<compile_context>
chip_gen: v6e
topology: v6e:2x2x1
jax: 0.10.0
libtpu: 0.0.40
codegen_flags: <defaults>
</compile_context>

<pallas_src>
import functools
import math

import jax
import jax.numpy as jnp
from jax.experimental import pallas as pl
from jax.experimental.pallas import tpu as pltpu

SELU_ALPHA = 1.6732632423543772
SELU_SCALE = 1.0507009873554805
BN_EPS = 1e-5
VMEM_LIMIT = 32 * 1024 * 1024      # explicit so v5e matches v6e/v7x scoped VMEM
TILE_BUDGET = 16 * 1024 * 1024     # bytes allowed for double-buffered M tiles


def _selu(x):
    return SELU_SCALE * jnp.where(x > 0, x, SELU_ALPHA * (jnp.exp(x) - 1.0))


def _pick_tile(m, cap):
    """Largest divisor of m that is <= cap and a multiple of 8 (or m itself)."""
    if m <= cap:
        return m
    t = min(cap, m)
    t -= t % 8
    while t >= 8:
        if m % t == 0:
            return t
        t -= 8
    return math.gcd(m, 8) or 1


def _conv_tile(m, k, n, in_bytes):
    """VMEM-aware M tile for the conv matmul (double-buffered in + out)."""
    row_bytes = k * in_bytes + n * 4
    cap = max(8, min(1024, (TILE_BUDGET // (2 * row_bytes)) // 8 * 8))
    return _pick_tile(m, cap)


# ----------------------------------------------------------------------------
# Pallas kernels
# ----------------------------------------------------------------------------
def _conv_stats_kernel(a_ref, w_ref, y_ref, ps_ref, pq_ref):
    # im2col matmul for one M-tile fused with the BatchNorm partial reductions.
    # K and Cout stay whole; the weight BlockSpec index is constant across the
    # M grid, so it is DMA'd once and held resident in VMEM.
    y = jnp.dot(a_ref[...], w_ref[...], preferred_element_type=jnp.float32)
    y_ref[...] = y
    ps_ref[...] = jnp.sum(y, axis=0)[None, None, :]
    pq_ref[...] = jnp.sum(y * y, axis=0)[None, None, :]


def _bn_selu_kernel(x_ref, scale_ref, shift_ref, o_ref):
    # BN folded to y*scale + shift (scale/shift carry mean/var/gamma/beta),
    # followed by SELU.  Operates on a lane-dense [M/f, f*C] view.
    o_ref[...] = _selu(x_ref[...] * scale_ref[...] + shift_ref[...])


def _head_kernel(x_ref, scale_ref, shift_ref, w_ref, b_ref, o_ref):
    # Layer-4 BN+SELU fused with the linear head + sigmoid.  The 1-output-
    # column matmul is done as multiply + reductions (VPU/XLU) instead of a
    # nearly-empty MXU op.
    act = _selu(x_ref[...] * scale_ref[...] + shift_ref[...])      # [B, HW, C]
    t = jnp.sum(act * w_ref[...][None, :, :], axis=2)              # [B, HW]
    z = jnp.sum(t, axis=1)[:, None] + b_ref[...]                   # [B, 1]
    o_ref[...] = jax.nn.sigmoid(z)


# ----------------------------------------------------------------------------
# pallas_call wrappers
# ----------------------------------------------------------------------------
def conv_matmul_stats(patches, w_mat, tm):
    M, K = patches.shape
    N = w_mat.shape[1]
    nt = M // tm
    y, ps, pq = pl.pallas_call(
        _conv_stats_kernel,
        out_shape=(jax.ShapeDtypeStruct((M, N), jnp.float32),
                   jax.ShapeDtypeStruct((nt, 1, N), jnp.float32),
                   jax.ShapeDtypeStruct((nt, 1, N), jnp.float32)),
        grid_spec=pltpu.PrefetchScalarGridSpec(
            num_scalar_prefetch=0,
            grid=(nt,),
            in_specs=[pl.BlockSpec((tm, K), lambda i: (i, 0)),
                      pl.BlockSpec((K, N), lambda i: (0, 0))],
            out_specs=(pl.BlockSpec((tm, N), lambda i: (i, 0)),
                       pl.BlockSpec((1, 1, N), lambda i: (i, 0, 0)),
                       pl.BlockSpec((1, 1, N), lambda i: (i, 0, 0))),
        ),
        compiler_params=pltpu.CompilerParams(
            dimension_semantics=("parallel",),
            vmem_limit_bytes=VMEM_LIMIT),
    )(patches, w_mat)
    return y, ps[:, 0, :], pq[:, 0, :]


def bn_selu(y, scale, shift):
    M, C = y.shape
    # Free contiguous row-merge so the last (lane) dim is 128 for C = 32/64:
    # unmasked vector stores, no extra HBM bytes.
    f = 128 // C if (C < 128 and 128 % C == 0 and M % (128 // C) == 0) else 1
    Mf, Cf = M // f, C * f
    x = y.reshape(Mf, Cf)
    sc = jnp.tile(scale, f)[None, :]
    sh = jnp.tile(shift, f)[None, :]
    tm = _pick_tile(Mf, 1024)
    out = pl.pallas_call(
        _bn_selu_kernel,
        out_shape=jax.ShapeDtypeStruct((Mf, Cf), jnp.float32),
        grid_spec=pltpu.PrefetchScalarGridSpec(
            num_scalar_prefetch=0,
            grid=(Mf // tm,),
            in_specs=[pl.BlockSpec((tm, Cf), lambda i: (i, 0)),
                      pl.BlockSpec((1, Cf), lambda i: (0, 0)),
                      pl.BlockSpec((1, Cf), lambda i: (0, 0))],
            out_specs=pl.BlockSpec((tm, Cf), lambda i: (i, 0)),
        ),
        compiler_params=pltpu.CompilerParams(
            dimension_semantics=("parallel",),
            vmem_limit_bytes=VMEM_LIMIT),
    )(x, sc, sh)
    return out.reshape(M, C)


def head_bn_selu_linear(y4, scale, shift, w_head, b_lin, B, hw, C):
    x = y4.reshape(B, hw, C)
    return pl.pallas_call(
        _head_kernel,
        out_shape=jax.ShapeDtypeStruct((B, 1), jnp.float32),
        grid_spec=pltpu.PrefetchScalarGridSpec(
            num_scalar_prefetch=0,
            grid=(1,),
            in_specs=[pl.BlockSpec((B, hw, C), lambda i: (0, 0, 0)),
                      pl.BlockSpec((1, 1, C), lambda i: (0, 0, 0)),
                      pl.BlockSpec((1, 1, C), lambda i: (0, 0, 0)),
                      pl.BlockSpec((hw, C), lambda i: (0, 0)),
                      pl.BlockSpec((1, 1), lambda i: (0, 0))],
            out_specs=pl.BlockSpec((B, 1), lambda i: (0, 0)),
        ),
        compiler_params=pltpu.CompilerParams(
            dimension_semantics=("arbitrary",),
            vmem_limit_bytes=VMEM_LIMIT),
    )(x, scale.reshape(1, 1, C), shift.reshape(1, 1, C), w_head,
      b_lin.reshape(1, 1))


# ----------------------------------------------------------------------------
# Glue: NHWC im2col (pure slicing/stack) and layer composition
# ----------------------------------------------------------------------------
def im2col_nhwc(x, k=4, s=2, p=1):
    # TODO(synk): the 16x patch expansion still goes through XLA/HBM; an
    # in-kernel gather from the padded NHWC activation would remove it.
    B, H, W, C = x.shape
    Ho = (H + 2 * p - k) // s + 1
    Wo = (W + 2 * p - k) // s + 1
    xp = jnp.pad(x, ((0, 0), (p, p), (p, p), (0, 0)))
    taps = [xp[:, di:di + s * Ho:s, dj:dj + s * Wo:s, :]
            for di in range(k) for dj in range(k)]
    patches = jnp.stack(taps, axis=3)            # [B, Ho, Wo, k*k, C]
    return patches.reshape(B * Ho * Wo, k * k * C), Ho, Wo


def conv_layer_stats(x_nhwc, w_conv, gamma, beta):
    """Conv (bias-free) + batch stats.  Returns y [M, Cout], folded BN
    scale/shift vectors, and the output spatial dims."""
    c_out, c_in, k, _ = w_conv.shape
    patches, Ho, Wo = im2col_nhwc(x_nhwc, k=k)
    M, K = patches.shape
    w_mat = jnp.transpose(w_conv, (2, 3, 1, 0)).reshape(K, c_out)
    in_bytes = 4
    if K >= 1024:                     # big-K layers: bf16 operands, f32 accum
        patches = patches.astype(jnp.bfloat16)
        w_mat = w_mat.astype(jnp.bfloat16)
        in_bytes = 2
    tm = _conv_tile(M, K, c_out, in_bytes)
    y, ps, pq = conv_matmul_stats(patches, w_mat, tm)
    mean = jnp.sum(ps, axis=0) / M
    var = jnp.maximum(jnp.sum(pq, axis=0) / M - mean * mean, 0.0)
    scale = gamma * jax.lax.rsqrt(var + BN_EPS)
    shift = beta - mean * scale
    return y, scale, shift, Ho, Wo


def discriminator_forward(x_nchw, params):
    B = x_nchw.shape[0]
    x = jnp.transpose(x_nchw, (0, 2, 3, 1))           # NCHW -> NHWC, once
    for i in (1, 2, 3):
        w = params[f"w{i}"]
        y, scale, shift, Ho, Wo = conv_layer_stats(
            x, w, params[f"gamma{i}"], params[f"beta{i}"])
        x = bn_selu(y, scale, shift).reshape(B, Ho, Wo, w.shape[0])
    # Layer 4: conv+stats, then BN+SELU fused with the linear head + sigmoid.
    w4 = params["w4"]
    y4, scale4, shift4, Ho, Wo = conv_layer_stats(
        x, w4, params["gamma4"], params["beta4"])
    C4, hw = w4.shape[0], Ho * Wo
    # Permute the linear weight once so the NHWC activation matches PyTorch's
    # (C, H, W) flatten order of .view(B, -1).
    w_head = jnp.transpose(params["w_lin"].reshape(C4, Ho, Wo),
                           (1, 2, 0)).reshape(hw, C4)
    out = head_bn_selu_linear(y4, scale4, shift4, w_head, params["b_lin"],
                              B, hw, C4)
    return out.reshape(-1)


# ----------------------------------------------------------------------------
# Deterministic parameter init (PyTorch shapes, synthetic values)
# ----------------------------------------------------------------------------
def init_params():
    key = jax.random.PRNGKey(42)
    k1, k2, k3, k4, k5 = jax.random.split(key, 5)
    params = {
        "w1": jax.random.normal(k1, (32, 3, 4, 4), jnp.float32) * 0.05,
        "w2": jax.random.normal(k2, (64, 32, 4, 4), jnp.float32) * 0.05,
        "w3": jax.random.normal(k3, (128, 64, 4, 4), jnp.float32) * 0.05,
        "w4": jax.random.normal(k4, (256, 128, 4, 4), jnp.float32) * 0.05,
        "w_lin": jax.random.normal(k5, (1, 4096), jnp.float32) * 0.02,
        "b_lin": jnp.zeros((1,), jnp.float32),
    }
    for i, c in enumerate([32, 64, 128, 256], start=1):
        params[f"gamma{i}"] = jnp.ones((c,), jnp.float32)   # BatchNorm2d defaults
        params[f"beta{i}"] = jnp.zeros((c,), jnp.float32)
    return params


# ----------------------------------------------------------------------------
# Pure-JAX reference (for a sanity check only)
# ----------------------------------------------------------------------------
def reference_forward(x, params):
    out = x
    for i in range(4):
        w = params[f"w{i+1}"]
        out = jax.lax.conv_general_dilated(
            out, w, window_strides=(2, 2), padding=((1, 1), (1, 1)),
            dimension_numbers=("NCHW", "OIHW", "NCHW"),
            precision=jax.lax.Precision.HIGHEST)
        mean = out.mean(axis=(0, 2, 3), keepdims=True)
        var = out.var(axis=(0, 2, 3), keepdims=True)
        xn = (out - mean) * jax.lax.rsqrt(var + BN_EPS)
        xn = xn * params[f"gamma{i+1}"].reshape(1, -1, 1, 1) \
             + params[f"beta{i+1}"].reshape(1, -1, 1, 1)
        out = SELU_SCALE * jnp.where(xn > 0, xn, SELU_ALPHA * (jnp.exp(xn) - 1.0))
    flat = out.reshape(x.shape[0], -1)
    y = flat @ params["w_lin"].T + params["b_lin"]
    return jax.nn.sigmoid(y).reshape(-1)


if __name__ == "__main__":
    # Input must be [B, 3, 64, 64] so the flattened features are 4096.
    B = 2
    x = jax.random.normal(jax.random.PRNGKey(0), (B, 3, 64, 64), jnp.float32)
    params = init_params()

    fwd = jax.jit(functools.partial(discriminator_forward, params=params))
    out = fwd(x)
    jax.block_until_ready(out)

    ref = reference_forward(x, params)
    assert out.shape == (B,)
    # bf16 matmul operands on the K>=1024 layers + default MXU precision vs the
    # HIGHEST-precision f32 reference -> slightly relaxed tolerance.
    assert jnp.allclose(out, ref, atol=2e-2, rtol=2e-2)

    print("KERNEL_OK")
</pallas_src>

<mosaic_0001>
module attributes {stable_mosaic.version = 11 : i64} {
  func.func @_conv_stats_kernel(%arg0: i32, %arg1: memref<1024x48xf32, #tpu.memory_space<vmem>>, %arg2: memref<48x32xf32, #tpu.memory_space<vmem>>, %arg3: memref<1024x32xf32, #tpu.memory_space<vmem>>, %arg4: memref<1x1x32xf32, #tpu.memory_space<vmem>>, %arg5: memref<1x1x32xf32, #tpu.memory_space<vmem>>) attributes {dimension_semantics = [#tpu.dimension_semantics<parallel>], iteration_bounds = array<i64: 2>, scalar_prefetch = 0 : i64, scratch_operands = 0 : i64, tpu.core_type = #tpu.core_type<tc>, window_params = [{transform_indices = @transform_0, window_bounds = array<i64: 1024, 48>}, {pipeline_mode = #tpu.pipeline_mode<synchronous>, transform_indices = @transform_1, window_bounds = array<i64: 48, 32>}, {transform_indices = @transform_2, window_bounds = array<i64: 1024, 32>}, {transform_indices = @transform_3, window_bounds = array<i64: 1, 1, 32>}, {transform_indices = @transform_4, window_bounds = array<i64: 1, 1, 32>}]} {
    %c0 = arith.constant 0 : index
    %c0_0 = arith.constant 0 : index
    %0 = vector.load %arg1[%c0, %c0_0] : memref<1024x48xf32, #tpu.memory_space<vmem>>, vector<1024x48xf32>
    %c0_1 = arith.constant 0 : index
    %c0_2 = arith.constant 0 : index
    %1 = vector.load %arg2[%c0_1, %c0_2] : memref<48x32xf32, #tpu.memory_space<vmem>>, vector<48x32xf32>
    %cst = arith.constant dense<0.000000e+00> : vector<1024x32xf32>
    %2 = tpu.matmul %0, %1, %cst {dimension_numbers = #tpu.dot_dimension_numbers<[1], [0], [0], [1], [0, 0, 1, 1], [], []>} : vector<1024x48xf32>, vector<48x32xf32>, vector<1024x32xf32> -> vector<1024x32xf32>
    %c0_3 = arith.constant 0 : index
    %c0_4 = arith.constant 0 : index
    %3 = vector.load %arg3[%c0_3, %c0_4] : memref<1024x32xf32, #tpu.memory_space<vmem>>, vector<1024x32xf32>
    tpu.vector_store %arg3[%c0_3, %c0_4], %2 {strides = array<i32>} : memref<1024x32xf32, #tpu.memory_space<vmem>>, vector<1024x32xf32>,
    %cst_5 = arith.constant dense<0.000000e+00> : vector<32xf32>
    %4 = vector.multi_reduction <add>, %2, %cst_5 [0] : vector<1024x32xf32> to vector<32xf32>
    %5 = vector.shape_cast %4 : vector<32xf32> to vector<1x1x32xf32>
    %c0_6 = arith.constant 0 : index
    %c0_7 = arith.constant 0 : index
    %c0_8 = arith.constant 0 : index
    %6 = vector.load %arg4[%c0_6, %c0_7, %c0_8] : memref<1x1x32xf32, #tpu.memory_space<vmem>>, vector<1x1x32xf32>
    tpu.vector_store %arg4[%c0_6, %c0_7, %c0_8], %5 {strides = array<i32>} : memref<1x1x32xf32, #tpu.memory_space<vmem>>, vector<1x1x32xf32>,
    %7 = arith.mulf %2, %2 : vector<1024x32xf32>
    %cst_9 = arith.constant dense<0.000000e+00> : vector<32xf32>
    %8 = vector.multi_reduction <add>, %7, %cst_9 [0] : vector<1024x32xf32> to vector<32xf32>
    %9 = vector.shape_cast %8 : vector<32xf32> to vector<1x1x32xf32>
    %c0_10 = arith.constant 0 : index
    %c0_11 = arith.constant 0 : index
    %c0_12 = arith.constant 0 : index
    %10 = vector.load %arg5[%c0_10, %c0_11, %c0_12] : memref<1x1x32xf32, #tpu.memory_space<vmem>>, vector<1x1x32xf32>
    tpu.vector_store %arg5[%c0_10, %c0_11, %c0_12], %9 {strides = array<i32>} : memref<1x1x32xf32, #tpu.memory_space<vmem>>, vector<1x1x32xf32>,
    return
  }
  func.func @transform_0(%arg0: i32) -> (i32, i32) {
    %c0_i32 = arith.constant 0 : i32
    %c0_i32_0 = arith.constant 0 : i32
    return %arg0, %c0_i32 : i32, i32
  }
  func.func @transform_1(%arg0: i32) -> (i32, i32) {
    %c0_i32 = arith.constant 0 : i32
    %c0_i32_0 = arith.constant 0 : i32
    %c0_i32_1 = arith.constant 0 : i32
    return %c0_i32, %c0_i32_0 : i32, i32
  }
  func.func @transform_2(%arg0: i32) -> (i32, i32) {
    %c0_i32 = arith.constant 0 : i32
    %c0_i32_0 = arith.constant 0 : i32
    return %arg0, %c0_i32 : i32, i32
  }
  func.func @transform_3(%arg0: i32) -> (i32, i32, i32) {
    %c0_i32 = arith.constant 0 : i32
    %c0_i32_0 = arith.constant 0 : i32
    %c0_i32_1 = arith.constant 0 : i32
    return %arg0, %c0_i32, %c0_i32_0 : i32, i32, i32
  }
  func.func @transform_4(%arg0: i32) -> (i32, i32, i32) {
    %c0_i32 = arith.constant 0 : i32
    %c0_i32_0 = arith.constant 0 : i32
    %c0_i32_1 = arith.constant 0 : i32
    return %arg0, %c0_i32, %c0_i32_0 : i32, i32, i32
  }
}

module attributes {stable_mosaic.version = 11 : i64} {
  func.func @_bn_selu_kernel(%arg0: i32, %arg1: memref<512x128xf32, #tpu.memory_space<vmem>>, %arg2: memref<1x128xf32, #tpu.memory_space<vmem>>, %arg3: memref<1x128xf32, #tpu.memory_space<vmem>>, %arg4: memref<512x128xf32, #tpu.memory_space<vmem>>) attributes {dimension_semantics = [#tpu.dimension_semantics<parallel>], iteration_bounds = array<i64: 1>, scalar_prefetch = 0 : i64, scratch_operands = 0 : i64, tpu.core_type = #tpu.core_type<tc>, window_params = [{transform_indices = @transform_0, window_bounds = array<i64: 512, 128>}, {pipeline_mode = #tpu.pipeline_mode<synchronous>, transform_indices = @transform_1, window_bounds = array<i64: 1, 128>}, {pipeline_mode = #tpu.pipeline_mode<synchronous>, transform_indices = @transform_2, window_bounds = array<i64: 1, 128>}, {transform_indices = @transform_3, window_bounds = array<i64: 512, 128>}]} {
    %c0 = arith.constant 0 : index
    %c0_0 = arith.constant 0 : index
    %0 = vector.load %arg1[%c0, %c0_0] : memref<512x128xf32, #tpu.memory_space<vmem>>, vector<512x128xf32>
    %c0_1 = arith.constant 0 : index
    %c0_2 = arith.constant 0 : index
    %1 = vector.load %arg2[%c0_1, %c0_2] : memref<1x128xf32, #tpu.memory_space<vmem>>, vector<1x128xf32>
    %2 = vector.broadcast %1 : vector<1x128xf32> to vector<512x128xf32>
    %3 = arith.mulf %0, %2 : vector<512x128xf32>
    %c0_3 = arith.constant 0 : index
    %c0_4 = arith.constant 0 : index
    %4 = vector.load %arg3[%c0_3, %c0_4] : memref<1x128xf32, #tpu.memory_space<vmem>>, vector<1x128xf32>
    %5 = vector.broadcast %4 : vector<1x128xf32> to vector<512x128xf32>
    %6 = arith.addf %3, %5 : vector<512x128xf32>
    %cst = arith.constant 0.000000e+00 : f32
    %7 = vector.broadcast %cst : f32 to vector<512x128xf32>
    %8 = arith.cmpf ogt, %6, %7 : vector<512x128xf32>
    %9 = math.exp %6 : vector<512x128xf32>
    %cst_5 = arith.constant 1.000000e+00 : f32
    %10 = vector.broadcast %cst_5 : f32 to vector<512x128xf32>
    %11 = arith.subf %9, %10 : vector<512x128xf32>
    %cst_6 = arith.constant 1.67326319 : f32
    %12 = vector.broadcast %cst_6 : f32 to vector<512x128xf32>
    %13 = arith.mulf %12, %11 : vector<512x128xf32>
    %14 = arith.select %8, %6, %13 : vector<512x128xi1>, vector<512x128xf32>
    %cst_7 = arith.constant 1.05070102 : f32
    %15 = vector.broadcast %cst_7 : f32 to vector<512x128xf32>
    %16 = arith.mulf %15, %14 : vector<512x128xf32>
    %c0_8 = arith.constant 0 : index
    %c0_9 = arith.constant 0 : index
    %17 = vector.load %arg4[%c0_8, %c0_9] : memref<512x128xf32, #tpu.memory_space<vmem>>, vector<512x128xf32>
    tpu.vector_store %arg4[%c0_8, %c0_9], %16 {strides = array<i32>} : memref<512x128xf32, #tpu.memory_space<vmem>>, vector<512x128xf32>,
    return
  }
  func.func @transform_0(%arg0: i32) -> (i32, i32) {
    %c0_i32 = arith.constant 0 : i32
    %c0_i32_0 = arith.constant 0 : i32
    return %arg0, %c0_i32 : i32, i32
  }
  func.func @transform_1(%arg0: i32) -> (i32, i32) {
    %c0_i32 = arith.constant 0 : i32
    %c0_i32_0 = arith.constant 0 : i32
    %c0_i32_1 = arith.constant 0 : i32
    return %c0_i32, %c0_i32_0 : i32, i32
  }
  func.func @transform_2(%arg0: i32) -> (i32, i32) {
    %c0_i32 = arith.constant 0 : i32
    %c0_i32_0 = arith.constant 0 : i32
    %c0_i32_1 = arith.constant 0 : i32
    return %c0_i32, %c0_i32_0 : i32, i32
  }
  func.func @transform_3(%arg0: i32) -> (i32, i32) {
    %c0_i32 = arith.constant 0 : i32
    %c0_i32_0 = arith.constant 0 : i32
    return %arg0, %c0_i32 : i32, i32
  }
}

module attributes {stable_mosaic.version = 11 : i64} {
  func.func @_conv_stats_kernel(%arg0: i32, %arg1: memref<512x512xf32, #tpu.memory_space<vmem>>, %arg2: memref<512x64xf32, #tpu.memory_space<vmem>>, %arg3: memref<512x64xf32, #tpu.memory_space<vmem>>, %arg4: memref<1x1x64xf32, #tpu.memory_space<vmem>>, %arg5: memref<1x1x64xf32, #tpu.memory_space<vmem>>) attributes {dimension_semantics = [#tpu.dimension_semantics<parallel>], iteration_bounds = array<i64: 1>, scalar_prefetch = 0 : i64, scratch_operands = 0 : i64, tpu.core_type = #tpu.core_type<tc>, window_params = [{transform_indices = @transform_0, window_bounds = array<i64: 512, 512>}, {pipeline_mode = #tpu.pipeline_mode<synchronous>, transform_indices = @transform_1, window_bounds = array<i64: 512, 64>}, {transform_indices = @transform_2, window_bounds = array<i64: 512, 64>}, {transform_indices = @transform_3, window_bounds = array<i64: 1, 1, 64>}, {transform_indices = @transform_4, window_bounds = array<i64: 1, 1, 64>}]} {
    %c0 = arith.constant 0 : index
    %c0_0 = arith.constant 0 : index
    %0 = vector.load %arg1[%c0, %c0_0] : memref<512x512xf32, #tpu.memory_space<vmem>>, vector<512x512xf32>
    %c0_1 = arith.constant 0 : index
    %c0_2 = arith.constant 0 : index
    %1 = vector.load %arg2[%c0_1, %c0_2] : memref<512x64xf32, #tpu.memory_space<vmem>>, vector<512x64xf32>
    %cst = arith.constant dense<0.000000e+00> : vector<512x64xf32>
    %2 = tpu.matmul %0, %1, %cst {dimension_numbers = #tpu.dot_dimension_numbers<[1], [0], [0], [1], [0, 0, 1, 1], [], []>} : vector<512x512xf32>, vector<512x64xf32>, vector<512x64xf32> -> vector<512x64xf32>
    %c0_3 = arith.constant 0 : index
    %c0_4 = arith.constant 0 : index
    %3 = vector.load %arg3[%c0_3, %c0_4] : memref<512x64xf32, #tpu.memory_space<vmem>>, vector<512x64xf32>
    tpu.vector_store %arg3[%c0_3, %c0_4], %2 {strides = array<i32>} : memref<512x64xf32, #tpu.memory_space<vmem>>, vector<512x64xf32>,
    %cst_5 = arith.constant dense<0.000000e+00> : vector<64xf32>
    %4 = vector.multi_reduction <add>, %2, %cst_5 [0] : vector<512x64xf32> to vector<64xf32>
    %5 = vector.shape_cast %4 : vector<64xf32> to vector<1x1x64xf32>
    %c0_6 = arith.constant 0 : index
    %c0_7 = arith.constant 0 : index
    %c0_8 = arith.constant 0 : index
    %6 = vector.load %arg4[%c0_6, %c0_7, %c0_8] : memref<1x1x64xf32, #tpu.memory_space<vmem>>, vector<1x1x64xf32>
    tpu.vector_store %arg4[%c0_6, %c0_7, %c0_8], %5 {strides = array<i32>} : memref<1x1x64xf32, #tpu.memory_space<vmem>>, vector<1x1x64xf32>,
    %7 = arith.mulf %2, %2 : vector<512x64xf32>
    %cst_9 = arith.constant dense<0.000000e+00> : vector<64xf32>
    %8 = vector.multi_reduction <add>, %7, %cst_9 [0] : vector<512x64xf32> to vector<64xf32>
    %9 = vector.shape_cast %8 : vector<64xf32> to vector<1x1x64xf32>
    %c0_10 = arith.constant 0 : index
    %c0_11 = arith.constant 0 : index
    %c0_12 = arith.constant 0 : index
    %10 = vector.load %arg5[%c0_10, %c0_11, %c0_12] : memref<1x1x64xf32, #tpu.memory_space<vmem>>, vector<1x1x64xf32>
    tpu.vector_store %arg5[%c0_10, %c0_11, %c0_12], %9 {strides = array<i32>} : memref<1x1x64xf32, #tpu.memory_space<vmem>>, vector<1x1x64xf32>,
    return
  }
  func.func @transform_0(%arg0: i32) -> (i32, i32) {
    %c0_i32 = arith.constant 0 : i32
    %c0_i32_0 = arith.constant 0 : i32
    return %arg0, %c0_i32 : i32, i32
  }
  func.func @transform_1(%arg0: i32) -> (i32, i32) {
    %c0_i32 = arith.constant 0 : i32
    %c0_i32_0 = arith.constant 0 : i32
    %c0_i32_1 = arith.constant 0 : i32
    return %c0_i32, %c0_i32_0 : i32, i32
  }
  func.func @transform_2(%arg0: i32) -> (i32, i32) {
    %c0_i32 = arith.constant 0 : i32
    %c0_i32_0 = arith.constant 0 : i32
    return %arg0, %c0_i32 : i32, i32
  }
  func.func @transform_3(%arg0: i32) -> (i32, i32, i32) {
    %c0_i32 = arith.constant 0 : i32
    %c0_i32_0 = arith.constant 0 : i32
    %c0_i32_1 = arith.constant 0 : i32
    return %arg0, %c0_i32, %c0_i32_0 : i32, i32, i32
  }
  func.func @transform_4(%arg0: i32) -> (i32, i32, i32) {
    %c0_i32 = arith.constant 0 : i32
    %c0_i32_0 = arith.constant 0 : i32
    %c0_i32_1 = arith.constant 0 : i32
    return %arg0, %c0_i32, %c0_i32_0 : i32, i32, i32
  }
}

module attributes {stable_mosaic.version = 11 : i64} {
  func.func @_bn_selu_kernel(%arg0: i32, %arg1: memref<256x128xf32, #tpu.memory_space<vmem>>, %arg2: memref<1x128xf32, #tpu.memory_space<vmem>>, %arg3: memref<1x128xf32, #tpu.memory_space<vmem>>, %arg4: memref<256x128xf32, #tpu.memory_space<vmem>>) attributes {dimension_semantics = [#tpu.dimension_semantics<parallel>], iteration_bounds = array<i64: 1>, scalar_prefetch = 0 : i64, scratch_operands = 0 : i64, tpu.core_type = #tpu.core_type<tc>, window_params = [{transform_indices = @transform_0, window_bounds = array<i64: 256, 128>}, {pipeline_mode = #tpu.pipeline_mode<synchronous>, transform_indices = @transform_1, window_bounds = array<i64: 1, 128>}, {pipeline_mode = #tpu.pipeline_mode<synchronous>, transform_indices = @transform_2, window_bounds = array<i64: 1, 128>}, {transform_indices = @transform_3, window_bounds = array<i64: 256, 128>}]} {
    %c0 = arith.constant 0 : index
    %c0_0 = arith.constant 0 : index
    %0 = vector.load %arg1[%c0, %c0_0] : memref<256x128xf32, #tpu.memory_space<vmem>>, vector<256x128xf32>
    %c0_1 = arith.constant 0 : index
    %c0_2 = arith.constant 0 : index
    %1 = vector.load %arg2[%c0_1, %c0_2] : memref<1x128xf32, #tpu.memory_space<vmem>>, vector<1x128xf32>
    %2 = vector.broadcast %1 : vector<1x128xf32> to vector<256x128xf32>
    %3 = arith.mulf %0, %2 : vector<256x128xf32>
    %c0_3 = arith.constant 0 : index
    %c0_4 = arith.constant 0 : index
    %4 = vector.load %arg3[%c0_3, %c0_4] : memref<1x128xf32, #tpu.memory_space<vmem>>, vector<1x128xf32>
    %5 = vector.broadcast %4 : vector<1x128xf32> to vector<256x128xf32>
    %6 = arith.addf %3, %5 : vector<256x128xf32>
    %cst = arith.constant 0.000000e+00 : f32
    %7 = vector.broadcast %cst : f32 to vector<256x128xf32>
    %8 = arith.cmpf ogt, %6, %7 : vector<256x128xf32>
    %9 = math.exp %6 : vector<256x128xf32>
    %cst_5 = arith.constant 1.000000e+00 : f32
    %10 = vector.broadcast %cst_5 : f32 to vector<256x128xf32>
    %11 = arith.subf %9, %10 : vector<256x128xf32>
    %cst_6 = arith.constant 1.67326319 : f32
    %12 = vector.broadcast %cst_6 : f32 to vector<256x128xf32>
    %13 = arith.mulf %12, %11 : vector<256x128xf32>
    %14 = arith.select %8, %6, %13 : vector<256x128xi1>, vector<256x128xf32>
    %cst_7 = arith.constant 1.05070102 : f32
    %15 = vector.broadcast %cst_7 : f32 to vector<256x128xf32>
    %16 = arith.mulf %15, %14 : vector<256x128xf32>
    %c0_8 = arith.constant 0 : index
    %c0_9 = arith.constant 0 : index
    %17 = vector.load %arg4[%c0_8, %c0_9] : memref<256x128xf32, #tpu.memory_space<vmem>>, vector<256x128xf32>
    tpu.vector_store %arg4[%c0_8, %c0_9], %16 {strides = array<i32>} : memref<256x128xf32, #tpu.memory_space<vmem>>, vector<256x128xf32>,
    return
  }
  func.func @transform_0(%arg0: i32) -> (i32, i32) {
    %c0_i32 = arith.constant 0 : i32
    %c0_i32_0 = arith.constant 0 : i32
    return %arg0, %c0_i32 : i32, i32
  }
  func.func @transform_1(%arg0: i32) -> (i32, i32) {
    %c0_i32 = arith.constant 0 : i32
    %c0_i32_0 = arith.constant 0 : i32
    %c0_i32_1 = arith.constant 0 : i32
    return %c0_i32, %c0_i32_0 : i32, i32
  }
  func.func @transform_2(%arg0: i32) -> (i32, i32) {
    %c0_i32 = arith.constant 0 : i32
    %c0_i32_0 = arith.constant 0 : i32
    %c0_i32_1 = arith.constant 0 : i32
    return %c0_i32, %c0_i32_0 : i32, i32
  }
  func.func @transform_3(%arg0: i32) -> (i32, i32) {
    %c0_i32 = arith.constant 0 : i32
    %c0_i32_0 = arith.constant 0 : i32
    return %arg0, %c0_i32 : i32, i32
  }
}

module attributes {stable_mosaic.version = 11 : i64} {
  func.func @_conv_stats_kernel(%arg0: i32, %arg1: memref<128x1024xbf16, #tpu.memory_space<vmem>>, %arg2: memref<1024x128xbf16, #tpu.memory_space<vmem>>, %arg3: memref<128x128xf32, #tpu.memory_space<vmem>>, %arg4: memref<1x1x128xf32, #tpu.memory_space<vmem>>, %arg5: memref<1x1x128xf32, #tpu.memory_space<vmem>>) attributes {dimension_semantics = [#tpu.dimension_semantics<parallel>], iteration_bounds = array<i64: 1>, scalar_prefetch = 0 : i64, scratch_operands = 0 : i64, tpu.core_type = #tpu.core_type<tc>, window_params = [{transform_indices = @transform_0, window_bounds = array<i64: 128, 1024>}, {pipeline_mode = #tpu.pipeline_mode<synchronous>, transform_indices = @transform_1, window_bounds = array<i64: 1024, 128>}, {transform_indices = @transform_2, window_bounds = array<i64: 128, 128>}, {transform_indices = @transform_3, window_bounds = array<i64: 1, 1, 128>}, {transform_indices = @transform_4, window_bounds = array<i64: 1, 1, 128>}]} {
    %c0 = arith.constant 0 : index
    %c0_0 = arith.constant 0 : index
    %0 = vector.load %arg1[%c0, %c0_0] : memref<128x1024xbf16, #tpu.memory_space<vmem>>, vector<128x1024xbf16>
    %c0_1 = arith.constant 0 : index
    %c0_2 = arith.constant 0 : index
    %1 = vector.load %arg2[%c0_1, %c0_2] : memref<1024x128xbf16, #tpu.memory_space<vmem>>, vector<1024x128xbf16>
    %cst = arith.constant dense<0.000000e+00> : vector<128x128xf32>
    %2 = tpu.matmul %0, %1, %cst {dimension_numbers = #tpu.dot_dimension_numbers<[1], [0], [0], [1], [0, 0, 1, 1], [], []>} : vector<128x1024xbf16>, vector<1024x128xbf16>, vector<128x128xf32> -> vector<128x128xf32>
    %c0_3 = arith.constant 0 : index
    %c0_4 = arith.constant 0 : index
    %3 = vector.load %arg3[%c0_3, %c0_4] : memref<128x128xf32, #tpu.memory_space<vmem>>, vector<128x128xf32>
    tpu.vector_store %arg3[%c0_3, %c0_4], %2 {strides = array<i32>} : memref<128x128xf32, #tpu.memory_space<vmem>>, vector<128x128xf32>,
    %cst_5 = arith.constant dense<0.000000e+00> : vector<128xf32>
    %4 = vector.multi_reduction <add>, %2, %cst_5 [0] : vector<128x128xf32> to vector<128xf32>
    %5 = vector.shape_cast %4 : vector<128xf32> to vector<1x1x128xf32>
    %c0_6 = arith.constant 0 : index
    %c0_7 = arith.constant 0 : index
    %c0_8 = arith.constant 0 : index
    %6 = vector.load %arg4[%c0_6, %c0_7, %c0_8] : memref<1x1x128xf32, #tpu.memory_space<vmem>>, vector<1x1x128xf32>
    tpu.vector_store %arg4[%c0_6, %c0_7, %c0_8], %5 {strides = array<i32>} : memref<1x1x128xf32, #tpu.memory_space<vmem>>, vector<1x1x128xf32>,
    %7 = arith.mulf %2, %2 : vector<128x128xf32>
    %cst_9 = arith.constant dense<0.000000e+00> : vector<128xf32>
    %8 = vector.multi_reduction <add>, %7, %cst_9 [0] : vector<128x128xf32> to vector<128xf32>
    %9 = vector.shape_cast %8 : vector<128xf32> to vector<1x1x128xf32>
    %c0_10 = arith.constant 0 : index
    %c0_11 = arith.constant 0 : index
    %c0_12 = arith.constant 0 : index
    %10 = vector.load %arg5[%c0_10, %c0_11, %c0_12] : memref<1x1x128xf32, #tpu.memory_space<vmem>>, vector<1x1x128xf32>
    tpu.vector_store %arg5[%c0_10, %c0_11, %c0_12], %9 {strides = array<i32>} : memref<1x1x128xf32, #tpu.memory_space<vmem>>, vector<1x1x128xf32>,
    return
  }
  func.func @transform_0(%arg0: i32) -> (i32, i32) {
    %c0_i32 = arith.constant 0 : i32
    %c0_i32_0 = arith.constant 0 : i32
    return %arg0, %c0_i32 : i32, i32
  }
  func.func @transform_1(%arg0: i32) -> (i32, i32) {
    %c0_i32 = arith.constant 0 : i32
    %c0_i32_0 = arith.constant 0 : i32
    %c0_i32_1 = arith.constant 0 : i32
    return %c0_i32, %c0_i32_0 : i32, i32
  }
  func.func @transform_2(%arg0: i32) -> (i32, i32) {
    %c0_i32 = arith.constant 0 : i32
    %c0_i32_0 = arith.constant 0 : i32
    return %arg0, %c0_i32 : i32, i32
  }
  func.func @transform_3(%arg0: i32) -> (i32, i32, i32) {
    %c0_i32 = arith.constant 0 : i32
    %c0_i32_0 = arith.constant 0 : i32
    %c0_i32_1 = arith.constant 0 : i32
    return %arg0, %c0_i32, %c0_i32_0 : i32, i32, i32
  }
  func.func @transform_4(%arg0: i32) -> (i32, i32, i32) {
    %c0_i32 = arith.constant 0 : i32
    %c0_i32_0 = arith.constant 0 : i32
    %c0_i32_1 = arith.constant 0 : i32
    return %arg0, %c0_i32, %c0_i32_0 : i32, i32, i32
  }
}

module attributes {stable_mosaic.version = 11 : i64} {
  func.func @_bn_selu_kernel(%arg0: i32, %arg1: memref<128x128xf32, #tpu.memory_space<vmem>>, %arg2: memref<1x128xf32, #tpu.memory_space<vmem>>, %arg3: memref<1x128xf32, #tpu.memory_space<vmem>>, %arg4: memref<128x128xf32, #tpu.memory_space<vmem>>) attributes {dimension_semantics = [#tpu.dimension_semantics<parallel>], iteration_bounds = array<i64: 1>, scalar_prefetch = 0 : i64, scratch_operands = 0 : i64, tpu.core_type = #tpu.core_type<tc>, window_params = [{transform_indices = @transform_0, window_bounds = array<i64: 128, 128>}, {pipeline_mode = #tpu.pipeline_mode<synchronous>, transform_indices = @transform_1, window_bounds = array<i64: 1, 128>}, {pipeline_mode = #tpu.pipeline_mode<synchronous>, transform_indices = @transform_2, window_bounds = array<i64: 1, 128>}, {transform_indices = @transform_3, window_bounds = array<i64: 128, 128>}]} {
    %c0 = arith.constant 0 : index
    %c0_0 = arith.constant 0 : index
    %0 = vector.load %arg1[%c0, %c0_0] : memref<128x128xf32, #tpu.memory_space<vmem>>, vector<128x128xf32>
    %c0_1 = arith.constant 0 : index
    %c0_2 = arith.constant 0 : index
    %1 = vector.load %arg2[%c0_1, %c0_2] : memref<1x128xf32, #tpu.memory_space<vmem>>, vector<1x128xf32>
    %2 = vector.broadcast %1 : vector<1x128xf32> to vector<128x128xf32>
    %3 = arith.mulf %0, %2 : vector<128x128xf32>
    %c0_3 = arith.constant 0 : index
    %c0_4 = arith.constant 0 : index
    %4 = vector.load %arg3[%c0_3, %c0_4] : memref<1x128xf32, #tpu.memory_space<vmem>>, vector<1x128xf32>
    %5 = vector.broadcast %4 : vector<1x128xf32> to vector<128x128xf32>
    %6 = arith.addf %3, %5 : vector<128x128xf32>
    %cst = arith.constant 0.000000e+00 : f32
    %7 = vector.broadcast %cst : f32 to vector<128x128xf32>
    %8 = arith.cmpf ogt, %6, %7 : vector<128x128xf32>
    %9 = math.exp %6 : vector<128x128xf32>
    %cst_5 = arith.constant 1.000000e+00 : f32
    %10 = vector.broadcast %cst_5 : f32 to vector<128x128xf32>
    %11 = arith.subf %9, %10 : vector<128x128xf32>
    %cst_6 = arith.constant 1.67326319 : f32
    %12 = vector.broadcast %cst_6 : f32 to vector<128x128xf32>
    %13 = arith.mulf %12, %11 : vector<128x128xf32>
    %14 = arith.select %8, %6, %13 : vector<128x128xi1>, vector<128x128xf32>
    %cst_7 = arith.constant 1.05070102 : f32
    %15 = vector.broadcast %cst_7 : f32 to vector<128x128xf32>
    %16 = arith.mulf %15, %14 : vector<128x128xf32>
    %c0_8 = arith.constant 0 : index
    %c0_9 = arith.constant 0 : index
    %17 = vector.load %arg4[%c0_8, %c0_9] : memref<128x128xf32, #tpu.memory_space<vmem>>, vector<128x128xf32>
    tpu.vector_store %arg4[%c0_8, %c0_9], %16 {strides = array<i32>} : memref<128x128xf32, #tpu.memory_space<vmem>>, vector<128x128xf32>,
    return
  }
  func.func @transform_0(%arg0: i32) -> (i32, i32) {
    %c0_i32 = arith.constant 0 : i32
    %c0_i32_0 = arith.constant 0 : i32
    return %arg0, %c0_i32 : i32, i32
  }
  func.func @transform_1(%arg0: i32) -> (i32, i32) {
    %c0_i32 = arith.constant 0 : i32
    %c0_i32_0 = arith.constant 0 : i32
    %c0_i32_1 = arith.constant 0 : i32
    return %c0_i32, %c0_i32_0 : i32, i32
  }
  func.func @transform_2(%arg0: i32) -> (i32, i32) {
    %c0_i32 = arith.constant 0 : i32
    %c0_i32_0 = arith.constant 0 : i32
    %c0_i32_1 = arith.constant 0 : i32
    return %c0_i32, %c0_i32_0 : i32, i32
  }
  func.func @transform_3(%arg0: i32) -> (i32, i32) {
    %c0_i32 = arith.constant 0 : i32
    %c0_i32_0 = arith.constant 0 : i32
    return %arg0, %c0_i32 : i32, i32
  }
}

module attributes {stable_mosaic.version = 11 : i64} {
  func.func @_conv_stats_kernel(%arg0: i32, %arg1: memref<32x2048xbf16, #tpu.memory_space<vmem>>, %arg2: memref<2048x256xbf16, #tpu.memory_space<vmem>>, %arg3: memref<32x256xf32, #tpu.memory_space<vmem>>, %arg4: memref<1x1x256xf32, #tpu.memory_space<vmem>>, %arg5: memref<1x1x256xf32, #tpu.memory_space<vmem>>) attributes {dimension_semantics = [#tpu.dimension_semantics<parallel>], iteration_bounds = array<i64: 1>, scalar_prefetch = 0 : i64, scratch_operands = 0 : i64, tpu.core_type = #tpu.core_type<tc>, window_params = [{transform_indices = @transform_0, window_bounds = array<i64: 32, 2048>}, {pipeline_mode = #tpu.pipeline_mode<synchronous>, transform_indices = @transform_1, window_bounds = array<i64: 2048, 256>}, {transform_indices = @transform_2, window_bounds = array<i64: 32, 256>}, {transform_indices = @transform_3, window_bounds = array<i64: 1, 1, 256>}, {transform_indices = @transform_4, window_bounds = array<i64: 1, 1, 256>}]} {
    %c0 = arith.constant 0 : index
    %c0_0 = arith.constant 0 : index
    %0 = vector.load %arg1[%c0, %c0_0] : memref<32x2048xbf16, #tpu.memory_space<vmem>>, vector<32x2048xbf16>
    %c0_1 = arith.constant 0 : index
    %c0_2 = arith.constant 0 : index
    %1 = vector.load %arg2[%c0_1, %c0_2] : memref<2048x256xbf16, #tpu.memory_space<vmem>>, vector<2048x256xbf16>
    %cst = arith.constant dense<0.000000e+00> : vector<32x256xf32>
    %2 = tpu.matmul %0, %1, %cst {dimension_numbers = #tpu.dot_dimension_numbers<[1], [0], [0], [1], [0, 0, 1, 1], [], []>} : vector<32x2048xbf16>, vector<2048x256xbf16>, vector<32x256xf32> -> vector<32x256xf32>
    %c0_3 = arith.constant 0 : index
    %c0_4 = arith.constant 0 : index
    %3 = vector.load %arg3[%c0_3, %c0_4] : memref<32x256xf32, #tpu.memory_space<vmem>>, vector<32x256xf32>
    tpu.vector_store %arg3[%c0_3, %c0_4], %2 {strides = array<i32>} : memref<32x256xf32, #tpu.memory_space<vmem>>, vector<32x256xf32>,
    %cst_5 = arith.constant dense<0.000000e+00> : vector<256xf32>
    %4 = vector.multi_reduction <add>, %2, %cst_5 [0] : vector<32x256xf32> to vector<256xf32>
    %5 = vector.shape_cast %4 : vector<256xf32> to vector<1x1x256xf32>
    %c0_6 = arith.constant 0 : index
    %c0_7 = arith.constant 0 : index
    %c0_8 = arith.constant 0 : index
    %6 = vector.load %arg4[%c0_6, %c0_7, %c0_8] : memref<1x1x256xf32, #tpu.memory_space<vmem>>, vector<1x1x256xf32>
    tpu.vector_store %arg4[%c0_6, %c0_7, %c0_8], %5 {strides = array<i32>} : memref<1x1x256xf32, #tpu.memory_space<vmem>>, vector<1x1x256xf32>,
    %7 = arith.mulf %2, %2 : vector<32x256xf32>
    %cst_9 = arith.constant dense<0.000000e+00> : vector<256xf32>
    %8 = vector.multi_reduction <add>, %7, %cst_9 [0] : vector<32x256xf32> to vector<256xf32>
    %9 = vector.shape_cast %8 : vector<256xf32> to vector<1x1x256xf32>
    %c0_10 = arith.constant 0 : index
    %c0_11 = arith.constant 0 : index
    %c0_12 = arith.constant 0 : index
    %10 = vector.load %arg5[%c0_10, %c0_11, %c0_12] : memref<1x1x256xf32, #tpu.memory_space<vmem>>, vector<1x1x256xf32>
    tpu.vector_store %arg5[%c0_10, %c0_11, %c0_12], %9 {strides = array<i32>} : memref<1x1x256xf32, #tpu.memory_space<vmem>>, vector<1x1x256xf32>,
    return
  }
  func.func @transform_0(%arg0: i32) -> (i32, i32) {
    %c0_i32 = arith.constant 0 : i32
    %c0_i32_0 = arith.constant 0 : i32
    return %arg0, %c0_i32 : i32, i32
  }
  func.func @transform_1(%arg0: i32) -> (i32, i32) {
    %c0_i32 = arith.constant 0 : i32
    %c0_i32_0 = arith.constant 0 : i32
    %c0_i32_1 = arith.constant 0 : i32
    return %c0_i32, %c0_i32_0 : i32, i32
  }
  func.func @transform_2(%arg0: i32) -> (i32, i32) {
    %c0_i32 = arith.constant 0 : i32
    %c0_i32_0 = arith.constant 0 : i32
    return %arg0, %c0_i32 : i32, i32
  }
  func.func @transform_3(%arg0: i32) -> (i32, i32, i32) {
    %c0_i32 = arith.constant 0 : i32
    %c0_i32_0 = arith.constant 0 : i32
    %c0_i32_1 = arith.constant 0 : i32
    return %arg0, %c0_i32, %c0_i32_0 : i32, i32, i32
  }
  func.func @transform_4(%arg0: i32) -> (i32, i32, i32) {
    %c0_i32 = arith.constant 0 : i32
    %c0_i32_0 = arith.constant 0 : i32
    %c0_i32_1 = arith.constant 0 : i32
    return %arg0, %c0_i32, %c0_i32_0 : i32, i32, i32
  }
}

module attributes {stable_mosaic.version = 11 : i64} {
  func.func @_head_kernel(%arg0: i32, %arg1: memref<2x16x256xf32, #tpu.memory_space<vmem>>, %arg2: memref<1x1x256xf32, #tpu.memory_space<vmem>>, %arg3: memref<1x1x256xf32, #tpu.memory_space<vmem>>, %arg4: memref<16x256xf32, #tpu.memory_space<vmem>>, %arg5: memref<1x1xf32, #tpu.memory_space<vmem>>, %arg6: memref<2x1xf32, #tpu.memory_space<vmem>>) attributes {dimension_semantics = [#tpu.dimension_semantics<arbitrary>], iteration_bounds = array<i64: 1>, scalar_prefetch = 0 : i64, scratch_operands = 0 : i64, tpu.core_type = #tpu.core_type<tc>, window_params = [{pipeline_mode = #tpu.pipeline_mode<synchronous>, transform_indices = @transform_0, window_bounds = array<i64: 2, 16, 256>}, {pipeline_mode = #tpu.pipeline_mode<synchronous>, transform_indices = @transform_1, window_bounds = array<i64: 1, 1, 256>}, {pipeline_mode = #tpu.pipeline_mode<synchronous>, transform_indices = @transform_2, window_bounds = array<i64: 1, 1, 256>}, {pipeline_mode = #tpu.pipeline_mode<synchronous>, transform_indices = @transform_3, window_bounds = array<i64: 16, 256>}, {pipeline_mode = #tpu.pipeline_mode<synchronous>, transform_indices = @transform_4, window_bounds = array<i64: 1, 1>}, {pipeline_mode = #tpu.pipeline_mode<synchronous>, transform_indices = @transform_5, window_bounds = array<i64: 2, 1>}]} {
    %c0 = arith.constant 0 : index
    %c0_0 = arith.constant 0 : index
    %c0_1 = arith.constant 0 : index
    %0 = vector.load %arg1[%c0, %c0_0, %c0_1] : memref<2x16x256xf32, #tpu.memory_space<vmem>>, vector<2x16x256xf32>
    %c0_2 = arith.constant 0 : index
    %c0_3 = arith.constant 0 : index
    %c0_4 = arith.constant 0 : index
    %1 = vector.load %arg2[%c0_2, %c0_3, %c0_4] : memref<1x1x256xf32, #tpu.memory_space<vmem>>, vector<1x1x256xf32>
    %2 = vector.broadcast %1 : vector<1x1x256xf32> to vector<2x16x256xf32>
    %3 = arith.mulf %0, %2 : vector<2x16x256xf32>
    %c0_5 = arith.constant 0 : index
    %c0_6 = arith.constant 0 : index
    %c0_7 = arith.constant 0 : index
    %4 = vector.load %arg3[%c0_5, %c0_6, %c0_7] : memref<1x1x256xf32, #tpu.memory_space<vmem>>, vector<1x1x256xf32>
    %5 = vector.broadcast %4 : vector<1x1x256xf32> to vector<2x16x256xf32>
    %6 = arith.addf %3, %5 : vector<2x16x256xf32>
    %cst = arith.constant 0.000000e+00 : f32
    %7 = vector.broadcast %cst : f32 to vector<2x16x256xf32>
    %8 = arith.cmpf ogt, %6, %7 : vector<2x16x256xf32>
    %9 = math.exp %6 : vector<2x16x256xf32>
    %cst_8 = arith.constant 1.000000e+00 : f32
    %10 = vector.broadcast %cst_8 : f32 to vector<2x16x256xf32>
    %11 = arith.subf %9, %10 : vector<2x16x256xf32>
    %cst_9 = arith.constant 1.67326319 : f32
    %12 = vector.broadcast %cst_9 : f32 to vector<2x16x256xf32>
    %13 = arith.mulf %12, %11 : vector<2x16x256xf32>
    %14 = arith.select %8, %6, %13 : vector<2x16x256xi1>, vector<2x16x256xf32>
    %cst_10 = arith.constant 1.05070102 : f32
    %15 = vector.broadcast %cst_10 : f32 to vector<2x16x256xf32>
    %16 = arith.mulf %15, %14 : vector<2x16x256xf32>
    %c0_11 = arith.constant 0 : index
    %c0_12 = arith.constant 0 : index
    %17 = vector.load %arg4[%c0_11, %c0_12] : memref<16x256xf32, #tpu.memory_space<vmem>>, vector<16x256xf32>
    %18 = vector.shape_cast %17 : vector<16x256xf32> to vector<1x16x256xf32>
    %19 = vector.broadcast %18 : vector<1x16x256xf32> to vector<2x16x256xf32>
    %20 = arith.mulf %16, %19 : vector<2x16x256xf32>
    %cst_13 = arith.constant dense<0.000000e+00> : vector<2x16xf32>
    %21 = vector.multi_reduction <add>, %20, %cst_13 [2] : vector<2x16x256xf32> to vector<2x16xf32>
    %cst_14 = arith.constant dense<0.000000e+00> : vector<2xf32>
    %22 = vector.multi_reduction <add>, %21, %cst_14 [1] : vector<2x16xf32> to vector<2xf32>
    %23 = vector.shape_cast %22 : vector<2xf32> to vector<2x1xf32>
    %c0_15 = arith.constant 0 : index
    %c0_16 = arith.constant 0 : index
    %24 = vector.load %arg5[%c0_15, %c0_16] : memref<1x1xf32, #tpu.memory_space<vmem>>, vector<1x1xf32>
    %25 = vector.broadcast %24 : vector<1x1xf32> to vector<2x1xf32>
    %26 = arith.addf %23, %25 : vector<2x1xf32>
    %27 = arith.negf %26 : vector<2x1xf32>
    %28 = math.exp %27 : vector<2x1xf32>
    %cst_17 = arith.constant 1.000000e+00 : f32
    %29 = vector.broadcast %cst_17 : f32 to vector<2x1xf32>
    %30 = arith.addf %29, %28 : vector<2x1xf32>
    %31 = arith.divf %29, %30 : vector<2x1xf32>
    %c0_18 = arith.constant 0 : index
    %c0_19 = arith.constant 0 : index
    %32 = vector.load %arg6[%c0_18, %c0_19] : memref<2x1xf32, #tpu.memory_space<vmem>>, vector<2x1xf32>
    tpu.vector_store %arg6[%c0_18, %c0_19], %31 {strides = array<i32>} : memref<2x1xf32, #tpu.memory_space<vmem>>, vector<2x1xf32>,
    return
  }
  func.func @transform_0(%arg0: i32) -> (i32, i32, i32) {
    %c0_i32 = arith.constant 0 : i32
    %c0_i32_0 = arith.constant 0 : i32
    %c0_i32_1 = arith.constant 0 : i32
    %c0_i32_2 = arith.constant 0 : i32
    return %c0_i32, %c0_i32_0, %c0_i32_1 : i32, i32, i32
  }
  func.func @transform_1(%arg0: i32) -> (i32, i32, i32) {
    %c0_i32 = arith.constant 0 : i32
    %c0_i32_0 = arith.constant 0 : i32
    %c0_i32_1 = arith.constant 0 : i32
    %c0_i32_2 = arith.constant 0 : i32
    return %c0_i32, %c0_i32_0, %c0_i32_1 : i32, i32, i32
  }
  func.func @transform_2(%arg0: i32) -> (i32, i32, i32) {
    %c0_i32 = arith.constant 0 : i32
    %c0_i32_0 = arith.constant 0 : i32
    %c0_i32_1 = arith.constant 0 : i32
    %c0_i32_2 = arith.constant 0 : i32
    return %c0_i32, %c0_i32_0, %c0_i32_1 : i32, i32, i32
  }
  func.func @transform_3(%arg0: i32) -> (i32, i32) {
    %c0_i32 = arith.constant 0 : i32
    %c0_i32_0 = arith.constant 0 : i32
    %c0_i32_1 = arith.constant 0 : i32
    return %c0_i32, %c0_i32_0 : i32, i32
  }
  func.func @transform_4(%arg0: i32) -> (i32, i32) {
    %c0_i32 = arith.constant 0 : i32
    %c0_i32_0 = arith.constant 0 : i32
    %c0_i32_1 = arith.constant 0 : i32
    return %c0_i32, %c0_i32_0 : i32, i32
  }
  func.func @transform_5(%arg0: i32) -> (i32, i32) {
    %c0_i32 = arith.constant 0 : i32
    %c0_i32_0 = arith.constant 0 : i32
    %c0_i32_1 = arith.constant 0 : i32
    return %c0_i32, %c0_i32_0 : i32, i32
  }
}

</mosaic_0001>

<llo_original>
// kernel: tile.31
$region0: #{tile.31}
  %s0 = inlined_call_operand.vmem [shape: f32[4,32], index: 0, kind: input, shape index: {}]
  %s1 = inlined_call_operand.vmem [shape: f32[1,128], index: 1, kind: output, shape index: {}]
  $region1: #{tile.31} parent=0
    #allocation0 [shape = 'u8[4096]{0}', space=vmem, size = 0x1000, scoped, tag = 'scoped mem for output reshape']
    #allocation1 [shape = 'u8[4096]{0}', space=vmem, size = 0x1000, scoped, tag = 'scoped mem for input reshape']
    %s3 = sshll.u32 1, 4
    %s4 = ssub.s32 %s3, 1
    %v5 = vld [vmem:[%s0] sm:%s4]
    %6 = vst [vmem:[#allocation1] sm:%s4] %v5
    %v7 = vld [vmem:[#allocation1] sm:$0x1]
    %vm8 = vcmask 261120
    %9 = vst.msk [vmem:[#allocation0] sm:$0x1] %vm8, %v7
    %s10 = scalar_lea.vmem [#allocation1], 3
    %v11 = vld [vmem:[%s10] sm:$0x1]
    %12 = vrot.lane.b32.xlu0 %v11, 96
    %v13 = vpop.permute.xlu0 %12
    %vm14 = vcmask 1048320
    %15 = vst.msk [vmem:[#allocation0] sm:$0x1] %vm14, %v13
    %s16 = scalar_lea.vmem [#allocation1], 2
    %v17 = vld [vmem:[%s16] sm:$0x1]
    %18 = vrot.lane.b32.xlu0 %v17, 64
    %v19 = vpop.permute.xlu0 %18
    %vm20 = vcmask 785920
    %21 = vst.msk [vmem:[#allocation0] sm:$0x1] %vm20, %v19
    %s22 = scalar_lea.vmem [#allocation1], 1
    %v23 = vld [vmem:[%s22] sm:$0x1]
    %24 = vrot.lane.b32.xlu0 %v23, 32
    %v25 = vpop.permute.xlu0 %24
    %vm26 = vcmask 523520
    %27 = vst.msk [vmem:[#allocation0] sm:$0x1] %vm26, %v25
    %s29 = sshll.u32 1, 1
    %s30 = ssub.s32 %s29, 1
    %v32 = vld [vmem:[#allocation0] sm:%s30]
    %s33 = sshll.u32 1, 1
    %s34 = ssub.s32 %s33, 1
    %35 = vst [vmem:[%s1] sm:%s34] %v32

// kernel: tile.30
$region0: #{tile.30}
  #allocation0 [shape = 's32[1]{0}', space=sflag, size = 0x4, scoped, tag = 'scoped memory for tile.30']
  %s0 = inlined_call_operand.vmem [shape: f32[32], index: 0, kind: input, shape index: {}]
  %s1 = inlined_call_operand.vmem [shape: f32[4,32], index: 1, kind: output, shape index: {}]
  // Predicated region
  $region2: #{tile.30} parent=0 // pred_check
    _
  $region3: #{tile.30} parent=0 // pred_check_branch
    %3 = sbr.rel (0) target = $region5
  $region4: #{tile.30} parent=0 // pred_region
    _
  $region5: #{tile.30} parent=0 // pred_fallthru
    _
  %v4 = vld [vmem:[%s0] ss:$0 sm:$0xff]
  %5 = vst [vmem:[%s1] sm:$0xf] %v4

// kernel: discriminator_forward.8
$region0: #{discriminator_forward.8}
  #allocation0 [shape = 'u32[]', space=smem, size = 0x4, offset = 0x4, fixed_abs, tag = 'smem constant byte address 0x4 - core index']
  #allocation1 [shape = 'u32[144,128]{1,0:T(1,128)}', space=vmem, size = 0x12000, scoped, tag = 'internal scratch']
  %s0 = inlined_call_operand.vmem [shape: f32[2048,48], index: 0, kind: input, shape index: {}]
  %s1 = inlined_call_operand.vmem [shape: f32[48,32], index: 1, kind: input, shape index: {}]
  %s2 = inlined_call_operand.vmem [shape: f32[2048,32], index: 2, kind: output, shape index: {0}]
  %s3 = inlined_call_operand.vmem [shape: f32[2,1,32], index: 3, kind: output, shape index: {1}]
  %s4 = inlined_call_operand.vmem [shape: f32[2,1,32], index: 4, kind: output, shape index: {2}]
  %5 = xla_tuple %s2, %s3, %s4
  %s6 = sld [smem:[#allocation0]]
  $region57: #{discriminator_forward.8} parent=0
    _
  %s8 = ssub.s32 1, %s6
  %s9 = scalar_select 0, %s8, %s6
  loop: start=0, step=1, limit=4
  $region2: #{discriminator_forward.8} parent=0 // loop_pre_header
    _
  $region3: #{discriminator_forward.8} parent=0 // loop_header
    %s11 = sphi 0, %s15
    %p12 = scmp.ge.s32.totalorder %s11, 4
    %s21 = sphi 0, %s23
    %s24 = sphi 0, %s21
    %s25 = sphi 0, %s24
    %s41 = sphi 0, %s25
    %s45 = sphi 0, %s45
    %s47 = sphi 0, %s45
    %s48 = sphi 0, %s47
    %s62 = sphi 0, %s48
    %s68 = sphi 0, %s70
    %s71 = sphi 0, %s68
    %s72 = sphi 0, %s71
    %s88 = sphi 0, %s72
    %s94 = sphi 0, %s96
    %s97 = sphi 0, %s94
    %s98 = sphi 0, %s97
    %s114 = sphi 0, %s98
    %s120 = sphi 0, %s122
    %s123 = sphi 0, %s120
    %s124 = sphi 0, %s123
    %s140 = sphi 0, %s124
  $region4: #{discriminator_forward.8} parent=0 // loop_header_branch
    %14 = sbr.rel (%p12) target = $region8
  $region5: #{discriminator_forward.8} parent=0 // loop_body
    %s16 = ssub.s32 %s11, 1
    %s17 = ssub.s32 %s11, 2
    %s18 = sadd.s32 %s11, 1
    %s19 = ssub.s32 %s11, %s18
    %p20 = scmp.eq.s32.totalorder %s19, 0
    %s22 = sadd.s32 %s21, 1
    %s23 = scalar_select %p20, %s21, %s22
    %p26 = pneg %p20
    %p27 = scmp.eq.s32.totalorder %s11, 1
    %p28 = por %p26, %p27
    %p29 = scmp.ne.s32.totalorder %s21, %s24
    %p30 = scmp.eq.s32.totalorder %s11, 0
    %p31 = por %p29, %p30
    %p32 = scmp.ne.s32.totalorder %s21, %s24
    %p33 = scmp.eq.s32.totalorder %s16, 1
    %p34 = por %p32, %p33
    %p35 = scmp.ne.s32.totalorder %s24, %s25
    %p36 = scmp.eq.s32.totalorder %s16, 0
    %p37 = por %p35, %p36
    %p38 = scmp.ne.s32.totalorder %s24, %s25
    %p39 = scmp.eq.s32.totalorder %s17, 1
    %p40 = por %p38, %p39
    %p42 = scmp.ne.s32.totalorder %s25, %s41
    %p43 = scmp.eq.s32.totalorder %s17, 0
    %p44 = por %p42, %p43
    %s46 = sadd.s32 %s45, 1
    %p49 = scmp.eq.s32.totalorder %s11, 1
    %p50 = scmp.ne.s32.totalorder %s45, %s47
    %p51 = scmp.eq.s32.totalorder %s11, 0
    %p52 = por %p50, %p51
    %p53 = scmp.ne.s32.totalorder %s45, %s47
    %p54 = scmp.eq.s32.totalorder %s16, 1
    %p55 = por %p53, %p54
    %p56 = scmp.ne.s32.totalorder %s47, %s48
    %p57 = scmp.eq.s32.totalorder %s16, 0
    %p58 = por %p56, %p57
    %p59 = scmp.ne.s32.totalorder %s47, %s48
    %p60 = scmp.eq.s32.totalorder %s17, 1
    %p61 = por %p59, %p60
    %p63 = scmp.ne.s32.totalorder %s48, %s62
    %p64 = scmp.eq.s32.totalorder %s17, 0
    %p65 = por %p63, %p64
    %s66 = ssub.s32 %s11, %s18
    %p67 = scmp.eq.s32.totalorder %s66, 0
    %s69 = sadd.s32 %s68, 1
    %s70 = scalar_select %p67, %s68, %s69
    %p73 = pneg %p67
    %p74 = scmp.eq.s32.totalorder %s11, 1
    %p75 = por %p73, %p74
    %p76 = scmp.ne.s32.totalorder %s68, %s71
    %p77 = scmp.eq.s32.totalorder %s11, 0
    %p78 = por %p76, %p77
    %p79 = scmp.ne.s32.totalorder %s68, %s71
    %p80 = scmp.eq.s32.totalorder %s16, 1
    %p81 = por %p79, %p80
    %p82 = scmp.ne.s32.totalorder %s71, %s72
    %p83 = scmp.eq.s32.totalorder %s16, 0
    %p84 = por %p82, %p83
    %p85 = scmp.ne.s32.totalorder %s71, %s72
    %p86 = scmp.eq.s32.totalorder %s17, 1
    %p87 = por %p85, %p86
    %p89 = scmp.ne.s32.totalorder %s72, %s88
    %p90 = scmp.eq.s32.totalorder %s17, 0
    %p91 = por %p89, %p90
    %s92 = ssub.s32 %s11, %s18
    %p93 = scmp.eq.s32.totalorder %s92, 0
    %s95 = sadd.s32 %s94, 1
    %s96 = scalar_select %p93, %s94, %s95
    %p99 = pneg %p93
    %p100 = scmp.eq.s32.totalorder %s11, 1
    %p101 = por %p99, %p100
    %p102 = scmp.ne.s32.totalorder %s94, %s97
    %p103 = scmp.eq.s32.totalorder %s11, 0
    %p104 = por %p102, %p103
    %p105 = scmp.ne.s32.totalorder %s94, %s97
    %p106 = scmp.eq.s32.totalorder %s16, 1
    %p107 = por %p105, %p106
    %p108 = scmp.ne.s32.totalorder %s97, %s98
    %p109 = scmp.eq.s32.totalorder %s16, 0
    %p110 = por %p108, %p109
    %p111 = scmp.ne.s32.totalorder %s97, %s98
    %p112 = scmp.eq.s32.totalorder %s17, 1
    %p113 = por %p111, %p112
    %p115 = scmp.ne.s32.totalorder %s98, %s114
    %p116 = scmp.eq.s32.totalorder %s17, 0
    %p117 = por %p115, %p116
    %s118 = ssub.s32 %s11, %s18
    %p119 = scmp.eq.s32.totalorder %s118, 0
    %s121 = sadd.s32 %s120, 1
    %s122 = scalar_select %p119, %s120, %s121
    %p125 = pneg %p119
    %p126 = scmp.eq.s32.totalorder %s11, 1
    %p127 = por %p125, %p126
    %p128 = scmp.ne.s32.totalorder %s120, %s123
    %p129 = scmp.eq.s32.totalorder %s11, 0
    %p130 = por %p128, %p129
    %p131 = scmp.ne.s32.totalorder %s120, %s123
    %p132 = scmp.eq.s32.totalorder %s16, 1
    %p133 = por %p131, %p132
    %p134 = scmp.ne.s32.totalorder %s123, %s124
    %p135 = scmp.eq.s32.totalorder %s16, 0
    %p136 = por %p134, %p135
    %p137 = scmp.ne.s32.totalorder %s123, %s124
    %p138 = scmp.eq.s32.totalorder %s17, 1
    %p139 = por %p137, %p138
    %p141 = scmp.ne.s32.totalorder %s124, %s140
    %p142 = scmp.eq.s32.totalorder %s17, 0
    %p143 = por %p141, %p142
    %p144 = scmp.le.s32.totalorder 1, %s11
    %p145 = scmp.lt.s32.totalorder %s11, 3
    %p146 = pnand %p144, %p145
    %p147 = pneg %p146
    // Predicated region
    $region9: #{discriminator_forward.8} parent=5 // pred_check
      _
    $region10: #{discriminator_forward.8} parent=5 // pred_check_branch
      %149 = sbr.rel (%p146) target = $region12
    $region11: #{discriminator_forward.8} parent=5 // pred_region
      %s150 = ssub.s32 %s11, 1
      // Predicated region
      $region13: #{discriminator_forward.8} parent=11 // pred_check
        %p151 = pneg %p58
      $region14: #{discriminator_forward.8} parent=11 // pred_check_branch
        %153 = sbr.rel (%p151) target = $region16
      $region15: #{discriminator_forward.8} parent=11 // pred_region
        _
      $region16: #{discriminator_forward.8} parent=11 // pred_fallthru
        _
    $region12: #{discriminator_forward.8} parent=5 // pred_fallthru
      _
    %p154 = scmp.lt.s32.totalorder %s11, 2
    // Predicated region
    $region17: #{discriminator_forward.8} parent=5 // pred_check
      %p155 = pneg %p154
    $region18: #{discriminator_forward.8} parent=5 // pred_check_branch
      %157 = sbr.rel (%p155) target = $region20
    $region19: #{discriminator_forward.8} parent=5 // pred_region
      // Predicated region
      $region21: #{discriminator_forward.8} parent=19 // pred_check
        %p158 = pneg %p31
      $region22: #{discriminator_forward.8} parent=19 // pred_check_branch
        %160 = sbr.rel (%p158) target = $region24
      $region23: #{discriminator_forward.8} parent=19 // pred_region
        %s161 = smul.u32 128, %s11
        %p162 = scmp.lt.s32.totalorder %s161, 255
        %s163 = scalar_select %p162, %s161, 255
        %s164 = smul.addr %s163, 8
        %s165 = scalar_lea.vmem %s0, %s164
        %s166 = smul.u32 128, %s11
      $region24: #{discriminator_forward.8} parent=19 // pred_fallthru
        _
    $region20: #{discriminator_forward.8} parent=5 // pred_fallthru
      _
    %p167 = scmp.le.s32.totalorder 1, %s11
    %p168 = scmp.lt.s32.totalorder %s11, 3
    %p169 = pnand %p167, %p168
    %p170 = pneg %p169
    // Predicated region
    $region25: #{discriminator_forward.8} parent=5 // pred_check
      _
    $region26: #{discriminator_forward.8} parent=5 // pred_check_branch
      %172 = sbr.rel (%p169) target = $region28
    $region27: #{discriminator_forward.8} parent=5 // pred_region
      %s173 = ssub.s32 %s11, 1
      %s174 = smul.u32 128, %s16
      %p175 = scmp.lt.s32.totalorder %s174, 255
      %s176 = scalar_select %p175, %s174, 255
      %s177 = smul.addr %s176, 8
      %s178 = scalar_lea.vmem %s0, %s177
      %p179 = pneg %p37
      %p180 = pneg %p34
      %p181 = pneg %p58
      %p182 = pneg %p55
      %p183 = pneg %p84
      %p184 = pneg %p81
      %s185 = smul.u32 128, %s16
      %p186 = scmp.lt.s32.totalorder %s185, 255
      %s187 = scalar_select %p186, %s185, 255
      %s188 = smul.addr %s187, 8
      %s189 = scalar_lea.vmem %s2, %s188
      %p190 = pneg %p110
      %p191 = pneg %p107
      %p192 = scmp.lt.s32.totalorder %s16, 1
      %s193 = scalar_select %p192, %s16, 1
      %s194 = scalar_lea.vmem %s3, %s193
      %p195 = pneg %p136
      %p196 = pneg %p133
      %p197 = scmp.lt.s32.totalorder %s16, 1
      %s198 = scalar_select %p197, %s16, 1
      %s199 = scalar_lea.vmem %s4, %s198
      %s200 = smul.u32 128, %s16
      %p201 = scmp.lt.s32.totalorder %s200, 255
      %s202 = scalar_select %p201, %s200, 255
      %s203 = smul.addr %s202, 8
      %s204 = scalar_lea.vmem %s0, %s203
      %s205 = smul.u32 128, %s16
      %s206 = smul.u32 128, %s16
      %p207 = scmp.lt.s32.totalorder %s206, 255
      %s208 = scalar_select %p207, %s206, 255
      %s209 = smul.addr %s208, 8
      %s210 = scalar_lea.vmem %s2, %s209
      %s211 = smul.u32 128, %s16
      %p212 = scmp.lt.s32.totalorder %s16, 1
      %s213 = scalar_select %p212, %s16, 1
      %s214 = scalar_lea.vmem %s3, %s213
      %p215 = scmp.lt.s32.totalorder %s16, 1
      %s216 = scalar_select %p215, %s16, 1
      %s217 = scalar_lea.vmem %s4, %s216
      %v218 = vld [vmem:[%s204] sm:$0xff]
      %v219 = vld [vmem:[%s204 + $0x8] sm:$0xff]
      %v220 = vld [vmem:[%s204 + $0x10] sm:$0xff]
      %v221 = vld [vmem:[%s204 + $0x18] sm:$0xff]
      %v222 = vld [vmem:[%s204 + $0x20] sm:$0xff]
      %v223 = vld [vmem:[%s204 + $0x28] sm:$0xff]
      %v224 = vld [vmem:[%s204 + $0x30] sm:$0xff]
      %v225 = vld [vmem:[%s204 + $0x38] sm:$0xff]
      %v226 = vld [vmem:[%s204 + $0x40] sm:$0xff]
      %v227 = vld [vmem:[%s204 + $0x48] sm:$0xff]
      %v228 = vld [vmem:[%s204 + $0x50] sm:$0xff]
      %v229 = vld [vmem:[%s204 + $0x58] sm:$0xff]
      %v230 = vld [vmem:[%s204 + $0x60] sm:$0xff]
      %v231 = vld [vmem:[%s204 + $0x68] sm:$0xff]
      %v232 = vld [vmem:[%s204 + $0x70] sm:$0xff]
      %v233 = vld [vmem:[%s204 + $0x78] sm:$0xff]
      %v234 = vld [vmem:[%s204 + $0x80] sm:$0xff]
      %v235 = vld [vmem:[%s204 + $0x88] sm:$0xff]
      %v236 = vld [vmem:[%s204 + $0x90] sm:$0xff]
      %v237 = vld [vmem:[%s204 + $0x98] sm:$0xff]
      %v238 = vld [vmem:[%s204 + $0xa0] sm:$0xff]
      %v239 = vld [vmem:[%s204 + $0xa8] sm:$0xff]
      %v240 = vld [vmem:[%s204 + $0xb0] sm:$0xff]
      %v241 = vld [vmem:[%s204 + $0xb8] sm:$0xff]
      %v242 = vld [vmem:[%s204 + $0xc0] sm:$0xff]
      %v243 = vld [vmem:[%s204 + $0xc8] sm:$0xff]
      %v244 = vld [vmem:[%s204 + $0xd0] sm:$0xff]
      %v245 = vld [vmem:[%s204 + $0xd8] sm:$0xff]
      %v246 = vld [vmem:[%s204 + $0xe0] sm:$0xff]
      %v247 = vld [vmem:[%s204 + $0xe8] sm:$0xff]
      %v248 = vld [vmem:[%s204 + $0xf0] sm:$0xff]
      %v249 = vld [vmem:[%s204 + $0xf8] sm:$0xff]
      %v250 = vld [vmem:[%s204 + $0x100] sm:$0xff]
      %v251 = vld [vmem:[%s204 + $0x108] sm:$0xff]
      %v252 = vld [vmem:[%s204 + $0x110] sm:$0xff]
      %v253 = vld [vmem:[%s204 + $0x118] sm:$0xff]
      %v254 = vld [vmem:[%s204 + $0x120] sm:$0xff]
      %v255 = vld [vmem:[%s204 + $0x128] sm:$0xff]
      %v256 = vld [vmem:[%s204 + $0x130] sm:$0xff]
      %v257 = vld [vmem:[%s204 + $0x138] sm:$0xff]
      %v258 = vld [vmem:[%s204 + $0x140] sm:$0xff]
      %v259 = vld [vmem:[%s204 + $0x148] sm:$0xff]
      %v260 = vld [vmem:[%s204 + $0x150] sm:$0xff]
      %v261 = vld [vmem:[%s204 + $0x158] sm:$0xff]
      %v262 = vld [vmem:[%s204 + $0x160] sm:$0xff]
      %v263 = vld [vmem:[%s204 + $0x168] sm:$0xff]
      %v264 = vld [vmem:[%s204 + $0x170] sm:$0xff]
      %v265 = vld [vmem:[%s204 + $0x178] sm:$0xff]
      %v266 = vld [vmem:[%s204 + $0x180] sm:$0xff]
      %v267 = vld [vmem:[%s204 + $0x188] sm:$0xff]
      %v268 = vld [vmem:[%s204 + $0x190] sm:$0xff]
      %v269 = vld [vmem:[%s204 + $0x198] sm:$0xff]
      %v270 = vld [vmem:[%s204 + $0x1a0] sm:$0xff]
      %v271 = vld [vmem:[%s204 + $0x1a8] sm:$0xff]
      %v272 = vld [vmem:[%s204 + $0x1b0] sm:$0xff]
      %v273 = vld [vmem:[%s204 + $0x1b8] sm:$0xff]
      %v274 = vld [vmem:[%s204 + $0x1c0] sm:$0xff]
      %v275 = vld [vmem:[%s204 + $0x1c8] sm:$0xff]
      %v276 = vld [vmem:[%s204 + $0x1d0] sm:$0xff]
      %v277 = vld [vmem:[%s204 + $0x1d8] sm:$0xff]
      %v278 = vld [vmem:[%s204 + $0x1e0] sm:$0xff]
      %v279 = vld [vmem:[%s204 + $0x1e8] sm:$0xff]
      %v280 = vld [vmem:[%s204 + $0x1f0] sm:$0xff]
      %v281 = vld [vmem:[%s204 + $0x1f8] sm:$0xff]
      %v282 = vld [vmem:[%s204 + $0x200] sm:$0xff]
      %v283 = vld [vmem:[%s204 + $0x208] sm:$0xff]
      %v284 = vld [vmem:[%s204 + $0x210] sm:$0xff]
      %v285 = vld [vmem:[%s204 + $0x218] sm:$0xff]
      %v286 = vld [vmem:[%s204 + $0x220] sm:$0xff]
      %v287 = vld [vmem:[%s204 + $0x228] sm:$0xff]
      %v288 = vld [vmem:[%s204 + $0x230] sm:$0xff]
      %v289 = vld [vmem:[%s204 + $0x238] sm:$0xff]
      %v290 = vld [vmem:[%s204 + $0x240] sm:$0xff]
      %v291 = vld [vmem:[%s204 + $0x248] sm:$0xff]
      %v292 = vld [vmem:[%s204 + $0x250] sm:$0xff]
      %v293 = vld [vmem:[%s204 + $0x258] sm:$0xff]
      %v294 = vld [vmem:[%s204 + $0x260] sm:$0xff]
      %v295 = vld [vmem:[%s204 + $0x268] sm:$0xff]
      %v296 = vld [vmem:[%s204 + $0x270] sm:$0xff]
      %v297 = vld [vmem:[%s204 + $0x278] sm:$0xff]
      %v298 = vld [vmem:[%s204 + $0x280] sm:$0xff]
      %v299 = vld [vmem:[%s204 + $0x288] sm:$0xff]
      %v300 = vld [vmem:[%s204 + $0x290] sm:$0xff]
      %v301 = vld [vmem:[%s204 + $0x298] sm:$0xff]
      %v302 = vld [vmem:[%s204 + $0x2a0] sm:$0xff]
      %v303 = vld [vmem:[%s204 + $0x2a8] sm:$0xff]
      %v304 = vld [vmem:[%s204 + $0x2b0] sm:$0xff]
      %v305 = vld [vmem:[%s204 + $0x2b8] sm:$0xff]
      %v306 = vld [vmem:[%s204 + $0x2c0] sm:$0xff]
      %v307 = vld [vmem:[%s204 + $0x2c8] sm:$0xff]
      %v308 = vld [vmem:[%s204 + $0x2d0] sm:$0xff]
      %v309 = vld [vmem:[%s204 + $0x2d8] sm:$0xff]
      %v310 = vld [vmem:[%s204 + $0x2e0] sm:$0xff]
      %v311 = vld [vmem:[%s204 + $0x2e8] sm:$0xff]
      %v312 = vld [vmem:[%s204 + $0x2f0] sm:$0xff]
      %v313 = vld [vmem:[%s204 + $0x2f8] sm:$0xff]
      %v314 = vld [vmem:[%s204 + $0x300] sm:$0xff]
      %v315 = vld [vmem:[%s204 + $0x308] sm:$0xff]
      %v316 = vld [vmem:[%s204 + $0x310] sm:$0xff]
      %v317 = vld [vmem:[%s204 + $0x318] sm:$0xff]
      %v318 = vld [vmem:[%s204 + $0x320] sm:$0xff]
      %v319 = vld [vmem:[%s204 + $0x328] sm:$0xff]
      %v320 = vld [vmem:[%s204 + $0x330] sm:$0xff]
      %v321 = vld [vmem:[%s204 + $0x338] sm:$0xff]
      %v322 = vld [vmem:[%s204 + $0x340] sm:$0xff]
      %v323 = vld [vmem:[%s204 + $0x348] sm:$0xff]
      %v324 = vld [vmem:[%s204 + $0x350] sm:$0xff]
      %v325 = vld [vmem:[%s204 + $0x358] sm:$0xff]
      %v326 = vld [vmem:[%s204 + $0x360] sm:$0xff]
      %v327 = vld [vmem:[%s204 + $0x368] sm:$0xff]
      %v328 = vld [vmem:[%s204 + $0x370] sm:$0xff]
      %v329 = vld [vmem:[%s204 + $0x378] sm:$0xff]
      %v330 = vld [vmem:[%s204 + $0x380] sm:$0xff]
      %v331 = vld [vmem:[%s204 + $0x388] sm:$0xff]
      %v332 = vld [vmem:[%s204 + $0x390] sm:$0xff]
      %v333 = vld [vmem:[%s204 + $0x398] sm:$0xff]
      %v334 = vld [vmem:[%s204 + $0x3a0] sm:$0xff]
      %v335 = vld [vmem:[%s204 + $0x3a8] sm:$0xff]
      %v336 = vld [vmem:[%s204 + $0x3b0] sm:$0xff]
      %v337 = vld [vmem:[%s204 + $0x3b8] sm:$0xff]
      %v338 = vld [vmem:[%s204 + $0x3c0] sm:$0xff]
      %v339 = vld [vmem:[%s204 + $0x3c8] sm:$0xff]
      %v340 = vld [vmem:[%s204 + $0x3d0] sm:$0xff]
      %v341 = vld [vmem:[%s204 + $0x3d8] sm:$0xff]
      %v342 = vld [vmem:[%s204 + $0x3e0] sm:$0xff]
      %v343 = vld [vmem:[%s204 + $0x3e8] sm:$0xff]
      %v344 = vld [vmem:[%s204 + $0x3f0] sm:$0xff]
      %v345 = vld [vmem:[%s204 + $0x3f8] sm:$0xff]
      %v346 = vld [vmem:[%s1] sm:$0xff]
      %v347 = vld [vmem:[%s1 + $0x8] sm:$0xff]
      %v348 = vld [vmem:[%s1 + $0x10] sm:$0xff]
      %v349 = vld [vmem:[%s1 + $0x18] sm:$0xff]
      %v350 = vld [vmem:[%s1 + $0x20] sm:$0xff]
      %v351 = vld [vmem:[%s1 + $0x28] sm:$0xff]
      %vm352 = vcmask 392192
      %v354 = vsel %vm352, %v218, 0
      %v357 = vsel %vm352, %v219, 0
      %v360 = vsel %vm352, %v220, 0
      %v363 = vsel %vm352, %v221, 0
      %v366 = vsel %vm352, %v222, 0
      %v369 = vsel %vm352, %v223, 0
      %v372 = vsel %vm352, %v224, 0
      %v375 = vsel %vm352, %v225, 0
      %v378 = vsel %vm352, %v226, 0
      %v381 = vsel %vm352, %v227, 0
      %v384 = vsel %vm352, %v228, 0
      %v387 = vsel %vm352, %v229, 0
      %v390 = vsel %vm352, %v230, 0
      %v393 = vsel %vm352, %v231, 0
      %v396 = vsel %vm352, %v232, 0
      %v399 = vsel %vm352, %v233, 0
      %v402 = vsel %vm352, %v234, 0
      %v405 = vsel %vm352, %v235, 0
      %v408 = vsel %vm352, %v236, 0
      %v411 = vsel %vm352, %v237, 0
      %v414 = vsel %vm352, %v238, 0
      %v417 = vsel %vm352, %v239, 0
      %v420 = vsel %vm352, %v240, 0
      %v423 = vsel %vm352, %v241, 0
      %v426 = vsel %vm352, %v242, 0
      %v429 = vsel %vm352, %v243, 0
      %v432 = vsel %vm352, %v244, 0
      %v435 = vsel %vm352, %v245, 0
      %v438 = vsel %vm352, %v246, 0
      %v441 = vsel %vm352, %v247, 0
      %v444 = vsel %vm352, %v248, 0
      %v447 = vsel %vm352, %v249, 0
      %v450 = vsel %vm352, %v250, 0
      %v453 = vsel %vm352, %v251, 0
      %v456 = vsel %vm352, %v252, 0
      %v459 = vsel %vm352, %v253, 0
      %v462 = vsel %vm352, %v254, 0
      %v465 = vsel %vm352, %v255, 0
      %v468 = vsel %vm352, %v256, 0
      %v471 = vsel %vm352, %v257, 0
      %v474 = vsel %vm352, %v258, 0
      %v477 = vsel %vm352, %v259, 0
      %v480 = vsel %vm352, %v260, 0
      %v483 = vsel %vm352, %v261, 0
      %v486 = vsel %vm352, %v262, 0
      %v489 = vsel %vm352, %v263, 0
      %v492 = vsel %vm352, %v264, 0
      %v495 = vsel %vm352, %v265, 0
      %v498 = vsel %vm352, %v266, 0
      %v501 = vsel %vm352, %v267, 0
      %v504 = vsel %vm352, %v268, 0
      %v507 = vsel %vm352, %v269, 0
      %v510 = vsel %vm352, %v270, 0
      %v513 = vsel %vm352, %v271, 0
      %v516 = vsel %vm352, %v272, 0
      %v519 = vsel %vm352, %v273, 0
      %v522 = vsel %vm352, %v274, 0
      %v525 = vsel %vm352, %v275, 0
      %v528 = vsel %vm352, %v276, 0
      %v531 = vsel %vm352, %v277, 0
      %v534 = vsel %vm352, %v278, 0
      %v537 = vsel %vm352, %v279, 0
      %v540 = vsel %vm352, %v280, 0
      %v543 = vsel %vm352, %v281, 0
      %v546 = vsel %vm352, %v282, 0
      %v549 = vsel %vm352, %v283, 0
      %v552 = vsel %vm352, %v284, 0
      %v555 = vsel %vm352, %v285, 0
      %v558 = vsel %vm352, %v286, 0
      %v561 = vsel %vm352, %v287, 0
      %v564 = vsel %vm352, %v288, 0
      %v567 = vsel %vm352, %v289, 0
      %v570 = vsel %vm352, %v290, 0
      %v573 = vsel %vm352, %v291, 0
      %v576 = vsel %vm352, %v292, 0
      %v579 = vsel %vm352, %v293, 0
      %v582 = vsel %vm352, %v294, 0
      %v585 = vsel %vm352, %v295, 0
      %v588 = vsel %vm352, %v296, 0
      %v591 = vsel %vm352, %v297, 0
      %v594 = vsel %vm352, %v298, 0
      %v597 = vsel %vm352, %v299, 0
      %v600 = vsel %vm352, %v300, 0
      %v603 = vsel %vm352, %v301, 0
      %v606 = vsel %vm352, %v302, 0
      %v609 = vsel %vm352, %v303, 0
      %v612 = vsel %vm352, %v304, 0
      %v615 = vsel %vm352, %v305, 0
      %v618 = vsel %vm352, %v306, 0
      %v621 = vsel %vm352, %v307, 0
      %v624 = vsel %vm352, %v308, 0
      %v627 = vsel %vm352, %v309, 0
      %v630 = vsel %vm352, %v310, 0
      %v633 = vsel %vm352, %v311, 0
      %v636 = vsel %vm352, %v312, 0
      %v639 = vsel %vm352, %v313, 0
      %v642 = vsel %vm352, %v314, 0
      %v645 = vsel %vm352, %v315, 0
      %v648 = vsel %vm352, %v316, 0
      %v651 = vsel %vm352, %v317, 0
      %v654 = vsel %vm352, %v318, 0
      %v657 = vsel %vm352, %v319, 0
      %v660 = vsel %vm352, %v320, 0
      %v663 = vsel %vm352, %v321, 0
      %v666 = vsel %vm352, %v322, 0
      %v669 = vsel %vm352, %v323, 0
      %v672 = vsel %vm352, %v324, 0
      %v675 = vsel %vm352, %v325, 0
      %v678 = vsel %vm352, %v326, 0
      %v681 = vsel %vm352, %v327, 0
      %v684 = vsel %vm352, %v328, 0
      %v687 = vsel %vm352, %v329, 0
      %v690 = vsel %vm352, %v330, 0
      %v693 = vsel %vm352, %v331, 0
      %v696 = vsel %vm352, %v332, 0
      %v699 = vsel %vm352, %v333, 0
      %v702 = vsel %vm352, %v334, 0
      %v705 = vsel %vm352, %v335, 0
      %v708 = vsel %vm352, %v336, 0
      %v711 = vsel %vm352, %v337, 0
      %v714 = vsel %vm352, %v338, 0
      %v717 = vsel %vm352, %v339, 0
      %v720 = vsel %vm352, %v340, 0
      %v723 = vsel %vm352, %v341, 0
      %v726 = vsel %vm352, %v342, 0
      %v729 = vsel %vm352, %v343, 0
      %v732 = vsel %vm352, %v344, 0
      %v735 = vsel %vm352, %v345, 0
      %737 = vmatprep.subr.mxu0 0.0
      %738 = vmatpush1.msra.mxu0 0.0
      %739 = vmatprep.subr.mxu0 0.0
      %740 = vmatpush1.msra.mxu0 0.0
      %741 = vmatprep.subr.mxu0 0.0
      %742 = vmatpush1.msra.mxu0 0.0
      %743 = vmatprep.subr.mxu0 0.0
      %744 = vmatpush1.msra.mxu0 0.0
      %745 = vmatprep.subr.mxu0 0.0
      %746 = vmatpush1.msra.mxu0 0.0
      %747 = vmatprep.subr.mxu0 0.0
      %748 = vmatpush1.msra.mxu0 0.0
      %749 = vmatprep.subr.mxu0 0.0
      %750 = vmatpush1.msra.mxu0 0.0
      %751 = vmatprep.subr.mxu0 0.0
      %752 = vmatpush1.msra.mxu0 0.0
      %753 = vmatprep.subr.mxu0 0.0
      %754 = vmatpush1.msra.mxu0 0.0
      %755 = vmatprep.subr.mxu0 0.0
      %756 = vmatpush1.msra.mxu0 0.0
      %757 = vmatprep.subr.mxu0 0.0
      %758 = vmatpush1.msra.mxu0 %v351
      %759 = vmatprep.subr.mxu0 0.0
      %760 = vmatpush1.msra.mxu0 %v350
      %761 = vmatprep.subr.mxu0 0.0
      %762 = vmatpush1.msra.mxu0 %v349
      %763 = vmatprep.subr.mxu0 0.0
      %764 = vmatpush1.msra.mxu0 %v348
      %765 = vmatprep.subr.mxu0 0.0
      %766 = vmatpush1.msra.mxu0 %v347
      %767 = vmatprep.subr.mxu0 0.0
      %768 = vmatpush1.msra.mxu0 %v346
      %769 = vmatprep.subr.mxu0 0.0
      %770 = vmatpush2.msra.mxu0 0.0
      %771 = vmatprep.subr.mxu0 0.0
      %772 = vmatpush2.msra.mxu0 0.0
      %773 = vmatprep.subr.mxu0 0.0
      %774 = vmatpush2.msra.mxu0 0.0
      %775 = vmatprep.subr.mxu0 0.0
      %776 = vmatpush2.msra.mxu0 0.0
      %777 = vmatprep.subr.mxu0 0.0
      %778 = vmatpush2.msra.mxu0 0.0
      %779 = vmatprep.subr.mxu0 0.0
      %780 = vmatpush2.msra.mxu0 0.0
      %781 = vmatprep.subr.mxu0 0.0
      %782 = vmatpush2.msra.mxu0 0.0
      %783 = vmatprep.subr.mxu0 0.0
      %784 = vmatpush2.msra.mxu0 0.0
      %785 = vmatprep.subr.mxu0 0.0
      %786 = vmatpush2.msra.mxu0 0.0
      %787 = vmatprep.subr.mxu0 0.0
      %788 = vmatpush2.msra.mxu0 0.0
      %789 = vmatprep.subr.mxu0 0.0
      %790 = vmatpush2.msra.mxu0 0.0
      %791 = vmatprep.subr.mxu0 0.0
      %792 = vmatpush2.msra.mxu0 0.0
      %793 = vmatprep.subr.mxu0 0.0
      %794 = vmatpush2.msra.mxu0 0.0
      %795 = vmatprep.subr.mxu0 0.0
      %796 = vmatpush2.msra.mxu0 0.0
      %797 = vmatprep.subr.mxu0 0.0
      %798 = vmatpush2.msra.mxu0 0.0
      %799 = vmatprep.subr.mxu0 0.0
      %800 = vmatpush2.msra.mxu0 0.0
      %801 = vmatprep.mubr.f32.mxu0 0.0
      %802 = vmatmul.mubr.f32.gmra.mxu0 %v354
      %v803 = vpop.f32.mrf.mxu0
      %v804 = vadd.f32 0.0, %v803
      %v805 = vpop.f32.mrf.mxu0
      %806 = vmatprep.mubr.f32.mxu0 0.0
      %807 = vmatmul.mubr.f32.gmra.mxu0 %v357
      %v808 = vpop.f32.mrf.mxu0
      %v809 = vadd.f32 0.0, %v808
      %v810 = vpop.f32.mrf.mxu0
      %811 = vmatprep.mubr.f32.mxu0 0.0
      %812 = vmatmul.mubr.f32.gmra.mxu0 %v360
      %v813 = vpop.f32.mrf.mxu0
      %v814 = vadd.f32 0.0, %v813
      %v815 = vpop.f32.mrf.mxu0
      %816 = vmatprep.mubr.f32.mxu0 0.0
      %817 = vmatmul.mubr.f32.gmra.mxu0 %v363
      %v818 = vpop.f32.mrf.mxu0
      %v819 = vadd.f32 0.0, %v818
      %v820 = vpop.f32.mrf.mxu0
      %821 = vmatprep.mubr.f32.mxu0 0.0
      %822 = vmatmul.mubr.f32.gmra.mxu0 %v366
      %v823 = vpop.f32.mrf.mxu0
      %v824 = vadd.f32 0.0, %v823
      %v825 = vpop.f32.mrf.mxu0
      %826 = vmatprep.mubr.f32.mxu0 0.0
      %827 = vmatmul.mubr.f32.gmra.mxu0 %v369
      %v828 = vpop.f32.mrf.mxu0
      %v829 = vadd.f32 0.0, %v828
      %v830 = vpop.f32.mrf.mxu0
      %831 = vmatprep.mubr.f32.mxu0 0.0
      %832 = vmatmul.mubr.f32.gmra.mxu0 %v372
      %v833 = vpop.f32.mrf.mxu0
      %v834 = vadd.f32 0.0, %v833
      %v835 = vpop.f32.mrf.mxu0
      %836 = vmatprep.mubr.f32.mxu0 0.0
      %837 = vmatmul.mubr.f32.gmra.mxu0 %v375
      %v838 = vpop.f32.mrf.mxu0
      %v839 = vadd.f32 0.0, %v838
      %v840 = vpop.f32.mrf.mxu0
      %841 = vmatprep.mubr.f32.mxu0 0.0
      %842 = vmatmul.mubr.f32.gmra.mxu0 %v378
      %v843 = vpop.f32.mrf.mxu0
      %v844 = vadd.f32 0.0, %v843
      %v845 = vpop.f32.mrf.mxu0
      %846 = vmatprep.mubr.f32.mxu0 0.0
      %847 = vmatmul.mubr.f32.gmra.mxu0 %v381
      %v848 = vpop.f32.mrf.mxu0
      %v849 = vadd.f32 0.0, %v848
      %v850 = vpop.f32.mrf.mxu0
      %851 = vmatprep.mubr.f32.mxu0 0.0
      %852 = vmatmul.mubr.f32.gmra.mxu0 %v384
      %v853 = vpop.f32.mrf.mxu0
      %v854 = vadd.f32 0.0, %v853
      %v855 = vpop.f32.mrf.mxu0
      %856 = vmatprep.mubr.f32.mxu0 0.0
      %857 = vmatmul.mubr.f32.gmra.mxu0 %v387
      %v858 = vpop.f32.mrf.mxu0
      %v859 = vadd.f32 0.0, %v858
      %v860 = vpop.f32.mrf.mxu0
      %861 = vmatprep.mubr.f32.mxu0 0.0
      %862 = vmatmul.mubr.f32.gmra.mxu0 %v390
      %v863 = vpop.f32.mrf.mxu0
      %v864 = vadd.f32 0.0, %v863
      %v865 = vpop.f32.mrf.mxu0
      %866 = vmatprep.mubr.f32.mxu0 0.0
      %867 = vmatmul.mubr.f32.gmra.mxu0 %v393
      %v868 = vpop.f32.mrf.mxu0
      %v869 = vadd.f32 0.0, %v868
      %v870 = vpop.f32.mrf.mxu0
      %871 = vmatprep.mubr.f32.mxu0 0.0
      %872 = vmatmul.mubr.f32.gmra.mxu0 %v396
      %v873 = vpop.f32.mrf.mxu0
      %v874 = vadd.f32 0.0, %v873
      %v875 = vpop.f32.mrf.mxu0
      %876 = vmatprep.mubr.f32.mxu0 0.0
      %877 = vmatmul.mubr.f32.gmra.mxu0 %v399
      %v878 = vpop.f32.mrf.mxu0
      %v879 = vadd.f32 0.0, %v878
      %v880 = vpop.f32.mrf.mxu0
      %881 = vmatprep.mubr.f32.mxu0 0.0
      %882 = vmatmul.mubr.f32.gmra.mxu0 %v402
      %v883 = vpop.f32.mrf.mxu0
      %v884 = vadd.f32 0.0, %v883
      %v885 = vpop.f32.mrf.mxu0
      %886 = vmatprep.mubr.f32.mxu0 0.0
      %887 = vmatmul.mubr.f32.gmra.mxu0 %v405
      %v888 = vpop.f32.mrf.mxu0
      %v889 = vadd.f32 0.0, %v888
      %v890 = vpop.f32.mrf.mxu0
      %891 = vmatprep.mubr.f32.mxu0 0.0
      %892 = vmatmul.mubr.f32.gmra.mxu0 %v408
      %v893 = vpop.f32.mrf.mxu0
      %v894 = vadd.f32 0.0, %v893
      %v895 = vpop.f32.mrf.mxu0
      %896 = vmatprep.mubr.f32.mxu0 0.0
      %897 = vmatmul.mubr.f32.gmra.mxu0 %v411
      %v898 = vpop.f32.mrf.mxu0
      %v899 = vadd.f32 0.0, %v898
      %v900 = vpop.f32.mrf.mxu0
      %901 = vmatprep.mubr.f32.mxu0 0.0
      %902 = vmatmul.mubr.f32.gmra.mxu0 %v414
      %v903 = vpop.f32.mrf.mxu0
      %v904 = vadd.f32 0.0, %v903
      %v905 = vpop.f32.mrf.mxu0
      %906 = vmatprep.mubr.f32.mxu0 0.0
      %907 = vmatmul.mubr.f32.gmra.mxu0 %v417
      %v908 = vpop.f32.mrf.mxu0
      %v909 = vadd.f32 0.0, %v908
      %v910 = vpop.f32.mrf.mxu0
      %911 = vmatprep.mubr.f32.mxu0 0.0
      %912 = vmatmul.mubr.f32.gmra.mxu0 %v420
      %v913 = vpop.f32.mrf.mxu0
      %v914 = vadd.f32 0.0, %v913
      %v915 = vpop.f32.mrf.mxu0
      %916 = vmatprep.mubr.f32.mxu0 0.0
      %917 = vmatmul.mubr.f32.gmra.mxu0 %v423
      %v918 = vpop.f32.mrf.mxu0
      %v919 = vadd.f32 0.0, %v918
      %v920 = vpop.f32.mrf.mxu0
      %921 = vmatprep.mubr.f32.mxu0 0.0
      %922 = vmatmul.mubr.f32.gmra.mxu0 %v426
      %v923 = vpop.f32.mrf.mxu0
      %v924 = vadd.f32 0.0, %v923
      %v925 = vpop.f32.mrf.mxu0
      %926 = vmatprep.mubr.f32.mxu0 0.0
      %927 = vmatmul.mubr.f32.gmra.mxu0 %v429
      %v928 = vpop.f32.mrf.mxu0
      %v929 = vadd.f32 0.0, %v928
      %v930 = vpop.f32.mrf.mxu0
      %931 = vmatprep.mubr.f32.mxu0 0.0
      %932 = vmatmul.mubr.f32.gmra.mxu0 %v432
      %v933 = vpop.f32.mrf.mxu0
      %v934 = vadd.f32 0.0, %v933
      %v935 = vpop.f32.mrf.mxu0
      %936 = vmatprep.mubr.f32.mxu0 0.0
      %937 = vmatmul.mubr.f32.gmra.mxu0 %v435
      %v938 = vpop.f32.mrf.mxu0
      %v939 = vadd.f32 0.0, %v938
      %v940 = vpop.f32.mrf.mxu0
      %941 = vmatprep.mubr.f32.mxu0 0.0
      %942 = vmatmul.mubr.f32.gmra.mxu0 %v438
      %v943 = vpop.f32.mrf.mxu0
      %v944 = vadd.f32 0.0, %v943
      %v945 = vpop.f32.mrf.mxu0
      %946 = vmatprep.mubr.f32.mxu0 0.0
      %947 = vmatmul.mubr.f32.gmra.mxu0 %v441
      %v948 = vpop.f32.mrf.mxu0
      %v949 = vadd.f32 0.0, %v948
      %v950 = vpop.f32.mrf.mxu0
      %951 = vmatprep.mubr.f32.mxu0 0.0
      %952 = vmatmul.mubr.f32.gmra.mxu0 %v444
      %v953 = vpop.f32.mrf.mxu0
      %v954 = vadd.f32 0.0, %v953
      %v955 = vpop.f32.mrf.mxu0
      %956 = vmatprep.mubr.f32.mxu0 0.0
      %957 = vmatmul.mubr.f32.gmra.mxu0 %v447
      %v958 = vpop.f32.mrf.mxu0
      %v959 = vadd.f32 0.0, %v958
      %v960 = vpop.f32.mrf.mxu0
      %961 = vmatprep.mubr.f32.mxu0 0.0
      %962 = vmatmul.mubr.f32.gmra.mxu0 %v450
      %v963 = vpop.f32.mrf.mxu0
      %v964 = vadd.f32 0.0, %v963
      %v965 = vpop.f32.mrf.mxu0
      %966 = vmatprep.mubr.f32.mxu0 0.0
      %967 = vmatmul.mubr.f32.gmra.mxu0 %v453
      %v968 = vpop.f32.mrf.mxu0
      %v969 = vadd.f32 0.0, %v968
      %v970 = vpop.f32.mrf.mxu0
      %971 = vmatprep.mubr.f32.mxu0 0.0
      %972 = vmatmul.mubr.f32.gmra.mxu0 %v456
      %v973 = vpop.f32.mrf.mxu0
      %v974 = vadd.f32 0.0, %v973
      %v975 = vpop.f32.mrf.mxu0
      %976 = vmatprep.mubr.f32.mxu0 0.0
      %977 = vmatmul.mubr.f32.gmra.mxu0 %v459
      %v978 = vpop.f32.mrf.mxu0
      %v979 = vadd.f32 0.0, %v978
      %v980 = vpop.f32.mrf.mxu0
      %981 = vmatprep.mubr.f32.mxu0 0.0
      %982 = vmatmul.mubr.f32.gmra.mxu0 %v462
      %v983 = vpop.f32.mrf.mxu0
      %v984 = vadd.f32 0.0, %v983
      %v985 = vpop.f32.mrf.mxu0
      %986 = vmatprep.mubr.f32.mxu0 0.0
      %987 = vmatmul.mubr.f32.gmra.mxu0 %v465
      %v988 = vpop.f32.mrf.mxu0
      %v989 = vadd.f32 0.0, %v988
      %v990 = vpop.f32.mrf.mxu0
      %991 = vmatprep.mubr.f32.mxu0 0.0
      %992 = vmatmul.mubr.f32.gmra.mxu0 %v468
      %v993 = vpop.f32.mrf.mxu0
      %v994 = vadd.f32 0.0, %v993
      %v995 = vpop.f32.mrf.mxu0
      %996 = vmatprep.mubr.f32.mxu0 0.0
      %997 = vmatmul.mubr.f32.gmra.mxu0 %v471
      %v998 = vpop.f32.mrf.mxu0
      %v999 = vadd.f32 0.0, %v998
      %v1000 = vpop.f32.mrf.mxu0
      %1001 = vmatprep.mubr.f32.mxu0 0.0
      %1002 = vmatmul.mubr.f32.gmra.mxu0 %v474
      %v1003 = vpop.f32.mrf.mxu0
      %v1004 = vadd.f32 0.0, %v1003
      %v1005 = vpop.f32.mrf.mxu0
      %1006 = vmatprep.mubr.f32.mxu0 0.0
      %1007 = vmatmul.mubr.f32.gmra.mxu0 %v477
      %v1008 = vpop.f32.mrf.mxu0
      %v1009 = vadd.f32 0.0, %v1008
      %v1010 = vpop.f32.mrf.mxu0
      %1011 = vmatprep.mubr.f32.mxu0 0.0
      %1012 = vmatmul.mubr.f32.gmra.mxu0 %v480
      %v1013 = vpop.f32.mrf.mxu0
      %v1014 = vadd.f32 0.0, %v1013
      %v1015 = vpop.f32.mrf.mxu0
      %1016 = vmatprep.mubr.f32.mxu0 0.0
      %1017 = vmatmul.mubr.f32.gmra.mxu0 %v483
      %v1018 = vpop.f32.mrf.mxu0
      %v1019 = vadd.f32 0.0, %v1018
      %v1020 = vpop.f32.mrf.mxu0
      %1021 = vmatprep.mubr.f32.mxu0 0.0
      %1022 = vmatmul.mubr.f32.gmra.mxu0 %v486
      %v1023 = vpop.f32.mrf.mxu0
      %v1024 = vadd.f32 0.0, %v1023
      %v1025 = vpop.f32.mrf.mxu0
      %1026 = vmatprep.mubr.f32.mxu0 0.0
      %1027 = vmatmul.mubr.f32.gmra.mxu0 %v489
      %v1028 = vpop.f32.mrf.mxu0
      %v1029 = vadd.f32 0.0, %v1028
      %v1030 = vpop.f32.mrf.mxu0
      %1031 = vmatprep.mubr.f32.mxu0 0.0
      %1032 = vmatmul.mubr.f32.gmra.mxu0 %v492
      %v1033 = vpop.f32.mrf.mxu0
      %v1034 = vadd.f32 0.0, %v1033
      %v1035 = vpop.f32.mrf.mxu0
      %1036 = vmatprep.mubr.f32.mxu0 0.0
      %1037 = vmatmul.mubr.f32.gmra.mxu0 %v495
      %v1038 = vpop.f32.mrf.mxu0
      %v1039 = vadd.f32 0.0, %v1038
      %v1040 = vpop.f32.mrf.mxu0
      %1041 = vmatprep.mubr.f32.mxu0 0.0
      %1042 = vmatmul.mubr.f32.gmra.mxu0 %v498
      %v1043 = vpop.f32.mrf.mxu0
      %v1044 = vadd.f32 0.0, %v1043
      %v1045 = vpop.f32.mrf.mxu0
      %1046 = vmatprep.mubr.f32.mxu0 0.0
      %1047 = vmatmul.mubr.f32.gmra.mxu0 %v501
      %v1048 = vpop.f32.mrf.mxu0
      %v1049 = vadd.f32 0.0, %v1048
      %v1050 = vpop.f32.mrf.mxu0
      %1051 = vmatprep.mubr.f32.mxu0 0.0
      %1052 = vmatmul.mubr.f32.gmra.mxu0 %v504
      %v1053 = vpop.f32.mrf.mxu0
      %v1054 = vadd.f32 0.0, %v1053
      %v1055 = vpop.f32.mrf.mxu0
      %1056 = vmatprep.mubr.f32.mxu0 0.0
      %1057 = vmatmul.mubr.f32.gmra.mxu0 %v507
      %v1058 = vpop.f32.mrf.mxu0
      %v1059 = vadd.f32 0.0, %v1058
      %v1060 = vpop.f32.mrf.mxu0
      %1061 = vmatprep.mubr.f32.mxu0 0.0
      %1062 = vmatmul.mubr.f32.gmra.mxu0 %v510
      %v1063 = vpop.f32.mrf.mxu0
      %v1064 = vadd.f32 0.0, %v1063
      %v1065 = vpop.f32.mrf.mxu0
      %1066 = vmatprep.mubr.f32.mxu0 0.0
      %1067 = vmatmul.mubr.f32.gmra.mxu0 %v513
      %v1068 = vpop.f32.mrf.mxu0
      %v1069 = vadd.f32 0.0, %v1068
      %v1070 = vpop.f32.mrf.mxu0
      %1071 = vmatprep.mubr.f32.mxu0 0.0
      %1072 = vmatmul.mubr.f32.gmra.mxu0 %v516
      %v1073 = vpop.f32.mrf.mxu0
      %v1074 = vadd.f32 0.0, %v1073
      %v1075 = vpop.f32.mrf.mxu0
      %1076 = vmatprep.mubr.f32.mxu0 0.0
      %1077 = vmatmul.mubr.f32.gmra.mxu0 %v519
      %v1078 = vpop.f32.mrf.mxu0
      %v1079 = vadd.f32 0.0, %v1078
      %v1080 = vpop.f32.mrf.mxu0
      %1081 = vmatprep.mubr.f32.mxu0 0.0
      %1082 = vmatmul.mubr.f32.gmra.mxu0 %v522
      %v1083 = vpop.f32.mrf.mxu0
      %v1084 = vadd.f32 0.0, %v1083
      %v1085 = vpop.f32.mrf.mxu0
      %1086 = vmatprep.mubr.f32.mxu0 0.0
      %1087 = vmatmul.mubr.f32.gmra.mxu0 %v525
      %v1088 = vpop.f32.mrf.mxu0
      %v1089 = vadd.f32 0.0, %v1088
      %v1090 = vpop.f32.mrf.mxu0
      %1091 = vmatprep.mubr.f32.mxu0 0.0
      %1092 = vmatmul.mubr.f32.gmra.mxu0 %v528
      %v1093 = vpop.f32.mrf.mxu0
      %v1094 = vadd.f32 0.0, %v1093
      %v1095 = vpop.f32.mrf.mxu0
      %1096 = vmatprep.mubr.f32.mxu0 0.0
      %1097 = vmatmul.mubr.f32.gmra.mxu0 %v531
      %v1098 = vpop.f32.mrf.mxu0
      %v1099 = vadd.f32 0.0, %v1098
      %v1100 = vpop.f32.mrf.mxu0
      %1101 = vmatprep.mubr.f32.mxu0 0.0
      %1102 = vmatmul.mubr.f32.gmra.mxu0 %v534
      %v1103 = vpop.f32.mrf.mxu0
      %v1104 = vadd.f32 0.0, %v1103
      %v1105 = vpop.f32.mrf.mxu0
      %1106 = vmatprep.mubr.f32.mxu0 0.0
      %1107 = vmatmul.mubr.f32.gmra.mxu0 %v537
      %v1108 = vpop.f32.mrf.mxu0
      %v1109 = vadd.f32 0.0, %v1108
      %v1110 = vpop.f32.mrf.mxu0
      %1111 = vmatprep.mubr.f32.mxu0 0.0
      %1112 = vmatmul.mubr.f32.gmra.mxu0 %v540
      %v1113 = vpop.f32.mrf.mxu0
      %v1114 = vadd.f32 0.0, %v1113
      %v1115 = vpop.f32.mrf.mxu0
      %1116 = vmatprep.mubr.f32.mxu0 0.0
      %1117 = vmatmul.mubr.f32.gmra.mxu0 %v543
      %v1118 = vpop.f32.mrf.mxu0
      %v1119 = vadd.f32 0.0, %v1118
      %v1120 = vpop.f32.mrf.mxu0
      %1121 = vmatprep.mubr.f32.mxu0 0.0
      %1122 = vmatmul.mubr.f32.gmra.mxu0 %v546
      %v1123 = vpop.f32.mrf.mxu0
      %v1124 = vadd.f32 0.0, %v1123
      %v1125 = vpop.f32.mrf.mxu0
      %1126 = vmatprep.mubr.f32.mxu0 0.0
      %1127 = vmatmul.mubr.f32.gmra.mxu0 %v549
      %v1128 = vpop.f32.mrf.mxu0
      %v1129 = vadd.f32 0.0, %v1128
      %v1130 = vpop.f32.mrf.mxu0
      %1131 = vmatprep.mubr.f32.mxu0 0.0
      %1132 = vmatmul.mubr.f32.gmra.mxu0 %v552
      %v1133 = vpop.f32.mrf.mxu0
      %v1134 = vadd.f32 0.0, %v1133
      %v1135 = vpop.f32.mrf.mxu0
      %1136 = vmatprep.mubr.f32.mxu0 0.0
      %1137 = vmatmul.mubr.f32.gmra.mxu0 %v555
      %v1138 = vpop.f32.mrf.mxu0
      %v1139 = vadd.f32 0.0, %v1138
      %v1140 = vpop.f32.mrf.mxu0
      %1141 = vmatprep.mubr.f32.mxu0 0.0
      %1142 = vmatmul.mubr.f32.gmra.mxu0 %v558
      %v1143 = vpop.f32.mrf.mxu0
      %v1144 = vadd.f32 0.0, %v1143
      %v1145 = vpop.f32.mrf.mxu0
      %1146 = vmatprep.mubr.f32.mxu0 0.0
      %1147 = vmatmul.mubr.f32.gmra.mxu0 %v561
      %v1148 = vpop.f32.mrf.mxu0
      %v1149 = vadd.f32 0.0, %v1148
      %v1150 = vpop.f32.mrf.mxu0
      %1151 = vmatprep.mubr.f32.mxu0 0.0
      %1152 = vmatmul.mubr.f32.gmra.mxu0 %v564
      %v1153 = vpop.f32.mrf.mxu0
      %v1154 = vadd.f32 0.0, %v1153
      %v1155 = vpop.f32.mrf.mxu0
      %1156 = vmatprep.mubr.f32.mxu0 0.0
      %1157 = vmatmul.mubr.f32.gmra.mxu0 %v567
      %v1158 = vpop.f32.mrf.mxu0
      %v1159 = vadd.f32 0.0, %v1158
      %v1160 = vpop.f32.mrf.mxu0
      %1161 = vmatprep.mubr.f32.mxu0 0.0
      %1162 = vmatmul.mubr.f32.gmra.mxu0 %v570
      %v1163 = vpop.f32.mrf.mxu0
      %v1164 = vadd.f32 0.0, %v1163
      %v1165 = vpop.f32.mrf.mxu0
      %1166 = vmatprep.mubr.f32.mxu0 0.0
      %1167 = vmatmul.mubr.f32.gmra.mxu0 %v573
      %v1168 = vpop.f32.mrf.mxu0
      %v1169 = vadd.f32 0.0, %v1168
      %v1170 = vpop.f32.mrf.mxu0
      %1171 = vmatprep.mubr.f32.mxu0 0.0
      %1172 = vmatmul.mubr.f32.gmra.mxu0 %v576
      %v1173 = vpop.f32.mrf.mxu0
      %v1174 = vadd.f32 0.0, %v1173
      %v1175 = vpop.f32.mrf.mxu0
      %1176 = vmatprep.mubr.f32.mxu0 0.0
      %1177 = vmatmul.mubr.f32.gmra.mxu0 %v579
      %v1178 = vpop.f32.mrf.mxu0
      %v1179 = vadd.f32 0.0, %v1178
      %v1180 = vpop.f32.mrf.mxu0
      %1181 = vmatprep.mubr.f32.mxu0 0.0
      %1182 = vmatmul.mubr.f32.gmra.mxu0 %v582
      %v1183 = vpop.f32.mrf.mxu0
      %v1184 = vadd.f32 0.0, %v1183
      %v1185 = vpop.f32.mrf.mxu0
      %1186 = vmatprep.mubr.f32.mxu0 0.0
      %1187 = vmatmul.mubr.f32.gmra.mxu0 %v585
      %v1188 = vpop.f32.mrf.mxu0
      %v1189 = vadd.f32 0.0, %v1188
      %v1190 = vpop.f32.mrf.mxu0
      %1191 = vmatprep.mubr.f32.mxu0 0.0
      %1192 = vmatmul.mubr.f32.gmra.mxu0 %v588
      %v1193 = vpop.f32.mrf.mxu0
      %v1194 = vadd.f32 0.0, %v1193
      %v1195 = vpop.f32.mrf.mxu0
      %1196 = vmatprep.mubr.f32.mxu0 0.0
      %1197 = vmatmul.mubr.f32.gmra.mxu0 %v591
      %v1198 = vpop.f32.mrf.mxu0
      %v1199 = vadd.f32 0.0, %v1198
      %v1200 = vpop.f32.mrf.mxu0
      %1201 = vmatprep.mubr.f32.mxu0 0.0
      %1202 = vmatmul.mubr.f32.gmra.mxu0 %v594
      %v1203 = vpop.f32.mrf.mxu0
      %v1204 = vadd.f32 0.0, %v1203
      %v1205 = vpop.f32.mrf.mxu0
      %1206 = vmatprep.mubr.f32.mxu0 0.0
      %1207 = vmatmul.mubr.f32.gmra.mxu0 %v597
      %v1208 = vpop.f32.mrf.mxu0
      %v1209 = vadd.f32 0.0, %v1208
      %v1210 = vpop.f32.mrf.mxu0
      %1211 = vmatprep.mubr.f32.mxu0 0.0
      %1212 = vmatmul.mubr.f32.gmra.mxu0 %v600
      %v1213 = vpop.f32.mrf.mxu0
      %v1214 = vadd.f32 0.0, %v1213
      %v1215 = vpop.f32.mrf.mxu0
      %1216 = vmatprep.mubr.f32.mxu0 0.0
      %1217 = vmatmul.mubr.f32.gmra.mxu0 %v603
      %v1218 = vpop.f32.mrf.mxu0
      %v1219 = vadd.f32 0.0, %v1218
      %v1220 = vpop.f32.mrf.mxu0
      %1221 = vmatprep.mubr.f32.mxu0 0.0
      %1222 = vmatmul.mubr.f32.gmra.mxu0 %v606
      %v1223 = vpop.f32.mrf.mxu0
      %v1224 = vadd.f32 0.0, %v1223
      %v1225 = vpop.f32.mrf.mxu0
      %1226 = vmatprep.mubr.f32.mxu0 0.0
      %1227 = vmatmul.mubr.f32.gmra.mxu0 %v609
      %v1228 = vpop.f32.mrf.mxu0
      %v1229 = vadd.f32 0.0, %v1228
      %v1230 = vpop.f32.mrf.mxu0
      %1231 = vmatprep.mubr.f32.mxu0 0.0
      %1232 = vmatmul.mubr.f32.gmra.mxu0 %v612
      %v1233 = vpop.f32.mrf.mxu0
      %v1234 = vadd.f32 0.0, %v1233
      %v1235 = vpop.f32.mrf.mxu0
      %1236 = vmatprep.mubr.f32.mxu0 0.0
      %1237 = vmatmul.mubr.f32.gmra.mxu0 %v615
      %v1238 = vpop.f32.mrf.mxu0
      %v1239 = vadd.f32 0.0, %v1238
      %v1240 = vpop.f32.mrf.mxu0
      %1241 = vmatprep.mubr.f32.mxu0 0.0
      %1242 = vmatmul.mubr.f32.gmra.mxu0 %v618
      %v1243 = vpop.f32.mrf.mxu0
      %v1244 = vadd.f32 0.0, %v1243
      %v1245 = vpop.f32.mrf.mxu0
      %1246 = vmatprep.mubr.f32.mxu0 0.0
      %1247 = vmatmul.mubr.f32.gmra.mxu0 %v621
      %v1248 = vpop.f32.mrf.mxu0
      %v1249 = vadd.f32 0.0, %v1248
      %v1250 = vpop.f32.mrf.mxu0
      %1251 = vmatprep.mubr.f32.mxu0 0.0
      %1252 = vmatmul.mubr.f32.gmra.mxu0 %v624
      %v1253 = vpop.f32.mrf.mxu0
      %v1254 = vadd.f32 0.0, %v1253
      %v1255 = vpop.f32.mrf.mxu0
      %1256 = vmatprep.mubr.f32.mxu0 0.0
      %1257 = vmatmul.mubr.f32.gmra.mxu0 %v627
      %v1258 = vpop.f32.mrf.mxu0
      %v1259 = vadd.f32 0.0, %v1258
      %v1260 = vpop.f32.mrf.mxu0
      %1261 = vmatprep.mubr.f32.mxu0 0.0
      %1262 = vmatmul.mubr.f32.gmra.mxu0 %v630
      %v1263 = vpop.f32.mrf.mxu0
      %v1264 = vadd.f32 0.0, %v1263
      %v1265 = vpop.f32.mrf.mxu0
      %1266 = vmatprep.mubr.f32.mxu0 0.0
      %1267 = vmatmul.mubr.f32.gmra.mxu0 %v633
      %v1268 = vpop.f32.mrf.mxu0
      %v1269 = vadd.f32 0.0, %v1268
      %v1270 = vpop.f32.mrf.mxu0
      %1271 = vmatprep.mubr.f32.mxu0 0.0
      %1272 = vmatmul.mubr.f32.gmra.mxu0 %v636
      %v1273 = vpop.f32.mrf.mxu0
      %v1274 = vadd.f32 0.0, %v1273
      %v1275 = vpop.f32.mrf.mxu0
      %1276 = vmatprep.mubr.f32.mxu0 0.0
      %1277 = vmatmul.mubr.f32.gmra.mxu0 %v639
      %v1278 = vpop.f32.mrf.mxu0
      %v1279 = vadd.f32 0.0, %v1278
      %v1280 = vpop.f32.mrf.mxu0
      %1281 = vmatprep.mubr.f32.mxu0 0.0
      %1282 = vmatmul.mubr.f32.gmra.mxu0 %v642
      %v1283 = vpop.f32.mrf.mxu0
      %v1284 = vadd.f32 0.0, %v1283
      %v1285 = vpop.f32.mrf.mxu0
      %1286 = vmatprep.mubr.f32.mxu0 0.0
      %1287 = vmatmul.mubr.f32.gmra.mxu0 %v645
      %v1288 = vpop.f32.mrf.mxu0
      %v1289 = vadd.f32 0.0, %v1288
      %v1290 = vpop.f32.mrf.mxu0
      %1291 = vmatprep.mubr.f32.mxu0 0.0
      %1292 = vmatmul.mubr.f32.gmra.mxu0 %v648
      %v1293 = vpop.f32.mrf.mxu0
      %v1294 = vadd.f32 0.0, %v1293
      %v1295 = vpop.f32.mrf.mxu0
      %1296 = vmatprep.mubr.f32.mxu0 0.0
      %1297 = vmatmul.mubr.f32.gmra.mxu0 %v651
      %v1298 = vpop.f32.mrf.mxu0
      %v1299 = vadd.f32 0.0, %v1298
      %v1300 = vpop.f32.mrf.mxu0
      %1301 = vmatprep.mubr.f32.mxu0 0.0
      %1302 = vmatmul.mubr.f32.gmra.mxu0 %v654
      %v1303 = vpop.f32.mrf.mxu0
      %v1304 = vadd.f32 0.0, %v1303
      %v1305 = vpop.f32.mrf.mxu0
      %1306 = vmatprep.mubr.f32.mxu0 0.0
      %1307 = vmatmul.mubr.f32.gmra.mxu0 %v657
      %v1308 = vpop.f32.mrf.mxu0
      %v1309 = vadd.f32 0.0, %v1308
      %v1310 = vpop.f32.mrf.mxu0
      %1311 = vmatprep.mubr.f32.mxu0 0.0
      %1312 = vmatmul.mubr.f32.gmra.mxu0 %v660
      %v1313 = vpop.f32.mrf.mxu0
      %v1314 = vadd.f32 0.0, %v1313
      %v1315 = vpop.f32.mrf.mxu0
      %1316 = vmatprep.mubr.f32.mxu0 0.0
      %1317 = vmatmul.mubr.f32.gmra.mxu0 %v663
      %v1318 = vpop.f32.mrf.mxu0
      %v1319 = vadd.f32 0.0, %v1318
      %v1320 = vpop.f32.mrf.mxu0
      %1321 = vmatprep.mubr.f32.mxu0 0.0
      %1322 = vmatmul.mubr.f32.gmra.mxu0 %v666
      %v1323 = vpop.f32.mrf.mxu0
      %v1324 = vadd.f32 0.0, %v1323
      %v1325 = vpop.f32.mrf.mxu0
      %1326 = vmatprep.mubr.f32.mxu0 0.0
      %1327 = vmatmul.mubr.f32.gmra.mxu0 %v669
      %v1328 = vpop.f32.mrf.mxu0
      %v1329 = vadd.f32 0.0, %v1328
      %v1330 = vpop.f32.mrf.mxu0
      %1331 = vmatprep.mubr.f32.mxu0 0.0
      %1332 = vmatmul.mubr.f32.gmra.mxu0 %v672
      %v1333 = vpop.f32.mrf.mxu0
      %v1334 = vadd.f32 0.0, %v1333
      %v1335 = vpop.f32.mrf.mxu0
      %1336 = vmatprep.mubr.f32.mxu0 0.0
      %1337 = vmatmul.mubr.f32.gmra.mxu0 %v675
      %v1338 = vpop.f32.mrf.mxu0
      %v1339 = vadd.f32 0.0, %v1338
      %v1340 = vpop.f32.mrf.mxu0
      %1341 = vmatprep.mubr.f32.mxu0 0.0
      %1342 = vmatmul.mubr.f32.gmra.mxu0 %v678
      %v1343 = vpop.f32.mrf.mxu0
      %v1344 = vadd.f32 0.0, %v1343
      %v1345 = vpop.f32.mrf.mxu0
      %1346 = vmatprep.mubr.f32.mxu0 0.0
      %1347 = vmatmul.mubr.f32.gmra.mxu0 %v681
      %v1348 = vpop.f32.mrf.mxu0
      %v1349 = vadd.f32 0.0, %v1348
      %v1350 = vpop.f32.mrf.mxu0
      %1351 = vmatprep.mubr.f32.mxu0 0.0
      %1352 = vmatmul.mubr.f32.gmra.mxu0 %v684
      %v1353 = vpop.f32.mrf.mxu0
      %v1354 = vadd.f32 0.0, %v1353
      %v1355 = vpop.f32.mrf.mxu0
      %1356 = vmatprep.mubr.f32.mxu0 0.0
      %1357 = vmatmul.mubr.f32.gmra.mxu0 %v687
      %v1358 = vpop.f32.mrf.mxu0
      %v1359 = vadd.f32 0.0, %v1358
      %v1360 = vpop.f32.mrf.mxu0
      %1361 = vmatprep.mubr.f32.mxu0 0.0
      %1362 = vmatmul.mubr.f32.gmra.mxu0 %v690
      %v1363 = vpop.f32.mrf.mxu0
      %v1364 = vadd.f32 0.0, %v1363
      %v1365 = vpop.f32.mrf.mxu0
      %1366 = vmatprep.mubr.f32.mxu0 0.0
      %1367 = vmatmul.mubr.f32.gmra.mxu0 %v693
      %v1368 = vpop.f32.mrf.mxu0
      %v1369 = vadd.f32 0.0, %v1368
      %v1370 = vpop.f32.mrf.mxu0
      %1371 = vmatprep.mubr.f32.mxu0 0.0
      %1372 = vmatmul.mubr.f32.gmra.mxu0 %v696
      %v1373 = vpop.f32.mrf.mxu0
      %v1374 = vadd.f32 0.0, %v1373
      %v1375 = vpop.f32.mrf.mxu0
      %1376 = vmatprep.mubr.f32.mxu0 0.0
      %1377 = vmatmul.mubr.f32.gmra.mxu0 %v699
      %v1378 = vpop.f32.mrf.mxu0
      %v1379 = vadd.f32 0.0, %v1378
      %v1380 = vpop.f32.mrf.mxu0
      %1381 = vmatprep.mubr.f32.mxu0 0.0
      %1382 = vmatmul.mubr.f32.gmra.mxu0 %v702
      %v1383 = vpop.f32.mrf.mxu0
      %v1384 = vadd.f32 0.0, %v1383
      %v1385 = vpop.f32.mrf.mxu0
      %1386 = vmatprep.mubr.f32.mxu0 0.0
      %1387 = vmatmul.mubr.f32.gmra.mxu0 %v705
      %v1388 = vpop.f32.mrf.mxu0
      %v1389 = vadd.f32 0.0, %v1388
      %v1390 = vpop.f32.mrf.mxu0
      %1391 = vmatprep.mubr.f32.mxu0 0.0
      %1392 = vmatmul.mubr.f32.gmra.mxu0 %v708
      %v1393 = vpop.f32.mrf.mxu0
      %v1394 = vadd.f32 0.0, %v1393
      %v1395 = vpop.f32.mrf.mxu0
      %1396 = vmatprep.mubr.f32.mxu0 0.0
      %1397 = vmatmul.mubr.f32.gmra.mxu0 %v711
      %v1398 = vpop.f32.mrf.mxu0
      %v1399 = vadd.f32 0.0, %v1398
      %v1400 = vpop.f32.mrf.mxu0
      %1401 = vmatprep.mubr.f32.mxu0 0.0
      %1402 = vmatmul.mubr.f32.gmra.mxu0 %v714
      %v1403 = vpop.f32.mrf.mxu0
      %v1404 = vadd.f32 0.0, %v1403
      %v1405 = vpop.f32.mrf.mxu0
      %1406 = vmatprep.mubr.f32.mxu0 0.0
      %1407 = vmatmul.mubr.f32.gmra.mxu0 %v717
      %v1408 = vpop.f32.mrf.mxu0
      %v1409 = vadd.f32 0.0, %v1408
      %v1410 = vpop.f32.mrf.mxu0
      %1411 = vmatprep.mubr.f32.mxu0 0.0
      %1412 = vmatmul.mubr.f32.gmra.mxu0 %v720
      %v1413 = vpop.f32.mrf.mxu0
      %v1414 = vadd.f32 0.0, %v1413
      %v1415 = vpop.f32.mrf.mxu0
      %1416 = vmatprep.mubr.f32.mxu0 0.0
      %1417 = vmatmul.mubr.f32.gmra.mxu0 %v723
      %v1418 = vpop.f32.mrf.mxu0
      %v1419 = vadd.f32 0.0, %v1418
      %v1420 = vpop.f32.mrf.mxu0
      %1421 = vmatprep.mubr.f32.mxu0 0.0
      %1422 = vmatmul.mubr.f32.gmra.mxu0 %v726
      %v1423 = vpop.f32.mrf.mxu0
      %v1424 = vadd.f32 0.0, %v1423
      %v1425 = vpop.f32.mrf.mxu0
      %1426 = vmatprep.mubr.f32.mxu0 0.0
      %1427 = vmatmul.mubr.f32.gmra.mxu0 %v729
      %v1428 = vpop.f32.mrf.mxu0
      %v1429 = vadd.f32 0.0, %v1428
      %v1430 = vpop.f32.mrf.mxu0
      %1431 = vmatprep.mubr.f32.mxu0 0.0
      %1432 = vmatmul.mubr.f32.gmra.mxu0 %v732
      %v1433 = vpop.f32.mrf.mxu0
      %v1434 = vadd.f32 0.0, %v1433
      %v1435 = vpop.f32.mrf.mxu0
      %1436 = vmatprep.mubr.f32.mxu0 0.0
      %1437 = vmatmul.mubr.f32.gmra.mxu0 %v735
      %v1438 = vpop.f32.mrf.mxu0
      %v1439 = vadd.f32 0.0, %v1438
      %v1440 = vpop.f32.mrf.mxu0
      %1441 = vdwg.mxu0
      %vm1442 = vcmask 261120
      %1443 = vst.msk [vmem:[%s210] sm:$0xff] %vm1442, %v804
      %1444 = vst.msk [vmem:[%s210 + $0x8] sm:$0xff] %vm1442, %v809
      %1445 = vst.msk [vmem:[%s210 + $0x10] sm:$0xff] %vm1442, %v814
      %1446 = vst.msk [vmem:[%s210 + $0x18] sm:$0xff] %vm1442, %v819
      %1447 = vst.msk [vmem:[%s210 + $0x20] sm:$0xff] %vm1442, %v824
      %1448 = vst.msk [vmem:[%s210 + $0x28] sm:$0xff] %vm1442, %v829
      %1449 = vst.msk [vmem:[%s210 + $0x30] sm:$0xff] %vm1442, %v834
      %1450 = vst.msk [vmem:[%s210 + $0x38] sm:$0xff] %vm1442, %v839
      %1451 = vst.msk [vmem:[%s210 + $0x40] sm:$0xff] %vm1442, %v844
      %1452 = vst.msk [vmem:[%s210 + $0x48] sm:$0xff] %vm1442, %v849
      %1453 = vst.msk [vmem:[%s210 + $0x50] sm:$0xff] %vm1442, %v854
      %1454 = vst.msk [vmem:[%s210 + $0x58] sm:$0xff] %vm1442, %v859
      %1455 = vst.msk [vmem:[%s210 + $0x60] sm:$0xff] %vm1442, %v864
      %1456 = vst.msk [vmem:[%s210 + $0x68] sm:$0xff] %vm1442, %v869
      %1457 = vst.msk [vmem:[%s210 + $0x70] sm:$0xff] %vm1442, %v874
      %1458 = vst.msk [vmem:[%s210 + $0x78] sm:$0xff] %vm1442, %v879
      %1459 = vst.msk [vmem:[%s210 + $0x80] sm:$0xff] %vm1442, %v884
      %1460 = vst.msk [vmem:[%s210 + $0x88] sm:$0xff] %vm1442, %v889
      %1461 = vst.msk [vmem:[%s210 + $0x90] sm:$0xff] %vm1442, %v894
      %1462 = vst.msk [vmem:[%s210 + $0x98] sm:$0xff] %vm1442, %v899
      %1463 = vst.msk [vmem:[%s210 + $0xa0] sm:$0xff] %vm1442, %v904
      %1464 = vst.msk [vmem:[%s210 + $0xa8] sm:$0xff] %vm1442, %v909
      %1465 = vst.msk [vmem:[%s210 + $0xb0] sm:$0xff] %vm1442, %v914
      %1466 = vst.msk [vmem:[%s210 + $0xb8] sm:$0xff] %vm1442, %v919
      %1467 = vst.msk [vmem:[%s210 + $0xc0] sm:$0xff] %vm1442, %v924
      %1468 = vst.msk [vmem:[%s210 + $0xc8] sm:$0xff] %vm1442, %v929
      %1469 = vst.msk [vmem:[%s210 + $0xd0] sm:$0xff] %vm1442, %v934
      %1470 = vst.msk [vmem:[%s210 + $0xd8] sm:$0xff] %vm1442, %v939
      %1471 = vst.msk [vmem:[%s210 + $0xe0] sm:$0xff] %vm1442, %v944
      %1472 = vst.msk [vmem:[%s210 + $0xe8] sm:$0xff] %vm1442, %v949
      %1473 = vst.msk [vmem:[%s210 + $0xf0] sm:$0xff] %vm1442, %v954
      %1474 = vst.msk [vmem:[%s210 + $0xf8] sm:$0xff] %vm1442, %v959
      %1475 = vst.msk [vmem:[%s210 + $0x100] sm:$0xff] %vm1442, %v964
      %1476 = vst.msk [vmem:[%s210 + $0x108] sm:$0xff] %vm1442, %v969
      %1477 = vst.msk [vmem:[%s210 + $0x110] sm:$0xff] %vm1442, %v974
      %1478 = vst.msk [vmem:[%s210 + $0x118] sm:$0xff] %vm1442, %v979
      %1479 = vst.msk [vmem:[%s210 + $0x120] sm:$0xff] %vm1442, %v984
      %1480 = vst.msk [vmem:[%s210 + $0x128] sm:$0xff] %vm1442, %v989
      %1481 = vst.msk [vmem:[%s210 + $0x130] sm:$0xff] %vm1442, %v994
      %1482 = vst.msk [vmem:[%s210 + $0x138] sm:$0xff] %vm1442, %v999
      %1483 = vst.msk [vmem:[%s210 + $0x140] sm:$0xff] %vm1442, %v1004
      %1484 = vst.msk [vmem:[%s210 + $0x148] sm:$0xff] %vm1442, %v1009
      %1485 = vst.msk [vmem:[%s210 + $0x150] sm:$0xff] %vm1442, %v1014
      %1486 = vst.msk [vmem:[%s210 + $0x158] sm:$0xff] %vm1442, %v1019
      %1487 = vst.msk [vmem:[%s210 + $0x160] sm:$0xff] %vm1442, %v1024
      %1488 = vst.msk [vmem:[%s210 + $0x168] sm:$0xff] %vm1442, %v1029
      %1489 = vst.msk [vmem:[%s210 + $0x170] sm:$0xff] %vm1442, %v1034
      %1490 = vst.msk [vmem:[%s210 + $0x178] sm:$0xff] %vm1442, %v1039
      %1491 = vst.msk [vmem:[%s210 + $0x180] sm:$0xff] %vm1442, %v1044
      %1492 = vst.msk [vmem:[%s210 + $0x188] sm:$0xff] %vm1442, %v1049
      %1493 = vst.msk [vmem:[%s210 + $0x190] sm:$0xff] %vm1442, %v1054
      %1494 = vst.msk [vmem:[%s210 + $0x198] sm:$0xff] %vm1442, %v1059
      %1495 = vst.msk [vmem:[%s210 + $0x1a0] sm:$0xff] %vm1442, %v1064
      %1496 = vst.msk [vmem:[%s210 + $0x1a8] sm:$0xff] %vm1442, %v1069
      %1497 = vst.msk [vmem:[%s210 + $0x1b0] sm:$0xff] %vm1442, %v1074
      %1498 = vst.msk [vmem:[%s210 + $0x1b8] sm:$0xff] %vm1442, %v1079
      %1499 = vst.msk [vmem:[%s210 + $0x1c0] sm:$0xff] %vm1442, %v1084
      %1500 = vst.msk [vmem:[%s210 + $0x1c8] sm:$0xff] %vm1442, %v1089
      %1501 = vst.msk [vmem:[%s210 + $0x1d0] sm:$0xff] %vm1442, %v1094
      %1502 = vst.msk [vmem:[%s210 + $0x1d8] sm:$0xff] %vm1442, %v1099
      %1503 = vst.msk [vmem:[%s210 + $0x1e0] sm:$0xff] %vm1442, %v1104
      %1504 = vst.msk [vmem:[%s210 + $0x1e8] sm:$0xff] %vm1442, %v1109
      %1505 = vst.msk [vmem:[%s210 + $0x1f0] sm:$0xff] %vm1442, %v1114
      %1506 = vst.msk [vmem:[%s210 + $0x1f8] sm:$0xff] %vm1442, %v1119
      %1507 = vst.msk [vmem:[%s210 + $0x200] sm:$0xff] %vm1442, %v1124
      %1508 = vst.msk [vmem:[%s210 + $0x208] sm:$0xff] %vm1442, %v1129
      %1509 = vst.msk [vmem:[%s210 + $0x210] sm:$0xff] %vm1442, %v1134
      %1510 = vst.msk [vmem:[%s210 + $0x218] sm:$0xff] %vm1442, %v1139
      %1511 = vst.msk [vmem:[%s210 + $0x220] sm:$0xff] %vm1442, %v1144
      %1512 = vst.msk [vmem:[%s210 + $0x228] sm:$0xff] %vm1442, %v1149
      %1513 = vst.msk [vmem:[%s210 + $0x230] sm:$0xff] %vm1442, %v1154
      %1514 = vst.msk [vmem:[%s210 + $0x238] sm:$0xff] %vm1442, %v1159
      %1515 = vst.msk [vmem:[%s210 + $0x240] sm:$0xff] %vm1442, %v1164
      %1516 = vst.msk [vmem:[%s210 + $0x248] sm:$0xff] %vm1442, %v1169
      %1517 = vst.msk [vmem:[%s210 + $0x250] sm:$0xff] %vm1442, %v1174
      %1518 = vst.msk [vmem:[%s210 + $0x258] sm:$0xff] %vm1442, %v1179
      %1519 = vst.msk [vmem:[%s210 + $0x260] sm:$0xff] %vm1442, %v1184
      %1520 = vst.msk [vmem:[%s210 + $0x268] sm:$0xff] %vm1442, %v1189
      %1521 = vst.msk [vmem:[%s210 + $0x270] sm:$0xff] %vm1442, %v1194
      %1522 = vst.msk [vmem:[%s210 + $0x278] sm:$0xff] %vm1442, %v1199
      %1523 = vst.msk [vmem:[%s210 + $0x280] sm:$0xff] %vm1442, %v1204
      %1524 = vst.msk [vmem:[%s210 + $0x288] sm:$0xff] %vm1442, %v1209
      %1525 = vst.msk [vmem:[%s210 + $0x290] sm:$0xff] %vm1442, %v1214
      %1526 = vst.msk [vmem:[%s210 + $0x298] sm:$0xff] %vm1442, %v1219
      %1527 = vst.msk [vmem:[%s210 + $0x2a0] sm:$0xff] %vm1442, %v1224
      %1528 = vst.msk [vmem:[%s210 + $0x2a8] sm:$0xff] %vm1442, %v1229
      %1529 = vst.msk [vmem:[%s210 + $0x2b0] sm:$0xff] %vm1442, %v1234
      %1530 = vst.msk [vmem:[%s210 + $0x2b8] sm:$0xff] %vm1442, %v1239
      %1531 = vst.msk [vmem:[%s210 + $0x2c0] sm:$0xff] %vm1442, %v1244
      %1532 = vst.msk [vmem:[%s210 + $0x2c8] sm:$0xff] %vm1442, %v1249
      %1533 = vst.msk [vmem:[%s210 + $0x2d0] sm:$0xff] %vm1442, %v1254
      %1534 = vst.msk [vmem:[%s210 + $0x2d8] sm:$0xff] %vm1442, %v1259
      %1535 = vst.msk [vmem:[%s210 + $0x2e0] sm:$0xff] %vm1442, %v1264
      %1536 = vst.msk [vmem:[%s210 + $0x2e8] sm:$0xff] %vm1442, %v1269
      %1537 = vst.msk [vmem:[%s210 + $0x2f0] sm:$0xff] %vm1442, %v1274
      %1538 = vst.msk [vmem:[%s210 + $0x2f8] sm:$0xff] %vm1442, %v1279
      %1539 = vst.msk [vmem:[%s210 + $0x300] sm:$0xff] %vm1442, %v1284
      %1540 = vst.msk [vmem:[%s210 + $0x308] sm:$0xff] %vm1442, %v1289
      %1541 = vst.msk [vmem:[%s210 + $0x310] sm:$0xff] %vm1442, %v1294
      %1542 = vst.msk [vmem:[%s210 + $0x318] sm:$0xff] %vm1442, %v1299
      %1543 = vst.msk [vmem:[%s210 + $0x320] sm:$0xff] %vm1442, %v1304
      %1544 = vst.msk [vmem:[%s210 + $0x328] sm:$0xff] %vm1442, %v1309
      %1545 = vst.msk [vmem:[%s210 + $0x330] sm:$0xff] %vm1442, %v1314
      %1546 = vst.msk [vmem:[%s210 + $0x338] sm:$0xff] %vm1442, %v1319
      %1547 = vst.msk [vmem:[%s210 + $0x340] sm:$0xff] %vm1442, %v1324
      %1548 = vst.msk [vmem:[%s210 + $0x348] sm:$0xff] %vm1442, %v1329
      %1549 = vst.msk [vmem:[%s210 + $0x350] sm:$0xff] %vm1442, %v1334
      %1550 = vst.msk [vmem:[%s210 + $0x358] sm:$0xff] %vm1442, %v1339
      %1551 = vst.msk [vmem:[%s210 + $0x360] sm:$0xff] %vm1442, %v1344
      %1552 = vst.msk [vmem:[%s210 + $0x368] sm:$0xff] %vm1442, %v1349
      %1553 = vst.msk [vmem:[%s210 + $0x370] sm:$0xff] %vm1442, %v1354
      %1554 = vst.msk [vmem:[%s210 + $0x378] sm:$0xff] %vm1442, %v1359
      %1555 = vst.msk [vmem:[%s210 + $0x380] sm:$0xff] %vm1442, %v1364
      %1556 = vst.msk [vmem:[%s210 + $0x388] sm:$0xff] %vm1442, %v1369
      %1557 = vst.msk [vmem:[%s210 + $0x390] sm:$0xff] %vm1442, %v1374
      %1558 = vst.msk [vmem:[%s210 + $0x398] sm:$0xff] %vm1442, %v1379
      %1559 = vst.msk [vmem:[%s210 + $0x3a0] sm:$0xff] %vm1442, %v1384
      %1560 = vst.msk [vmem:[%s210 + $0x3a8] sm:$0xff] %vm1442, %v1389
      %1561 = vst.msk [vmem:[%s210 + $0x3b0] sm:$0xff] %vm1442, %v1394
      %1562 = vst.msk [vmem:[%s210 + $0x3b8] sm:$0xff] %vm1442, %v1399
      %1563 = vst.msk [vmem:[%s210 + $0x3c0] sm:$0xff] %vm1442, %v1404
      %1564 = vst.msk [vmem:[%s210 + $0x3c8] sm:$0xff] %vm1442, %v1409
      %1565 = vst.msk [vmem:[%s210 + $0x3d0] sm:$0xff] %vm1442, %v1414
      %1566 = vst.msk [vmem:[%s210 + $0x3d8] sm:$0xff] %vm1442, %v1419
      %1567 = vst.msk [vmem:[%s210 + $0x3e0] sm:$0xff] %vm1442, %v1424
      %1568 = vst.msk [vmem:[%s210 + $0x3e8] sm:$0xff] %vm1442, %v1429
      %1569 = vst.msk [vmem:[%s210 + $0x3f0] sm:$0xff] %vm1442, %v1434
      %1570 = vst.msk [vmem:[%s210 + $0x3f8] sm:$0xff] %vm1442, %v1439
      %v1571 = vsel %vm1442, %v804, 0.0
      %v1572 = vsel %vm1442, %v809, 0.0
      %v1573 = vadd.f32 %v1571, %v1572
      %v1574 = vsel %vm1442, %v814, 0.0
      %v1575 = vadd.f32 %v1573, %v1574
      %v1576 = vsel %vm1442, %v819, 0.0
      %v1577 = vadd.f32 %v1575, %v1576
      %v1578 = vsel %vm1442, %v824, 0.0
      %v1579 = vadd.f32 %v1577, %v1578
      %v1580 = vsel %vm1442, %v829, 0.0
      %v1581 = vadd.f32 %v1579, %v1580
      %v1582 = vsel %vm1442, %v834, 0.0
      %v1583 = vadd.f32 %v1581, %v1582
      %v1584 = vsel %vm1442, %v839, 0.0
      %v1585 = vadd.f32 %v1583, %v1584
      %v1586 = vsel %vm1442, %v844, 0.0
      %v1587 = vadd.f32 %v1585, %v1586
      %v1588 = vsel %vm1442, %v849, 0.0
      %v1589 = vadd.f32 %v1587, %v1588
      %v1590 = vsel %vm1442, %v854, 0.0
      %v1591 = vadd.f32 %v1589, %v1590
      %v1592 = vsel %vm1442, %v859, 0.0
      %v1593 = vadd.f32 %v1591, %v1592
      %v1594 = vsel %vm1442, %v864, 0.0
      %v1595 = vadd.f32 %v1593, %v1594
      %v1596 = vsel %vm1442, %v869, 0.0
      %v1597 = vadd.f32 %v1595, %v1596
      %v1598 = vsel %vm1442, %v874, 0.0
      %v1599 = vadd.f32 %v1597, %v1598
      %v1600 = vsel %vm1442, %v879, 0.0
      %v1601 = vadd.f32 %v1599, %v1600
      %v1602 = vsel %vm1442, %v884, 0.0
      %v1603 = vadd.f32 %v1601, %v1602
      %v1604 = vsel %vm1442, %v889, 0.0
      %v1605 = vadd.f32 %v1603, %v1604
      %v1606 = vsel %vm1442, %v894, 0.0
      %v1607 = vadd.f32 %v1605, %v1606
      %v1608 = vsel %vm1442, %v899, 0.0
      %v1609 = vadd.f32 %v1607, %v1608
      %v1610 = vsel %vm1442, %v904, 0.0
      %v1611 = vadd.f32 %v1609, %v1610
      %v1612 = vsel %vm1442, %v909, 0.0
      %v1613 = vadd.f32 %v1611, %v1612
      %v1614 = vsel %vm1442, %v914, 0.0
      %v1615 = vadd.f32 %v1613, %v1614
      %v1616 = vsel %vm1442, %v919, 0.0
      %v1617 = vadd.f32 %v1615, %v1616
      %v1618 = vsel %vm1442, %v924, 0.0
      %v1619 = vadd.f32 %v1617, %v1618
      %v1620 = vsel %vm1442, %v929, 0.0
      %v1621 = vadd.f32 %v1619, %v1620
      %v1622 = vsel %vm1442, %v934, 0.0
      %v1623 = vadd.f32 %v1621, %v1622
      %v1624 = vsel %vm1442, %v939, 0.0
      %v1625 = vadd.f32 %v1623, %v1624
      %v1626 = vsel %vm1442, %v944, 0.0
      %v1627 = vadd.f32 %v1625, %v1626
      %v1628 = vsel %vm1442, %v949, 0.0
      %v1629 = vadd.f32 %v1627, %v1628
      %v1630 = vsel %vm1442, %v954, 0.0
      %v1631 = vadd.f32 %v1629, %v1630
      %v1632 = vsel %vm1442, %v959, 0.0
      %v1633 = vadd.f32 %v1631, %v1632
      %v1634 = vsel %vm1442, %v964, 0.0
      %v1635 = vadd.f32 %v1633, %v1634
      %v1636 = vsel %vm1442, %v969, 0.0
      %v1637 = vadd.f32 %v1635, %v1636
      %v1638 = vsel %vm1442, %v974, 0.0
      %v1639 = vadd.f32 %v1637, %v1638
      %v1640 = vsel %vm1442, %v979, 0.0
      %v1641 = vadd.f32 %v1639, %v1640
      %v1642 = vsel %vm1442, %v984, 0.0
      %v1643 = vadd.f32 %v1641, %v1642
      %v1644 = vsel %vm1442, %v989, 0.0
      %v1645 = vadd.f32 %v1643, %v1644
      %v1646 = vsel %vm1442, %v994, 0.0
      %v1647 = vadd.f32 %v1645, %v1646
      %v1648 = vsel %vm1442, %v999, 0.0
      %v1649 = vadd.f32 %v1647, %v1648
      %v1650 = vsel %vm1442, %v1004, 0.0
      %v1651 = vadd.f32 %v1649, %v1650
      %v1652 = vsel %vm1442, %v1009, 0.0
      %v1653 = vadd.f32 %v1651, %v1652
      %v1654 = vsel %vm1442, %v1014, 0.0
      %v1655 = vadd.f32 %v1653, %v1654
      %v1656 = vsel %vm1442, %v1019, 0.0
      %v1657 = vadd.f32 %v1655, %v1656
      %v1658 = vsel %vm1442, %v1024, 0.0
      %v1659 = vadd.f32 %v1657, %v1658
      %v1660 = vsel %vm1442, %v1029, 0.0
      %v1661 = vadd.f32 %v1659, %v1660
      %v1662 = vsel %vm1442, %v1034, 0.0
      %v1663 = vadd.f32 %v1661, %v1662
      %v1664 = vsel %vm1442, %v1039, 0.0
      %v1665 = vadd.f32 %v1663, %v1664
      %v1666 = vsel %vm1442, %v1044, 0.0
      %v1667 = vadd.f32 %v1665, %v1666
      %v1668 = vsel %vm1442, %v1049, 0.0
      %v1669 = vadd.f32 %v1667, %v1668
      %v1670 = vsel %vm1442, %v1054, 0.0
      %v1671 = vadd.f32 %v1669, %v1670
      %v1672 = vsel %vm1442, %v1059, 0.0
      %v1673 = vadd.f32 %v1671, %v1672
      %v1674 = vsel %vm1442, %v1064, 0.0
      %v1675 = vadd.f32 %v1673, %v1674
      %v1676 = vsel %vm1442, %v1069, 0.0
      %v1677 = vadd.f32 %v1675, %v1676
      %v1678 = vsel %vm1442, %v1074, 0.0
      %v1679 = vadd.f32 %v1677, %v1678
      %v1680 = vsel %vm1442, %v1079, 0.0
      %v1681 = vadd.f32 %v1679, %v1680
      %v1682 = vsel %vm1442, %v1084, 0.0
      %v1683 = vadd.f32 %v1681, %v1682
      %v1684 = vsel %vm1442, %v1089, 0.0
      %v1685 = vadd.f32 %v1683, %v1684
      %v1686 = vsel %vm1442, %v1094, 0.0
      %v1687 = vadd.f32 %v1685, %v1686
      %v1688 = vsel %vm1442, %v1099, 0.0
      %v1689 = vadd.f32 %v1687, %v1688
      %v1690 = vsel %vm1442, %v1104, 0.0
      %v1691 = vadd.f32 %v1689, %v1690
      %v1692 = vsel %vm1442, %v1109, 0.0
      %v1693 = vadd.f32 %v1691, %v1692
      %v1694 = vsel %vm1442, %v1114, 0.0
      %v1695 = vadd.f32 %v1693, %v1694
      %v1696 = vsel %vm1442, %v1119, 0.0
      %v1697 = vadd.f32 %v1695, %v1696
      %v1698 = vsel %vm1442, %v1124, 0.0
      %v1699 = vadd.f32 %v1697, %v1698
      %v1700 = vsel %vm1442, %v1129, 0.0
      %v1701 = vadd.f32 %v1699, %v1700
      %v1702 = vsel %vm1442, %v1134, 0.0
      %v1703 = vadd.f32 %v1701, %v1702
      %v1704 = vsel %vm1442, %v1139, 0.0
      %v1705 = vadd.f32 %v1703, %v1704
      %v1706 = vsel %vm1442, %v1144, 0.0
      %v1707 = vadd.f32 %v1705, %v1706
      %v1708 = vsel %vm1442, %v1149, 0.0
      %v1709 = vadd.f32 %v1707, %v1708
      %v1710 = vsel %vm1442, %v1154, 0.0
      %v1711 = vadd.f32 %v1709, %v1710
      %v1712 = vsel %vm1442, %v1159, 0.0
      %v1713 = vadd.f32 %v1711, %v1712
      %v1714 = vsel %vm1442, %v1164, 0.0
      %v1715 = vadd.f32 %v1713, %v1714
      %v1716 = vsel %vm1442, %v1169, 0.0
      %v1717 = vadd.f32 %v1715, %v1716
      %v1718 = vsel %vm1442, %v1174, 0.0
      %v1719 = vadd.f32 %v1717, %v1718
      %v1720 = vsel %vm1442, %v1179, 0.0
      %v1721 = vadd.f32 %v1719, %v1720
      %v1722 = vsel %vm1442, %v1184, 0.0
      %v1723 = vadd.f32 %v1721, %v1722
      %v1724 = vsel %vm1442, %v1189, 0.0
      %v1725 = vadd.f32 %v1723, %v1724
      %v1726 = vsel %vm1442, %v1194, 0.0
      %v1727 = vadd.f32 %v1725, %v1726
      %v1728 = vsel %vm1442, %v1199, 0.0
      %v1729 = vadd.f32 %v1727, %v1728
      %v1730 = vsel %vm1442, %v1204, 0.0
      %v1731 = vadd.f32 %v1729, %v1730
      %v1732 = vsel %vm1442, %v1209, 0.0
      %v1733 = vadd.f32 %v1731, %v1732
      %v1734 = vsel %vm1442, %v1214, 0.0
      %v1735 = vadd.f32 %v1733, %v1734
      %v1736 = vsel %vm1442, %v1219, 0.0
      %v1737 = vadd.f32 %v1735, %v1736
      %v1738 = vsel %vm1442, %v1224, 0.0
      %v1739 = vadd.f32 %v1737, %v1738
      %v1740 = vsel %vm1442, %v1229, 0.0
      %v1741 = vadd.f32 %v1739, %v1740
      %v1742 = vsel %vm1442, %v1234, 0.0
      %v1743 = vadd.f32 %v1741, %v1742
      %v1744 = vsel %vm1442, %v1239, 0.0
      %v1745 = vadd.f32 %v1743, %v1744
      %v1746 = vsel %vm1442, %v1244, 0.0
      %v1747 = vadd.f32 %v1745, %v1746
      %v1748 = vsel %vm1442, %v1249, 0.0
      %v1749 = vadd.f32 %v1747, %v1748
      %v1750 = vsel %vm1442, %v1254, 0.0
      %v1751 = vadd.f32 %v1749, %v1750
      %v1752 = vsel %vm1442, %v1259, 0.0
      %v1753 = vadd.f32 %v1751, %v1752
      %v1754 = vsel %vm1442, %v1264, 0.0
      %v1755 = vadd.f32 %v1753, %v1754
      %v1756 = vsel %vm1442, %v1269, 0.0
      %v1757 = vadd.f32 %v1755, %v1756
      %v1758 = vsel %vm1442, %v1274, 0.0
      %v1759 = vadd.f32 %v1757, %v1758
      %v1760 = vsel %vm1442, %v1279, 0.0
      %v1761 = vadd.f32 %v1759, %v1760
      %v1762 = vsel %vm1442, %v1284, 0.0
      %v1763 = vadd.f32 %v1761, %v1762
      %v1764 = vsel %vm1442, %v1289, 0.0
      %v1765 = vadd.f32 %v1763, %v1764
      %v1766 = vsel %vm1442, %v1294, 0.0
      %v1767 = vadd.f32 %v1765, %v1766
      %v1768 = vsel %vm1442, %v1299, 0.0
      %v1769 = vadd.f32 %v1767, %v1768
      %v1770 = vsel %vm1442, %v1304, 0.0
      %v1771 = vadd.f32 %v1769, %v1770
      %v1772 = vsel %vm1442, %v1309, 0.0
      %v1773 = vadd.f32 %v1771, %v1772
      %v1774 = vsel %vm1442, %v1314, 0.0
      %v1775 = vadd.f32 %v1773, %v1774
      %v1776 = vsel %vm1442, %v1319, 0.0
      %v1777 = vadd.f32 %v1775, %v1776
      %v1778 = vsel %vm1442, %v1324, 0.0
      %v1779 = vadd.f32 %v1777, %v1778
      %v1780 = vsel %vm1442, %v1329, 0.0
      %v1781 = vadd.f32 %v1779, %v1780
      %v1782 = vsel %vm1442, %v1334, 0.0
      %v1783 = vadd.f32 %v1781, %v1782
      %v1784 = vsel %vm1442, %v1339, 0.0
      %v1785 = vadd.f32 %v1783, %v1784
      %v1786 = vsel %vm1442, %v1344, 0.0
      %v1787 = vadd.f32 %v1785, %v1786
      %v1788 = vsel %vm1442, %v1349, 0.0
      %v1789 = vadd.f32 %v1787, %v1788
      %v1790 = vsel %vm1442, %v1354, 0.0
      %v1791 = vadd.f32 %v1789, %v1790
      %v1792 = vsel %vm1442, %v1359, 0.0
      %v1793 = vadd.f32 %v1791, %v1792
      %v1794 = vsel %vm1442, %v1364, 0.0
      %v1795 = vadd.f32 %v1793, %v1794
      %v1796 = vsel %vm1442, %v1369, 0.0
      %v1797 = vadd.f32 %v1795, %v1796
      %v1798 = vsel %vm1442, %v1374, 0.0
      %v1799 = vadd.f32 %v1797, %v1798
      %v1800 = vsel %vm1442, %v1379, 0.0
      %v1801 = vadd.f32 %v1799, %v1800
      %v1802 = vsel %vm1442, %v1384, 0.0
      %v1803 = vadd.f32 %v1801, %v1802
      %v1804 = vsel %vm1442, %v1389, 0.0
      %v1805 = vadd.f32 %v1803, %v1804
      %v1806 = vsel %vm1442, %v1394, 0.0
      %v1807 = vadd.f32 %v1805, %v1806
      %v1808 = vsel %vm1442, %v1399, 0.0
      %v1809 = vadd.f32 %v1807, %v1808
      %v1810 = vsel %vm1442, %v1404, 0.0
      %v1811 = vadd.f32 %v1809, %v1810
      %v1812 = vsel %vm1442, %v1409, 0.0
      %v1813 = vadd.f32 %v1811, %v1812
      %v1814 = vsel %vm1442, %v1414, 0.0
      %v1815 = vadd.f32 %v1813, %v1814
      %v1816 = vsel %vm1442, %v1419, 0.0
      %v1817 = vadd.f32 %v1815, %v1816
      %v1818 = vsel %vm1442, %v1424, 0.0
      %v1819 = vadd.f32 %v1817, %v1818
      %v1820 = vsel %vm1442, %v1429, 0.0
      %v1821 = vadd.f32 %v1819, %v1820
      %v1822 = vsel %vm1442, %v1434, 0.0
      %v1823 = vadd.f32 %v1821, %v1822
      %v1824 = vsel %vm1442, %v1439, 0.0
      %v1825 = vadd.f32 %v1823, %v1824
      %v1826 = vrot.slane %v1825, 4
      %v1827 = vadd.f32 %v1825, %v1826
      %v1828 = vrot.slane %v1827, 2
      %v1829 = vadd.f32 %v1827, %v1828
      %v1830 = vrot.slane %v1829, 1
      %v1831 = vadd.f32 %v1829, %v1830
      %vm1832 = vcmask 253952
      %1833 = vst.msk [vmem:[%s214] sm:$0x1] %vm1832, %v1831
      %v1834 = vmul.f32 %v804, %v804
      %v1835 = vmul.f32 %v809, %v809
      %v1836 = vmul.f32 %v814, %v814
      %v1837 = vmul.f32 %v819, %v819
      %v1838 = vmul.f32 %v824, %v824
      %v1839 = vmul.f32 %v829, %v829
      %v1840 = vmul.f32 %v834, %v834
      %v1841 = vmul.f32 %v839, %v839
      %v1842 = vmul.f32 %v844, %v844
      %v1843 = vmul.f32 %v849, %v849
      %v1844 = vmul.f32 %v854, %v854
      %v1845 = vmul.f32 %v859, %v859
      %v1846 = vmul.f32 %v864, %v864
      %v1847 = vmul.f32 %v869, %v869
      %v1848 = vmul.f32 %v874, %v874
      %v1849 = vmul.f32 %v879, %v879
      %v1850 = vmul.f32 %v884, %v884
      %v1851 = vmul.f32 %v889, %v889
      %v1852 = vmul.f32 %v894, %v894
      %v1853 = vmul.f32 %v899, %v899
      %v1854 = vmul.f32 %v904, %v904
      %v1855 = vmul.f32 %v909, %v909
      %v1856 = vmul.f32 %v914, %v914
      %v1857 = vmul.f32 %v919, %v919
      %v1858 = vmul.f32 %v924, %v924
      %v1859 = vmul.f32 %v929, %v929
      %v1860 = vmul.f32 %v934, %v934
      %v1861 = vmul.f32 %v939, %v939
      %v1862 = vmul.f32 %v944, %v944
      %v1863 = vmul.f32 %v949, %v949
      %v1864 = vmul.f32 %v954, %v954
      %v1865 = vmul.f32 %v959, %v959
      %v1866 = vmul.f32 %v964, %v964
      %v1867 = vmul.f32 %v969, %v969
      %v1868 = vmul.f32 %v974, %v974
      %v1869 = vmul.f32 %v979, %v979
      %v1870 = vmul.f32 %v984, %v984
      %v1871 = vmul.f32 %v989, %v989
      %v1872 = vmul.f32 %v994, %v994
      %v1873 = vmul.f32 %v999, %v999
      %v1874 = vmul.f32 %v1004, %v1004
      %v1875 = vmul.f32 %v1009, %v1009
      %v1876 = vmul.f32 %v1014, %v1014
      %v1877 = vmul.f32 %v1019, %v1019
      %v1878 = vmul.f32 %v1024, %v1024
      %v1879 = vmul.f32 %v1029, %v1029
      %v1880 = vmul.f32 %v1034, %v1034
      %v1881 = vmul.f32 %v1039, %v1039
      %v1882 = vmul.f32 %v1044, %v1044
      %v1883 = vmul.f32 %v1049, %v1049
      %v1884 = vmul.f32 %v1054, %v1054
      %v1885 = vmul.f32 %v1059, %v1059
      %v1886 = vmul.f32 %v1064, %v1064
      %v1887 = vmul.f32 %v1069, %v1069
      %v1888 = vmul.f32 %v1074, %v1074
      %v1889 = vmul.f32 %v1079, %v1079
      %v1890 = vmul.f32 %v1084, %v1084
      %v1891 = vmul.f32 %v1089, %v1089
      %v1892 = vmul.f32 %v1094, %v1094
      %v1893 = vmul.f32 %v1099, %v1099
      %v1894 = vmul.f32 %v1104, %v1104
      %v1895 = vmul.f32 %v1109, %v1109
      %v1896 = vmul.f32 %v1114, %v1114
      %v1897 = vmul.f32 %v1119, %v1119
      %v1898 = vmul.f32 %v1124, %v1124
      %v1899 = vmul.f32 %v1129, %v1129
      %v1900 = vmul.f32 %v1134, %v1134
      %v1901 = vmul.f32 %v1139, %v1139
      %v1902 = vmul.f32 %v1144, %v1144
      %v1903 = vmul.f32 %v1149, %v1149
      %v1904 = vmul.f32 %v1154, %v1154
      %v1905 = vmul.f32 %v1159, %v1159
      %v1906 = vmul.f32 %v1164, %v1164
      %v1907 = vmul.f32 %v1169, %v1169
      %v1908 = vmul.f32 %v1174, %v1174
      %v1909 = vmul.f32 %v1179, %v1179
      %v1910 = vmul.f32 %v1184, %v1184
      %v1911 = vmul.f32 %v1189, %v1189
      %v1912 = vmul.f32 %v1194, %v1194
      %v1913 = vmul.f32 %v1199, %v1199
      %v1914 = vmul.f32 %v1204, %v1204
      %v1915 = vmul.f32 %v1209, %v1209
      %v1916 = vmul.f32 %v1214, %v1214
      %v1917 = vmul.f32 %v1219, %v1219
      %v1918 = vmul.f32 %v1224, %v1224
      %v1919 = vmul.f32 %v1229, %v1229
      %v1920 = vmul.f32 %v1234, %v1234
      %v1921 = vmul.f32 %v1239, %v1239
      %v1922 = vmul.f32 %v1244, %v1244
      %v1923 = vmul.f32 %v1249, %v1249
      %v1924 = vmul.f32 %v1254, %v1254
      %v1925 = vmul.f32 %v1259, %v1259
      %v1926 = vmul.f32 %v1264, %v1264
      %v1927 = vmul.f32 %v1269, %v1269
      %v1928 = vmul.f32 %v1274, %v1274
      %v1929 = vmul.f32 %v1279, %v1279
      %v1930 = vmul.f32 %v1284, %v1284
      %v1931 = vmul.f32 %v1289, %v1289
      %v1932 = vmul.f32 %v1294, %v1294
      %v1933 = vmul.f32 %v1299, %v1299
      %v1934 = vmul.f32 %v1304, %v1304
      %v1935 = vmul.f32 %v1309, %v1309
      %v1936 = vmul.f32 %v1314, %v1314
      %v1937 = vmul.f32 %v1319, %v1319
      %v1938 = vmul.f32 %v1324, %v1324
      %v1939 = vmul.f32 %v1329, %v1329
      %v1940 = vmul.f32 %v1334, %v1334
      %v1941 = vmul.f32 %v1339, %v1339
      %v1942 = vmul.f32 %v1344, %v1344
      %v1943 = vmul.f32 %v1349, %v1349
      %v1944 = vmul.f32 %v1354, %v1354
      %v1945 = vmul.f32 %v1359, %v1359
      %v1946 = vmul.f32 %v1364, %v1364
      %v1947 = vmul.f32 %v1369, %v1369
      %v1948 = vmul.f32 %v1374, %v1374
      %v1949 = vmul.f32 %v1379, %v1379
      %v1950 = vmul.f32 %v1384, %v1384
      %v1951 = vmul.f32 %v1389, %v1389
      %v1952 = vmul.f32 %v1394, %v1394
      %v1953 = vmul.f32 %v1399, %v1399
      %v1954 = vmul.f32 %v1404, %v1404
      %v1955 = vmul.f32 %v1409, %v1409
      %v1956 = vmul.f32 %v1414, %v1414
      %v1957 = vmul.f32 %v1419, %v1419
      %v1958 = vmul.f32 %v1424, %v1424
      %v1959 = vmul.f32 %v1429, %v1429
      %v1960 = vmul.f32 %v1434, %v1434
      %v1961 = vmul.f32 %v1439, %v1439
      %v1962 = vsel %vm1442, %v1834, 0.0
      %v1963 = vsel %vm1442, %v1835, 0.0
      %v1964 = vadd.f32 %v1962, %v1963
      %v1965 = vsel %vm1442, %v1836, 0.0
      %v1966 = vadd.f32 %v1964, %v1965
      %v1967 = vsel %vm1442, %v1837, 0.0
      %v1968 = vadd.f32 %v1966, %v1967
      %v1969 = vsel %vm1442, %v1838, 0.0
      %v1970 = vadd.f32 %v1968, %v1969
      %v1971 = vsel %vm1442, %v1839, 0.0
      %v1972 = vadd.f32 %v1970, %v1971
      %v1973 = vsel %vm1442, %v1840, 0.0
      %v1974 = vadd.f32 %v1972, %v1973
      %v1975 = vsel %vm1442, %v1841, 0.0
      %v1976 = vadd.f32 %v1974, %v1975
      %v1977 = vsel %vm1442, %v1842, 0.0
      %v1978 = vadd.f32 %v1976, %v1977
      %v1979 = vsel %vm1442, %v1843, 0.0
      %v1980 = vadd.f32 %v1978, %v1979
      %v1981 = vsel %vm1442, %v1844, 0.0
      %v1982 = vadd.f32 %v1980, %v1981
      %v1983 = vsel %vm1442, %v1845, 0.0
      %v1984 = vadd.f32 %v1982, %v1983
      %v1985 = vsel %vm1442, %v1846, 0.0
      %v1986 = vadd.f32 %v1984, %v1985
      %v1987 = vsel %vm1442, %v1847, 0.0
      %v1988 = vadd.f32 %v1986, %v1987
      %v1989 = vsel %vm1442, %v1848, 0.0
      %v1990 = vadd.f32 %v1988, %v1989
      %v1991 = vsel %vm1442, %v1849, 0.0
      %v1992 = vadd.f32 %v1990, %v1991
      %v1993 = vsel %vm1442, %v1850, 0.0
      %v1994 = vadd.f32 %v1992, %v1993
      %v1995 = vsel %vm1442, %v1851, 0.0
      %v1996 = vadd.f32 %v1994, %v1995
      %v1997 = vsel %vm1442, %v1852, 0.0
      %v1998 = vadd.f32 %v1996, %v1997
      %v1999 = vsel %vm1442, %v1853, 0.0
      %v2000 = vadd.f32 %v1998, %v1999
      %v2001 = vsel %vm1442, %v1854, 0.0
      %v2002 = vadd.f32 %v2000, %v2001
      %v2003 = vsel %vm1442, %v1855, 0.0
      %v2004 = vadd.f32 %v2002, %v2003
      %v2005 = vsel %vm1442, %v1856, 0.0
      %v2006 = vadd.f32 %v2004, %v2005
      %v2007 = vsel %vm1442, %v1857, 0.0
      %v2008 = vadd.f32 %v2006, %v2007
      %v2009 = vsel %vm1442, %v1858, 0.0
      %v2010 = vadd.f32 %v2008, %v2009
      %v2011 = vsel %vm1442, %v1859, 0.0
      %v2012 = vadd.f32 %v2010, %v2011
      %v2013 = vsel %vm1442, %v1860, 0.0
      %v2014 = vadd.f32 %v2012, %v2013
      %v2015 = vsel %vm1442, %v1861, 0.0
      %v2016 = vadd.f32 %v2014, %v2015
      %v2017 = vsel %vm1442, %v1862, 0.0
      %v2018 = vadd.f32 %v2016, %v2017
      %v2019 = vsel %vm1442, %v1863, 0.0
      %v2020 = vadd.f32 %v2018, %v2019
      %v2021 = vsel %vm1442, %v1864, 0.0
      %v2022 = vadd.f32 %v2020, %v2021
      %v2023 = vsel %vm1442, %v1865, 0.0
      %v2024 = vadd.f32 %v2022, %v2023
      %v2025 = vsel %vm1442, %v1866, 0.0
      %v2026 = vadd.f32 %v2024, %v2025
      %v2027 = vsel %vm1442, %v1867, 0.0
      %v2028 = vadd.f32 %v2026, %v2027
      %v2029 = vsel %vm1442, %v1868, 0.0
      %v2030 = vadd.f32 %v2028, %v2029
      %v2031 = vsel %vm1442, %v1869, 0.0
      %v2032 = vadd.f32 %v2030, %v2031
      %v2033 = vsel %vm1442, %v1870, 0.0
      %v2034 = vadd.f32 %v2032, %v2033
      %v2035 = vsel %vm1442, %v1871, 0.0
      %v2036 = vadd.f32 %v2034, %v2035
      %v2037 = vsel %vm1442, %v1872, 0.0
      %v2038 = vadd.f32 %v2036, %v2037
      %v2039 = vsel %vm1442, %v1873, 0.0
      %v2040 = vadd.f32 %v2038, %v2039
      %v2041 = vsel %vm1442, %v1874, 0.0
      %v2042 = vadd.f32 %v2040, %v2041
      %v2043 = vsel %vm1442, %v1875, 0.0
      %v2044 = vadd.f32 %v2042, %v2043
      %v2045 = vsel %vm1442, %v1876, 0.0
      %v2046 = vadd.f32 %v2044, %v2045
      %v2047 = vsel %vm1442, %v1877, 0.0
      %v2048 = vadd.f32 %v2046, %v2047
      %v2049 = vsel %vm1442, %v1878, 0.0
      %v2050 = vadd.f32 %v2048, %v2049
      %v2051 = vsel %vm1442, %v1879, 0.0
      %v2052 = vadd.f32 %v2050, %v2051
      %v2053 = vsel %vm1442, %v1880, 0.0
      %v2054 = vadd.f32 %v2052, %v2053
      %v2055 = vsel %vm1442, %v1881, 0.0
      %v2056 = vadd.f32 %v2054, %v2055
      %v2057 = vsel %vm1442, %v1882, 0.0
      %v2058 = vadd.f32 %v2056, %v2057
      %v2059 = vsel %vm1442, %v1883, 0.0
      %v2060 = vadd.f32 %v2058, %v2059
      %v2061 = vsel %vm1442, %v1884, 0.0
      %v2062 = vadd.f32 %v2060, %v2061
      %v2063 = vsel %vm1442, %v1885, 0.0
      %v2064 = vadd.f32 %v2062, %v2063
      %v2065 = vsel %vm1442, %v1886, 0.0
      %v2066 = vadd.f32 %v2064, %v2065
      %v2067 = vsel %vm1442, %v1887, 0.0
      %v2068 = vadd.f32 %v2066, %v2067
      %v2069 = vsel %vm1442, %v1888, 0.0
      %v2070 = vadd.f32 %v2068, %v2069
      %v2071 = vsel %vm1442, %v1889, 0.0
      %v2072 = vadd.f32 %v2070, %v2071
      %v2073 = vsel %vm1442, %v1890, 0.0
      %v2074 = vadd.f32 %v2072, %v2073
      %v2075 = vsel %vm1442, %v1891, 0.0
      %v2076 = vadd.f32 %v2074, %v2075
      %v2077 = vsel %vm1442, %v1892, 0.0
      %v2078 = vadd.f32 %v2076, %v2077
      %v2079 = vsel %vm1442, %v1893, 0.0
      %v2080 = vadd.f32 %v2078, %v2079
      %v2081 = vsel %vm1442, %v1894, 0.0
      %v2082 = vadd.f32 %v2080, %v2081
      %v2083 = vsel %vm1442, %v1895, 0.0
      %v2084 = vadd.f32 %v2082, %v2083
      %v2085 = vsel %vm1442, %v1896, 0.0
      %v2086 = vadd.f32 %v2084, %v2085
      %v2087 = vsel %vm1442, %v1897, 0.0
      %v2088 = vadd.f32 %v2086, %v2087
      %v2089 = vsel %vm1442, %v1898, 0.0
      %v2090 = vadd.f32 %v2088, %v2089
      %v2091 = vsel %vm1442, %v1899, 0.0
      %v2092 = vadd.f32 %v2090, %v2091
      %v2093 = vsel %vm1442, %v1900, 0.0
      %v2094 = vadd.f32 %v2092, %v2093
      %v2095 = vsel %vm1442, %v1901, 0.0
      %v2096 = vadd.f32 %v2094, %v2095
      %v2097 = vsel %vm1442, %v1902, 0.0
      %v2098 = vadd.f32 %v2096, %v2097
      %v2099 = vsel %vm1442, %v1903, 0.0
      %v2100 = vadd.f32 %v2098, %v2099
      %v2101 = vsel %vm1442, %v1904, 0.0
      %v2102 = vadd.f32 %v2100, %v2101
      %v2103 = vsel %vm1442, %v1905, 0.0
      %v2104 = vadd.f32 %v2102, %v2103
      %v2105 = vsel %vm1442, %v1906, 0.0
      %v2106 = vadd.f32 %v2104, %v2105
      %v2107 = vsel %vm1442, %v1907, 0.0
      %v2108 = vadd.f32 %v2106, %v2107
      %v2109 = vsel %vm1442, %v1908, 0.0
      %v2110 = vadd.f32 %v2108, %v2109
      %v2111 = vsel %vm1442, %v1909, 0.0
      %v2112 = vadd.f32 %v2110, %v2111
      %v2113 = vsel %vm1442, %v1910, 0.0
      %v2114 = vadd.f32 %v2112, %v2113
      %v2115 = vsel %vm1442, %v1911, 0.0
      %v2116 = vadd.f32 %v2114, %v2115
      %v2117 = vsel %vm1442, %v1912, 0.0
      %v2118 = vadd.f32 %v2116, %v2117
      %v2119 = vsel %vm1442, %v1913, 0.0
      %v2120 = vadd.f32 %v2118, %v2119
      %v2121 = vsel %vm1442, %v1914, 0.0
      %v2122 = vadd.f32 %v2120, %v2121
      %v2123 = vsel %vm1442, %v1915, 0.0
      %v2124 = vadd.f32 %v2122, %v2123
      %v2125 = vsel %vm1442, %v1916, 0.0
      %v2126 = vadd.f32 %v2124, %v2125
      %v2127 = vsel %vm1442, %v1917, 0.0
      %v2128 = vadd.f32 %v2126, %v2127
      %v2129 = vsel %vm1442, %v1918, 0.0
      %v2130 = vadd.f32 %v2128, %v2129
      %v2131 = vsel %vm1442, %v1919, 0.0
      %v2132 = vadd.f32 %v2130, %v2131
      %v2133 = vsel %vm1442, %v1920, 0.0
      %v2134 = vadd.f32 %v2132, %v2133
      %v2135 = vsel %vm1442, %v1921, 0.0
      %v2136 = vadd.f32 %v2134, %v2135
      %v2137 = vsel %vm1442, %v1922, 0.0
      %v2138 = vadd.f32 %v2136, %v2137
      %v2139 = vsel %vm1442, %v1923, 0.0
      %v2140 = vadd.f32 %v2138, %v2139
      %v2141 = vsel %vm1442, %v1924, 0.0
      %v2142 = vadd.f32 %v2140, %v2141
      %v2143 = vsel %vm1442, %v1925, 0.0
      %v2144 = vadd.f32 %v2142, %v2143
      %v2145 = vsel %vm1442, %v1926, 0.0
      %v2146 = vadd.f32 %v2144, %v2145
      %v2147 = vsel %vm1442, %v1927, 0.0
      %v2148 = vadd.f32 %v2146, %v2147
      %v2149 = vsel %vm1442, %v1928, 0.0
      %v2150 = vadd.f32 %v2148, %v2149
      %v2151 = vsel %vm1442, %v1929, 0.0
      %v2152 = vadd.f32 %v2150, %v2151
      %v2153 = vsel %vm1442, %v1930, 0.0
      %v2154 = vadd.f32 %v2152, %v2153
      %v2155 = vsel %vm1442, %v1931, 0.0
      %v2156 = vadd.f32 %v2154, %v2155
      %v2157 = vsel %vm1442, %v1932, 0.0
      %v2158 = vadd.f32 %v2156, %v2157
      %v2159 = vsel %vm1442, %v1933, 0.0
      %v2160 = vadd.f32 %v2158, %v2159
      %v2161 = vsel %vm1442, %v1934, 0.0
      %v2162 = vadd.f32 %v2160, %v2161
      %v2163 = vsel %vm1442, %v1935, 0.0
      %v2164 = vadd.f32 %v2162, %v2163
      %v2165 = vsel %vm1442, %v1936, 0.0
      %v2166 = vadd.f32 %v2164, %v2165
      %v2167 = vsel %vm1442, %v1937, 0.0
      %v2168 = vadd.f32 %v2166, %v2167
      %v2169 = vsel %vm1442, %v1938, 0.0
      %v2170 = vadd.f32 %v2168, %v2169
      %v2171 = vsel %vm1442, %v1939, 0.0
      %v2172 = vadd.f32 %v2170, %v2171
      %v2173 = vsel %vm1442, %v1940, 0.0
      %v2174 = vadd.f32 %v2172, %v2173
      %v2175 = vsel %vm1442, %v1941, 0.0
      %v2176 = vadd.f32 %v2174, %v2175
      %v2177 = vsel %vm1442, %v1942, 0.0
      %v2178 = vadd.f32 %v2176, %v2177
      %v2179 = vsel %vm1442, %v1943, 0.0
      %v2180 = vadd.f32 %v2178, %v2179
      %v2181 = vsel %vm1442, %v1944, 0.0
      %v2182 = vadd.f32 %v2180, %v2181
      %v2183 = vsel %vm1442, %v1945, 0.0
      %v2184 = vadd.f32 %v2182, %v2183
      %v2185 = vsel %vm1442, %v1946, 0.0
      %v2186 = vadd.f32 %v2184, %v2185
      %v2187 = vsel %vm1442, %v1947, 0.0
      %v2188 = vadd.f32 %v2186, %v2187
      %v2189 = vsel %vm1442, %v1948, 0.0
      %v2190 = vadd.f32 %v2188, %v2189
      %v2191 = vsel %vm1442, %v1949, 0.0
      %v2192 = vadd.f32 %v2190, %v2191
      %v2193 = vsel %vm1442, %v1950, 0.0
      %v2194 = vadd.f32 %v2192, %v2193
      %v2195 = vsel %vm1442, %v1951, 0.0
      %v2196 = vadd.f32 %v2194, %v2195
      %v2197 = vsel %vm1442, %v1952, 0.0
      %v2198 = vadd.f32 %v2196, %v2197
      %v2199 = vsel %vm1442, %v1953, 0.0
      %v2200 = vadd.f32 %v2198, %v2199
      %v2201 = vsel %vm1442, %v1954, 0.0
      %v2202 = vadd.f32 %v2200, %v2201
      %v2203 = vsel %vm1442, %v1955, 0.0
      %v2204 = vadd.f32 %v2202, %v2203
      %v2205 = vsel %vm1442, %v1956, 0.0
      %v2206 = vadd.f32 %v2204, %v2205
      %v2207 = vsel %vm1442, %v1957, 0.0
      %v2208 = vadd.f32 %v2206, %v2207
      %v2209 = vsel %vm1442, %v1958, 0.0
      %v2210 = vadd.f32 %v2208, %v2209
      %v2211 = vsel %vm1442, %v1959, 0.0
      %v2212 = vadd.f32 %v2210, %v2211
      %v2213 = vsel %vm1442, %v1960, 0.0
      %v2214 = vadd.f32 %v2212, %v2213
      %v2215 = vsel %vm1442, %v1961, 0.0
      %v2216 = vadd.f32 %v2214, %v2215
      %v2217 = vrot.slane %v2216, 4
      %v2218 = vadd.f32 %v2216, %v2217
      %v2219 = vrot.slane %v2218, 2
      %v2220 = vadd.f32 %v2218, %v2219
      %v2221 = vrot.slane %v2220, 1
      %v2222 = vadd.f32 %v2220, %v2221
      %2223 = vst.msk [vmem:[%s217] sm:$0x1] %vm1832, %v2222
      %s2224 = smul.u32 128, %s16
      %p2225 = scmp.lt.s32.totalorder %s2224, 255
      %s2226 = scalar_select %p2225, %s2224, 255
      %s2227 = smul.addr %s2226, 8
      %s2228 = scalar_lea.vmem %s2, %s2227
      %p2229 = scmp.lt.s32.totalorder %s16, 1
      %s2230 = scalar_select %p2229, %s16, 1
      %s2231 = scalar_lea.vmem %s3, %s2230
      %p2232 = scmp.lt.s32.totalorder %s16, 1
      %s2233 = scalar_select %p2232, %s16, 1
      %s2234 = scalar_lea.vmem %s4, %s2233
      // Predicated region
      $region29: #{discriminator_forward.8} parent=27 // pred_check
        %p2235 = pneg %p81
      $region30: #{discriminator_forward.8} parent=27 // pred_check_branch
        %2237 = sbr.rel (%p2235) target = $region32
      $region31: #{discriminator_forward.8} parent=27 // pred_region
        %s2238 = smul.u32 128, %s16
      $region32: #{discriminator_forward.8} parent=27 // pred_fallthru
        _
      // Predicated region
      $region33: #{discriminator_forward.8} parent=27 // pred_check
        %p2239 = pneg %p107
      $region34: #{discriminator_forward.8} parent=27 // pred_check_branch
        %2241 = sbr.rel (%p2239) target = $region36
      $region35: #{discriminator_forward.8} parent=27 // pred_region
        _
      $region36: #{discriminator_forward.8} parent=27 // pred_fallthru
        _
      // Predicated region
      $region37: #{discriminator_forward.8} parent=27 // pred_check
        %p2242 = pneg %p133
      $region38: #{discriminator_forward.8} parent=27 // pred_check_branch
        %2244 = sbr.rel (%p2242) target = $region40
      $region39: #{discriminator_forward.8} parent=27 // pred_region
        _
      $region40: #{discriminator_forward.8} parent=27 // pred_fallthru
        _
    $region28: #{discriminator_forward.8} parent=5 // pred_fallthru
      _
    %p2245 = scmp.le.s32.totalorder 2, %s11
    // Predicated region
    $region41: #{discriminator_forward.8} parent=5 // pred_check
      %p2246 = pneg %p2245
    $region42: #{discriminator_forward.8} parent=5 // pred_check_branch
      %2248 = sbr.rel (%p2246) target = $region44
    $region43: #{discriminator_forward.8} parent=5 // pred_region
      %s2249 = ssub.s32 %s11, 2
      // Predicated region
      $region45: #{discriminator_forward.8} parent=43 // pred_check
        %p2250 = pneg %p87
      $region46: #{discriminator_forward.8} parent=43 // pred_check_branch
        %2252 = sbr.rel (%p2250) target = $region48
      $region47: #{discriminator_forward.8} parent=43 // pred_region
        %s2253 = smul.u32 128, %s17
        %p2254 = scmp.lt.s32.totalorder %s2253, 255
        %s2255 = scalar_select %p2254, %s2253, 255
        %s2256 = smul.addr %s2255, 8
        %s2257 = scalar_lea.vmem %s2, %s2256
      $region48: #{discriminator_forward.8} parent=43 // pred_fallthru
        _
      // Predicated region
      $region49: #{discriminator_forward.8} parent=43 // pred_check
        %p2258 = pneg %p113
      $region50: #{discriminator_forward.8} parent=43 // pred_check_branch
        %2260 = sbr.rel (%p2258) target = $region52
      $region51: #{discriminator_forward.8} parent=43 // pred_region
        %p2261 = scmp.lt.s32.totalorder %s17, 1
        %s2262 = scalar_select %p2261, %s17, 1
        %s2263 = scalar_lea.vmem %s3, %s2262
      $region52: #{discriminator_forward.8} parent=43 // pred_fallthru
        _
      // Predicated region
      $region53: #{discriminator_forward.8} parent=43 // pred_check
        %p2264 = pneg %p139
      $region54: #{discriminator_forward.8} parent=43 // pred_check_branch
        %2266 = sbr.rel (%p2264) target = $region56
      $region55: #{discriminator_forward.8} parent=43 // pred_region
        %p2267 = scmp.lt.s32.totalorder %s17, 1
        %s2268 = scalar_select %p2267, %s17, 1
        %s2269 = scalar_lea.vmem %s4, %s2268
      $region56: #{discriminator_forward.8} parent=43 // pred_fallthru
        _
    $region44: #{discriminator_forward.8} parent=5 // pred_fallthru
      _
  $region6: #{discriminator_forward.8} parent=0 // loop_footer
    %s15 = sadd.s32 1, %s11
  $region7: #{discriminator_forward.8} parent=0 // loop_footer_branch
    %10 = sbr.rel target = $region3
  $region8: #{discriminator_forward.8} parent=0 // loop_exit
    _

// kernel: discriminator_forward.9
$region0: #{discriminator_forward.9}
  #allocation0 [shape = 'u32[]', space=smem, size = 0x4, offset = 0x4, fixed_abs, tag = 'smem constant byte address 0x4 - core index']
  #allocation1 [shape = 'u32[144,128]{1,0:T(1,128)}', space=vmem, size = 0x12000, scoped, tag = 'internal scratch']
  %s0 = inlined_call_operand.vmem [shape: f32[512,128], index: 0, kind: input, shape index: {}]
  %s1 = inlined_call_operand.vmem [shape: f32[1,128], index: 1, kind: input, shape index: {}]
  %s2 = inlined_call_operand.vmem [shape: f32[1,128], index: 2, kind: input, shape index: {}]
  %s3 = inlined_call_operand.vmem [shape: f32[512,128], index: 3, kind: output, shape index: {}]
  %s4 = sld [smem:[#allocation0]]
  $region22: #{discriminator_forward.9} parent=0
    _
  %s6 = ssub.s32 1, %s4
  %s7 = scalar_select 0, %s6, %s4
  // Predicated region
  $region2: #{discriminator_forward.9} parent=0 // pred_check
    _
  $region3: #{discriminator_forward.9} parent=0 // pred_check_branch
    %9 = sbr.rel (0) target = $region5
  $region4: #{discriminator_forward.9} parent=0 // pred_region
    _
  $region5: #{discriminator_forward.9} parent=0 // pred_fallthru
    _
  // Predicated region
  $region6: #{discriminator_forward.9} parent=0 // pred_check
    _
  $region7: #{discriminator_forward.9} parent=0 // pred_check_branch
    %11 = sbr.rel (0) target = $region9
  $region8: #{discriminator_forward.9} parent=0 // pred_region
    _
  $region9: #{discriminator_forward.9} parent=0 // pred_fallthru
    _
  // Predicated region
  $region10: #{discriminator_forward.9} parent=0 // pred_check
    _
  $region11: #{discriminator_forward.9} parent=0 // pred_check_branch
    %13 = sbr.rel (0) target = $region13
  $region12: #{discriminator_forward.9} parent=0 // pred_region
    _
  $region13: #{discriminator_forward.9} parent=0 // pred_fallthru
    _
  %v14 = vld [vmem:[%s0] sm:$0xff]
  %v15 = vld [vmem:[%s0 + $0x8] sm:$0xff]
  %v16 = vld [vmem:[%s0 + $0x10] sm:$0xff]
  %v17 = vld [vmem:[%s0 + $0x18] sm:$0xff]
  %v18 = vld [vmem:[%s0 + $0x20] sm:$0xff]
  %v19 = vld [vmem:[%s0 + $0x28] sm:$0xff]
  %v20 = vld [vmem:[%s0 + $0x30] sm:$0xff]
  %v21 = vld [vmem:[%s0 + $0x38] sm:$0xff]
  %v22 = vld [vmem:[%s0 + $0x40] sm:$0xff]
  %v23 = vld [vmem:[%s0 + $0x48] sm:$0xff]
  %v24 = vld [vmem:[%s0 + $0x50] sm:$0xff]
  %v25 = vld [vmem:[%s0 + $0x58] sm:$0xff]
  %v26 = vld [vmem:[%s0 + $0x60] sm:$0xff]
  %v27 = vld [vmem:[%s0 + $0x68] sm:$0xff]
  %v28 = vld [vmem:[%s0 + $0x70] sm:$0xff]
  %v29 = vld [vmem:[%s0 + $0x78] sm:$0xff]
  %v30 = vld [vmem:[%s0 + $0x80] sm:$0xff]
  %v31 = vld [vmem:[%s0 + $0x88] sm:$0xff]
  %v32 = vld [vmem:[%s0 + $0x90] sm:$0xff]
  %v33 = vld [vmem:[%s0 + $0x98] sm:$0xff]
  %v34 = vld [vmem:[%s0 + $0xa0] sm:$0xff]
  %v35 = vld [vmem:[%s0 + $0xa8] sm:$0xff]
  %v36 = vld [vmem:[%s0 + $0xb0] sm:$0xff]
  %v37 = vld [vmem:[%s0 + $0xb8] sm:$0xff]
  %v38 = vld [vmem:[%s0 + $0xc0] sm:$0xff]
  %v39 = vld [vmem:[%s0 + $0xc8] sm:$0xff]
  %v40 = vld [vmem:[%s0 + $0xd0] sm:$0xff]
  %v41 = vld [vmem:[%s0 + $0xd8] sm:$0xff]
  %v42 = vld [vmem:[%s0 + $0xe0] sm:$0xff]
  %v43 = vld [vmem:[%s0 + $0xe8] sm:$0xff]
  %v44 = vld [vmem:[%s0 + $0xf0] sm:$0xff]
  %v45 = vld [vmem:[%s0 + $0xf8] sm:$0xff]
  %v46 = vld [vmem:[%s0 + $0x100] sm:$0xff]
  %v47 = vld [vmem:[%s0 + $0x108] sm:$0xff]
  %v48 = vld [vmem:[%s0 + $0x110] sm:$0xff]
  %v49 = vld [vmem:[%s0 + $0x118] sm:$0xff]
  %v50 = vld [vmem:[%s0 + $0x120] sm:$0xff]
  %v51 = vld [vmem:[%s0 + $0x128] sm:$0xff]
  %v52 = vld [vmem:[%s0 + $0x130] sm:$0xff]
  %v53 = vld [vmem:[%s0 + $0x138] sm:$0xff]
  %v54 = vld [vmem:[%s0 + $0x140] sm:$0xff]
  %v55 = vld [vmem:[%s0 + $0x148] sm:$0xff]
  %v56 = vld [vmem:[%s0 + $0x150] sm:$0xff]
  %v57 = vld [vmem:[%s0 + $0x158] sm:$0xff]
  %v58 = vld [vmem:[%s0 + $0x160] sm:$0xff]
  %v59 = vld [vmem:[%s0 + $0x168] sm:$0xff]
  %v60 = vld [vmem:[%s0 + $0x170] sm:$0xff]
  %v61 = vld [vmem:[%s0 + $0x178] sm:$0xff]
  %v62 = vld [vmem:[%s0 + $0x180] sm:$0xff]
  %v63 = vld [vmem:[%s0 + $0x188] sm:$0xff]
  %v64 = vld [vmem:[%s0 + $0x190] sm:$0xff]
  %v65 = vld [vmem:[%s0 + $0x198] sm:$0xff]
  %v66 = vld [vmem:[%s0 + $0x1a0] sm:$0xff]
  %v67 = vld [vmem:[%s0 + $0x1a8] sm:$0xff]
  %v68 = vld [vmem:[%s0 + $0x1b0] sm:$0xff]
  %v69 = vld [vmem:[%s0 + $0x1b8] sm:$0xff]
  %v70 = vld [vmem:[%s0 + $0x1c0] sm:$0xff]
  %v71 = vld [vmem:[%s0 + $0x1c8] sm:$0xff]
  %v72 = vld [vmem:[%s0 + $0x1d0] sm:$0xff]
  %v73 = vld [vmem:[%s0 + $0x1d8] sm:$0xff]
  %v74 = vld [vmem:[%s0 + $0x1e0] sm:$0xff]
  %v75 = vld [vmem:[%s0 + $0x1e8] sm:$0xff]
  %v76 = vld [vmem:[%s0 + $0x1f0] sm:$0xff]
  %v77 = vld [vmem:[%s0 + $0x1f8] sm:$0xff]
  %v78 = vld [vmem:[%s1] sm:$0x1]
  %v80 = vlaneseq
  %v81 = vshrl.u32 %v80, 7
  %v82 = vsub.s32 0, %v81
  %v83 = vrot.slane %v78, %v82
  %v85 = vmul.f32 %v14, %v83
  %v86 = vmul.f32 %v15, %v83
  %v87 = vmul.f32 %v16, %v83
  %v88 = vmul.f32 %v17, %v83
  %v89 = vmul.f32 %v18, %v83
  %v90 = vmul.f32 %v19, %v83
  %v91 = vmul.f32 %v20, %v83
  %v92 = vmul.f32 %v21, %v83
  %v93 = vmul.f32 %v22, %v83
  %v94 = vmul.f32 %v23, %v83
  %v95 = vmul.f32 %v24, %v83
  %v96 = vmul.f32 %v25, %v83
  %v97 = vmul.f32 %v26, %v83
  %v98 = vmul.f32 %v27, %v83
  %v99 = vmul.f32 %v28, %v83
  %v100 = vmul.f32 %v29, %v83
  %v101 = vmul.f32 %v30, %v83
  %v102 = vmul.f32 %v31, %v83
  %v103 = vmul.f32 %v32, %v83
  %v104 = vmul.f32 %v33, %v83
  %v105 = vmul.f32 %v34, %v83
  %v106 = vmul.f32 %v35, %v83
  %v107 = vmul.f32 %v36, %v83
  %v108 = vmul.f32 %v37, %v83
  %v109 = vmul.f32 %v38, %v83
  %v110 = vmul.f32 %v39, %v83
  %v111 = vmul.f32 %v40, %v83
  %v112 = vmul.f32 %v41, %v83
  %v113 = vmul.f32 %v42, %v83
  %v114 = vmul.f32 %v43, %v83
  %v115 = vmul.f32 %v44, %v83
  %v116 = vmul.f32 %v45, %v83
  %v117 = vmul.f32 %v46, %v83
  %v118 = vmul.f32 %v47, %v83
  %v119 = vmul.f32 %v48, %v83
  %v120 = vmul.f32 %v49, %v83
  %v121 = vmul.f32 %v50, %v83
  %v122 = vmul.f32 %v51, %v83
  %v123 = vmul.f32 %v52, %v83
  %v124 = vmul.f32 %v53, %v83
  %v125 = vmul.f32 %v54, %v83
  %v126 = vmul.f32 %v55, %v83
  %v127 = vmul.f32 %v56, %v83
  %v128 = vmul.f32 %v57, %v83
  %v129 = vmul.f32 %v58, %v83
  %v130 = vmul.f32 %v59, %v83
  %v131 = vmul.f32 %v60, %v83
  %v132 = vmul.f32 %v61, %v83
  %v133 = vmul.f32 %v62, %v83
  %v134 = vmul.f32 %v63, %v83
  %v135 = vmul.f32 %v64, %v83
  %v136 = vmul.f32 %v65, %v83
  %v137 = vmul.f32 %v66, %v83
  %v138 = vmul.f32 %v67, %v83
  %v139 = vmul.f32 %v68, %v83
  %v140 = vmul.f32 %v69, %v83
  %v141 = vmul.f32 %v70, %v83
  %v142 = vmul.f32 %v71, %v83
  %v143 = vmul.f32 %v72, %v83
  %v144 = vmul.f32 %v73, %v83
  %v145 = vmul.f32 %v74, %v83
  %v146 = vmul.f32 %v75, %v83
  %v147 = vmul.f32 %v76, %v83
  %v148 = vmul.f32 %v77, %v83
  %v149 = vld [vmem:[%s2] sm:$0x1]
  %v151 = vlaneseq
  %v152 = vshrl.u32 %v151, 7
  %v153 = vsub.s32 0, %v152
  %v154 = vrot.slane %v149, %v153
  %v156 = vadd.f32 %v85, %v154
  %v157 = vadd.f32 %v86, %v154
  %v158 = vadd.f32 %v87, %v154
  %v159 = vadd.f32 %v88, %v154
  %v160 = vadd.f32 %v89, %v154
  %v161 = vadd.f32 %v90, %v154
  %v162 = vadd.f32 %v91, %v154
  %v163 = vadd.f32 %v92, %v154
  %v164 = vadd.f32 %v93, %v154
  %v165 = vadd.f32 %v94, %v154
  %v166 = vadd.f32 %v95, %v154
  %v167 = vadd.f32 %v96, %v154
  %v168 = vadd.f32 %v97, %v154
  %v169 = vadd.f32 %v98, %v154
  %v170 = vadd.f32 %v99, %v154
  %v171 = vadd.f32 %v100, %v154
  %v172 = vadd.f32 %v101, %v154
  %v173 = vadd.f32 %v102, %v154
  %v174 = vadd.f32 %v103, %v154
  %v175 = vadd.f32 %v104, %v154
  %v176 = vadd.f32 %v105, %v154
  %v177 = vadd.f32 %v106, %v154
  %v178 = vadd.f32 %v107, %v154
  %v179 = vadd.f32 %v108, %v154
  %v180 = vadd.f32 %v109, %v154
  %v181 = vadd.f32 %v110, %v154
  %v182 = vadd.f32 %v111, %v154
  %v183 = vadd.f32 %v112, %v154
  %v184 = vadd.f32 %v113, %v154
  %v185 = vadd.f32 %v114, %v154
  %v186 = vadd.f32 %v115, %v154
  %v187 = vadd.f32 %v116, %v154
  %v188 = vadd.f32 %v117, %v154
  %v189 = vadd.f32 %v118, %v154
  %v190 = vadd.f32 %v119, %v154
  %v191 = vadd.f32 %v120, %v154
  %v192 = vadd.f32 %v121, %v154
  %v193 = vadd.f32 %v122, %v154
  %v194 = vadd.f32 %v123, %v154
  %v195 = vadd.f32 %v124, %v154
  %v196 = vadd.f32 %v125, %v154
  %v197 = vadd.f32 %v126, %v154
  %v198 = vadd.f32 %v127, %v154
  %v199 = vadd.f32 %v128, %v154
  %v200 = vadd.f32 %v129, %v154
  %v201 = vadd.f32 %v130, %v154
  %v202 = vadd.f32 %v131, %v154
  %v203 = vadd.f32 %v132, %v154
  %v204 = vadd.f32 %v133, %v154
  %v205 = vadd.f32 %v134, %v154
  %v206 = vadd.f32 %v135, %v154
  %v207 = vadd.f32 %v136, %v154
  %v208 = vadd.f32 %v137, %v154
  %v209 = vadd.f32 %v138, %v154
  %v210 = vadd.f32 %v139, %v154
  %v211 = vadd.f32 %v140, %v154
  %v212 = vadd.f32 %v141, %v154
  %v213 = vadd.f32 %v142, %v154
  %v214 = vadd.f32 %v143, %v154
  %v215 = vadd.f32 %v144, %v154
  %v216 = vadd.f32 %v145, %v154
  %v217 = vadd.f32 %v146, %v154
  %v218 = vadd.f32 %v147, %v154
  %v219 = vadd.f32 %v148, %v154
  %vm220 = vcmp.gt.f32.partialorder %v156, 0.0
  %vm221 = vcmp.gt.f32.partialorder %v157, 0.0
  %vm222 = vcmp.gt.f32.partialorder %v158, 0.0
  %vm223 = vcmp.gt.f32.partialorder %v159, 0.0
  %vm224 = vcmp.gt.f32.partialorder %v160, 0.0
  %vm225 = vcmp.gt.f32.partialorder %v161, 0.0
  %vm226 = vcmp.gt.f32.partialorder %v162, 0.0
  %vm227 = vcmp.gt.f32.partialorder %v163, 0.0
  %vm228 = vcmp.gt.f32.partialorder %v164, 0.0
  %vm229 = vcmp.gt.f32.partialorder %v165, 0.0
  %vm230 = vcmp.gt.f32.partialorder %v166, 0.0
  %vm231 = vcmp.gt.f32.partialorder %v167, 0.0
  %vm232 = vcmp.gt.f32.partialorder %v168, 0.0
  %vm233 = vcmp.gt.f32.partialorder %v169, 0.0
  %vm234 = vcmp.gt.f32.partialorder %v170, 0.0
  %vm235 = vcmp.gt.f32.partialorder %v171, 0.0
  %vm236 = vcmp.gt.f32.partialorder %v172, 0.0
  %vm237 = vcmp.gt.f32.partialorder %v173, 0.0
  %vm238 = vcmp.gt.f32.partialorder %v174, 0.0
  %vm239 = vcmp.gt.f32.partialorder %v175, 0.0
  %vm240 = vcmp.gt.f32.partialorder %v176, 0.0
  %vm241 = vcmp.gt.f32.partialorder %v177, 0.0
  %vm242 = vcmp.gt.f32.partialorder %v178, 0.0
  %vm243 = vcmp.gt.f32.partialorder %v179, 0.0
  %vm244 = vcmp.gt.f32.partialorder %v180, 0.0
  %vm245 = vcmp.gt.f32.partialorder %v181, 0.0
  %vm246 = vcmp.gt.f32.partialorder %v182, 0.0
  %vm247 = vcmp.gt.f32.partialorder %v183, 0.0
  %vm248 = vcmp.gt.f32.partialorder %v184, 0.0
  %vm249 = vcmp.gt.f32.partialorder %v185, 0.0
  %vm250 = vcmp.gt.f32.partialorder %v186, 0.0
  %vm251 = vcmp.gt.f32.partialorder %v187, 0.0
  %vm252 = vcmp.gt.f32.partialorder %v188, 0.0
  %vm253 = vcmp.gt.f32.partialorder %v189, 0.0
  %vm254 = vcmp.gt.f32.partialorder %v190, 0.0
  %vm255 = vcmp.gt.f32.partialorder %v191, 0.0
  %vm256 = vcmp.gt.f32.partialorder %v192, 0.0
  %vm257 = vcmp.gt.f32.partialorder %v193, 0.0
  %vm258 = vcmp.gt.f32.partialorder %v194, 0.0
  %vm259 = vcmp.gt.f32.partialorder %v195, 0.0
  %vm260 = vcmp.gt.f32.partialorder %v196, 0.0
  %vm261 = vcmp.gt.f32.partialorder %v197, 0.0
  %vm262 = vcmp.gt.f32.partialorder %v198, 0.0
  %vm263 = vcmp.gt.f32.partialorder %v199, 0.0
  %vm264 = vcmp.gt.f32.partialorder %v200, 0.0
  %vm265 = vcmp.gt.f32.partialorder %v201, 0.0
  %vm266 = vcmp.gt.f32.partialorder %v202, 0.0
  %vm267 = vcmp.gt.f32.partialorder %v203, 0.0
  %vm268 = vcmp.gt.f32.partialorder %v204, 0.0
  %vm269 = vcmp.gt.f32.partialorder %v205, 0.0
  %vm270 = vcmp.gt.f32.partialorder %v206, 0.0
  %vm271 = vcmp.gt.f32.partialorder %v207, 0.0
  %vm272 = vcmp.gt.f32.partialorder %v208, 0.0
  %vm273 = vcmp.gt.f32.partialorder %v209, 0.0
  %vm274 = vcmp.gt.f32.partialorder %v210, 0.0
  %vm275 = vcmp.gt.f32.partialorder %v211, 0.0
  %vm276 = vcmp.gt.f32.partialorder %v212, 0.0
  %vm277 = vcmp.gt.f32.partialorder %v213, 0.0
  %vm278 = vcmp.gt.f32.partialorder %v214, 0.0
  %vm279 = vcmp.gt.f32.partialorder %v215, 0.0
  %vm280 = vcmp.gt.f32.partialorder %v216, 0.0
  %vm281 = vcmp.gt.f32.partialorder %v217, 0.0
  %vm282 = vcmp.gt.f32.partialorder %v218, 0.0
  %vm283 = vcmp.gt.f32.partialorder %v219, 0.0
  %v284 = vmul.f32 %v156, 1.442695
  %v285 = vpow.pop %v284
  %v286 = vmul.f32 %v157, 1.442695
  %v287 = vpow.pop %v286
  %v288 = vmul.f32 %v158, 1.442695
  %v289 = vpow.pop %v288
  %v290 = vmul.f32 %v159, 1.442695
  %v291 = vpow.pop %v290
  %v292 = vmul.f32 %v160, 1.442695
  %v293 = vpow.pop %v292
  %v294 = vmul.f32 %v161, 1.442695
  %v295 = vpow.pop %v294
  %v296 = vmul.f32 %v162, 1.442695
  %v297 = vpow.pop %v296
  %v298 = vmul.f32 %v163, 1.442695
  %v299 = vpow.pop %v298
  %v300 = vmul.f32 %v164, 1.442695
  %v301 = vpow.pop %v300
  %v302 = vmul.f32 %v165, 1.442695
  %v303 = vpow.pop %v302
  %v304 = vmul.f32 %v166, 1.442695
  %v305 = vpow.pop %v304
  %v306 = vmul.f32 %v167, 1.442695
  %v307 = vpow.pop %v306
  %v308 = vmul.f32 %v168, 1.442695
  %v309 = vpow.pop %v308
  %v310 = vmul.f32 %v169, 1.442695
  %v311 = vpow.pop %v310
  %v312 = vmul.f32 %v170, 1.442695
  %v313 = vpow.pop %v312
  %v314 = vmul.f32 %v171, 1.442695
  %v315 = vpow.pop %v314
  %v316 = vmul.f32 %v172, 1.442695
  %v317 = vpow.pop %v316
  %v318 = vmul.f32 %v173, 1.442695
  %v319 = vpow.pop %v318
  %v320 = vmul.f32 %v174, 1.442695
  %v321 = vpow.pop %v320
  %v322 = vmul.f32 %v175, 1.442695
  %v323 = vpow.pop %v322
  %v324 = vmul.f32 %v176, 1.442695
  %v325 = vpow.pop %v324
  %v326 = vmul.f32 %v177, 1.442695
  %v327 = vpow.pop %v326
  %v328 = vmul.f32 %v178, 1.442695
  %v329 = vpow.pop %v328
  %v330 = vmul.f32 %v179, 1.442695
  %v331 = vpow.pop %v330
  %v332 = vmul.f32 %v180, 1.442695
  %v333 = vpow.pop %v332
  %v334 = vmul.f32 %v181, 1.442695
  %v335 = vpow.pop %v334
  %v336 = vmul.f32 %v182, 1.442695
  %v337 = vpow.pop %v336
  %v338 = vmul.f32 %v183, 1.442695
  %v339 = vpow.pop %v338
  %v340 = vmul.f32 %v184, 1.442695
  %v341 = vpow.pop %v340
  %v342 = vmul.f32 %v185, 1.442695
  %v343 = vpow.pop %v342
  %v344 = vmul.f32 %v186, 1.442695
  %v345 = vpow.pop %v344
  %v346 = vmul.f32 %v187, 1.442695
  %v347 = vpow.pop %v346
  %v348 = vmul.f32 %v188, 1.442695
  %v349 = vpow.pop %v348
  %v350 = vmul.f32 %v189, 1.442695
  %v351 = vpow.pop %v350
  %v352 = vmul.f32 %v190, 1.442695
  %v353 = vpow.pop %v352
  %v354 = vmul.f32 %v191, 1.442695
  %v355 = vpow.pop %v354
  %v356 = vmul.f32 %v192, 1.442695
  %v357 = vpow.pop %v356
  %v358 = vmul.f32 %v193, 1.442695
  %v359 = vpow.pop %v358
  %v360 = vmul.f32 %v194, 1.442695
  %v361 = vpow.pop %v360
  %v362 = vmul.f32 %v195, 1.442695
  %v363 = vpow.pop %v362
  %v364 = vmul.f32 %v196, 1.442695
  %v365 = vpow.pop %v364
  %v366 = vmul.f32 %v197, 1.442695
  %v367 = vpow.pop %v366
  %v368 = vmul.f32 %v198, 1.442695
  %v369 = vpow.pop %v368
  %v370 = vmul.f32 %v199, 1.442695
  %v371 = vpow.pop %v370
  %v372 = vmul.f32 %v200, 1.442695
  %v373 = vpow.pop %v372
  %v374 = vmul.f32 %v201, 1.442695
  %v375 = vpow.pop %v374
  %v376 = vmul.f32 %v202, 1.442695
  %v377 = vpow.pop %v376
  %v378 = vmul.f32 %v203, 1.442695
  %v379 = vpow.pop %v378
  %v380 = vmul.f32 %v204, 1.442695
  %v381 = vpow.pop %v380
  %v382 = vmul.f32 %v205, 1.442695
  %v383 = vpow.pop %v382
  %v384 = vmul.f32 %v206, 1.442695
  %v385 = vpow.pop %v384
  %v386 = vmul.f32 %v207, 1.442695
  %v387 = vpow.pop %v386
  %v388 = vmul.f32 %v208, 1.442695
  %v389 = vpow.pop %v388
  %v390 = vmul.f32 %v209, 1.442695
  %v391 = vpow.pop %v390
  %v392 = vmul.f32 %v210, 1.442695
  %v393 = vpow.pop %v392
  %v394 = vmul.f32 %v211, 1.442695
  %v395 = vpow.pop %v394
  %v396 = vmul.f32 %v212, 1.442695
  %v397 = vpow.pop %v396
  %v398 = vmul.f32 %v213, 1.442695
  %v399 = vpow.pop %v398
  %v400 = vmul.f32 %v214, 1.442695
  %v401 = vpow.pop %v400
  %v402 = vmul.f32 %v215, 1.442695
  %v403 = vpow.pop %v402
  %v404 = vmul.f32 %v216, 1.442695
  %v405 = vpow.pop %v404
  %v406 = vmul.f32 %v217, 1.442695
  %v407 = vpow.pop %v406
  %v408 = vmul.f32 %v218, 1.442695
  %v409 = vpow.pop %v408
  %v410 = vmul.f32 %v219, 1.442695
  %v411 = vpow.pop %v410
  %v412 = vsub.f32 %v285, 1.0
  %v413 = vsub.f32 %v287, 1.0
  %v414 = vsub.f32 %v289, 1.0
  %v415 = vsub.f32 %v291, 1.0
  %v416 = vsub.f32 %v293, 1.0
  %v417 = vsub.f32 %v295, 1.0
  %v418 = vsub.f32 %v297, 1.0
  %v419 = vsub.f32 %v299, 1.0
  %v420 = vsub.f32 %v301, 1.0
  %v421 = vsub.f32 %v303, 1.0
  %v422 = vsub.f32 %v305, 1.0
  %v423 = vsub.f32 %v307, 1.0
  %v424 = vsub.f32 %v309, 1.0
  %v425 = vsub.f32 %v311, 1.0
  %v426 = vsub.f32 %v313, 1.0
  %v427 = vsub.f32 %v315, 1.0
  %v428 = vsub.f32 %v317, 1.0
  %v429 = vsub.f32 %v319, 1.0
  %v430 = vsub.f32 %v321, 1.0
  %v431 = vsub.f32 %v323, 1.0
  %v432 = vsub.f32 %v325, 1.0
  %v433 = vsub.f32 %v327, 1.0
  %v434 = vsub.f32 %v329, 1.0
  %v435 = vsub.f32 %v331, 1.0
  %v436 = vsub.f32 %v333, 1.0
  %v437 = vsub.f32 %v335, 1.0
  %v438 = vsub.f32 %v337, 1.0
  %v439 = vsub.f32 %v339, 1.0
  %v440 = vsub.f32 %v341, 1.0
  %v441 = vsub.f32 %v343, 1.0
  %v442 = vsub.f32 %v345, 1.0
  %v443 = vsub.f32 %v347, 1.0
  %v444 = vsub.f32 %v349, 1.0
  %v445 = vsub.f32 %v351, 1.0
  %v446 = vsub.f32 %v353, 1.0
  %v447 = vsub.f32 %v355, 1.0
  %v448 = vsub.f32 %v357, 1.0
  %v449 = vsub.f32 %v359, 1.0
  %v450 = vsub.f32 %v361, 1.0
  %v451 = vsub.f32 %v363, 1.0
  %v452 = vsub.f32 %v365, 1.0
  %v453 = vsub.f32 %v367, 1.0
  %v454 = vsub.f32 %v369, 1.0
  %v455 = vsub.f32 %v371, 1.0
  %v456 = vsub.f32 %v373, 1.0
  %v457 = vsub.f32 %v375, 1.0
  %v458 = vsub.f32 %v377, 1.0
  %v459 = vsub.f32 %v379, 1.0
  %v460 = vsub.f32 %v381, 1.0
  %v461 = vsub.f32 %v383, 1.0
  %v462 = vsub.f32 %v385, 1.0
  %v463 = vsub.f32 %v387, 1.0
  %v464 = vsub.f32 %v389, 1.0
  %v465 = vsub.f32 %v391, 1.0
  %v466 = vsub.f32 %v393, 1.0
  %v467 = vsub.f32 %v395, 1.0
  %v468 = vsub.f32 %v397, 1.0
  %v469 = vsub.f32 %v399, 1.0
  %v470 = vsub.f32 %v401, 1.0
  %v471 = vsub.f32 %v403, 1.0
  %v472 = vsub.f32 %v405, 1.0
  %v473 = vsub.f32 %v407, 1.0
  %v474 = vsub.f32 %v409, 1.0
  %v475 = vsub.f32 %v411, 1.0
  %v476 = vmul.f32 %v412, 1.6732632
  %v477 = vmul.f32 %v413, 1.6732632
  %v478 = vmul.f32 %v414, 1.6732632
  %v479 = vmul.f32 %v415, 1.6732632
  %v480 = vmul.f32 %v416, 1.6732632
  %v481 = vmul.f32 %v417, 1.6732632
  %v482 = vmul.f32 %v418, 1.6732632
  %v483 = vmul.f32 %v419, 1.6732632
  %v484 = vmul.f32 %v420, 1.6732632
  %v485 = vmul.f32 %v421, 1.6732632
  %v486 = vmul.f32 %v422, 1.6732632
  %v487 = vmul.f32 %v423, 1.6732632
  %v488 = vmul.f32 %v424, 1.6732632
  %v489 = vmul.f32 %v425, 1.6732632
  %v490 = vmul.f32 %v426, 1.6732632
  %v491 = vmul.f32 %v427, 1.6732632
  %v492 = vmul.f32 %v428, 1.6732632
  %v493 = vmul.f32 %v429, 1.6732632
  %v494 = vmul.f32 %v430, 1.6732632
  %v495 = vmul.f32 %v431, 1.6732632
  %v496 = vmul.f32 %v432, 1.6732632
  %v497 = vmul.f32 %v433, 1.6732632
  %v498 = vmul.f32 %v434, 1.6732632
  %v499 = vmul.f32 %v435, 1.6732632
  %v500 = vmul.f32 %v436, 1.6732632
  %v501 = vmul.f32 %v437, 1.6732632
  %v502 = vmul.f32 %v438, 1.6732632
  %v503 = vmul.f32 %v439, 1.6732632
  %v504 = vmul.f32 %v440, 1.6732632
  %v505 = vmul.f32 %v441, 1.6732632
  %v506 = vmul.f32 %v442, 1.6732632
  %v507 = vmul.f32 %v443, 1.6732632
  %v508 = vmul.f32 %v444, 1.6732632
  %v509 = vmul.f32 %v445, 1.6732632
  %v510 = vmul.f32 %v446, 1.6732632
  %v511 = vmul.f32 %v447, 1.6732632
  %v512 = vmul.f32 %v448, 1.6732632
  %v513 = vmul.f32 %v449, 1.6732632
  %v514 = vmul.f32 %v450, 1.6732632
  %v515 = vmul.f32 %v451, 1.6732632
  %v516 = vmul.f32 %v452, 1.6732632
  %v517 = vmul.f32 %v453, 1.6732632
  %v518 = vmul.f32 %v454, 1.6732632
  %v519 = vmul.f32 %v455, 1.6732632
  %v520 = vmul.f32 %v456, 1.6732632
  %v521 = vmul.f32 %v457, 1.6732632
  %v522 = vmul.f32 %v458, 1.6732632
  %v523 = vmul.f32 %v459, 1.6732632
  %v524 = vmul.f32 %v460, 1.6732632
  %v525 = vmul.f32 %v461, 1.6732632
  %v526 = vmul.f32 %v462, 1.6732632
  %v527 = vmul.f32 %v463, 1.6732632
  %v528 = vmul.f32 %v464, 1.6732632
  %v529 = vmul.f32 %v465, 1.6732632
  %v530 = vmul.f32 %v466, 1.6732632
  %v531 = vmul.f32 %v467, 1.6732632
  %v532 = vmul.f32 %v468, 1.6732632
  %v533 = vmul.f32 %v469, 1.6732632
  %v534 = vmul.f32 %v470, 1.6732632
  %v535 = vmul.f32 %v471, 1.6732632
  %v536 = vmul.f32 %v472, 1.6732632
  %v537 = vmul.f32 %v473, 1.6732632
  %v538 = vmul.f32 %v474, 1.6732632
  %v539 = vmul.f32 %v475, 1.6732632
  %v540 = vsel %vm220, %v156, %v476
  %v541 = vsel %vm221, %v157, %v477
  %v542 = vsel %vm222, %v158, %v478
  %v543 = vsel %vm223, %v159, %v479
  %v544 = vsel %vm224, %v160, %v480
  %v545 = vsel %vm225, %v161, %v481
  %v546 = vsel %vm226, %v162, %v482
  %v547 = vsel %vm227, %v163, %v483
  %v548 = vsel %vm228, %v164, %v484
  %v549 = vsel %vm229, %v165, %v485
  %v550 = vsel %vm230, %v166, %v486
  %v551 = vsel %vm231, %v167, %v487
  %v552 = vsel %vm232, %v168, %v488
  %v553 = vsel %vm233, %v169, %v489
  %v554 = vsel %vm234, %v170, %v490
  %v555 = vsel %vm235, %v171, %v491
  %v556 = vsel %vm236, %v172, %v492
  %v557 = vsel %vm237, %v173, %v493
  %v558 = vsel %vm238, %v174, %v494
  %v559 = vsel %vm239, %v175, %v495
  %v560 = vsel %vm240, %v176, %v496
  %v561 = vsel %vm241, %v177, %v497
  %v562 = vsel %vm242, %v178, %v498
  %v563 = vsel %vm243, %v179, %v499
  %v564 = vsel %vm244, %v180, %v500
  %v565 = vsel %vm245, %v181, %v501
  %v566 = vsel %vm246, %v182, %v502
  %v567 = vsel %vm247, %v183, %v503
  %v568 = vsel %vm248, %v184, %v504
  %v569 = vsel %vm249, %v185, %v505
  %v570 = vsel %vm250, %v186, %v506
  %v571 = vsel %vm251, %v187, %v507
  %v572 = vsel %vm252, %v188, %v508
  %v573 = vsel %vm253, %v189, %v509
  %v574 = vsel %vm254, %v190, %v510
  %v575 = vsel %vm255, %v191, %v511
  %v576 = vsel %vm256, %v192, %v512
  %v577 = vsel %vm257, %v193, %v513
  %v578 = vsel %vm258, %v194, %v514
  %v579 = vsel %vm259, %v195, %v515
  %v580 = vsel %vm260, %v196, %v516
  %v581 = vsel %vm261, %v197, %v517
  %v582 = vsel %vm262, %v198, %v518
  %v583 = vsel %vm263, %v199, %v519
  %v584 = vsel %vm264, %v200, %v520
  %v585 = vsel %vm265, %v201, %v521
  %v586 = vsel %vm266, %v202, %v522
  %v587 = vsel %vm267, %v203, %v523
  %v588 = vsel %vm268, %v204, %v524
  %v589 = vsel %vm269, %v205, %v525
  %v590 = vsel %vm270, %v206, %v526
  %v591 = vsel %vm271, %v207, %v527
  %v592 = vsel %vm272, %v208, %v528
  %v593 = vsel %vm273, %v209, %v529
  %v594 = vsel %vm274, %v210, %v530
  %v595 = vsel %vm275, %v211, %v531
  %v596 = vsel %vm276, %v212, %v532
  %v597 = vsel %vm277, %v213, %v533
  %v598 = vsel %vm278, %v214, %v534
  %v599 = vsel %vm279, %v215, %v535
  %v600 = vsel %vm280, %v216, %v536
  %v601 = vsel %vm281, %v217, %v537
  %v602 = vsel %vm282, %v218, %v538
  %v603 = vsel %vm283, %v219, %v539
  %v604 = vmul.f32 %v540, 1.050701
  %v605 = vmul.f32 %v541, 1.050701
  %v606 = vmul.f32 %v542, 1.050701
  %v607 = vmul.f32 %v543, 1.050701
  %v608 = vmul.f32 %v544, 1.050701
  %v609 = vmul.f32 %v545, 1.050701
  %v610 = vmul.f32 %v546, 1.050701
  %v611 = vmul.f32 %v547, 1.050701
  %v612 = vmul.f32 %v548, 1.050701
  %v613 = vmul.f32 %v549, 1.050701
  %v614 = vmul.f32 %v550, 1.050701
  %v615 = vmul.f32 %v551, 1.050701
  %v616 = vmul.f32 %v552, 1.050701
  %v617 = vmul.f32 %v553, 1.050701
  %v618 = vmul.f32 %v554, 1.050701
  %v619 = vmul.f32 %v555, 1.050701
  %v620 = vmul.f32 %v556, 1.050701
  %v621 = vmul.f32 %v557, 1.050701
  %v622 = vmul.f32 %v558, 1.050701
  %v623 = vmul.f32 %v559, 1.050701
  %v624 = vmul.f32 %v560, 1.050701
  %v625 = vmul.f32 %v561, 1.050701
  %v626 = vmul.f32 %v562, 1.050701
  %v627 = vmul.f32 %v563, 1.050701
  %v628 = vmul.f32 %v564, 1.050701
  %v629 = vmul.f32 %v565, 1.050701
  %v630 = vmul.f32 %v566, 1.050701
  %v631 = vmul.f32 %v567, 1.050701
  %v632 = vmul.f32 %v568, 1.050701
  %v633 = vmul.f32 %v569, 1.050701
  %v634 = vmul.f32 %v570, 1.050701
  %v635 = vmul.f32 %v571, 1.050701
  %v636 = vmul.f32 %v572, 1.050701
  %v637 = vmul.f32 %v573, 1.050701
  %v638 = vmul.f32 %v574, 1.050701
  %v639 = vmul.f32 %v575, 1.050701
  %v640 = vmul.f32 %v576, 1.050701
  %v641 = vmul.f32 %v577, 1.050701
  %v642 = vmul.f32 %v578, 1.050701
  %v643 = vmul.f32 %v579, 1.050701
  %v644 = vmul.f32 %v580, 1.050701
  %v645 = vmul.f32 %v581, 1.050701
  %v646 = vmul.f32 %v582, 1.050701
  %v647 = vmul.f32 %v583, 1.050701
  %v648 = vmul.f32 %v584, 1.050701
  %v649 = vmul.f32 %v585, 1.050701
  %v650 = vmul.f32 %v586, 1.050701
  %v651 = vmul.f32 %v587, 1.050701
  %v652 = vmul.f32 %v588, 1.050701
  %v653 = vmul.f32 %v589, 1.050701
  %v654 = vmul.f32 %v590, 1.050701
  %v655 = vmul.f32 %v591, 1.050701
  %v656 = vmul.f32 %v592, 1.050701
  %v657 = vmul.f32 %v593, 1.050701
  %v658 = vmul.f32 %v594, 1.050701
  %v659 = vmul.f32 %v595, 1.050701
  %v660 = vmul.f32 %v596, 1.050701
  %v661 = vmul.f32 %v597, 1.050701
  %v662 = vmul.f32 %v598, 1.050701
  %v663 = vmul.f32 %v599, 1.050701
  %v664 = vmul.f32 %v600, 1.050701
  %v665 = vmul.f32 %v601, 1.050701
  %v666 = vmul.f32 %v602, 1.050701
  %v667 = vmul.f32 %v603, 1.050701
  %668 = vst [vmem:[%s3] sm:$0xff] %v604
  %669 = vst [vmem:[%s3 + $0x8] sm:$0xff] %v605
  %670 = vst [vmem:[%s3 + $0x10] sm:$0xff] %v606
  %671 = vst [vmem:[%s3 + $0x18] sm:$0xff] %v607
  %672 = vst [vmem:[%s3 + $0x20] sm:$0xff] %v608
  %673 = vst [vmem:[%s3 + $0x28] sm:$0xff] %v609
  %674 = vst [vmem:[%s3 + $0x30] sm:$0xff] %v610
  %675 = vst [vmem:[%s3 + $0x38] sm:$0xff] %v611
  %676 = vst [vmem:[%s3 + $0x40] sm:$0xff] %v612
  %677 = vst [vmem:[%s3 + $0x48] sm:$0xff] %v613
  %678 = vst [vmem:[%s3 + $0x50] sm:$0xff] %v614
  %679 = vst [vmem:[%s3 + $0x58] sm:$0xff] %v615
  %680 = vst [vmem:[%s3 + $0x60] sm:$0xff] %v616
  %681 = vst [vmem:[%s3 + $0x68] sm:$0xff] %v617
  %682 = vst [vmem:[%s3 + $0x70] sm:$0xff] %v618
  %683 = vst [vmem:[%s3 + $0x78] sm:$0xff] %v619
  %684 = vst [vmem:[%s3 + $0x80] sm:$0xff] %v620
  %685 = vst [vmem:[%s3 + $0x88] sm:$0xff] %v621
  %686 = vst [vmem:[%s3 + $0x90] sm:$0xff] %v622
  %687 = vst [vmem:[%s3 + $0x98] sm:$0xff] %v623
  %688 = vst [vmem:[%s3 + $0xa0] sm:$0xff] %v624
  %689 = vst [vmem:[%s3 + $0xa8] sm:$0xff] %v625
  %690 = vst [vmem:[%s3 + $0xb0] sm:$0xff] %v626
  %691 = vst [vmem:[%s3 + $0xb8] sm:$0xff] %v627
  %692 = vst [vmem:[%s3 + $0xc0] sm:$0xff] %v628
  %693 = vst [vmem:[%s3 + $0xc8] sm:$0xff] %v629
  %694 = vst [vmem:[%s3 + $0xd0] sm:$0xff] %v630
  %695 = vst [vmem:[%s3 + $0xd8] sm:$0xff] %v631
  %696 = vst [vmem:[%s3 + $0xe0] sm:$0xff] %v632
  %697 = vst [vmem:[%s3 + $0xe8] sm:$0xff] %v633
  %698 = vst [vmem:[%s3 + $0xf0] sm:$0xff] %v634
  %699 = vst [vmem:[%s3 + $0xf8] sm:$0xff] %v635
  %700 = vst [vmem:[%s3 + $0x100] sm:$0xff] %v636
  %701 = vst [vmem:[%s3 + $0x108] sm:$0xff] %v637
  %702 = vst [vmem:[%s3 + $0x110] sm:$0xff] %v638
  %703 = vst [vmem:[%s3 + $0x118] sm:$0xff] %v639
  %704 = vst [vmem:[%s3 + $0x120] sm:$0xff] %v640
  %705 = vst [vmem:[%s3 + $0x128] sm:$0xff] %v641
  %706 = vst [vmem:[%s3 + $0x130] sm:$0xff] %v642
  %707 = vst [vmem:[%s3 + $0x138] sm:$0xff] %v643
  %708 = vst [vmem:[%s3 + $0x140] sm:$0xff] %v644
  %709 = vst [vmem:[%s3 + $0x148] sm:$0xff] %v645
  %710 = vst [vmem:[%s3 + $0x150] sm:$0xff] %v646
  %711 = vst [vmem:[%s3 + $0x158] sm:$0xff] %v647
  %712 = vst [vmem:[%s3 + $0x160] sm:$0xff] %v648
  %713 = vst [vmem:[%s3 + $0x168] sm:$0xff] %v649
  %714 = vst [vmem:[%s3 + $0x170] sm:$0xff] %v650
  %715 = vst [vmem:[%s3 + $0x178] sm:$0xff] %v651
  %716 = vst [vmem:[%s3 + $0x180] sm:$0xff] %v652
  %717 = vst [vmem:[%s3 + $0x188] sm:$0xff] %v653
  %718 = vst [vmem:[%s3 + $0x190] sm:$0xff] %v654
  %719 = vst [vmem:[%s3 + $0x198] sm:$0xff] %v655
  %720 = vst [vmem:[%s3 + $0x1a0] sm:$0xff] %v656
  %721 = vst [vmem:[%s3 + $0x1a8] sm:$0xff] %v657
  %722 = vst [vmem:[%s3 + $0x1b0] sm:$0xff] %v658
  %723 = vst [vmem:[%s3 + $0x1b8] sm:$0xff] %v659
  %724 = vst [vmem:[%s3 + $0x1c0] sm:$0xff] %v660
  %725 = vst [vmem:[%s3 + $0x1c8] sm:$0xff] %v661
  %726 = vst [vmem:[%s3 + $0x1d0] sm:$0xff] %v662
  %727 = vst [vmem:[%s3 + $0x1d8] sm:$0xff] %v663
  %728 = vst [vmem:[%s3 + $0x1e0] sm:$0xff] %v664
  %729 = vst [vmem:[%s3 + $0x1e8] sm:$0xff] %v665
  %730 = vst [vmem:[%s3 + $0x1f0] sm:$0xff] %v666
  %731 = vst [vmem:[%s3 + $0x1f8] sm:$0xff] %v667
  // Predicated region
  $region14: #{discriminator_forward.9} parent=0 // pred_check
    _
  $region15: #{discriminator_forward.9} parent=0 // pred_check_branch
    %733 = sbr.rel (0) target = $region17
  $region16: #{discriminator_forward.9} parent=0 // pred_region
    _
  $region17: #{discriminator_forward.9} parent=0 // pred_fallthru
    _
  // Predicated region
  $region18: #{discriminator_forward.9} parent=0 // pred_check
    _
  $region19: #{discriminator_forward.9} parent=0 // pred_check_branch
    %735 = sbr.rel (0) target = $region21
  $region20: #{discriminator_forward.9} parent=0 // pred_region
    _
  $region21: #{discriminator_forward.9} parent=0 // pred_fallthru
    _

// kernel: discriminator_forward.10
$region0: #{discriminator_forward.10}
  #allocation0 [shape = 'u32[]', space=smem, size = 0x4, offset = 0x4, fixed_abs, tag = 'smem constant byte address 0x4 - core index']
  #allocation1 [shape = 'u32[144,128]{1,0:T(1,128)}', space=vmem, size = 0x12000, scoped, tag = 'internal scratch']
  %s0 = inlined_call_operand.vmem [shape: f32[512,512], index: 0, kind: input, shape index: {}]
  %s1 = inlined_call_operand.vmem [shape: f32[512,64], index: 1, kind: input, shape index: {}]
  %s2 = inlined_call_operand.vmem [shape: f32[512,64], index: 2, kind: output, shape index: {0}]
  %s3 = inlined_call_operand.vmem [shape: f32[1,1,64], index: 3, kind: output, shape index: {1}]
  %s4 = inlined_call_operand.vmem [shape: f32[1,1,64], index: 4, kind: output, shape index: {2}]
  %5 = xla_tuple %s2, %s3, %s4
  %s6 = sld [smem:[#allocation0]]
  $region34: #{discriminator_forward.10} parent=0
    _
  %s8 = ssub.s32 1, %s6
  %s9 = scalar_select 0, %s8, %s6
  // Predicated region
  $region2: #{discriminator_forward.10} parent=0 // pred_check
    _
  $region3: #{discriminator_forward.10} parent=0 // pred_check_branch
    %11 = sbr.rel (0) target = $region5
  $region4: #{discriminator_forward.10} parent=0 // pred_region
    _
  $region5: #{discriminator_forward.10} parent=0 // pred_fallthru
    _
  // Predicated region
  $region6: #{discriminator_forward.10} parent=0 // pred_check
    _
  $region7: #{discriminator_forward.10} parent=0 // pred_check_branch
    %13 = sbr.rel (0) target = $region9
  $region8: #{discriminator_forward.10} parent=0 // pred_region
    _
  $region9: #{discriminator_forward.10} parent=0 // pred_fallthru
    _
  %v14 = vld [vmem:[%s0] sm:$0xff]
  %v15 = vld [vmem:[%s0 + $0x8] sm:$0xff]
  %v16 = vld [vmem:[%s0 + $0x10] sm:$0xff]
  %v17 = vld [vmem:[%s0 + $0x18] sm:$0xff]
  %v18 = vld [vmem:[%s0 + $0x20] sm:$0xff]
  %v19 = vld [vmem:[%s0 + $0x28] sm:$0xff]
  %v20 = vld [vmem:[%s0 + $0x30] sm:$0xff]
  %v21 = vld [vmem:[%s0 + $0x38] sm:$0xff]
  %v22 = vld [vmem:[%s0 + $0x40] sm:$0xff]
  %v23 = vld [vmem:[%s0 + $0x48] sm:$0xff]
  %v24 = vld [vmem:[%s0 + $0x50] sm:$0xff]
  %v25 = vld [vmem:[%s0 + $0x58] sm:$0xff]
  %v26 = vld [vmem:[%s0 + $0x60] sm:$0xff]
  %v27 = vld [vmem:[%s0 + $0x68] sm:$0xff]
  %v28 = vld [vmem:[%s0 + $0x70] sm:$0xff]
  %v29 = vld [vmem:[%s0 + $0x78] sm:$0xff]
  %v30 = vld [vmem:[%s0 + $0x80] sm:$0xff]
  %v31 = vld [vmem:[%s0 + $0x88] sm:$0xff]
  %v32 = vld [vmem:[%s0 + $0x90] sm:$0xff]
  %v33 = vld [vmem:[%s0 + $0x98] sm:$0xff]
  %v34 = vld [vmem:[%s0 + $0xa0] sm:$0xff]
  %v35 = vld [vmem:[%s0 + $0xa8] sm:$0xff]
  %v36 = vld [vmem:[%s0 + $0xb0] sm:$0xff]
  %v37 = vld [vmem:[%s0 + $0xb8] sm:$0xff]
  %v38 = vld [vmem:[%s0 + $0xc0] sm:$0xff]
  %v39 = vld [vmem:[%s0 + $0xc8] sm:$0xff]
  %v40 = vld [vmem:[%s0 + $0xd0] sm:$0xff]
  %v41 = vld [vmem:[%s0 + $0xd8] sm:$0xff]
  %v42 = vld [vmem:[%s0 + $0xe0] sm:$0xff]
  %v43 = vld [vmem:[%s0 + $0xe8] sm:$0xff]
  %v44 = vld [vmem:[%s0 + $0xf0] sm:$0xff]
  %v45 = vld [vmem:[%s0 + $0xf8] sm:$0xff]
  %v46 = vld [vmem:[%s0 + $0x100] sm:$0xff]
  %v47 = vld [vmem:[%s0 + $0x108] sm:$0xff]
  %v48 = vld [vmem:[%s0 + $0x110] sm:$0xff]
  %v49 = vld [vmem:[%s0 + $0x118] sm:$0xff]
  %v50 = vld [vmem:[%s0 + $0x120] sm:$0xff]
  %v51 = vld [vmem:[%s0 + $0x128] sm:$0xff]
  %v52 = vld [vmem:[%s0 + $0x130] sm:$0xff]
  %v53 = vld [vmem:[%s0 + $0x138] sm:$0xff]
  %v54 = vld [vmem:[%s0 + $0x140] sm:$0xff]
  %v55 = vld [vmem:[%s0 + $0x148] sm:$0xff]
  %v56 = vld [vmem:[%s0 + $0x150] sm:$0xff]
  %v57 = vld [vmem:[%s0 + $0x158] sm:$0xff]
  %v58 = vld [vmem:[%s0 + $0x160] sm:$0xff]
  %v59 = vld [vmem:[%s0 + $0x168] sm:$0xff]
  %v60 = vld [vmem:[%s0 + $0x170] sm:$0xff]
  %v61 = vld [vmem:[%s0 + $0x178] sm:$0xff]
  %v62 = vld [vmem:[%s0 + $0x180] sm:$0xff]
  %v63 = vld [vmem:[%s0 + $0x188] sm:$0xff]
  %v64 = vld [vmem:[%s0 + $0x190] sm:$0xff]
  %v65 = vld [vmem:[%s0 + $0x198] sm:$0xff]
  %v66 = vld [vmem:[%s0 + $0x1a0] sm:$0xff]
  %v67 = vld [vmem:[%s0 + $0x1a8] sm:$0xff]
  %v68 = vld [vmem:[%s0 + $0x1b0] sm:$0xff]
  %v69 = vld [vmem:[%s0 + $0x1b8] sm:$0xff]
  %v70 = vld [vmem:[%s0 + $0x1c0] sm:$0xff]
  %v71 = vld [vmem:[%s0 + $0x1c8] sm:$0xff]
  %v72 = vld [vmem:[%s0 + $0x1d0] sm:$0xff]
  %v73 = vld [vmem:[%s0 + $0x1d8] sm:$0xff]
  %v74 = vld [vmem:[%s0 + $0x1e0] sm:$0xff]
  %v75 = vld [vmem:[%s0 + $0x1e8] sm:$0xff]
  %v76 = vld [vmem:[%s0 + $0x1f0] sm:$0xff]
  %v77 = vld [vmem:[%s0 + $0x1f8] sm:$0xff]
  %v78 = vld [vmem:[%s0 + $0x200] sm:$0xff]
  %v79 = vld [vmem:[%s0 + $0x208] sm:$0xff]
  %v80 = vld [vmem:[%s0 + $0x210] sm:$0xff]
  %v81 = vld [vmem:[%s0 + $0x218] sm:$0xff]
  %v82 = vld [vmem:[%s0 + $0x220] sm:$0xff]
  %v83 = vld [vmem:[%s0 + $0x228] sm:$0xff]
  %v84 = vld [vmem:[%s0 + $0x230] sm:$0xff]
  %v85 = vld [vmem:[%s0 + $0x238] sm:$0xff]
  %v86 = vld [vmem:[%s0 + $0x240] sm:$0xff]
  %v87 = vld [vmem:[%s0 + $0x248] sm:$0xff]
  %v88 = vld [vmem:[%s0 + $0x250] sm:$0xff]
  %v89 = vld [vmem:[%s0 + $0x258] sm:$0xff]
  %v90 = vld [vmem:[%s0 + $0x260] sm:$0xff]
  %v91 = vld [vmem:[%s0 + $0x268] sm:$0xff]
  %v92 = vld [vmem:[%s0 + $0x270] sm:$0xff]
  %v93 = vld [vmem:[%s0 + $0x278] sm:$0xff]
  %v94 = vld [vmem:[%s0 + $0x280] sm:$0xff]
  %v95 = vld [vmem:[%s0 + $0x288] sm:$0xff]
  %v96 = vld [vmem:[%s0 + $0x290] sm:$0xff]
  %v97 = vld [vmem:[%s0 + $0x298] sm:$0xff]
  %v98 = vld [vmem:[%s0 + $0x2a0] sm:$0xff]
  %v99 = vld [vmem:[%s0 + $0x2a8] sm:$0xff]
  %v100 = vld [vmem:[%s0 + $0x2b0] sm:$0xff]
  %v101 = vld [vmem:[%s0 + $0x2b8] sm:$0xff]
  %v102 = vld [vmem:[%s0 + $0x2c0] sm:$0xff]
  %v103 = vld [vmem:[%s0 + $0x2c8] sm:$0xff]
  %v104 = vld [vmem:[%s0 + $0x2d0] sm:$0xff]
  %v105 = vld [vmem:[%s0 + $0x2d8] sm:$0xff]
  %v106 = vld [vmem:[%s0 + $0x2e0] sm:$0xff]
  %v107 = vld [vmem:[%s0 + $0x2e8] sm:$0xff]
  %v108 = vld [vmem:[%s0 + $0x2f0] sm:$0xff]
  %v109 = vld [vmem:[%s0 + $0x2f8] sm:$0xff]
  %v110 = vld [vmem:[%s0 + $0x300] sm:$0xff]
  %v111 = vld [vmem:[%s0 + $0x308] sm:$0xff]
  %v112 = vld [vmem:[%s0 + $0x310] sm:$0xff]
  %v113 = vld [vmem:[%s0 + $0x318] sm:$0xff]
  %v114 = vld [vmem:[%s0 + $0x320] sm:$0xff]
  %v115 = vld [vmem:[%s0 + $0x328] sm:$0xff]
  %v116 = vld [vmem:[%s0 + $0x330] sm:$0xff]
  %v117 = vld [vmem:[%s0 + $0x338] sm:$0xff]
  %v118 = vld [vmem:[%s0 + $0x340] sm:$0xff]
  %v119 = vld [vmem:[%s0 + $0x348] sm:$0xff]
  %v120 = vld [vmem:[%s0 + $0x350] sm:$0xff]
  %v121 = vld [vmem:[%s0 + $0x358] sm:$0xff]
  %v122 = vld [vmem:[%s0 + $0x360] sm:$0xff]
  %v123 = vld [vmem:[%s0 + $0x368] sm:$0xff]
  %v124 = vld [vmem:[%s0 + $0x370] sm:$0xff]
  %v125 = vld [vmem:[%s0 + $0x378] sm:$0xff]
  %v126 = vld [vmem:[%s0 + $0x380] sm:$0xff]
  %v127 = vld [vmem:[%s0 + $0x388] sm:$0xff]
  %v128 = vld [vmem:[%s0 + $0x390] sm:$0xff]
  %v129 = vld [vmem:[%s0 + $0x398] sm:$0xff]
  %v130 = vld [vmem:[%s0 + $0x3a0] sm:$0xff]
  %v131 = vld [vmem:[%s0 + $0x3a8] sm:$0xff]
  %v132 = vld [vmem:[%s0 + $0x3b0] sm:$0xff]
  %v133 = vld [vmem:[%s0 + $0x3b8] sm:$0xff]
  %v134 = vld [vmem:[%s0 + $0x3c0] sm:$0xff]
  %v135 = vld [vmem:[%s0 + $0x3c8] sm:$0xff]
  %v136 = vld [vmem:[%s0 + $0x3d0] sm:$0xff]
  %v137 = vld [vmem:[%s0 + $0x3d8] sm:$0xff]
  %v138 = vld [vmem:[%s0 + $0x3e0] sm:$0xff]
  %v139 = vld [vmem:[%s0 + $0x3e8] sm:$0xff]
  %v140 = vld [vmem:[%s0 + $0x3f0] sm:$0xff]
  %v141 = vld [vmem:[%s0 + $0x3f8] sm:$0xff]
  %v142 = vld [vmem:[%s0 + $0x400] sm:$0xff]
  %v143 = vld [vmem:[%s0 + $0x408] sm:$0xff]
  %v144 = vld [vmem:[%s0 + $0x410] sm:$0xff]
  %v145 = vld [vmem:[%s0 + $0x418] sm:$0xff]
  %v146 = vld [vmem:[%s0 + $0x420] sm:$0xff]
  %v147 = vld [vmem:[%s0 + $0x428] sm:$0xff]
  %v148 = vld [vmem:[%s0 + $0x430] sm:$0xff]
  %v149 = vld [vmem:[%s0 + $0x438] sm:$0xff]
  %v150 = vld [vmem:[%s0 + $0x440] sm:$0xff]
  %v151 = vld [vmem:[%s0 + $0x448] sm:$0xff]
  %v152 = vld [vmem:[%s0 + $0x450] sm:$0xff]
  %v153 = vld [vmem:[%s0 + $0x458] sm:$0xff]
  %v154 = vld [vmem:[%s0 + $0x460] sm:$0xff]
  %v155 = vld [vmem:[%s0 + $0x468] sm:$0xff]
  %v156 = vld [vmem:[%s0 + $0x470] sm:$0xff]
  %v157 = vld [vmem:[%s0 + $0x478] sm:$0xff]
  %v158 = vld [vmem:[%s0 + $0x480] sm:$0xff]
  %v159 = vld [vmem:[%s0 + $0x488] sm:$0xff]
  %v160 = vld [vmem:[%s0 + $0x490] sm:$0xff]
  %v161 = vld [vmem:[%s0 + $0x498] sm:$0xff]
  %v162 = vld [vmem:[%s0 + $0x4a0] sm:$0xff]
  %v163 = vld [vmem:[%s0 + $0x4a8] sm:$0xff]
  %v164 = vld [vmem:[%s0 + $0x4b0] sm:$0xff]
  %v165 = vld [vmem:[%s0 + $0x4b8] sm:$0xff]
  %v166 = vld [vmem:[%s0 + $0x4c0] sm:$0xff]
  %v167 = vld [vmem:[%s0 + $0x4c8] sm:$0xff]
  %v168 = vld [vmem:[%s0 + $0x4d0] sm:$0xff]
  %v169 = vld [vmem:[%s0 + $0x4d8] sm:$0xff]
  %v170 = vld [vmem:[%s0 + $0x4e0] sm:$0xff]
  %v171 = vld [vmem:[%s0 + $0x4e8] sm:$0xff]
  %v172 = vld [vmem:[%s0 + $0x4f0] sm:$0xff]
  %v173 = vld [vmem:[%s0 + $0x4f8] sm:$0xff]
  %v174 = vld [vmem:[%s0 + $0x500] sm:$0xff]
  %v175 = vld [vmem:[%s0 + $0x508] sm:$0xff]
  %v176 = vld [vmem:[%s0 + $0x510] sm:$0xff]
  %v177 = vld [vmem:[%s0 + $0x518] sm:$0xff]
  %v178 = vld [vmem:[%s0 + $0x520] sm:$0xff]
  %v179 = vld [vmem:[%s0 + $0x528] sm:$0xff]
  %v180 = vld [vmem:[%s0 + $0x530] sm:$0xff]
  %v181 = vld [vmem:[%s0 + $0x538] sm:$0xff]
  %v182 = vld [vmem:[%s0 + $0x540] sm:$0xff]
  %v183 = vld [vmem:[%s0 + $0x548] sm:$0xff]
  %v184 = vld [vmem:[%s0 + $0x550] sm:$0xff]
  %v185 = vld [vmem:[%s0 + $0x558] sm:$0xff]
  %v186 = vld [vmem:[%s0 + $0x560] sm:$0xff]
  %v187 = vld [vmem:[%s0 + $0x568] sm:$0xff]
  %v188 = vld [vmem:[%s0 + $0x570] sm:$0xff]
  %v189 = vld [vmem:[%s0 + $0x578] sm:$0xff]
  %v190 = vld [vmem:[%s0 + $0x580] sm:$0xff]
  %v191 = vld [vmem:[%s0 + $0x588] sm:$0xff]
  %v192 = vld [vmem:[%s0 + $0x590] sm:$0xff]
  %v193 = vld [vmem:[%s0 + $0x598] sm:$0xff]
  %v194 = vld [vmem:[%s0 + $0x5a0] sm:$0xff]
  %v195 = vld [vmem:[%s0 + $0x5a8] sm:$0xff]
  %v196 = vld [vmem:[%s0 + $0x5b0] sm:$0xff]
  %v197 = vld [vmem:[%s0 + $0x5b8] sm:$0xff]
  %v198 = vld [vmem:[%s0 + $0x5c0] sm:$0xff]
  %v199 = vld [vmem:[%s0 + $0x5c8] sm:$0xff]
  %v200 = vld [vmem:[%s0 + $0x5d0] sm:$0xff]
  %v201 = vld [vmem:[%s0 + $0x5d8] sm:$0xff]
  %v202 = vld [vmem:[%s0 + $0x5e0] sm:$0xff]
  %v203 = vld [vmem:[%s0 + $0x5e8] sm:$0xff]
  %v204 = vld [vmem:[%s0 + $0x5f0] sm:$0xff]
  %v205 = vld [vmem:[%s0 + $0x5f8] sm:$0xff]
  %v206 = vld [vmem:[%s0 + $0x600] sm:$0xff]
  %v207 = vld [vmem:[%s0 + $0x608] sm:$0xff]
  %v208 = vld [vmem:[%s0 + $0x610] sm:$0xff]
  %v209 = vld [vmem:[%s0 + $0x618] sm:$0xff]
  %v210 = vld [vmem:[%s0 + $0x620] sm:$0xff]
  %v211 = vld [vmem:[%s0 + $0x628] sm:$0xff]
  %v212 = vld [vmem:[%s0 + $0x630] sm:$0xff]
  %v213 = vld [vmem:[%s0 + $0x638] sm:$0xff]
  %v214 = vld [vmem:[%s0 + $0x640] sm:$0xff]
  %v215 = vld [vmem:[%s0 + $0x648] sm:$0xff]
  %v216 = vld [vmem:[%s0 + $0x650] sm:$0xff]
  %v217 = vld [vmem:[%s0 + $0x658] sm:$0xff]
  %v218 = vld [vmem:[%s0 + $0x660] sm:$0xff]
  %v219 = vld [vmem:[%s0 + $0x668] sm:$0xff]
  %v220 = vld [vmem:[%s0 + $0x670] sm:$0xff]
  %v221 = vld [vmem:[%s0 + $0x678] sm:$0xff]
  %v222 = vld [vmem:[%s0 + $0x680] sm:$0xff]
  %v223 = vld [vmem:[%s0 + $0x688] sm:$0xff]
  %v224 = vld [vmem:[%s0 + $0x690] sm:$0xff]
  %v225 = vld [vmem:[%s0 + $0x698] sm:$0xff]
  %v226 = vld [vmem:[%s0 + $0x6a0] sm:$0xff]
  %v227 = vld [vmem:[%s0 + $0x6a8] sm:$0xff]
  %v228 = vld [vmem:[%s0 + $0x6b0] sm:$0xff]
  %v229 = vld [vmem:[%s0 + $0x6b8] sm:$0xff]
  %v230 = vld [vmem:[%s0 + $0x6c0] sm:$0xff]
  %v231 = vld [vmem:[%s0 + $0x6c8] sm:$0xff]
  %v232 = vld [vmem:[%s0 + $0x6d0] sm:$0xff]
  %v233 = vld [vmem:[%s0 + $0x6d8] sm:$0xff]
  %v234 = vld [vmem:[%s0 + $0x6e0] sm:$0xff]
  %v235 = vld [vmem:[%s0 + $0x6e8] sm:$0xff]
  %v236 = vld [vmem:[%s0 + $0x6f0] sm:$0xff]
  %v237 = vld [vmem:[%s0 + $0x6f8] sm:$0xff]
  %v238 = vld [vmem:[%s0 + $0x700] sm:$0xff]
  %v239 = vld [vmem:[%s0 + $0x708] sm:$0xff]
  %v240 = vld [vmem:[%s0 + $0x710] sm:$0xff]
  %v241 = vld [vmem:[%s0 + $0x718] sm:$0xff]
  %v242 = vld [vmem:[%s0 + $0x720] sm:$0xff]
  %v243 = vld [vmem:[%s0 + $0x728] sm:$0xff]
  %v244 = vld [vmem:[%s0 + $0x730] sm:$0xff]
  %v245 = vld [vmem:[%s0 + $0x738] sm:$0xff]
  %v246 = vld [vmem:[%s0 + $0x740] sm:$0xff]
  %v247 = vld [vmem:[%s0 + $0x748] sm:$0xff]
  %v248 = vld [vmem:[%s0 + $0x750] sm:$0xff]
  %v249 = vld [vmem:[%s0 + $0x758] sm:$0xff]
  %v250 = vld [vmem:[%s0 + $0x760] sm:$0xff]
  %v251 = vld [vmem:[%s0 + $0x768] sm:$0xff]
  %v252 = vld [vmem:[%s0 + $0x770] sm:$0xff]
  %v253 = vld [vmem:[%s0 + $0x778] sm:$0xff]
  %v254 = vld [vmem:[%s0 + $0x780] sm:$0xff]
  %v255 = vld [vmem:[%s0 + $0x788] sm:$0xff]
  %v256 = vld [vmem:[%s0 + $0x790] sm:$0xff]
  %v257 = vld [vmem:[%s0 + $0x798] sm:$0xff]
  %v258 = vld [vmem:[%s0 + $0x7a0] sm:$0xff]
  %v259 = vld [vmem:[%s0 + $0x7a8] sm:$0xff]
  %v260 = vld [vmem:[%s0 + $0x7b0] sm:$0xff]
  %v261 = vld [vmem:[%s0 + $0x7b8] sm:$0xff]
  %v262 = vld [vmem:[%s0 + $0x7c0] sm:$0xff]
  %v263 = vld [vmem:[%s0 + $0x7c8] sm:$0xff]
  %v264 = vld [vmem:[%s0 + $0x7d0] sm:$0xff]
  %v265 = vld [vmem:[%s0 + $0x7d8] sm:$0xff]
  %v266 = vld [vmem:[%s0 + $0x7e0] sm:$0xff]
  %v267 = vld [vmem:[%s0 + $0x7e8] sm:$0xff]
  %v268 = vld [vmem:[%s0 + $0x7f0] sm:$0xff]
  %v269 = vld [vmem:[%s0 + $0x7f8] sm:$0xff]
  %v270 = vld [vmem:[%s1] sm:$0xff]
  %v271 = vld [vmem:[%s1 + $0x8] sm:$0xff]
  %v272 = vld [vmem:[%s1 + $0x10] sm:$0xff]
  %v273 = vld [vmem:[%s1 + $0x18] sm:$0xff]
  %v274 = vld [vmem:[%s1 + $0x20] sm:$0xff]
  %v275 = vld [vmem:[%s1 + $0x28] sm:$0xff]
  %v276 = vld [vmem:[%s1 + $0x30] sm:$0xff]
  %v277 = vld [vmem:[%s1 + $0x38] sm:$0xff]
  %v278 = vld [vmem:[%s1 + $0x40] sm:$0xff]
  %v279 = vld [vmem:[%s1 + $0x48] sm:$0xff]
  %v280 = vld [vmem:[%s1 + $0x50] sm:$0xff]
  %v281 = vld [vmem:[%s1 + $0x58] sm:$0xff]
  %v282 = vld [vmem:[%s1 + $0x60] sm:$0xff]
  %v283 = vld [vmem:[%s1 + $0x68] sm:$0xff]
  %v284 = vld [vmem:[%s1 + $0x70] sm:$0xff]
  %v285 = vld [vmem:[%s1 + $0x78] sm:$0xff]
  %v286 = vld [vmem:[%s1 + $0x80] sm:$0xff]
  %v287 = vld [vmem:[%s1 + $0x88] sm:$0xff]
  %v288 = vld [vmem:[%s1 + $0x90] sm:$0xff]
  %v289 = vld [vmem:[%s1 + $0x98] sm:$0xff]
  %v290 = vld [vmem:[%s1 + $0xa0] sm:$0xff]
  %v291 = vld [vmem:[%s1 + $0xa8] sm:$0xff]
  %v292 = vld [vmem:[%s1 + $0xb0] sm:$0xff]
  %v293 = vld [vmem:[%s1 + $0xb8] sm:$0xff]
  %v294 = vld [vmem:[%s1 + $0xc0] sm:$0xff]
  %v295 = vld [vmem:[%s1 + $0xc8] sm:$0xff]
  %v296 = vld [vmem:[%s1 + $0xd0] sm:$0xff]
  %v297 = vld [vmem:[%s1 + $0xd8] sm:$0xff]
  %v298 = vld [vmem:[%s1 + $0xe0] sm:$0xff]
  %v299 = vld [vmem:[%s1 + $0xe8] sm:$0xff]
  %v300 = vld [vmem:[%s1 + $0xf0] sm:$0xff]
  %v301 = vld [vmem:[%s1 + $0xf8] sm:$0xff]
  %v302 = vld [vmem:[%s1 + $0x100] sm:$0xff]
  %v303 = vld [vmem:[%s1 + $0x108] sm:$0xff]
  %v304 = vld [vmem:[%s1 + $0x110] sm:$0xff]
  %v305 = vld [vmem:[%s1 + $0x118] sm:$0xff]
  %v306 = vld [vmem:[%s1 + $0x120] sm:$0xff]
  %v307 = vld [vmem:[%s1 + $0x128] sm:$0xff]
  %v308 = vld [vmem:[%s1 + $0x130] sm:$0xff]
  %v309 = vld [vmem:[%s1 + $0x138] sm:$0xff]
  %v310 = vld [vmem:[%s1 + $0x140] sm:$0xff]
  %v311 = vld [vmem:[%s1 + $0x148] sm:$0xff]
  %v312 = vld [vmem:[%s1 + $0x150] sm:$0xff]
  %v313 = vld [vmem:[%s1 + $0x158] sm:$0xff]
  %v314 = vld [vmem:[%s1 + $0x160] sm:$0xff]
  %v315 = vld [vmem:[%s1 + $0x168] sm:$0xff]
  %v316 = vld [vmem:[%s1 + $0x170] sm:$0xff]
  %v317 = vld [vmem:[%s1 + $0x178] sm:$0xff]
  %v318 = vld [vmem:[%s1 + $0x180] sm:$0xff]
  %v319 = vld [vmem:[%s1 + $0x188] sm:$0xff]
  %v320 = vld [vmem:[%s1 + $0x190] sm:$0xff]
  %v321 = vld [vmem:[%s1 + $0x198] sm:$0xff]
  %v322 = vld [vmem:[%s1 + $0x1a0] sm:$0xff]
  %v323 = vld [vmem:[%s1 + $0x1a8] sm:$0xff]
  %v324 = vld [vmem:[%s1 + $0x1b0] sm:$0xff]
  %v325 = vld [vmem:[%s1 + $0x1b8] sm:$0xff]
  %v326 = vld [vmem:[%s1 + $0x1c0] sm:$0xff]
  %v327 = vld [vmem:[%s1 + $0x1c8] sm:$0xff]
  %v328 = vld [vmem:[%s1 + $0x1d0] sm:$0xff]
  %v329 = vld [vmem:[%s1 + $0x1d8] sm:$0xff]
  %v330 = vld [vmem:[%s1 + $0x1e0] sm:$0xff]
  %v331 = vld [vmem:[%s1 + $0x1e8] sm:$0xff]
  %v332 = vld [vmem:[%s1 + $0x1f0] sm:$0xff]
  %v333 = vld [vmem:[%s1 + $0x1f8] sm:$0xff]
  %334 = vmatprep.subr.mxu0 0.0
  %335 = vmatpush1.msra.mxu0 %v285
  %336 = vmatprep.subr.mxu0 0.0
  %337 = vmatpush1.msra.mxu0 %v284
  %338 = vmatprep.subr.mxu0 0.0
  %339 = vmatpush1.msra.mxu0 %v283
  %340 = vmatprep.subr.mxu0 0.0
  %341 = vmatpush1.msra.mxu0 %v282
  %342 = vmatprep.subr.mxu0 0.0
  %343 = vmatpush1.msra.mxu0 %v281
  %344 = vmatprep.subr.mxu0 0.0
  %345 = vmatpush1.msra.mxu0 %v280
  %346 = vmatprep.subr.mxu0 0.0
  %347 = vmatpush1.msra.mxu0 %v279
  %348 = vmatprep.subr.mxu0 0.0
  %349 = vmatpush1.msra.mxu0 %v278
  %350 = vmatprep.subr.mxu0 0.0
  %351 = vmatpush1.msra.mxu0 %v277
  %352 = vmatprep.subr.mxu0 0.0
  %353 = vmatpush1.msra.mxu0 %v276
  %354 = vmatprep.subr.mxu0 0.0
  %355 = vmatpush1.msra.mxu0 %v275
  %356 = vmatprep.subr.mxu0 0.0
  %357 = vmatpush1.msra.mxu0 %v274
  %358 = vmatprep.subr.mxu0 0.0
  %359 = vmatpush1.msra.mxu0 %v273
  %360 = vmatprep.subr.mxu0 0.0
  %361 = vmatpush1.msra.mxu0 %v272
  %362 = vmatprep.subr.mxu0 0.0
  %363 = vmatpush1.msra.mxu0 %v271
  %364 = vmatprep.subr.mxu0 0.0
  %365 = vmatpush1.msra.mxu0 %v270
  %366 = vmatprep.subr.mxu0 0.0
  %367 = vmatpush2.msra.mxu0 %v301
  %368 = vmatprep.subr.mxu0 0.0
  %369 = vmatpush2.msra.mxu0 %v300
  %370 = vmatprep.subr.mxu0 0.0
  %371 = vmatpush2.msra.mxu0 %v299
  %372 = vmatprep.subr.mxu0 0.0
  %373 = vmatpush2.msra.mxu0 %v298
  %374 = vmatprep.subr.mxu0 0.0
  %375 = vmatpush2.msra.mxu0 %v297
  %376 = vmatprep.subr.mxu0 0.0
  %377 = vmatpush2.msra.mxu0 %v296
  %378 = vmatprep.subr.mxu0 0.0
  %379 = vmatpush2.msra.mxu0 %v295
  %380 = vmatprep.subr.mxu0 0.0
  %381 = vmatpush2.msra.mxu0 %v294
  %382 = vmatprep.subr.mxu0 0.0
  %383 = vmatpush2.msra.mxu0 %v293
  %384 = vmatprep.subr.mxu0 0.0
  %385 = vmatpush2.msra.mxu0 %v292
  %386 = vmatprep.subr.mxu0 0.0
  %387 = vmatpush2.msra.mxu0 %v291
  %388 = vmatprep.subr.mxu0 0.0
  %389 = vmatpush2.msra.mxu0 %v290
  %390 = vmatprep.subr.mxu0 0.0
  %391 = vmatpush2.msra.mxu0 %v289
  %392 = vmatprep.subr.mxu0 0.0
  %393 = vmatpush2.msra.mxu0 %v288
  %394 = vmatprep.subr.mxu0 0.0
  %395 = vmatpush2.msra.mxu0 %v287
  %396 = vmatprep.subr.mxu0 0.0
  %397 = vmatpush2.msra.mxu0 %v286
  %398 = vmatprep.mubr.f32.mxu0 %v15
  %399 = vmatmul.mubr.f32.gmra.mxu0 %v14
  %v400 = vpop.f32.mrf.mxu0
  %v401 = vadd.f32 0.0, %v400
  %v402 = vpop.f32.mrf.mxu0
  %403 = vmatprep.mubr.f32.mxu0 %v19
  %404 = vmatmul.mubr.f32.gmra.mxu0 %v18
  %v405 = vpop.f32.mrf.mxu0
  %v406 = vadd.f32 0.0, %v405
  %v407 = vpop.f32.mrf.mxu0
  %408 = vmatprep.mubr.f32.mxu0 %v23
  %409 = vmatmul.mubr.f32.gmra.mxu0 %v22
  %v410 = vpop.f32.mrf.mxu0
  %v411 = vadd.f32 0.0, %v410
  %v412 = vpop.f32.mrf.mxu0
  %413 = vmatprep.mubr.f32.mxu0 %v27
  %414 = vmatmul.mubr.f32.gmra.mxu0 %v26
  %v415 = vpop.f32.mrf.mxu0
  %v416 = vadd.f32 0.0, %v415
  %v417 = vpop.f32.mrf.mxu0
  %418 = vmatprep.mubr.f32.mxu0 %v31
  %419 = vmatmul.mubr.f32.gmra.mxu0 %v30
  %v420 = vpop.f32.mrf.mxu0
  %v421 = vadd.f32 0.0, %v420
  %v422 = vpop.f32.mrf.mxu0
  %423 = vmatprep.mubr.f32.mxu0 %v35
  %424 = vmatmul.mubr.f32.gmra.mxu0 %v34
  %v425 = vpop.f32.mrf.mxu0
  %v426 = vadd.f32 0.0, %v425
  %v427 = vpop.f32.mrf.mxu0
  %428 = vmatprep.mubr.f32.mxu0 %v39
  %429 = vmatmul.mubr.f32.gmra.mxu0 %v38
  %v430 = vpop.f32.mrf.mxu0
  %v431 = vadd.f32 0.0, %v430
  %v432 = vpop.f32.mrf.mxu0
  %433 = vmatprep.mubr.f32.mxu0 %v43
  %434 = vmatmul.mubr.f32.gmra.mxu0 %v42
  %v435 = vpop.f32.mrf.mxu0
  %v436 = vadd.f32 0.0, %v435
  %v437 = vpop.f32.mrf.mxu0
  %438 = vmatprep.mubr.f32.mxu0 %v47
  %439 = vmatmul.mubr.f32.gmra.mxu0 %v46
  %v440 = vpop.f32.mrf.mxu0
  %v441 = vadd.f32 0.0, %v440
  %v442 = vpop.f32.mrf.mxu0
  %443 = vmatprep.mubr.f32.mxu0 %v51
  %444 = vmatmul.mubr.f32.gmra.mxu0 %v50
  %v445 = vpop.f32.mrf.mxu0
  %v446 = vadd.f32 0.0, %v445
  %v447 = vpop.f32.mrf.mxu0
  %448 = vmatprep.mubr.f32.mxu0 %v55
  %449 = vmatmul.mubr.f32.gmra.mxu0 %v54
  %v450 = vpop.f32.mrf.mxu0
  %v451 = vadd.f32 0.0, %v450
  %v452 = vpop.f32.mrf.mxu0
  %453 = vmatprep.mubr.f32.mxu0 %v59
  %454 = vmatmul.mubr.f32.gmra.mxu0 %v58
  %v455 = vpop.f32.mrf.mxu0
  %v456 = vadd.f32 0.0, %v455
  %v457 = vpop.f32.mrf.mxu0
  %458 = vmatprep.mubr.f32.mxu0 %v63
  %459 = vmatmul.mubr.f32.gmra.mxu0 %v62
  %v460 = vpop.f32.mrf.mxu0
  %v461 = vadd.f32 0.0, %v460
  %v462 = vpop.f32.mrf.mxu0
  %463 = vmatprep.mubr.f32.mxu0 %v67
  %464 = vmatmul.mubr.f32.gmra.mxu0 %v66
  %v465 = vpop.f32.mrf.mxu0
  %v466 = vadd.f32 0.0, %v465
  %v467 = vpop.f32.mrf.mxu0
  %468 = vmatprep.mubr.f32.mxu0 %v71
  %469 = vmatmul.mubr.f32.gmra.mxu0 %v70
  %v470 = vpop.f32.mrf.mxu0
  %v471 = vadd.f32 0.0, %v470
  %v472 = vpop.f32.mrf.mxu0
  %473 = vmatprep.mubr.f32.mxu0 %v75
  %474 = vmatmul.mubr.f32.gmra.mxu0 %v74
  %v475 = vpop.f32.mrf.mxu0
  %v476 = vadd.f32 0.0, %v475
  %v477 = vpop.f32.mrf.mxu0
  %478 = vmatprep.mubr.f32.mxu0 %v79
  %479 = vmatmul.mubr.f32.gmra.mxu0 %v78
  %v480 = vpop.f32.mrf.mxu0
  %v481 = vadd.f32 0.0, %v480
  %v482 = vpop.f32.mrf.mxu0
  %483 = vmatprep.mubr.f32.mxu0 %v83
  %484 = vmatmul.mubr.f32.gmra.mxu0 %v82
  %v485 = vpop.f32.mrf.mxu0
  %v486 = vadd.f32 0.0, %v485
  %v487 = vpop.f32.mrf.mxu0
  %488 = vmatprep.mubr.f32.mxu0 %v87
  %489 = vmatmul.mubr.f32.gmra.mxu0 %v86
  %v490 = vpop.f32.mrf.mxu0
  %v491 = vadd.f32 0.0, %v490
  %v492 = vpop.f32.mrf.mxu0
  %493 = vmatprep.mubr.f32.mxu0 %v91
  %494 = vmatmul.mubr.f32.gmra.mxu0 %v90
  %v495 = vpop.f32.mrf.mxu0
  %v496 = vadd.f32 0.0, %v495
  %v497 = vpop.f32.mrf.mxu0
  %498 = vmatprep.mubr.f32.mxu0 %v95
  %499 = vmatmul.mubr.f32.gmra.mxu0 %v94
  %v500 = vpop.f32.mrf.mxu0
  %v501 = vadd.f32 0.0, %v500
  %v502 = vpop.f32.mrf.mxu0
  %503 = vmatprep.mubr.f32.mxu0 %v99
  %504 = vmatmul.mubr.f32.gmra.mxu0 %v98
  %v505 = vpop.f32.mrf.mxu0
  %v506 = vadd.f32 0.0, %v505
  %v507 = vpop.f32.mrf.mxu0
  %508 = vmatprep.mubr.f32.mxu0 %v103
  %509 = vmatmul.mubr.f32.gmra.mxu0 %v102
  %v510 = vpop.f32.mrf.mxu0
  %v511 = vadd.f32 0.0, %v510
  %v512 = vpop.f32.mrf.mxu0
  %513 = vmatprep.mubr.f32.mxu0 %v107
  %514 = vmatmul.mubr.f32.gmra.mxu0 %v106
  %v515 = vpop.f32.mrf.mxu0
  %v516 = vadd.f32 0.0, %v515
  %v517 = vpop.f32.mrf.mxu0
  %518 = vmatprep.mubr.f32.mxu0 %v111
  %519 = vmatmul.mubr.f32.gmra.mxu0 %v110
  %v520 = vpop.f32.mrf.mxu0
  %v521 = vadd.f32 0.0, %v520
  %v522 = vpop.f32.mrf.mxu0
  %523 = vmatprep.mubr.f32.mxu0 %v115
  %524 = vmatmul.mubr.f32.gmra.mxu0 %v114
  %v525 = vpop.f32.mrf.mxu0
  %v526 = vadd.f32 0.0, %v525
  %v527 = vpop.f32.mrf.mxu0
  %528 = vmatprep.mubr.f32.mxu0 %v119
  %529 = vmatmul.mubr.f32.gmra.mxu0 %v118
  %v530 = vpop.f32.mrf.mxu0
  %v531 = vadd.f32 0.0, %v530
  %v532 = vpop.f32.mrf.mxu0
  %533 = vmatprep.mubr.f32.mxu0 %v123
  %534 = vmatmul.mubr.f32.gmra.mxu0 %v122
  %v535 = vpop.f32.mrf.mxu0
  %v536 = vadd.f32 0.0, %v535
  %v537 = vpop.f32.mrf.mxu0
  %538 = vmatprep.mubr.f32.mxu0 %v127
  %539 = vmatmul.mubr.f32.gmra.mxu0 %v126
  %v540 = vpop.f32.mrf.mxu0
  %v541 = vadd.f32 0.0, %v540
  %v542 = vpop.f32.mrf.mxu0
  %543 = vmatprep.mubr.f32.mxu0 %v131
  %544 = vmatmul.mubr.f32.gmra.mxu0 %v130
  %v545 = vpop.f32.mrf.mxu0
  %v546 = vadd.f32 0.0, %v545
  %v547 = vpop.f32.mrf.mxu0
  %548 = vmatprep.mubr.f32.mxu0 %v135
  %549 = vmatmul.mubr.f32.gmra.mxu0 %v134
  %v550 = vpop.f32.mrf.mxu0
  %v551 = vadd.f32 0.0, %v550
  %v552 = vpop.f32.mrf.mxu0
  %553 = vmatprep.mubr.f32.mxu0 %v139
  %554 = vmatmul.mubr.f32.gmra.mxu0 %v138
  %v555 = vpop.f32.mrf.mxu0
  %v556 = vadd.f32 0.0, %v555
  %v557 = vpop.f32.mrf.mxu0
  %558 = vmatprep.mubr.f32.mxu0 %v143
  %559 = vmatmul.mubr.f32.gmra.mxu0 %v142
  %v560 = vpop.f32.mrf.mxu0
  %v561 = vadd.f32 0.0, %v560
  %v562 = vpop.f32.mrf.mxu0
  %563 = vmatprep.mubr.f32.mxu0 %v147
  %564 = vmatmul.mubr.f32.gmra.mxu0 %v146
  %v565 = vpop.f32.mrf.mxu0
  %v566 = vadd.f32 0.0, %v565
  %v567 = vpop.f32.mrf.mxu0
  %568 = vmatprep.mubr.f32.mxu0 %v151
  %569 = vmatmul.mubr.f32.gmra.mxu0 %v150
  %v570 = vpop.f32.mrf.mxu0
  %v571 = vadd.f32 0.0, %v570
  %v572 = vpop.f32.mrf.mxu0
  %573 = vmatprep.mubr.f32.mxu0 %v155
  %574 = vmatmul.mubr.f32.gmra.mxu0 %v154
  %v575 = vpop.f32.mrf.mxu0
  %v576 = vadd.f32 0.0, %v575
  %v577 = vpop.f32.mrf.mxu0
  %578 = vmatprep.mubr.f32.mxu0 %v159
  %579 = vmatmul.mubr.f32.gmra.mxu0 %v158
  %v580 = vpop.f32.mrf.mxu0
  %v581 = vadd.f32 0.0, %v580
  %v582 = vpop.f32.mrf.mxu0
  %583 = vmatprep.mubr.f32.mxu0 %v163
  %584 = vmatmul.mubr.f32.gmra.mxu0 %v162
  %v585 = vpop.f32.mrf.mxu0
  %v586 = vadd.f32 0.0, %v585
  %v587 = vpop.f32.mrf.mxu0
  %588 = vmatprep.mubr.f32.mxu0 %v167
  %589 = vmatmul.mubr.f32.gmra.mxu0 %v166
  %v590 = vpop.f32.mrf.mxu0
  %v591 = vadd.f32 0.0, %v590
  %v592 = vpop.f32.mrf.mxu0
  %593 = vmatprep.mubr.f32.mxu0 %v171
  %594 = vmatmul.mubr.f32.gmra.mxu0 %v170
  %v595 = vpop.f32.mrf.mxu0
  %v596 = vadd.f32 0.0, %v595
  %v597 = vpop.f32.mrf.mxu0
  %598 = vmatprep.mubr.f32.mxu0 %v175
  %599 = vmatmul.mubr.f32.gmra.mxu0 %v174
  %v600 = vpop.f32.mrf.mxu0
  %v601 = vadd.f32 0.0, %v600
  %v602 = vpop.f32.mrf.mxu0
  %603 = vmatprep.mubr.f32.mxu0 %v179
  %604 = vmatmul.mubr.f32.gmra.mxu0 %v178
  %v605 = vpop.f32.mrf.mxu0
  %v606 = vadd.f32 0.0, %v605
  %v607 = vpop.f32.mrf.mxu0
  %608 = vmatprep.mubr.f32.mxu0 %v183
  %609 = vmatmul.mubr.f32.gmra.mxu0 %v182
  %v610 = vpop.f32.mrf.mxu0
  %v611 = vadd.f32 0.0, %v610
  %v612 = vpop.f32.mrf.mxu0
  %613 = vmatprep.mubr.f32.mxu0 %v187
  %614 = vmatmul.mubr.f32.gmra.mxu0 %v186
  %v615 = vpop.f32.mrf.mxu0
  %v616 = vadd.f32 0.0, %v615
  %v617 = vpop.f32.mrf.mxu0
  %618 = vmatprep.mubr.f32.mxu0 %v191
  %619 = vmatmul.mubr.f32.gmra.mxu0 %v190
  %v620 = vpop.f32.mrf.mxu0
  %v621 = vadd.f32 0.0, %v620
  %v622 = vpop.f32.mrf.mxu0
  %623 = vmatprep.mubr.f32.mxu0 %v195
  %624 = vmatmul.mubr.f32.gmra.mxu0 %v194
  %v625 = vpop.f32.mrf.mxu0
  %v626 = vadd.f32 0.0, %v625
  %v627 = vpop.f32.mrf.mxu0
  %628 = vmatprep.mubr.f32.mxu0 %v199
  %629 = vmatmul.mubr.f32.gmra.mxu0 %v198
  %v630 = vpop.f32.mrf.mxu0
  %v631 = vadd.f32 0.0, %v630
  %v632 = vpop.f32.mrf.mxu0
  %633 = vmatprep.mubr.f32.mxu0 %v203
  %634 = vmatmul.mubr.f32.gmra.mxu0 %v202
  %v635 = vpop.f32.mrf.mxu0
  %v636 = vadd.f32 0.0, %v635
  %v637 = vpop.f32.mrf.mxu0
  %638 = vmatprep.mubr.f32.mxu0 %v207
  %639 = vmatmul.mubr.f32.gmra.mxu0 %v206
  %v640 = vpop.f32.mrf.mxu0
  %v641 = vadd.f32 0.0, %v640
  %v642 = vpop.f32.mrf.mxu0
  %643 = vmatprep.mubr.f32.mxu0 %v211
  %644 = vmatmul.mubr.f32.gmra.mxu0 %v210
  %v645 = vpop.f32.mrf.mxu0
  %v646 = vadd.f32 0.0, %v645
  %v647 = vpop.f32.mrf.mxu0
  %648 = vmatprep.mubr.f32.mxu0 %v215
  %649 = vmatmul.mubr.f32.gmra.mxu0 %v214
  %v650 = vpop.f32.mrf.mxu0
  %v651 = vadd.f32 0.0, %v650
  %v652 = vpop.f32.mrf.mxu0
  %653 = vmatprep.mubr.f32.mxu0 %v219
  %654 = vmatmul.mubr.f32.gmra.mxu0 %v218
  %v655 = vpop.f32.mrf.mxu0
  %v656 = vadd.f32 0.0, %v655
  %v657 = vpop.f32.mrf.mxu0
  %658 = vmatprep.mubr.f32.mxu0 %v223
  %659 = vmatmul.mubr.f32.gmra.mxu0 %v222
  %v660 = vpop.f32.mrf.mxu0
  %v661 = vadd.f32 0.0, %v660
  %v662 = vpop.f32.mrf.mxu0
  %663 = vmatprep.mubr.f32.mxu0 %v227
  %664 = vmatmul.mubr.f32.gmra.mxu0 %v226
  %v665 = vpop.f32.mrf.mxu0
  %v666 = vadd.f32 0.0, %v665
  %v667 = vpop.f32.mrf.mxu0
  %668 = vmatprep.mubr.f32.mxu0 %v231
  %669 = vmatmul.mubr.f32.gmra.mxu0 %v230
  %v670 = vpop.f32.mrf.mxu0
  %v671 = vadd.f32 0.0, %v670
  %v672 = vpop.f32.mrf.mxu0
  %673 = vmatprep.mubr.f32.mxu0 %v235
  %674 = vmatmul.mubr.f32.gmra.mxu0 %v234
  %v675 = vpop.f32.mrf.mxu0
  %v676 = vadd.f32 0.0, %v675
  %v677 = vpop.f32.mrf.mxu0
  %678 = vmatprep.mubr.f32.mxu0 %v239
  %679 = vmatmul.mubr.f32.gmra.mxu0 %v238
  %v680 = vpop.f32.mrf.mxu0
  %v681 = vadd.f32 0.0, %v680
  %v682 = vpop.f32.mrf.mxu0
  %683 = vmatprep.mubr.f32.mxu0 %v243
  %684 = vmatmul.mubr.f32.gmra.mxu0 %v242
  %v685 = vpop.f32.mrf.mxu0
  %v686 = vadd.f32 0.0, %v685
  %v687 = vpop.f32.mrf.mxu0
  %688 = vmatprep.mubr.f32.mxu0 %v247
  %689 = vmatmul.mubr.f32.gmra.mxu0 %v246
  %v690 = vpop.f32.mrf.mxu0
  %v691 = vadd.f32 0.0, %v690
  %v692 = vpop.f32.mrf.mxu0
  %693 = vmatprep.mubr.f32.mxu0 %v251
  %694 = vmatmul.mubr.f32.gmra.mxu0 %v250
  %v695 = vpop.f32.mrf.mxu0
  %v696 = vadd.f32 0.0, %v695
  %v697 = vpop.f32.mrf.mxu0
  %698 = vmatprep.mubr.f32.mxu0 %v255
  %699 = vmatmul.mubr.f32.gmra.mxu0 %v254
  %v700 = vpop.f32.mrf.mxu0
  %v701 = vadd.f32 0.0, %v700
  %v702 = vpop.f32.mrf.mxu0
  %703 = vmatprep.mubr.f32.mxu0 %v259
  %704 = vmatmul.mubr.f32.gmra.mxu0 %v258
  %v705 = vpop.f32.mrf.mxu0
  %v706 = vadd.f32 0.0, %v705
  %v707 = vpop.f32.mrf.mxu0
  %708 = vmatprep.mubr.f32.mxu0 %v263
  %709 = vmatmul.mubr.f32.gmra.mxu0 %v262
  %v710 = vpop.f32.mrf.mxu0
  %v711 = vadd.f32 0.0, %v710
  %v712 = vpop.f32.mrf.mxu0
  %713 = vmatprep.mubr.f32.mxu0 %v267
  %714 = vmatmul.mubr.f32.gmra.mxu0 %v266
  %v715 = vpop.f32.mrf.mxu0
  %v716 = vadd.f32 0.0, %v715
  %v717 = vpop.f32.mrf.mxu0
  %718 = vdwg.mxu0
  %719 = vmatprep.subr.mxu0 0.0
  %720 = vmatpush1.msra.mxu0 %v317
  %721 = vmatprep.subr.mxu0 0.0
  %722 = vmatpush1.msra.mxu0 %v316
  %723 = vmatprep.subr.mxu0 0.0
  %724 = vmatpush1.msra.mxu0 %v315
  %725 = vmatprep.subr.mxu0 0.0
  %726 = vmatpush1.msra.mxu0 %v314
  %727 = vmatprep.subr.mxu0 0.0
  %728 = vmatpush1.msra.mxu0 %v313
  %729 = vmatprep.subr.mxu0 0.0
  %730 = vmatpush1.msra.mxu0 %v312
  %731 = vmatprep.subr.mxu0 0.0
  %732 = vmatpush1.msra.mxu0 %v311
  %733 = vmatprep.subr.mxu0 0.0
  %734 = vmatpush1.msra.mxu0 %v310
  %735 = vmatprep.subr.mxu0 0.0
  %736 = vmatpush1.msra.mxu0 %v309
  %737 = vmatprep.subr.mxu0 0.0
  %738 = vmatpush1.msra.mxu0 %v308
  %739 = vmatprep.subr.mxu0 0.0
  %740 = vmatpush1.msra.mxu0 %v307
  %741 = vmatprep.subr.mxu0 0.0
  %742 = vmatpush1.msra.mxu0 %v306
  %743 = vmatprep.subr.mxu0 0.0
  %744 = vmatpush1.msra.mxu0 %v305
  %745 = vmatprep.subr.mxu0 0.0
  %746 = vmatpush1.msra.mxu0 %v304
  %747 = vmatprep.subr.mxu0 0.0
  %748 = vmatpush1.msra.mxu0 %v303
  %749 = vmatprep.subr.mxu0 0.0
  %750 = vmatpush1.msra.mxu0 %v302
  %751 = vmatprep.subr.mxu0 0.0
  %752 = vmatpush2.msra.mxu0 %v333
  %753 = vmatprep.subr.mxu0 0.0
  %754 = vmatpush2.msra.mxu0 %v332
  %755 = vmatprep.subr.mxu0 0.0
  %756 = vmatpush2.msra.mxu0 %v331
  %757 = vmatprep.subr.mxu0 0.0
  %758 = vmatpush2.msra.mxu0 %v330
  %759 = vmatprep.subr.mxu0 0.0
  %760 = vmatpush2.msra.mxu0 %v329
  %761 = vmatprep.subr.mxu0 0.0
  %762 = vmatpush2.msra.mxu0 %v328
  %763 = vmatprep.subr.mxu0 0.0
  %764 = vmatpush2.msra.mxu0 %v327
  %765 = vmatprep.subr.mxu0 0.0
  %766 = vmatpush2.msra.mxu0 %v326
  %767 = vmatprep.subr.mxu0 0.0
  %768 = vmatpush2.msra.mxu0 %v325
  %769 = vmatprep.subr.mxu0 0.0
  %770 = vmatpush2.msra.mxu0 %v324
  %771 = vmatprep.subr.mxu0 0.0
  %772 = vmatpush2.msra.mxu0 %v323
  %773 = vmatprep.subr.mxu0 0.0
  %774 = vmatpush2.msra.mxu0 %v322
  %775 = vmatprep.subr.mxu0 0.0
  %776 = vmatpush2.msra.mxu0 %v321
  %777 = vmatprep.subr.mxu0 0.0
  %778 = vmatpush2.msra.mxu0 %v320
  %779 = vmatprep.subr.mxu0 0.0
  %780 = vmatpush2.msra.mxu0 %v319
  %781 = vmatprep.subr.mxu0 0.0
  %782 = vmatpush2.msra.mxu0 %v318
  %783 = vmatprep.mubr.f32.mxu0 %v17
  %784 = vmatmul.mubr.f32.gmra.mxu0 %v16
  %v785 = vpop.f32.mrf.mxu0
  %v786 = vadd.f32 %v401, %v785
  %v787 = vpop.f32.mrf.mxu0
  %788 = vmatprep.mubr.f32.mxu0 %v21
  %789 = vmatmul.mubr.f32.gmra.mxu0 %v20
  %v790 = vpop.f32.mrf.mxu0
  %v791 = vadd.f32 %v406, %v790
  %v792 = vpop.f32.mrf.mxu0
  %793 = vmatprep.mubr.f32.mxu0 %v25
  %794 = vmatmul.mubr.f32.gmra.mxu0 %v24
  %v795 = vpop.f32.mrf.mxu0
  %v796 = vadd.f32 %v411, %v795
  %v797 = vpop.f32.mrf.mxu0
  %798 = vmatprep.mubr.f32.mxu0 %v29
  %799 = vmatmul.mubr.f32.gmra.mxu0 %v28
  %v800 = vpop.f32.mrf.mxu0
  %v801 = vadd.f32 %v416, %v800
  %v802 = vpop.f32.mrf.mxu0
  %803 = vmatprep.mubr.f32.mxu0 %v33
  %804 = vmatmul.mubr.f32.gmra.mxu0 %v32
  %v805 = vpop.f32.mrf.mxu0
  %v806 = vadd.f32 %v421, %v805
  %v807 = vpop.f32.mrf.mxu0
  %808 = vmatprep.mubr.f32.mxu0 %v37
  %809 = vmatmul.mubr.f32.gmra.mxu0 %v36
  %v810 = vpop.f32.mrf.mxu0
  %v811 = vadd.f32 %v426, %v810
  %v812 = vpop.f32.mrf.mxu0
  %813 = vmatprep.mubr.f32.mxu0 %v41
  %814 = vmatmul.mubr.f32.gmra.mxu0 %v40
  %v815 = vpop.f32.mrf.mxu0
  %v816 = vadd.f32 %v431, %v815
  %v817 = vpop.f32.mrf.mxu0
  %818 = vmatprep.mubr.f32.mxu0 %v45
  %819 = vmatmul.mubr.f32.gmra.mxu0 %v44
  %v820 = vpop.f32.mrf.mxu0
  %v821 = vadd.f32 %v436, %v820
  %v822 = vpop.f32.mrf.mxu0
  %823 = vmatprep.mubr.f32.mxu0 %v49
  %824 = vmatmul.mubr.f32.gmra.mxu0 %v48
  %v825 = vpop.f32.mrf.mxu0
  %v826 = vadd.f32 %v441, %v825
  %v827 = vpop.f32.mrf.mxu0
  %828 = vmatprep.mubr.f32.mxu0 %v53
  %829 = vmatmul.mubr.f32.gmra.mxu0 %v52
  %v830 = vpop.f32.mrf.mxu0
  %v831 = vadd.f32 %v446, %v830
  %v832 = vpop.f32.mrf.mxu0
  %833 = vmatprep.mubr.f32.mxu0 %v57
  %834 = vmatmul.mubr.f32.gmra.mxu0 %v56
  %v835 = vpop.f32.mrf.mxu0
  %v836 = vadd.f32 %v451, %v835
  %v837 = vpop.f32.mrf.mxu0
  %838 = vmatprep.mubr.f32.mxu0 %v61
  %839 = vmatmul.mubr.f32.gmra.mxu0 %v60
  %v840 = vpop.f32.mrf.mxu0
  %v841 = vadd.f32 %v456, %v840
  %v842 = vpop.f32.mrf.mxu0
  %843 = vmatprep.mubr.f32.mxu0 %v65
  %844 = vmatmul.mubr.f32.gmra.mxu0 %v64
  %v845 = vpop.f32.mrf.mxu0
  %v846 = vadd.f32 %v461, %v845
  %v847 = vpop.f32.mrf.mxu0
  %848 = vmatprep.mubr.f32.mxu0 %v69
  %849 = vmatmul.mubr.f32.gmra.mxu0 %v68
  %v850 = vpop.f32.mrf.mxu0
  %v851 = vadd.f32 %v466, %v850
  %v852 = vpop.f32.mrf.mxu0
  %853 = vmatprep.mubr.f32.mxu0 %v73
  %854 = vmatmul.mubr.f32.gmra.mxu0 %v72
  %v855 = vpop.f32.mrf.mxu0
  %v856 = vadd.f32 %v471, %v855
  %v857 = vpop.f32.mrf.mxu0
  %858 = vmatprep.mubr.f32.mxu0 %v77
  %859 = vmatmul.mubr.f32.gmra.mxu0 %v76
  %v860 = vpop.f32.mrf.mxu0
  %v861 = vadd.f32 %v476, %v860
  %v862 = vpop.f32.mrf.mxu0
  %863 = vmatprep.mubr.f32.mxu0 %v81
  %864 = vmatmul.mubr.f32.gmra.mxu0 %v80
  %v865 = vpop.f32.mrf.mxu0
  %v866 = vadd.f32 %v481, %v865
  %v867 = vpop.f32.mrf.mxu0
  %868 = vmatprep.mubr.f32.mxu0 %v85
  %869 = vmatmul.mubr.f32.gmra.mxu0 %v84
  %v870 = vpop.f32.mrf.mxu0
  %v871 = vadd.f32 %v486, %v870
  %v872 = vpop.f32.mrf.mxu0
  %873 = vmatprep.mubr.f32.mxu0 %v89
  %874 = vmatmul.mubr.f32.gmra.mxu0 %v88
  %v875 = vpop.f32.mrf.mxu0
  %v876 = vadd.f32 %v491, %v875
  %v877 = vpop.f32.mrf.mxu0
  %878 = vmatprep.mubr.f32.mxu0 %v93
  %879 = vmatmul.mubr.f32.gmra.mxu0 %v92
  %v880 = vpop.f32.mrf.mxu0
  %v881 = vadd.f32 %v496, %v880
  %v882 = vpop.f32.mrf.mxu0
  %883 = vmatprep.mubr.f32.mxu0 %v97
  %884 = vmatmul.mubr.f32.gmra.mxu0 %v96
  %v885 = vpop.f32.mrf.mxu0
  %v886 = vadd.f32 %v501, %v885
  %v887 = vpop.f32.mrf.mxu0
  %888 = vmatprep.mubr.f32.mxu0 %v101
  %889 = vmatmul.mubr.f32.gmra.mxu0 %v100
  %v890 = vpop.f32.mrf.mxu0
  %v891 = vadd.f32 %v506, %v890
  %v892 = vpop.f32.mrf.mxu0
  %893 = vmatprep.mubr.f32.mxu0 %v105
  %894 = vmatmul.mubr.f32.gmra.mxu0 %v104
  %v895 = vpop.f32.mrf.mxu0
  %v896 = vadd.f32 %v511, %v895
  %v897 = vpop.f32.mrf.mxu0
  %898 = vmatprep.mubr.f32.mxu0 %v109
  %899 = vmatmul.mubr.f32.gmra.mxu0 %v108
  %v900 = vpop.f32.mrf.mxu0
  %v901 = vadd.f32 %v516, %v900
  %v902 = vpop.f32.mrf.mxu0
  %903 = vmatprep.mubr.f32.mxu0 %v113
  %904 = vmatmul.mubr.f32.gmra.mxu0 %v112
  %v905 = vpop.f32.mrf.mxu0
  %v906 = vadd.f32 %v521, %v905
  %v907 = vpop.f32.mrf.mxu0
  %908 = vmatprep.mubr.f32.mxu0 %v117
  %909 = vmatmul.mubr.f32.gmra.mxu0 %v116
  %v910 = vpop.f32.mrf.mxu0
  %v911 = vadd.f32 %v526, %v910
  %v912 = vpop.f32.mrf.mxu0
  %913 = vmatprep.mubr.f32.mxu0 %v121
  %914 = vmatmul.mubr.f32.gmra.mxu0 %v120
  %v915 = vpop.f32.mrf.mxu0
  %v916 = vadd.f32 %v531, %v915
  %v917 = vpop.f32.mrf.mxu0
  %918 = vmatprep.mubr.f32.mxu0 %v125
  %919 = vmatmul.mubr.f32.gmra.mxu0 %v124
  %v920 = vpop.f32.mrf.mxu0
  %v921 = vadd.f32 %v536, %v920
  %v922 = vpop.f32.mrf.mxu0
  %923 = vmatprep.mubr.f32.mxu0 %v129
  %924 = vmatmul.mubr.f32.gmra.mxu0 %v128
  %v925 = vpop.f32.mrf.mxu0
  %v926 = vadd.f32 %v541, %v925
  %v927 = vpop.f32.mrf.mxu0
  %928 = vmatprep.mubr.f32.mxu0 %v133
  %929 = vmatmul.mubr.f32.gmra.mxu0 %v132
  %v930 = vpop.f32.mrf.mxu0
  %v931 = vadd.f32 %v546, %v930
  %v932 = vpop.f32.mrf.mxu0
  %933 = vmatprep.mubr.f32.mxu0 %v137
  %934 = vmatmul.mubr.f32.gmra.mxu0 %v136
  %v935 = vpop.f32.mrf.mxu0
  %v936 = vadd.f32 %v551, %v935
  %v937 = vpop.f32.mrf.mxu0
  %938 = vmatprep.mubr.f32.mxu0 %v141
  %939 = vmatmul.mubr.f32.gmra.mxu0 %v140
  %v940 = vpop.f32.mrf.mxu0
  %v941 = vadd.f32 %v556, %v940
  %v942 = vpop.f32.mrf.mxu0
  %943 = vmatprep.mubr.f32.mxu0 %v145
  %944 = vmatmul.mubr.f32.gmra.mxu0 %v144
  %v945 = vpop.f32.mrf.mxu0
  %v946 = vadd.f32 %v561, %v945
  %v947 = vpop.f32.mrf.mxu0
  %948 = vmatprep.mubr.f32.mxu0 %v149
  %949 = vmatmul.mubr.f32.gmra.mxu0 %v148
  %v950 = vpop.f32.mrf.mxu0
  %v951 = vadd.f32 %v566, %v950
  %v952 = vpop.f32.mrf.mxu0
  %953 = vmatprep.mubr.f32.mxu0 %v153
  %954 = vmatmul.mubr.f32.gmra.mxu0 %v152
  %v955 = vpop.f32.mrf.mxu0
  %v956 = vadd.f32 %v571, %v955
  %v957 = vpop.f32.mrf.mxu0
  %958 = vmatprep.mubr.f32.mxu0 %v157
  %959 = vmatmul.mubr.f32.gmra.mxu0 %v156
  %v960 = vpop.f32.mrf.mxu0
  %v961 = vadd.f32 %v576, %v960
  %v962 = vpop.f32.mrf.mxu0
  %963 = vmatprep.mubr.f32.mxu0 %v161
  %964 = vmatmul.mubr.f32.gmra.mxu0 %v160
  %v965 = vpop.f32.mrf.mxu0
  %v966 = vadd.f32 %v581, %v965
  %v967 = vpop.f32.mrf.mxu0
  %968 = vmatprep.mubr.f32.mxu0 %v165
  %969 = vmatmul.mubr.f32.gmra.mxu0 %v164
  %v970 = vpop.f32.mrf.mxu0
  %v971 = vadd.f32 %v586, %v970
  %v972 = vpop.f32.mrf.mxu0
  %973 = vmatprep.mubr.f32.mxu0 %v169
  %974 = vmatmul.mubr.f32.gmra.mxu0 %v168
  %v975 = vpop.f32.mrf.mxu0
  %v976 = vadd.f32 %v591, %v975
  %v977 = vpop.f32.mrf.mxu0
  %978 = vmatprep.mubr.f32.mxu0 %v173
  %979 = vmatmul.mubr.f32.gmra.mxu0 %v172
  %v980 = vpop.f32.mrf.mxu0
  %v981 = vadd.f32 %v596, %v980
  %v982 = vpop.f32.mrf.mxu0
  %983 = vmatprep.mubr.f32.mxu0 %v177
  %984 = vmatmul.mubr.f32.gmra.mxu0 %v176
  %v985 = vpop.f32.mrf.mxu0
  %v986 = vadd.f32 %v601, %v985
  %v987 = vpop.f32.mrf.mxu0
  %988 = vmatprep.mubr.f32.mxu0 %v181
  %989 = vmatmul.mubr.f32.gmra.mxu0 %v180
  %v990 = vpop.f32.mrf.mxu0
  %v991 = vadd.f32 %v606, %v990
  %v992 = vpop.f32.mrf.mxu0
  %993 = vmatprep.mubr.f32.mxu0 %v185
  %994 = vmatmul.mubr.f32.gmra.mxu0 %v184
  %v995 = vpop.f32.mrf.mxu0
  %v996 = vadd.f32 %v611, %v995
  %v997 = vpop.f32.mrf.mxu0
  %998 = vmatprep.mubr.f32.mxu0 %v189
  %999 = vmatmul.mubr.f32.gmra.mxu0 %v188
  %v1000 = vpop.f32.mrf.mxu0
  %v1001 = vadd.f32 %v616, %v1000
  %v1002 = vpop.f32.mrf.mxu0
  %1003 = vmatprep.mubr.f32.mxu0 %v193
  %1004 = vmatmul.mubr.f32.gmra.mxu0 %v192
  %v1005 = vpop.f32.mrf.mxu0
  %v1006 = vadd.f32 %v621, %v1005
  %v1007 = vpop.f32.mrf.mxu0
  %1008 = vmatprep.mubr.f32.mxu0 %v197
  %1009 = vmatmul.mubr.f32.gmra.mxu0 %v196
  %v1010 = vpop.f32.mrf.mxu0
  %v1011 = vadd.f32 %v626, %v1010
  %v1012 = vpop.f32.mrf.mxu0
  %1013 = vmatprep.mubr.f32.mxu0 %v201
  %1014 = vmatmul.mubr.f32.gmra.mxu0 %v200
  %v1015 = vpop.f32.mrf.mxu0
  %v1016 = vadd.f32 %v631, %v1015
  %v1017 = vpop.f32.mrf.mxu0
  %1018 = vmatprep.mubr.f32.mxu0 %v205
  %1019 = vmatmul.mubr.f32.gmra.mxu0 %v204
  %v1020 = vpop.f32.mrf.mxu0
  %v1021 = vadd.f32 %v636, %v1020
  %v1022 = vpop.f32.mrf.mxu0
  %1023 = vmatprep.mubr.f32.mxu0 %v209
  %1024 = vmatmul.mubr.f32.gmra.mxu0 %v208
  %v1025 = vpop.f32.mrf.mxu0
  %v1026 = vadd.f32 %v641, %v1025
  %v1027 = vpop.f32.mrf.mxu0
  %1028 = vmatprep.mubr.f32.mxu0 %v213
  %1029 = vmatmul.mubr.f32.gmra.mxu0 %v212
  %v1030 = vpop.f32.mrf.mxu0
  %v1031 = vadd.f32 %v646, %v1030
  %v1032 = vpop.f32.mrf.mxu0
  %1033 = vmatprep.mubr.f32.mxu0 %v217
  %1034 = vmatmul.mubr.f32.gmra.mxu0 %v216
  %v1035 = vpop.f32.mrf.mxu0
  %v1036 = vadd.f32 %v651, %v1035
  %v1037 = vpop.f32.mrf.mxu0
  %1038 = vmatprep.mubr.f32.mxu0 %v221
  %1039 = vmatmul.mubr.f32.gmra.mxu0 %v220
  %v1040 = vpop.f32.mrf.mxu0
  %v1041 = vadd.f32 %v656, %v1040
  %v1042 = vpop.f32.mrf.mxu0
  %1043 = vmatprep.mubr.f32.mxu0 %v225
  %1044 = vmatmul.mubr.f32.gmra.mxu0 %v224
  %v1045 = vpop.f32.mrf.mxu0
  %v1046 = vadd.f32 %v661, %v1045
  %v1047 = vpop.f32.mrf.mxu0
  %1048 = vmatprep.mubr.f32.mxu0 %v229
  %1049 = vmatmul.mubr.f32.gmra.mxu0 %v228
  %v1050 = vpop.f32.mrf.mxu0
  %v1051 = vadd.f32 %v666, %v1050
  %v1052 = vpop.f32.mrf.mxu0
  %1053 = vmatprep.mubr.f32.mxu0 %v233
  %1054 = vmatmul.mubr.f32.gmra.mxu0 %v232
  %v1055 = vpop.f32.mrf.mxu0
  %v1056 = vadd.f32 %v671, %v1055
  %v1057 = vpop.f32.mrf.mxu0
  %1058 = vmatprep.mubr.f32.mxu0 %v237
  %1059 = vmatmul.mubr.f32.gmra.mxu0 %v236
  %v1060 = vpop.f32.mrf.mxu0
  %v1061 = vadd.f32 %v676, %v1060
  %v1062 = vpop.f32.mrf.mxu0
  %1063 = vmatprep.mubr.f32.mxu0 %v241
  %1064 = vmatmul.mubr.f32.gmra.mxu0 %v240
  %v1065 = vpop.f32.mrf.mxu0
  %v1066 = vadd.f32 %v681, %v1065
  %v1067 = vpop.f32.mrf.mxu0
  %1068 = vmatprep.mubr.f32.mxu0 %v245
  %1069 = vmatmul.mubr.f32.gmra.mxu0 %v244
  %v1070 = vpop.f32.mrf.mxu0
  %v1071 = vadd.f32 %v686, %v1070
  %v1072 = vpop.f32.mrf.mxu0
  %1073 = vmatprep.mubr.f32.mxu0 %v249
  %1074 = vmatmul.mubr.f32.gmra.mxu0 %v248
  %v1075 = vpop.f32.mrf.mxu0
  %v1076 = vadd.f32 %v691, %v1075
  %v1077 = vpop.f32.mrf.mxu0
  %1078 = vmatprep.mubr.f32.mxu0 %v253
  %1079 = vmatmul.mubr.f32.gmra.mxu0 %v252
  %v1080 = vpop.f32.mrf.mxu0
  %v1081 = vadd.f32 %v696, %v1080
  %v1082 = vpop.f32.mrf.mxu0
  %1083 = vmatprep.mubr.f32.mxu0 %v257
  %1084 = vmatmul.mubr.f32.gmra.mxu0 %v256
  %v1085 = vpop.f32.mrf.mxu0
  %v1086 = vadd.f32 %v701, %v1085
  %v1087 = vpop.f32.mrf.mxu0
  %1088 = vmatprep.mubr.f32.mxu0 %v261
  %1089 = vmatmul.mubr.f32.gmra.mxu0 %v260
  %v1090 = vpop.f32.mrf.mxu0
  %v1091 = vadd.f32 %v706, %v1090
  %v1092 = vpop.f32.mrf.mxu0
  %1093 = vmatprep.mubr.f32.mxu0 %v265
  %1094 = vmatmul.mubr.f32.gmra.mxu0 %v264
  %v1095 = vpop.f32.mrf.mxu0
  %v1096 = vadd.f32 %v711, %v1095
  %v1097 = vpop.f32.mrf.mxu0
  %1098 = vmatprep.mubr.f32.mxu0 %v269
  %1099 = vmatmul.mubr.f32.gmra.mxu0 %v268
  %v1100 = vpop.f32.mrf.mxu0
  %v1101 = vadd.f32 %v716, %v1100
  %v1102 = vpop.f32.mrf.mxu0
  %1103 = vdwg.mxu0
  %vm1104 = vcmask 523264
  %1105 = vst.msk [vmem:[%s2] sm:$0xff] %vm1104, %v786
  %1106 = vst.msk [vmem:[%s2 + $0x8] sm:$0xff] %vm1104, %v791
  %1107 = vst.msk [vmem:[%s2 + $0x10] sm:$0xff] %vm1104, %v796
  %1108 = vst.msk [vmem:[%s2 + $0x18] sm:$0xff] %vm1104, %v801
  %1109 = vst.msk [vmem:[%s2 + $0x20] sm:$0xff] %vm1104, %v806
  %1110 = vst.msk [vmem:[%s2 + $0x28] sm:$0xff] %vm1104, %v811
  %1111 = vst.msk [vmem:[%s2 + $0x30] sm:$0xff] %vm1104, %v816
  %1112 = vst.msk [vmem:[%s2 + $0x38] sm:$0xff] %vm1104, %v821
  %1113 = vst.msk [vmem:[%s2 + $0x40] sm:$0xff] %vm1104, %v826
  %1114 = vst.msk [vmem:[%s2 + $0x48] sm:$0xff] %vm1104, %v831
  %1115 = vst.msk [vmem:[%s2 + $0x50] sm:$0xff] %vm1104, %v836
  %1116 = vst.msk [vmem:[%s2 + $0x58] sm:$0xff] %vm1104, %v841
  %1117 = vst.msk [vmem:[%s2 + $0x60] sm:$0xff] %vm1104, %v846
  %1118 = vst.msk [vmem:[%s2 + $0x68] sm:$0xff] %vm1104, %v851
  %1119 = vst.msk [vmem:[%s2 + $0x70] sm:$0xff] %vm1104, %v856
  %1120 = vst.msk [vmem:[%s2 + $0x78] sm:$0xff] %vm1104, %v861
  %1121 = vst.msk [vmem:[%s2 + $0x80] sm:$0xff] %vm1104, %v866
  %1122 = vst.msk [vmem:[%s2 + $0x88] sm:$0xff] %vm1104, %v871
  %1123 = vst.msk [vmem:[%s2 + $0x90] sm:$0xff] %vm1104, %v876
  %1124 = vst.msk [vmem:[%s2 + $0x98] sm:$0xff] %vm1104, %v881
  %1125 = vst.msk [vmem:[%s2 + $0xa0] sm:$0xff] %vm1104, %v886
  %1126 = vst.msk [vmem:[%s2 + $0xa8] sm:$0xff] %vm1104, %v891
  %1127 = vst.msk [vmem:[%s2 + $0xb0] sm:$0xff] %vm1104, %v896
  %1128 = vst.msk [vmem:[%s2 + $0xb8] sm:$0xff] %vm1104, %v901
  %1129 = vst.msk [vmem:[%s2 + $0xc0] sm:$0xff] %vm1104, %v906
  %1130 = vst.msk [vmem:[%s2 + $0xc8] sm:$0xff] %vm1104, %v911
  %1131 = vst.msk [vmem:[%s2 + $0xd0] sm:$0xff] %vm1104, %v916
  %1132 = vst.msk [vmem:[%s2 + $0xd8] sm:$0xff] %vm1104, %v921
  %1133 = vst.msk [vmem:[%s2 + $0xe0] sm:$0xff] %vm1104, %v926
  %1134 = vst.msk [vmem:[%s2 + $0xe8] sm:$0xff] %vm1104, %v931
  %1135 = vst.msk [vmem:[%s2 + $0xf0] sm:$0xff] %vm1104, %v936
  %1136 = vst.msk [vmem:[%s2 + $0xf8] sm:$0xff] %vm1104, %v941
  %1137 = vst.msk [vmem:[%s2 + $0x100] sm:$0xff] %vm1104, %v946
  %1138 = vst.msk [vmem:[%s2 + $0x108] sm:$0xff] %vm1104, %v951
  %1139 = vst.msk [vmem:[%s2 + $0x110] sm:$0xff] %vm1104, %v956
  %1140 = vst.msk [vmem:[%s2 + $0x118] sm:$0xff] %vm1104, %v961
  %1141 = vst.msk [vmem:[%s2 + $0x120] sm:$0xff] %vm1104, %v966
  %1142 = vst.msk [vmem:[%s2 + $0x128] sm:$0xff] %vm1104, %v971
  %1143 = vst.msk [vmem:[%s2 + $0x130] sm:$0xff] %vm1104, %v976
  %1144 = vst.msk [vmem:[%s2 + $0x138] sm:$0xff] %vm1104, %v981
  %1145 = vst.msk [vmem:[%s2 + $0x140] sm:$0xff] %vm1104, %v986
  %1146 = vst.msk [vmem:[%s2 + $0x148] sm:$0xff] %vm1104, %v991
  %1147 = vst.msk [vmem:[%s2 + $0x150] sm:$0xff] %vm1104, %v996
  %1148 = vst.msk [vmem:[%s2 + $0x158] sm:$0xff] %vm1104, %v1001
  %1149 = vst.msk [vmem:[%s2 + $0x160] sm:$0xff] %vm1104, %v1006
  %1150 = vst.msk [vmem:[%s2 + $0x168] sm:$0xff] %vm1104, %v1011
  %1151 = vst.msk [vmem:[%s2 + $0x170] sm:$0xff] %vm1104, %v1016
  %1152 = vst.msk [vmem:[%s2 + $0x178] sm:$0xff] %vm1104, %v1021
  %1153 = vst.msk [vmem:[%s2 + $0x180] sm:$0xff] %vm1104, %v1026
  %1154 = vst.msk [vmem:[%s2 + $0x188] sm:$0xff] %vm1104, %v1031
  %1155 = vst.msk [vmem:[%s2 + $0x190] sm:$0xff] %vm1104, %v1036
  %1156 = vst.msk [vmem:[%s2 + $0x198] sm:$0xff] %vm1104, %v1041
  %1157 = vst.msk [vmem:[%s2 + $0x1a0] sm:$0xff] %vm1104, %v1046
  %1158 = vst.msk [vmem:[%s2 + $0x1a8] sm:$0xff] %vm1104, %v1051
  %1159 = vst.msk [vmem:[%s2 + $0x1b0] sm:$0xff] %vm1104, %v1056
  %1160 = vst.msk [vmem:[%s2 + $0x1b8] sm:$0xff] %vm1104, %v1061
  %1161 = vst.msk [vmem:[%s2 + $0x1c0] sm:$0xff] %vm1104, %v1066
  %1162 = vst.msk [vmem:[%s2 + $0x1c8] sm:$0xff] %vm1104, %v1071
  %1163 = vst.msk [vmem:[%s2 + $0x1d0] sm:$0xff] %vm1104, %v1076
  %1164 = vst.msk [vmem:[%s2 + $0x1d8] sm:$0xff] %vm1104, %v1081
  %1165 = vst.msk [vmem:[%s2 + $0x1e0] sm:$0xff] %vm1104, %v1086
  %1166 = vst.msk [vmem:[%s2 + $0x1e8] sm:$0xff] %vm1104, %v1091
  %1167 = vst.msk [vmem:[%s2 + $0x1f0] sm:$0xff] %vm1104, %v1096
  %1168 = vst.msk [vmem:[%s2 + $0x1f8] sm:$0xff] %vm1104, %v1101
  %v1169 = vsel %vm1104, %v786, 0.0
  %v1170 = vsel %vm1104, %v791, 0.0
  %v1171 = vadd.f32 %v1169, %v1170
  %v1172 = vsel %vm1104, %v796, 0.0
  %v1173 = vadd.f32 %v1171, %v1172
  %v1174 = vsel %vm1104, %v801, 0.0
  %v1175 = vadd.f32 %v1173, %v1174
  %v1176 = vsel %vm1104, %v806, 0.0
  %v1177 = vadd.f32 %v1175, %v1176
  %v1178 = vsel %vm1104, %v811, 0.0
  %v1179 = vadd.f32 %v1177, %v1178
  %v1180 = vsel %vm1104, %v816, 0.0
  %v1181 = vadd.f32 %v1179, %v1180
  %v1182 = vsel %vm1104, %v821, 0.0
  %v1183 = vadd.f32 %v1181, %v1182
  %v1184 = vsel %vm1104, %v826, 0.0
  %v1185 = vadd.f32 %v1183, %v1184
  %v1186 = vsel %vm1104, %v831, 0.0
  %v1187 = vadd.f32 %v1185, %v1186
  %v1188 = vsel %vm1104, %v836, 0.0
  %v1189 = vadd.f32 %v1187, %v1188
  %v1190 = vsel %vm1104, %v841, 0.0
  %v1191 = vadd.f32 %v1189, %v1190
  %v1192 = vsel %vm1104, %v846, 0.0
  %v1193 = vadd.f32 %v1191, %v1192
  %v1194 = vsel %vm1104, %v851, 0.0
  %v1195 = vadd.f32 %v1193, %v1194
  %v1196 = vsel %vm1104, %v856, 0.0
  %v1197 = vadd.f32 %v1195, %v1196
  %v1198 = vsel %vm1104, %v861, 0.0
  %v1199 = vadd.f32 %v1197, %v1198
  %v1200 = vsel %vm1104, %v866, 0.0
  %v1201 = vadd.f32 %v1199, %v1200
  %v1202 = vsel %vm1104, %v871, 0.0
  %v1203 = vadd.f32 %v1201, %v1202
  %v1204 = vsel %vm1104, %v876, 0.0
  %v1205 = vadd.f32 %v1203, %v1204
  %v1206 = vsel %vm1104, %v881, 0.0
  %v1207 = vadd.f32 %v1205, %v1206
  %v1208 = vsel %vm1104, %v886, 0.0
  %v1209 = vadd.f32 %v1207, %v1208
  %v1210 = vsel %vm1104, %v891, 0.0
  %v1211 = vadd.f32 %v1209, %v1210
  %v1212 = vsel %vm1104, %v896, 0.0
  %v1213 = vadd.f32 %v1211, %v1212
  %v1214 = vsel %vm1104, %v901, 0.0
  %v1215 = vadd.f32 %v1213, %v1214
  %v1216 = vsel %vm1104, %v906, 0.0
  %v1217 = vadd.f32 %v1215, %v1216
  %v1218 = vsel %vm1104, %v911, 0.0
  %v1219 = vadd.f32 %v1217, %v1218
  %v1220 = vsel %vm1104, %v916, 0.0
  %v1221 = vadd.f32 %v1219, %v1220
  %v1222 = vsel %vm1104, %v921, 0.0
  %v1223 = vadd.f32 %v1221, %v1222
  %v1224 = vsel %vm1104, %v926, 0.0
  %v1225 = vadd.f32 %v1223, %v1224
  %v1226 = vsel %vm1104, %v931, 0.0
  %v1227 = vadd.f32 %v1225, %v1226
  %v1228 = vsel %vm1104, %v936, 0.0
  %v1229 = vadd.f32 %v1227, %v1228
  %v1230 = vsel %vm1104, %v941, 0.0
  %v1231 = vadd.f32 %v1229, %v1230
  %v1232 = vsel %vm1104, %v946, 0.0
  %v1233 = vadd.f32 %v1231, %v1232
  %v1234 = vsel %vm1104, %v951, 0.0
  %v1235 = vadd.f32 %v1233, %v1234
  %v1236 = vsel %vm1104, %v956, 0.0
  %v1237 = vadd.f32 %v1235, %v1236
  %v1238 = vsel %vm1104, %v961, 0.0
  %v1239 = vadd.f32 %v1237, %v1238
  %v1240 = vsel %vm1104, %v966, 0.0
  %v1241 = vadd.f32 %v1239, %v1240
  %v1242 = vsel %vm1104, %v971, 0.0
  %v1243 = vadd.f32 %v1241, %v1242
  %v1244 = vsel %vm1104, %v976, 0.0
  %v1245 = vadd.f32 %v1243, %v1244
  %v1246 = vsel %vm1104, %v981, 0.0
  %v1247 = vadd.f32 %v1245, %v1246
  %v1248 = vsel %vm1104, %v986, 0.0
  %v1249 = vadd.f32 %v1247, %v1248
  %v1250 = vsel %vm1104, %v991, 0.0
  %v1251 = vadd.f32 %v1249, %v1250
  %v1252 = vsel %vm1104, %v996, 0.0
  %v1253 = vadd.f32 %v1251, %v1252
  %v1254 = vsel %vm1104, %v1001, 0.0
  %v1255 = vadd.f32 %v1253, %v1254
  %v1256 = vsel %vm1104, %v1006, 0.0
  %v1257 = vadd.f32 %v1255, %v1256
  %v1258 = vsel %vm1104, %v1011, 0.0
  %v1259 = vadd.f32 %v1257, %v1258
  %v1260 = vsel %vm1104, %v1016, 0.0
  %v1261 = vadd.f32 %v1259, %v1260
  %v1262 = vsel %vm1104, %v1021, 0.0
  %v1263 = vadd.f32 %v1261, %v1262
  %v1264 = vsel %vm1104, %v1026, 0.0
  %v1265 = vadd.f32 %v1263, %v1264
  %v1266 = vsel %vm1104, %v1031, 0.0
  %v1267 = vadd.f32 %v1265, %v1266
  %v1268 = vsel %vm1104, %v1036, 0.0
  %v1269 = vadd.f32 %v1267, %v1268
  %v1270 = vsel %vm1104, %v1041, 0.0
  %v1271 = vadd.f32 %v1269, %v1270
  %v1272 = vsel %vm1104, %v1046, 0.0
  %v1273 = vadd.f32 %v1271, %v1272
  %v1274 = vsel %vm1104, %v1051, 0.0
  %v1275 = vadd.f32 %v1273, %v1274
  %v1276 = vsel %vm1104, %v1056, 0.0
  %v1277 = vadd.f32 %v1275, %v1276
  %v1278 = vsel %vm1104, %v1061, 0.0
  %v1279 = vadd.f32 %v1277, %v1278
  %v1280 = vsel %vm1104, %v1066, 0.0
  %v1281 = vadd.f32 %v1279, %v1280
  %v1282 = vsel %vm1104, %v1071, 0.0
  %v1283 = vadd.f32 %v1281, %v1282
  %v1284 = vsel %vm1104, %v1076, 0.0
  %v1285 = vadd.f32 %v1283, %v1284
  %v1286 = vsel %vm1104, %v1081, 0.0
  %v1287 = vadd.f32 %v1285, %v1286
  %v1288 = vsel %vm1104, %v1086, 0.0
  %v1289 = vadd.f32 %v1287, %v1288
  %v1290 = vsel %vm1104, %v1091, 0.0
  %v1291 = vadd.f32 %v1289, %v1290
  %v1292 = vsel %vm1104, %v1096, 0.0
  %v1293 = vadd.f32 %v1291, %v1292
  %v1294 = vsel %vm1104, %v1101, 0.0
  %v1295 = vadd.f32 %v1293, %v1294
  %v1296 = vrot.slane %v1295, 4
  %v1297 = vadd.f32 %v1295, %v1296
  %v1298 = vrot.slane %v1297, 2
  %v1299 = vadd.f32 %v1297, %v1298
  %v1300 = vrot.slane %v1299, 1
  %v1301 = vadd.f32 %v1299, %v1300
  %vm1302 = vcmask 516096
  %1303 = vst.msk [vmem:[%s3] sm:$0x1] %vm1302, %v1301
  %v1304 = vmul.f32 %v786, %v786
  %v1305 = vmul.f32 %v791, %v791
  %v1306 = vmul.f32 %v796, %v796
  %v1307 = vmul.f32 %v801, %v801
  %v1308 = vmul.f32 %v806, %v806
  %v1309 = vmul.f32 %v811, %v811
  %v1310 = vmul.f32 %v816, %v816
  %v1311 = vmul.f32 %v821, %v821
  %v1312 = vmul.f32 %v826, %v826
  %v1313 = vmul.f32 %v831, %v831
  %v1314 = vmul.f32 %v836, %v836
  %v1315 = vmul.f32 %v841, %v841
  %v1316 = vmul.f32 %v846, %v846
  %v1317 = vmul.f32 %v851, %v851
  %v1318 = vmul.f32 %v856, %v856
  %v1319 = vmul.f32 %v861, %v861
  %v1320 = vmul.f32 %v866, %v866
  %v1321 = vmul.f32 %v871, %v871
  %v1322 = vmul.f32 %v876, %v876
  %v1323 = vmul.f32 %v881, %v881
  %v1324 = vmul.f32 %v886, %v886
  %v1325 = vmul.f32 %v891, %v891
  %v1326 = vmul.f32 %v896, %v896
  %v1327 = vmul.f32 %v901, %v901
  %v1328 = vmul.f32 %v906, %v906
  %v1329 = vmul.f32 %v911, %v911
  %v1330 = vmul.f32 %v916, %v916
  %v1331 = vmul.f32 %v921, %v921
  %v1332 = vmul.f32 %v926, %v926
  %v1333 = vmul.f32 %v931, %v931
  %v1334 = vmul.f32 %v936, %v936
  %v1335 = vmul.f32 %v941, %v941
  %v1336 = vmul.f32 %v946, %v946
  %v1337 = vmul.f32 %v951, %v951
  %v1338 = vmul.f32 %v956, %v956
  %v1339 = vmul.f32 %v961, %v961
  %v1340 = vmul.f32 %v966, %v966
  %v1341 = vmul.f32 %v971, %v971
  %v1342 = vmul.f32 %v976, %v976
  %v1343 = vmul.f32 %v981, %v981
  %v1344 = vmul.f32 %v986, %v986
  %v1345 = vmul.f32 %v991, %v991
  %v1346 = vmul.f32 %v996, %v996
  %v1347 = vmul.f32 %v1001, %v1001
  %v1348 = vmul.f32 %v1006, %v1006
  %v1349 = vmul.f32 %v1011, %v1011
  %v1350 = vmul.f32 %v1016, %v1016
  %v1351 = vmul.f32 %v1021, %v1021
  %v1352 = vmul.f32 %v1026, %v1026
  %v1353 = vmul.f32 %v1031, %v1031
  %v1354 = vmul.f32 %v1036, %v1036
  %v1355 = vmul.f32 %v1041, %v1041
  %v1356 = vmul.f32 %v1046, %v1046
  %v1357 = vmul.f32 %v1051, %v1051
  %v1358 = vmul.f32 %v1056, %v1056
  %v1359 = vmul.f32 %v1061, %v1061
  %v1360 = vmul.f32 %v1066, %v1066
  %v1361 = vmul.f32 %v1071, %v1071
  %v1362 = vmul.f32 %v1076, %v1076
  %v1363 = vmul.f32 %v1081, %v1081
  %v1364 = vmul.f32 %v1086, %v1086
  %v1365 = vmul.f32 %v1091, %v1091
  %v1366 = vmul.f32 %v1096, %v1096
  %v1367 = vmul.f32 %v1101, %v1101
  %v1368 = vsel %vm1104, %v1304, 0.0
  %v1369 = vsel %vm1104, %v1305, 0.0
  %v1370 = vadd.f32 %v1368, %v1369
  %v1371 = vsel %vm1104, %v1306, 0.0
  %v1372 = vadd.f32 %v1370, %v1371
  %v1373 = vsel %vm1104, %v1307, 0.0
  %v1374 = vadd.f32 %v1372, %v1373
  %v1375 = vsel %vm1104, %v1308, 0.0
  %v1376 = vadd.f32 %v1374, %v1375
  %v1377 = vsel %vm1104, %v1309, 0.0
  %v1378 = vadd.f32 %v1376, %v1377
  %v1379 = vsel %vm1104, %v1310, 0.0
  %v1380 = vadd.f32 %v1378, %v1379
  %v1381 = vsel %vm1104, %v1311, 0.0
  %v1382 = vadd.f32 %v1380, %v1381
  %v1383 = vsel %vm1104, %v1312, 0.0
  %v1384 = vadd.f32 %v1382, %v1383
  %v1385 = vsel %vm1104, %v1313, 0.0
  %v1386 = vadd.f32 %v1384, %v1385
  %v1387 = vsel %vm1104, %v1314, 0.0
  %v1388 = vadd.f32 %v1386, %v1387
  %v1389 = vsel %vm1104, %v1315, 0.0
  %v1390 = vadd.f32 %v1388, %v1389
  %v1391 = vsel %vm1104, %v1316, 0.0
  %v1392 = vadd.f32 %v1390, %v1391
  %v1393 = vsel %vm1104, %v1317, 0.0
  %v1394 = vadd.f32 %v1392, %v1393
  %v1395 = vsel %vm1104, %v1318, 0.0
  %v1396 = vadd.f32 %v1394, %v1395
  %v1397 = vsel %vm1104, %v1319, 0.0
  %v1398 = vadd.f32 %v1396, %v1397
  %v1399 = vsel %vm1104, %v1320, 0.0
  %v1400 = vadd.f32 %v1398, %v1399
  %v1401 = vsel %vm1104, %v1321, 0.0
  %v1402 = vadd.f32 %v1400, %v1401
  %v1403 = vsel %vm1104, %v1322, 0.0
  %v1404 = vadd.f32 %v1402, %v1403
  %v1405 = vsel %vm1104, %v1323, 0.0
  %v1406 = vadd.f32 %v1404, %v1405
  %v1407 = vsel %vm1104, %v1324, 0.0
  %v1408 = vadd.f32 %v1406, %v1407
  %v1409 = vsel %vm1104, %v1325, 0.0
  %v1410 = vadd.f32 %v1408, %v1409
  %v1411 = vsel %vm1104, %v1326, 0.0
  %v1412 = vadd.f32 %v1410, %v1411
  %v1413 = vsel %vm1104, %v1327, 0.0
  %v1414 = vadd.f32 %v1412, %v1413
  %v1415 = vsel %vm1104, %v1328, 0.0
  %v1416 = vadd.f32 %v1414, %v1415
  %v1417 = vsel %vm1104, %v1329, 0.0
  %v1418 = vadd.f32 %v1416, %v1417
  %v1419 = vsel %vm1104, %v1330, 0.0
  %v1420 = vadd.f32 %v1418, %v1419
  %v1421 = vsel %vm1104, %v1331, 0.0
  %v1422 = vadd.f32 %v1420, %v1421
  %v1423 = vsel %vm1104, %v1332, 0.0
  %v1424 = vadd.f32 %v1422, %v1423
  %v1425 = vsel %vm1104, %v1333, 0.0
  %v1426 = vadd.f32 %v1424, %v1425
  %v1427 = vsel %vm1104, %v1334, 0.0
  %v1428 = vadd.f32 %v1426, %v1427
  %v1429 = vsel %vm1104, %v1335, 0.0
  %v1430 = vadd.f32 %v1428, %v1429
  %v1431 = vsel %vm1104, %v1336, 0.0
  %v1432 = vadd.f32 %v1430, %v1431
  %v1433 = vsel %vm1104, %v1337, 0.0
  %v1434 = vadd.f32 %v1432, %v1433
  %v1435 = vsel %vm1104, %v1338, 0.0
  %v1436 = vadd.f32 %v1434, %v1435
  %v1437 = vsel %vm1104, %v1339, 0.0
  %v1438 = vadd.f32 %v1436, %v1437
  %v1439 = vsel %vm1104, %v1340, 0.0
  %v1440 = vadd.f32 %v1438, %v1439
  %v1441 = vsel %vm1104, %v1341, 0.0
  %v1442 = vadd.f32 %v1440, %v1441
  %v1443 = vsel %vm1104, %v1342, 0.0
  %v1444 = vadd.f32 %v1442, %v1443
  %v1445 = vsel %vm1104, %v1343, 0.0
  %v1446 = vadd.f32 %v1444, %v1445
  %v1447 = vsel %vm1104, %v1344, 0.0
  %v1448 = vadd.f32 %v1446, %v1447
  %v1449 = vsel %vm1104, %v1345, 0.0
  %v1450 = vadd.f32 %v1448, %v1449
  %v1451 = vsel %vm1104, %v1346, 0.0
  %v1452 = vadd.f32 %v1450, %v1451
  %v1453 = vsel %vm1104, %v1347, 0.0
  %v1454 = vadd.f32 %v1452, %v1453
  %v1455 = vsel %vm1104, %v1348, 0.0
  %v1456 = vadd.f32 %v1454, %v1455
  %v1457 = vsel %vm1104, %v1349, 0.0
  %v1458 = vadd.f32 %v1456, %v1457
  %v1459 = vsel %vm1104, %v1350, 0.0
  %v1460 = vadd.f32 %v1458, %v1459
  %v1461 = vsel %vm1104, %v1351, 0.0
  %v1462 = vadd.f32 %v1460, %v1461
  %v1463 = vsel %vm1104, %v1352, 0.0
  %v1464 = vadd.f32 %v1462, %v1463
  %v1465 = vsel %vm1104, %v1353, 0.0
  %v1466 = vadd.f32 %v1464, %v1465
  %v1467 = vsel %vm1104, %v1354, 0.0
  %v1468 = vadd.f32 %v1466, %v1467
  %v1469 = vsel %vm1104, %v1355, 0.0
  %v1470 = vadd.f32 %v1468, %v1469
  %v1471 = vsel %vm1104, %v1356, 0.0
  %v1472 = vadd.f32 %v1470, %v1471
  %v1473 = vsel %vm1104, %v1357, 0.0
  %v1474 = vadd.f32 %v1472, %v1473
  %v1475 = vsel %vm1104, %v1358, 0.0
  %v1476 = vadd.f32 %v1474, %v1475
  %v1477 = vsel %vm1104, %v1359, 0.0
  %v1478 = vadd.f32 %v1476, %v1477
  %v1479 = vsel %vm1104, %v1360, 0.0
  %v1480 = vadd.f32 %v1478, %v1479
  %v1481 = vsel %vm1104, %v1361, 0.0
  %v1482 = vadd.f32 %v1480, %v1481
  %v1483 = vsel %vm1104, %v1362, 0.0
  %v1484 = vadd.f32 %v1482, %v1483
  %v1485 = vsel %vm1104, %v1363, 0.0
  %v1486 = vadd.f32 %v1484, %v1485
  %v1487 = vsel %vm1104, %v1364, 0.0
  %v1488 = vadd.f32 %v1486, %v1487
  %v1489 = vsel %vm1104, %v1365, 0.0
  %v1490 = vadd.f32 %v1488, %v1489
  %v1491 = vsel %vm1104, %v1366, 0.0
  %v1492 = vadd.f32 %v1490, %v1491
  %v1493 = vsel %vm1104, %v1367, 0.0
  %v1494 = vadd.f32 %v1492, %v1493
  %v1495 = vrot.slane %v1494, 4
  %v1496 = vadd.f32 %v1494, %v1495
  %v1497 = vrot.slane %v1496, 2
  %v1498 = vadd.f32 %v1496, %v1497
  %v1499 = vrot.slane %v1498, 1
  %v1500 = vadd.f32 %v1498, %v1499
  %1501 = vst.msk [vmem:[%s4] sm:$0x1] %vm1302, %v1500
  // Predicated region
  $region10: #{discriminator_forward.10} parent=0 // pred_check
    _
  $region11: #{discriminator_forward.10} parent=0 // pred_check_branch
    %1503 = sbr.rel (0) target = $region13
  $region12: #{discriminator_forward.10} parent=0 // pred_region
    _
  $region13: #{discriminator_forward.10} parent=0 // pred_fallthru
    _
  // Predicated region
  $region14: #{discriminator_forward.10} parent=0 // pred_check
    _
  $region15: #{discriminator_forward.10} parent=0 // pred_check_branch
    %1505 = sbr.rel (0) target = $region17
  $region16: #{discriminator_forward.10} parent=0 // pred_region
    _
  $region17: #{discriminator_forward.10} parent=0 // pred_fallthru
    _
  // Predicated region
  $region18: #{discriminator_forward.10} parent=0 // pred_check
    _
  $region19: #{discriminator_forward.10} parent=0 // pred_check_branch
    %1507 = sbr.rel (0) target = $region21
  $region20: #{discriminator_forward.10} parent=0 // pred_region
    _
  $region21: #{discriminator_forward.10} parent=0 // pred_fallthru
    _
  // Predicated region
  $region22: #{discriminator_forward.10} parent=0 // pred_check
    _
  $region23: #{discriminator_forward.10} parent=0 // pred_check_branch
    %1509 = sbr.rel (0) target = $region25
  $region24: #{discriminator_forward.10} parent=0 // pred_region
    _
  $region25: #{discriminator_forward.10} parent=0 // pred_fallthru
    _
  // Predicated region
  $region26: #{discriminator_forward.10} parent=0 // pred_check
    _
  $region27: #{discriminator_forward.10} parent=0 // pred_check_branch
    %1511 = sbr.rel (0) target = $region29
  $region28: #{discriminator_forward.10} parent=0 // pred_region
    _
  $region29: #{discriminator_forward.10} parent=0 // pred_fallthru
    _
  // Predicated region
  $region30: #{discriminator_forward.10} parent=0 // pred_check
    _
  $region31: #{discriminator_forward.10} parent=0 // pred_check_branch
    %1513 = sbr.rel (0) target = $region33
  $region32: #{discriminator_forward.10} parent=0 // pred_region
    _
  $region33: #{discriminator_forward.10} parent=0 // pred_fallthru
    _

// kernel: tile.40
$region0: #{tile.40}
  #allocation0 [shape = 's32[1]{0}', space=sflag, size = 0x4, scoped, tag = 'scoped memory for tile.40']
  %s0 = inlined_call_operand.vmem [shape: f32[64], index: 0, kind: input, shape index: {}]
  %s1 = inlined_call_operand.vmem [shape: f32[2,64], index: 1, kind: output, shape index: {}]
  // Predicated region
  $region2: #{tile.40} parent=0 // pred_check
    _
  $region3: #{tile.40} parent=0 // pred_check_branch
    %3 = sbr.rel (0) target = $region5
  $region4: #{tile.40} parent=0 // pred_region
    _
  $region5: #{tile.40} parent=0 // pred_fallthru
    _
  %v4 = vld [vmem:[%s0] ss:$0 sm:$0xff]
  %5 = vst [vmem:[%s1] sm:$0x3] %v4

// kernel: tile.41
$region0: #{tile.41}
  %s0 = inlined_call_operand.vmem [shape: f32[2,64], index: 0, kind: input, shape index: {}]
  %s1 = inlined_call_operand.vmem [shape: f32[1,128], index: 1, kind: output, shape index: {}]
  $region1: #{tile.41} parent=0
    #allocation0 [shape = 'u8[4096]{0}', space=vmem, size = 0x1000, scoped, tag = 'scoped mem for output reshape']
    #allocation1 [shape = 'u8[4096]{0}', space=vmem, size = 0x1000, scoped, tag = 'scoped mem for input reshape']
    %s3 = sshll.u32 1, 2
    %s4 = ssub.s32 %s3, 1
    %v5 = vld [vmem:[%s0] sm:%s4]
    %6 = vst [vmem:[#allocation1] sm:%s4] %v5
    %v7 = vld [vmem:[#allocation1] sm:$0x1]
    %vm8 = vcmask 523264
    %9 = vst.msk [vmem:[#allocation0] sm:$0x1] %vm8, %v7
    %s10 = scalar_lea.vmem [#allocation1], 1
    %v11 = vld [vmem:[%s10] sm:$0x1]
    %12 = vrot.lane.b32.xlu0 %v11, 64
    %v13 = vpop.permute.xlu0 %12
    %vm14 = vcmask 1048064
    %15 = vst.msk [vmem:[#allocation0] sm:$0x1] %vm14, %v13
    %s17 = sshll.u32 1, 1
    %s18 = ssub.s32 %s17, 1
    %v20 = vld [vmem:[#allocation0] sm:%s18]
    %s21 = sshll.u32 1, 1
    %s22 = ssub.s32 %s21, 1
    %23 = vst [vmem:[%s1] sm:%s22] %v20

// kernel: discriminator_forward.11
$region0: #{discriminator_forward.11}
  #allocation0 [shape = 'u32[]', space=smem, size = 0x4, offset = 0x4, fixed_abs, tag = 'smem constant byte address 0x4 - core index']
  #allocation1 [shape = 'u32[144,128]{1,0:T(1,128)}', space=vmem, size = 0x12000, scoped, tag = 'internal scratch']
  %s0 = inlined_call_operand.vmem [shape: f32[256,128], index: 0, kind: input, shape index: {}]
  %s1 = inlined_call_operand.vmem [shape: f32[1,128], index: 1, kind: input, shape index: {}]
  %s2 = inlined_call_operand.vmem [shape: f32[1,128], index: 2, kind: input, shape index: {}]
  %s3 = inlined_call_operand.vmem [shape: f32[256,128], index: 3, kind: output, shape index: {}]
  %s4 = sld [smem:[#allocation0]]
  $region22: #{discriminator_forward.11} parent=0
    _
  %s6 = ssub.s32 1, %s4
  %s7 = scalar_select 0, %s6, %s4
  // Predicated region
  $region2: #{discriminator_forward.11} parent=0 // pred_check
    _
  $region3: #{discriminator_forward.11} parent=0 // pred_check_branch
    %9 = sbr.rel (0) target = $region5
  $region4: #{discriminator_forward.11} parent=0 // pred_region
    _
  $region5: #{discriminator_forward.11} parent=0 // pred_fallthru
    _
  // Predicated region
  $region6: #{discriminator_forward.11} parent=0 // pred_check
    _
  $region7: #{discriminator_forward.11} parent=0 // pred_check_branch
    %11 = sbr.rel (0) target = $region9
  $region8: #{discriminator_forward.11} parent=0 // pred_region
    _
  $region9: #{discriminator_forward.11} parent=0 // pred_fallthru
    _
  // Predicated region
  $region10: #{discriminator_forward.11} parent=0 // pred_check
    _
  $region11: #{discriminator_forward.11} parent=0 // pred_check_branch
    %13 = sbr.rel (0) target = $region13
  $region12: #{discriminator_forward.11} parent=0 // pred_region
    _
  $region13: #{discriminator_forward.11} parent=0 // pred_fallthru
    _
  %v14 = vld [vmem:[%s0] sm:$0xff]
  %v15 = vld [vmem:[%s0 + $0x8] sm:$0xff]
  %v16 = vld [vmem:[%s0 + $0x10] sm:$0xff]
  %v17 = vld [vmem:[%s0 + $0x18] sm:$0xff]
  %v18 = vld [vmem:[%s0 + $0x20] sm:$0xff]
  %v19 = vld [vmem:[%s0 + $0x28] sm:$0xff]
  %v20 = vld [vmem:[%s0 + $0x30] sm:$0xff]
  %v21 = vld [vmem:[%s0 + $0x38] sm:$0xff]
  %v22 = vld [vmem:[%s0 + $0x40] sm:$0xff]
  %v23 = vld [vmem:[%s0 + $0x48] sm:$0xff]
  %v24 = vld [vmem:[%s0 + $0x50] sm:$0xff]
  %v25 = vld [vmem:[%s0 + $0x58] sm:$0xff]
  %v26 = vld [vmem:[%s0 + $0x60] sm:$0xff]
  %v27 = vld [vmem:[%s0 + $0x68] sm:$0xff]
  %v28 = vld [vmem:[%s0 + $0x70] sm:$0xff]
  %v29 = vld [vmem:[%s0 + $0x78] sm:$0xff]
  %v30 = vld [vmem:[%s0 + $0x80] sm:$0xff]
  %v31 = vld [vmem:[%s0 + $0x88] sm:$0xff]
  %v32 = vld [vmem:[%s0 + $0x90] sm:$0xff]
  %v33 = vld [vmem:[%s0 + $0x98] sm:$0xff]
  %v34 = vld [vmem:[%s0 + $0xa0] sm:$0xff]
  %v35 = vld [vmem:[%s0 + $0xa8] sm:$0xff]
  %v36 = vld [vmem:[%s0 + $0xb0] sm:$0xff]
  %v37 = vld [vmem:[%s0 + $0xb8] sm:$0xff]
  %v38 = vld [vmem:[%s0 + $0xc0] sm:$0xff]
  %v39 = vld [vmem:[%s0 + $0xc8] sm:$0xff]
  %v40 = vld [vmem:[%s0 + $0xd0] sm:$0xff]
  %v41 = vld [vmem:[%s0 + $0xd8] sm:$0xff]
  %v42 = vld [vmem:[%s0 + $0xe0] sm:$0xff]
  %v43 = vld [vmem:[%s0 + $0xe8] sm:$0xff]
  %v44 = vld [vmem:[%s0 + $0xf0] sm:$0xff]
  %v45 = vld [vmem:[%s0 + $0xf8] sm:$0xff]
  %v46 = vld [vmem:[%s1] sm:$0x1]
  %v48 = vlaneseq
  %v49 = vshrl.u32 %v48, 7
  %v50 = vsub.s32 0, %v49
  %v51 = vrot.slane %v46, %v50
  %v53 = vmul.f32 %v14, %v51
  %v54 = vmul.f32 %v15, %v51
  %v55 = vmul.f32 %v16, %v51
  %v56 = vmul.f32 %v17, %v51
  %v57 = vmul.f32 %v18, %v51
  %v58 = vmul.f32 %v19, %v51
  %v59 = vmul.f32 %v20, %v51
  %v60 = vmul.f32 %v21, %v51
  %v61 = vmul.f32 %v22, %v51
  %v62 = vmul.f32 %v23, %v51
  %v63 = vmul.f32 %v24, %v51
  %v64 = vmul.f32 %v25, %v51
  %v65 = vmul.f32 %v26, %v51
  %v66 = vmul.f32 %v27, %v51
  %v67 = vmul.f32 %v28, %v51
  %v68 = vmul.f32 %v29, %v51
  %v69 = vmul.f32 %v30, %v51
  %v70 = vmul.f32 %v31, %v51
  %v71 = vmul.f32 %v32, %v51
  %v72 = vmul.f32 %v33, %v51
  %v73 = vmul.f32 %v34, %v51
  %v74 = vmul.f32 %v35, %v51
  %v75 = vmul.f32 %v36, %v51
  %v76 = vmul.f32 %v37, %v51
  %v77 = vmul.f32 %v38, %v51
  %v78 = vmul.f32 %v39, %v51
  %v79 = vmul.f32 %v40, %v51
  %v80 = vmul.f32 %v41, %v51
  %v81 = vmul.f32 %v42, %v51
  %v82 = vmul.f32 %v43, %v51
  %v83 = vmul.f32 %v44, %v51
  %v84 = vmul.f32 %v45, %v51
  %v85 = vld [vmem:[%s2] sm:$0x1]
  %v87 = vlaneseq
  %v88 = vshrl.u32 %v87, 7
  %v89 = vsub.s32 0, %v88
  %v90 = vrot.slane %v85, %v89
  %v92 = vadd.f32 %v53, %v90
  %v93 = vadd.f32 %v54, %v90
  %v94 = vadd.f32 %v55, %v90
  %v95 = vadd.f32 %v56, %v90
  %v96 = vadd.f32 %v57, %v90
  %v97 = vadd.f32 %v58, %v90
  %v98 = vadd.f32 %v59, %v90
  %v99 = vadd.f32 %v60, %v90
  %v100 = vadd.f32 %v61, %v90
  %v101 = vadd.f32 %v62, %v90
  %v102 = vadd.f32 %v63, %v90
  %v103 = vadd.f32 %v64, %v90
  %v104 = vadd.f32 %v65, %v90
  %v105 = vadd.f32 %v66, %v90
  %v106 = vadd.f32 %v67, %v90
  %v107 = vadd.f32 %v68, %v90
  %v108 = vadd.f32 %v69, %v90
  %v109 = vadd.f32 %v70, %v90
  %v110 = vadd.f32 %v71, %v90
  %v111 = vadd.f32 %v72, %v90
  %v112 = vadd.f32 %v73, %v90
  %v113 = vadd.f32 %v74, %v90
  %v114 = vadd.f32 %v75, %v90
  %v115 = vadd.f32 %v76, %v90
  %v116 = vadd.f32 %v77, %v90
  %v117 = vadd.f32 %v78, %v90
  %v118 = vadd.f32 %v79, %v90
  %v119 = vadd.f32 %v80, %v90
  %v120 = vadd.f32 %v81, %v90
  %v121 = vadd.f32 %v82, %v90
  %v122 = vadd.f32 %v83, %v90
  %v123 = vadd.f32 %v84, %v90
  %vm124 = vcmp.gt.f32.partialorder %v92, 0.0
  %vm125 = vcmp.gt.f32.partialorder %v93, 0.0
  %vm126 = vcmp.gt.f32.partialorder %v94, 0.0
  %vm127 = vcmp.gt.f32.partialorder %v95, 0.0
  %vm128 = vcmp.gt.f32.partialorder %v96, 0.0
  %vm129 = vcmp.gt.f32.partialorder %v97, 0.0
  %vm130 = vcmp.gt.f32.partialorder %v98, 0.0
  %vm131 = vcmp.gt.f32.partialorder %v99, 0.0
  %vm132 = vcmp.gt.f32.partialorder %v100, 0.0
  %vm133 = vcmp.gt.f32.partialorder %v101, 0.0
  %vm134 = vcmp.gt.f32.partialorder %v102, 0.0
  %vm135 = vcmp.gt.f32.partialorder %v103, 0.0
  %vm136 = vcmp.gt.f32.partialorder %v104, 0.0
  %vm137 = vcmp.gt.f32.partialorder %v105, 0.0
  %vm138 = vcmp.gt.f32.partialorder %v106, 0.0
  %vm139 = vcmp.gt.f32.partialorder %v107, 0.0
  %vm140 = vcmp.gt.f32.partialorder %v108, 0.0
  %vm141 = vcmp.gt.f32.partialorder %v109, 0.0
  %vm142 = vcmp.gt.f32.partialorder %v110, 0.0
  %vm143 = vcmp.gt.f32.partialorder %v111, 0.0
  %vm144 = vcmp.gt.f32.partialorder %v112, 0.0
  %vm145 = vcmp.gt.f32.partialorder %v113, 0.0
  %vm146 = vcmp.gt.f32.partialorder %v114, 0.0
  %vm147 = vcmp.gt.f32.partialorder %v115, 0.0
  %vm148 = vcmp.gt.f32.partialorder %v116, 0.0
  %vm149 = vcmp.gt.f32.partialorder %v117, 0.0
  %vm150 = vcmp.gt.f32.partialorder %v118, 0.0
  %vm151 = vcmp.gt.f32.partialorder %v119, 0.0
  %vm152 = vcmp.gt.f32.partialorder %v120, 0.0
  %vm153 = vcmp.gt.f32.partialorder %v121, 0.0
  %vm154 = vcmp.gt.f32.partialorder %v122, 0.0
  %vm155 = vcmp.gt.f32.partialorder %v123, 0.0
  %v156 = vmul.f32 %v92, 1.442695
  %v157 = vpow.pop %v156
  %v158 = vmul.f32 %v93, 1.442695
  %v159 = vpow.pop %v158
  %v160 = vmul.f32 %v94, 1.442695
  %v161 = vpow.pop %v160
  %v162 = vmul.f32 %v95, 1.442695
  %v163 = vpow.pop %v162
  %v164 = vmul.f32 %v96, 1.442695
  %v165 = vpow.pop %v164
  %v166 = vmul.f32 %v97, 1.442695
  %v167 = vpow.pop %v166
  %v168 = vmul.f32 %v98, 1.442695
  %v169 = vpow.pop %v168
  %v170 = vmul.f32 %v99, 1.442695
  %v171 = vpow.pop %v170
  %v172 = vmul.f32 %v100, 1.442695
  %v173 = vpow.pop %v172
  %v174 = vmul.f32 %v101, 1.442695
  %v175 = vpow.pop %v174
  %v176 = vmul.f32 %v102, 1.442695
  %v177 = vpow.pop %v176
  %v178 = vmul.f32 %v103, 1.442695
  %v179 = vpow.pop %v178
  %v180 = vmul.f32 %v104, 1.442695
  %v181 = vpow.pop %v180
  %v182 = vmul.f32 %v105, 1.442695
  %v183 = vpow.pop %v182
  %v184 = vmul.f32 %v106, 1.442695
  %v185 = vpow.pop %v184
  %v186 = vmul.f32 %v107, 1.442695
  %v187 = vpow.pop %v186
  %v188 = vmul.f32 %v108, 1.442695
  %v189 = vpow.pop %v188
  %v190 = vmul.f32 %v109, 1.442695
  %v191 = vpow.pop %v190
  %v192 = vmul.f32 %v110, 1.442695
  %v193 = vpow.pop %v192
  %v194 = vmul.f32 %v111, 1.442695
  %v195 = vpow.pop %v194
  %v196 = vmul.f32 %v112, 1.442695
  %v197 = vpow.pop %v196
  %v198 = vmul.f32 %v113, 1.442695
  %v199 = vpow.pop %v198
  %v200 = vmul.f32 %v114, 1.442695
  %v201 = vpow.pop %v200
  %v202 = vmul.f32 %v115, 1.442695
  %v203 = vpow.pop %v202
  %v204 = vmul.f32 %v116, 1.442695
  %v205 = vpow.pop %v204
  %v206 = vmul.f32 %v117, 1.442695
  %v207 = vpow.pop %v206
  %v208 = vmul.f32 %v118, 1.442695
  %v209 = vpow.pop %v208
  %v210 = vmul.f32 %v119, 1.442695
  %v211 = vpow.pop %v210
  %v212 = vmul.f32 %v120, 1.442695
  %v213 = vpow.pop %v212
  %v214 = vmul.f32 %v121, 1.442695
  %v215 = vpow.pop %v214
  %v216 = vmul.f32 %v122, 1.442695
  %v217 = vpow.pop %v216
  %v218 = vmul.f32 %v123, 1.442695
  %v219 = vpow.pop %v218
  %v220 = vsub.f32 %v157, 1.0
  %v221 = vsub.f32 %v159, 1.0
  %v222 = vsub.f32 %v161, 1.0
  %v223 = vsub.f32 %v163, 1.0
  %v224 = vsub.f32 %v165, 1.0
  %v225 = vsub.f32 %v167, 1.0
  %v226 = vsub.f32 %v169, 1.0
  %v227 = vsub.f32 %v171, 1.0
  %v228 = vsub.f32 %v173, 1.0
  %v229 = vsub.f32 %v175, 1.0
  %v230 = vsub.f32 %v177, 1.0
  %v231 = vsub.f32 %v179, 1.0
  %v232 = vsub.f32 %v181, 1.0
  %v233 = vsub.f32 %v183, 1.0
  %v234 = vsub.f32 %v185, 1.0
  %v235 = vsub.f32 %v187, 1.0
  %v236 = vsub.f32 %v189, 1.0
  %v237 = vsub.f32 %v191, 1.0
  %v238 = vsub.f32 %v193, 1.0
  %v239 = vsub.f32 %v195, 1.0
  %v240 = vsub.f32 %v197, 1.0
  %v241 = vsub.f32 %v199, 1.0
  %v242 = vsub.f32 %v201, 1.0
  %v243 = vsub.f32 %v203, 1.0
  %v244 = vsub.f32 %v205, 1.0
  %v245 = vsub.f32 %v207, 1.0
  %v246 = vsub.f32 %v209, 1.0
  %v247 = vsub.f32 %v211, 1.0
  %v248 = vsub.f32 %v213, 1.0
  %v249 = vsub.f32 %v215, 1.0
  %v250 = vsub.f32 %v217, 1.0
  %v251 = vsub.f32 %v219, 1.0
  %v252 = vmul.f32 %v220, 1.6732632
  %v253 = vmul.f32 %v221, 1.6732632
  %v254 = vmul.f32 %v222, 1.6732632
  %v255 = vmul.f32 %v223, 1.6732632
  %v256 = vmul.f32 %v224, 1.6732632
  %v257 = vmul.f32 %v225, 1.6732632
  %v258 = vmul.f32 %v226, 1.6732632
  %v259 = vmul.f32 %v227, 1.6732632
  %v260 = vmul.f32 %v228, 1.6732632
  %v261 = vmul.f32 %v229, 1.6732632
  %v262 = vmul.f32 %v230, 1.6732632
  %v263 = vmul.f32 %v231, 1.6732632
  %v264 = vmul.f32 %v232, 1.6732632
  %v265 = vmul.f32 %v233, 1.6732632
  %v266 = vmul.f32 %v234, 1.6732632
  %v267 = vmul.f32 %v235, 1.6732632
  %v268 = vmul.f32 %v236, 1.6732632
  %v269 = vmul.f32 %v237, 1.6732632
  %v270 = vmul.f32 %v238, 1.6732632
  %v271 = vmul.f32 %v239, 1.6732632
  %v272 = vmul.f32 %v240, 1.6732632
  %v273 = vmul.f32 %v241, 1.6732632
  %v274 = vmul.f32 %v242, 1.6732632
  %v275 = vmul.f32 %v243, 1.6732632
  %v276 = vmul.f32 %v244, 1.6732632
  %v277 = vmul.f32 %v245, 1.6732632
  %v278 = vmul.f32 %v246, 1.6732632
  %v279 = vmul.f32 %v247, 1.6732632
  %v280 = vmul.f32 %v248, 1.6732632
  %v281 = vmul.f32 %v249, 1.6732632
  %v282 = vmul.f32 %v250, 1.6732632
  %v283 = vmul.f32 %v251, 1.6732632
  %v284 = vsel %vm124, %v92, %v252
  %v285 = vsel %vm125, %v93, %v253
  %v286 = vsel %vm126, %v94, %v254
  %v287 = vsel %vm127, %v95, %v255
  %v288 = vsel %vm128, %v96, %v256
  %v289 = vsel %vm129, %v97, %v257
  %v290 = vsel %vm130, %v98, %v258
  %v291 = vsel %vm131, %v99, %v259
  %v292 = vsel %vm132, %v100, %v260
  %v293 = vsel %vm133, %v101, %v261
  %v294 = vsel %vm134, %v102, %v262
  %v295 = vsel %vm135, %v103, %v263
  %v296 = vsel %vm136, %v104, %v264
  %v297 = vsel %vm137, %v105, %v265
  %v298 = vsel %vm138, %v106, %v266
  %v299 = vsel %vm139, %v107, %v267
  %v300 = vsel %vm140, %v108, %v268
  %v301 = vsel %vm141, %v109, %v269
  %v302 = vsel %vm142, %v110, %v270
  %v303 = vsel %vm143, %v111, %v271
  %v304 = vsel %vm144, %v112, %v272
  %v305 = vsel %vm145, %v113, %v273
  %v306 = vsel %vm146, %v114, %v274
  %v307 = vsel %vm147, %v115, %v275
  %v308 = vsel %vm148, %v116, %v276
  %v309 = vsel %vm149, %v117, %v277
  %v310 = vsel %vm150, %v118, %v278
  %v311 = vsel %vm151, %v119, %v279
  %v312 = vsel %vm152, %v120, %v280
  %v313 = vsel %vm153, %v121, %v281
  %v314 = vsel %vm154, %v122, %v282
  %v315 = vsel %vm155, %v123, %v283
  %v316 = vmul.f32 %v284, 1.050701
  %v317 = vmul.f32 %v285, 1.050701
  %v318 = vmul.f32 %v286, 1.050701
  %v319 = vmul.f32 %v287, 1.050701
  %v320 = vmul.f32 %v288, 1.050701
  %v321 = vmul.f32 %v289, 1.050701
  %v322 = vmul.f32 %v290, 1.050701
  %v323 = vmul.f32 %v291, 1.050701
  %v324 = vmul.f32 %v292, 1.050701
  %v325 = vmul.f32 %v293, 1.050701
  %v326 = vmul.f32 %v294, 1.050701
  %v327 = vmul.f32 %v295, 1.050701
  %v328 = vmul.f32 %v296, 1.050701
  %v329 = vmul.f32 %v297, 1.050701
  %v330 = vmul.f32 %v298, 1.050701
  %v331 = vmul.f32 %v299, 1.050701
  %v332 = vmul.f32 %v300, 1.050701
  %v333 = vmul.f32 %v301, 1.050701
  %v334 = vmul.f32 %v302, 1.050701
  %v335 = vmul.f32 %v303, 1.050701
  %v336 = vmul.f32 %v304, 1.050701
  %v337 = vmul.f32 %v305, 1.050701
  %v338 = vmul.f32 %v306, 1.050701
  %v339 = vmul.f32 %v307, 1.050701
  %v340 = vmul.f32 %v308, 1.050701
  %v341 = vmul.f32 %v309, 1.050701
  %v342 = vmul.f32 %v310, 1.050701
  %v343 = vmul.f32 %v311, 1.050701
  %v344 = vmul.f32 %v312, 1.050701
  %v345 = vmul.f32 %v313, 1.050701
  %v346 = vmul.f32 %v314, 1.050701
  %v347 = vmul.f32 %v315, 1.050701
  %348 = vst [vmem:[%s3] sm:$0xff] %v316
  %349 = vst [vmem:[%s3 + $0x8] sm:$0xff] %v317
  %350 = vst [vmem:[%s3 + $0x10] sm:$0xff] %v318
  %351 = vst [vmem:[%s3 + $0x18] sm:$0xff] %v319
  %352 = vst [vmem:[%s3 + $0x20] sm:$0xff] %v320
  %353 = vst [vmem:[%s3 + $0x28] sm:$0xff] %v321
  %354 = vst [vmem:[%s3 + $0x30] sm:$0xff] %v322
  %355 = vst [vmem:[%s3 + $0x38] sm:$0xff] %v323
  %356 = vst [vmem:[%s3 + $0x40] sm:$0xff] %v324
  %357 = vst [vmem:[%s3 + $0x48] sm:$0xff] %v325
  %358 = vst [vmem:[%s3 + $0x50] sm:$0xff] %v326
  %359 = vst [vmem:[%s3 + $0x58] sm:$0xff] %v327
  %360 = vst [vmem:[%s3 + $0x60] sm:$0xff] %v328
  %361 = vst [vmem:[%s3 + $0x68] sm:$0xff] %v329
  %362 = vst [vmem:[%s3 + $0x70] sm:$0xff] %v330
  %363 = vst [vmem:[%s3 + $0x78] sm:$0xff] %v331
  %364 = vst [vmem:[%s3 + $0x80] sm:$0xff] %v332
  %365 = vst [vmem:[%s3 + $0x88] sm:$0xff] %v333
  %366 = vst [vmem:[%s3 + $0x90] sm:$0xff] %v334
  %367 = vst [vmem:[%s3 + $0x98] sm:$0xff] %v335
  %368 = vst [vmem:[%s3 + $0xa0] sm:$0xff] %v336
  %369 = vst [vmem:[%s3 + $0xa8] sm:$0xff] %v337
  %370 = vst [vmem:[%s3 + $0xb0] sm:$0xff] %v338
  %371 = vst [vmem:[%s3 + $0xb8] sm:$0xff] %v339
  %372 = vst [vmem:[%s3 + $0xc0] sm:$0xff] %v340
  %373 = vst [vmem:[%s3 + $0xc8] sm:$0xff] %v341
  %374 = vst [vmem:[%s3 + $0xd0] sm:$0xff] %v342
  %375 = vst [vmem:[%s3 + $0xd8] sm:$0xff] %v343
  %376 = vst [vmem:[%s3 + $0xe0] sm:$0xff] %v344
  %377 = vst [vmem:[%s3 + $0xe8] sm:$0xff] %v345
  %378 = vst [vmem:[%s3 + $0xf0] sm:$0xff] %v346
  %379 = vst [vmem:[%s3 + $0xf8] sm:$0xff] %v347
  // Predicated region
  $region14: #{discriminator_forward.11} parent=0 // pred_check
    _
  $region15: #{discriminator_forward.11} parent=0 // pred_check_branch
    %381 = sbr.rel (0) target = $region17
  $region16: #{discriminator_forward.11} parent=0 // pred_region
    _
  $region17: #{discriminator_forward.11} parent=0 // pred_fallthru
    _
  // Predicated region
  $region18: #{discriminator_forward.11} parent=0 // pred_check
    _
  $region19: #{discriminator_forward.11} parent=0 // pred_check_branch
    %383 = sbr.rel (0) target = $region21
  $region20: #{discriminator_forward.11} parent=0 // pred_region
    _
  $region21: #{discriminator_forward.11} parent=0 // pred_fallthru
    _

// kernel: discriminator_forward.13
$region0: #{discriminator_forward.13}
  #allocation0 [shape = 'u32[]', space=smem, size = 0x4, offset = 0x4, fixed_abs, tag = 'smem constant byte address 0x4 - core index']
  #allocation1 [shape = 'u32[144,128]{1,0:T(1,128)}', space=vmem, size = 0x12000, scoped, tag = 'internal scratch']
  %s0 = inlined_call_operand.vmem [shape: f32[128,128], index: 0, kind: input, shape index: {}]
  %s1 = inlined_call_operand.vmem [shape: f32[1,128], index: 1, kind: input, shape index: {}]
  %s2 = inlined_call_operand.vmem [shape: f32[1,128], index: 2, kind: input, shape index: {}]
  %s3 = inlined_call_operand.vmem [shape: f32[128,128], index: 3, kind: output, shape index: {}]
  %s4 = sld [smem:[#allocation0]]
  $region22: #{discriminator_forward.13} parent=0
    _
  %s6 = ssub.s32 1, %s4
  %s7 = scalar_select 0, %s6, %s4
  // Predicated region
  $region2: #{discriminator_forward.13} parent=0 // pred_check
    _
  $region3: #{discriminator_forward.13} parent=0 // pred_check_branch
    %9 = sbr.rel (0) target = $region5
  $region4: #{discriminator_forward.13} parent=0 // pred_region
    _
  $region5: #{discriminator_forward.13} parent=0 // pred_fallthru
    _
  // Predicated region
  $region6: #{discriminator_forward.13} parent=0 // pred_check
    _
  $region7: #{discriminator_forward.13} parent=0 // pred_check_branch
    %11 = sbr.rel (0) target = $region9
  $region8: #{discriminator_forward.13} parent=0 // pred_region
    _
  $region9: #{discriminator_forward.13} parent=0 // pred_fallthru
    _
  // Predicated region
  $region10: #{discriminator_forward.13} parent=0 // pred_check
    _
  $region11: #{discriminator_forward.13} parent=0 // pred_check_branch
    %13 = sbr.rel (0) target = $region13
  $region12: #{discriminator_forward.13} parent=0 // pred_region
    _
  $region13: #{discriminator_forward.13} parent=0 // pred_fallthru
    _
  %v14 = vld [vmem:[%s0] sm:$0xff]
  %v15 = vld [vmem:[%s0 + $0x8] sm:$0xff]
  %v16 = vld [vmem:[%s0 + $0x10] sm:$0xff]
  %v17 = vld [vmem:[%s0 + $0x18] sm:$0xff]
  %v18 = vld [vmem:[%s0 + $0x20] sm:$0xff]
  %v19 = vld [vmem:[%s0 + $0x28] sm:$0xff]
  %v20 = vld [vmem:[%s0 + $0x30] sm:$0xff]
  %v21 = vld [vmem:[%s0 + $0x38] sm:$0xff]
  %v22 = vld [vmem:[%s0 + $0x40] sm:$0xff]
  %v23 = vld [vmem:[%s0 + $0x48] sm:$0xff]
  %v24 = vld [vmem:[%s0 + $0x50] sm:$0xff]
  %v25 = vld [vmem:[%s0 + $0x58] sm:$0xff]
  %v26 = vld [vmem:[%s0 + $0x60] sm:$0xff]
  %v27 = vld [vmem:[%s0 + $0x68] sm:$0xff]
  %v28 = vld [vmem:[%s0 + $0x70] sm:$0xff]
  %v29 = vld [vmem:[%s0 + $0x78] sm:$0xff]
  %v30 = vld [vmem:[%s1] sm:$0x1]
  %v32 = vlaneseq
  %v33 = vshrl.u32 %v32, 7
  %v34 = vsub.s32 0, %v33
  %v35 = vrot.slane %v30, %v34
  %v37 = vmul.f32 %v14, %v35
  %v38 = vmul.f32 %v15, %v35
  %v39 = vmul.f32 %v16, %v35
  %v40 = vmul.f32 %v17, %v35
  %v41 = vmul.f32 %v18, %v35
  %v42 = vmul.f32 %v19, %v35
  %v43 = vmul.f32 %v20, %v35
  %v44 = vmul.f32 %v21, %v35
  %v45 = vmul.f32 %v22, %v35
  %v46 = vmul.f32 %v23, %v35
  %v47 = vmul.f32 %v24, %v35
  %v48 = vmul.f32 %v25, %v35
  %v49 = vmul.f32 %v26, %v35
  %v50 = vmul.f32 %v27, %v35
  %v51 = vmul.f32 %v28, %v35
  %v52 = vmul.f32 %v29, %v35
  %v53 = vld [vmem:[%s2] sm:$0x1]
  %v55 = vlaneseq
  %v56 = vshrl.u32 %v55, 7
  %v57 = vsub.s32 0, %v56
  %v58 = vrot.slane %v53, %v57
  %v60 = vadd.f32 %v37, %v58
  %v61 = vadd.f32 %v38, %v58
  %v62 = vadd.f32 %v39, %v58
  %v63 = vadd.f32 %v40, %v58
  %v64 = vadd.f32 %v41, %v58
  %v65 = vadd.f32 %v42, %v58
  %v66 = vadd.f32 %v43, %v58
  %v67 = vadd.f32 %v44, %v58
  %v68 = vadd.f32 %v45, %v58
  %v69 = vadd.f32 %v46, %v58
  %v70 = vadd.f32 %v47, %v58
  %v71 = vadd.f32 %v48, %v58
  %v72 = vadd.f32 %v49, %v58
  %v73 = vadd.f32 %v50, %v58
  %v74 = vadd.f32 %v51, %v58
  %v75 = vadd.f32 %v52, %v58
  %vm76 = vcmp.gt.f32.partialorder %v60, 0.0
  %vm77 = vcmp.gt.f32.partialorder %v61, 0.0
  %vm78 = vcmp.gt.f32.partialorder %v62, 0.0
  %vm79 = vcmp.gt.f32.partialorder %v63, 0.0
  %vm80 = vcmp.gt.f32.partialorder %v64, 0.0
  %vm81 = vcmp.gt.f32.partialorder %v65, 0.0
  %vm82 = vcmp.gt.f32.partialorder %v66, 0.0
  %vm83 = vcmp.gt.f32.partialorder %v67, 0.0
  %vm84 = vcmp.gt.f32.partialorder %v68, 0.0
  %vm85 = vcmp.gt.f32.partialorder %v69, 0.0
  %vm86 = vcmp.gt.f32.partialorder %v70, 0.0
  %vm87 = vcmp.gt.f32.partialorder %v71, 0.0
  %vm88 = vcmp.gt.f32.partialorder %v72, 0.0
  %vm89 = vcmp.gt.f32.partialorder %v73, 0.0
  %vm90 = vcmp.gt.f32.partialorder %v74, 0.0
  %vm91 = vcmp.gt.f32.partialorder %v75, 0.0
  %v92 = vmul.f32 %v60, 1.442695
  %v93 = vpow.pop %v92
  %v94 = vmul.f32 %v61, 1.442695
  %v95 = vpow.pop %v94
  %v96 = vmul.f32 %v62, 1.442695
  %v97 = vpow.pop %v96
  %v98 = vmul.f32 %v63, 1.442695
  %v99 = vpow.pop %v98
  %v100 = vmul.f32 %v64, 1.442695
  %v101 = vpow.pop %v100
  %v102 = vmul.f32 %v65, 1.442695
  %v103 = vpow.pop %v102
  %v104 = vmul.f32 %v66, 1.442695
  %v105 = vpow.pop %v104
  %v106 = vmul.f32 %v67, 1.442695
  %v107 = vpow.pop %v106
  %v108 = vmul.f32 %v68, 1.442695
  %v109 = vpow.pop %v108
  %v110 = vmul.f32 %v69, 1.442695
  %v111 = vpow.pop %v110
  %v112 = vmul.f32 %v70, 1.442695
  %v113 = vpow.pop %v112
  %v114 = vmul.f32 %v71, 1.442695
  %v115 = vpow.pop %v114
  %v116 = vmul.f32 %v72, 1.442695
  %v117 = vpow.pop %v116
  %v118 = vmul.f32 %v73, 1.442695
  %v119 = vpow.pop %v118
  %v120 = vmul.f32 %v74, 1.442695
  %v121 = vpow.pop %v120
  %v122 = vmul.f32 %v75, 1.442695
  %v123 = vpow.pop %v122
  %v124 = vsub.f32 %v93, 1.0
  %v125 = vsub.f32 %v95, 1.0
  %v126 = vsub.f32 %v97, 1.0
  %v127 = vsub.f32 %v99, 1.0
  %v128 = vsub.f32 %v101, 1.0
  %v129 = vsub.f32 %v103, 1.0
  %v130 = vsub.f32 %v105, 1.0
  %v131 = vsub.f32 %v107, 1.0
  %v132 = vsub.f32 %v109, 1.0
  %v133 = vsub.f32 %v111, 1.0
  %v134 = vsub.f32 %v113, 1.0
  %v135 = vsub.f32 %v115, 1.0
  %v136 = vsub.f32 %v117, 1.0
  %v137 = vsub.f32 %v119, 1.0
  %v138 = vsub.f32 %v121, 1.0
  %v139 = vsub.f32 %v123, 1.0
  %v140 = vmul.f32 %v124, 1.6732632
  %v141 = vmul.f32 %v125, 1.6732632
  %v142 = vmul.f32 %v126, 1.6732632
  %v143 = vmul.f32 %v127, 1.6732632
  %v144 = vmul.f32 %v128, 1.6732632
  %v145 = vmul.f32 %v129, 1.6732632
  %v146 = vmul.f32 %v130, 1.6732632
  %v147 = vmul.f32 %v131, 1.6732632
  %v148 = vmul.f32 %v132, 1.6732632
  %v149 = vmul.f32 %v133, 1.6732632
  %v150 = vmul.f32 %v134, 1.6732632
  %v151 = vmul.f32 %v135, 1.6732632
  %v152 = vmul.f32 %v136, 1.6732632
  %v153 = vmul.f32 %v137, 1.6732632
  %v154 = vmul.f32 %v138, 1.6732632
  %v155 = vmul.f32 %v139, 1.6732632
  %v156 = vsel %vm76, %v60, %v140
  %v157 = vsel %vm77, %v61, %v141
  %v158 = vsel %vm78, %v62, %v142
  %v159 = vsel %vm79, %v63, %v143
  %v160 = vsel %vm80, %v64, %v144
  %v161 = vsel %vm81, %v65, %v145
  %v162 = vsel %vm82, %v66, %v146
  %v163 = vsel %vm83, %v67, %v147
  %v164 = vsel %vm84, %v68, %v148
  %v165 = vsel %vm85, %v69, %v149
  %v166 = vsel %vm86, %v70, %v150
  %v167 = vsel %vm87, %v71, %v151
  %v168 = vsel %vm88, %v72, %v152
  %v169 = vsel %vm89, %v73, %v153
  %v170 = vsel %vm90, %v74, %v154
  %v171 = vsel %vm91, %v75, %v155
  %v172 = vmul.f32 %v156, 1.050701
  %v173 = vmul.f32 %v157, 1.050701
  %v174 = vmul.f32 %v158, 1.050701
  %v175 = vmul.f32 %v159, 1.050701
  %v176 = vmul.f32 %v160, 1.050701
  %v177 = vmul.f32 %v161, 1.050701
  %v178 = vmul.f32 %v162, 1.050701
  %v179 = vmul.f32 %v163, 1.050701
  %v180 = vmul.f32 %v164, 1.050701
  %v181 = vmul.f32 %v165, 1.050701
  %v182 = vmul.f32 %v166, 1.050701
  %v183 = vmul.f32 %v167, 1.050701
  %v184 = vmul.f32 %v168, 1.050701
  %v185 = vmul.f32 %v169, 1.050701
  %v186 = vmul.f32 %v170, 1.050701
  %v187 = vmul.f32 %v171, 1.050701
  %188 = vst [vmem:[%s3] sm:$0xff] %v172
  %189 = vst [vmem:[%s3 + $0x8] sm:$0xff] %v173
  %190 = vst [vmem:[%s3 + $0x10] sm:$0xff] %v174
  %191 = vst [vmem:[%s3 + $0x18] sm:$0xff] %v175
  %192 = vst [vmem:[%s3 + $0x20] sm:$0xff] %v176
  %193 = vst [vmem:[%s3 + $0x28] sm:$0xff] %v177
  %194 = vst [vmem:[%s3 + $0x30] sm:$0xff] %v178
  %195 = vst [vmem:[%s3 + $0x38] sm:$0xff] %v179
  %196 = vst [vmem:[%s3 + $0x40] sm:$0xff] %v180
  %197 = vst [vmem:[%s3 + $0x48] sm:$0xff] %v181
  %198 = vst [vmem:[%s3 + $0x50] sm:$0xff] %v182
  %199 = vst [vmem:[%s3 + $0x58] sm:$0xff] %v183
  %200 = vst [vmem:[%s3 + $0x60] sm:$0xff] %v184
  %201 = vst [vmem:[%s3 + $0x68] sm:$0xff] %v185
  %202 = vst [vmem:[%s3 + $0x70] sm:$0xff] %v186
  %203 = vst [vmem:[%s3 + $0x78] sm:$0xff] %v187
  // Predicated region
  $region14: #{discriminator_forward.13} parent=0 // pred_check
    _
  $region15: #{discriminator_forward.13} parent=0 // pred_check_branch
    %205 = sbr.rel (0) target = $region17
  $region16: #{discriminator_forward.13} parent=0 // pred_region
    _
  $region17: #{discriminator_forward.13} parent=0 // pred_fallthru
    _
  // Predicated region
  $region18: #{discriminator_forward.13} parent=0 // pred_check
    _
  $region19: #{discriminator_forward.13} parent=0 // pred_check_branch
    %207 = sbr.rel (0) target = $region21
  $region20: #{discriminator_forward.13} parent=0 // pred_region
    _
  $region21: #{discriminator_forward.13} parent=0 // pred_fallthru
    _

// kernel: discriminator_forward.12
$region0: #{discriminator_forward.12}
  #allocation0 [shape = 'u32[]', space=smem, size = 0x4, offset = 0x4, fixed_abs, tag = 'smem constant byte address 0x4 - core index']
  #allocation1 [shape = 'u32[144,128]{1,0:T(1,128)}', space=vmem, size = 0x12000, scoped, tag = 'internal scratch']
  %s0 = inlined_call_operand.vmem [shape: bf16[128,1024], index: 0, kind: input, shape index: {}]
  %s1 = inlined_call_operand.vmem [shape: bf16[1024,128], index: 1, kind: input, shape index: {}]
  %s2 = inlined_call_operand.vmem [shape: f32[128,128], index: 2, kind: output, shape index: {0}]
  %s3 = inlined_call_operand.vmem [shape: f32[1,1,128], index: 3, kind: output, shape index: {1}]
  %s4 = inlined_call_operand.vmem [shape: f32[1,1,128], index: 4, kind: output, shape index: {2}]
  %5 = xla_tuple %s2, %s3, %s4
  %s6 = sld [smem:[#allocation0]]
  $region34: #{discriminator_forward.12} parent=0
    _
  %s8 = ssub.s32 1, %s6
  %s9 = scalar_select 0, %s8, %s6
  // Predicated region
  $region2: #{discriminator_forward.12} parent=0 // pred_check
    _
  $region3: #{discriminator_forward.12} parent=0 // pred_check_branch
    %11 = sbr.rel (0) target = $region5
  $region4: #{discriminator_forward.12} parent=0 // pred_region
    _
  $region5: #{discriminator_forward.12} parent=0 // pred_fallthru
    _
  // Predicated region
  $region6: #{discriminator_forward.12} parent=0 // pred_check
    _
  $region7: #{discriminator_forward.12} parent=0 // pred_check_branch
    %13 = sbr.rel (0) target = $region9
  $region8: #{discriminator_forward.12} parent=0 // pred_region
    _
  $region9: #{discriminator_forward.12} parent=0 // pred_fallthru
    _
  %v15 = vld [vmem:[%s0] sm:$0xff]
  %v16 = vld [vmem:[%s0 + $0x8] sm:$0xff]
  %v17 = vld [vmem:[%s0 + $0x10] sm:$0xff]
  %v18 = vld [vmem:[%s0 + $0x18] sm:$0xff]
  %v19 = vld [vmem:[%s0 + $0x20] sm:$0xff]
  %v20 = vld [vmem:[%s0 + $0x28] sm:$0xff]
  %v21 = vld [vmem:[%s0 + $0x30] sm:$0xff]
  %v22 = vld [vmem:[%s0 + $0x38] sm:$0xff]
  %v23 = vld [vmem:[%s0 + $0x40] sm:$0xff]
  %v24 = vld [vmem:[%s0 + $0x48] sm:$0xff]
  %v25 = vld [vmem:[%s0 + $0x50] sm:$0xff]
  %v26 = vld [vmem:[%s0 + $0x58] sm:$0xff]
  %v27 = vld [vmem:[%s0 + $0x60] sm:$0xff]
  %v28 = vld [vmem:[%s0 + $0x68] sm:$0xff]
  %v29 = vld [vmem:[%s0 + $0x70] sm:$0xff]
  %v30 = vld [vmem:[%s0 + $0x78] sm:$0xff]
  %v31 = vld [vmem:[%s0 + $0x80] sm:$0xff]
  %v32 = vld [vmem:[%s0 + $0x88] sm:$0xff]
  %v33 = vld [vmem:[%s0 + $0x90] sm:$0xff]
  %v34 = vld [vmem:[%s0 + $0x98] sm:$0xff]
  %v35 = vld [vmem:[%s0 + $0xa0] sm:$0xff]
  %v36 = vld [vmem:[%s0 + $0xa8] sm:$0xff]
  %v37 = vld [vmem:[%s0 + $0xb0] sm:$0xff]
  %v38 = vld [vmem:[%s0 + $0xb8] sm:$0xff]
  %v39 = vld [vmem:[%s0 + $0xc0] sm:$0xff]
  %v40 = vld [vmem:[%s0 + $0xc8] sm:$0xff]
  %v41 = vld [vmem:[%s0 + $0xd0] sm:$0xff]
  %v42 = vld [vmem:[%s0 + $0xd8] sm:$0xff]
  %v43 = vld [vmem:[%s0 + $0xe0] sm:$0xff]
  %v44 = vld [vmem:[%s0 + $0xe8] sm:$0xff]
  %v45 = vld [vmem:[%s0 + $0xf0] sm:$0xff]
  %v46 = vld [vmem:[%s0 + $0xf8] sm:$0xff]
  %v47 = vld [vmem:[%s0 + $0x100] sm:$0xff]
  %v48 = vld [vmem:[%s0 + $0x108] sm:$0xff]
  %v49 = vld [vmem:[%s0 + $0x110] sm:$0xff]
  %v50 = vld [vmem:[%s0 + $0x118] sm:$0xff]
  %v51 = vld [vmem:[%s0 + $0x120] sm:$0xff]
  %v52 = vld [vmem:[%s0 + $0x128] sm:$0xff]
  %v53 = vld [vmem:[%s0 + $0x130] sm:$0xff]
  %v54 = vld [vmem:[%s0 + $0x138] sm:$0xff]
  %v55 = vld [vmem:[%s0 + $0x140] sm:$0xff]
  %v56 = vld [vmem:[%s0 + $0x148] sm:$0xff]
  %v57 = vld [vmem:[%s0 + $0x150] sm:$0xff]
  %v58 = vld [vmem:[%s0 + $0x158] sm:$0xff]
  %v59 = vld [vmem:[%s0 + $0x160] sm:$0xff]
  %v60 = vld [vmem:[%s0 + $0x168] sm:$0xff]
  %v61 = vld [vmem:[%s0 + $0x170] sm:$0xff]
  %v62 = vld [vmem:[%s0 + $0x178] sm:$0xff]
  %v63 = vld [vmem:[%s0 + $0x180] sm:$0xff]
  %v64 = vld [vmem:[%s0 + $0x188] sm:$0xff]
  %v65 = vld [vmem:[%s0 + $0x190] sm:$0xff]
  %v66 = vld [vmem:[%s0 + $0x198] sm:$0xff]
  %v67 = vld [vmem:[%s0 + $0x1a0] sm:$0xff]
  %v68 = vld [vmem:[%s0 + $0x1a8] sm:$0xff]
  %v69 = vld [vmem:[%s0 + $0x1b0] sm:$0xff]
  %v70 = vld [vmem:[%s0 + $0x1b8] sm:$0xff]
  %v71 = vld [vmem:[%s0 + $0x1c0] sm:$0xff]
  %v72 = vld [vmem:[%s0 + $0x1c8] sm:$0xff]
  %v73 = vld [vmem:[%s0 + $0x1d0] sm:$0xff]
  %v74 = vld [vmem:[%s0 + $0x1d8] sm:$0xff]
  %v75 = vld [vmem:[%s0 + $0x1e0] sm:$0xff]
  %v76 = vld [vmem:[%s0 + $0x1e8] sm:$0xff]
  %v77 = vld [vmem:[%s0 + $0x1f0] sm:$0xff]
  %v78 = vld [vmem:[%s0 + $0x1f8] sm:$0xff]
  %v79 = vld [vmem:[%s1] sm:$0xf]
  %v80 = vld [vmem:[%s1 + $0x4] sm:$0xf]
  %v81 = vld [vmem:[%s1 + $0x8] sm:$0xf]
  %v82 = vld [vmem:[%s1 + $0xc] sm:$0xf]
  %v83 = vld [vmem:[%s1 + $0x10] sm:$0xf]
  %v84 = vld [vmem:[%s1 + $0x14] sm:$0xf]
  %v85 = vld [vmem:[%s1 + $0x18] sm:$0xf]
  %v86 = vld [vmem:[%s1 + $0x1c] sm:$0xf]
  %v87 = vld [vmem:[%s1 + $0x20] sm:$0xf]
  %v88 = vld [vmem:[%s1 + $0x24] sm:$0xf]
  %v89 = vld [vmem:[%s1 + $0x28] sm:$0xf]
  %v90 = vld [vmem:[%s1 + $0x2c] sm:$0xf]
  %v91 = vld [vmem:[%s1 + $0x30] sm:$0xf]
  %v92 = vld [vmem:[%s1 + $0x34] sm:$0xf]
  %v93 = vld [vmem:[%s1 + $0x38] sm:$0xf]
  %v94 = vld [vmem:[%s1 + $0x3c] sm:$0xf]
  %v95 = vld [vmem:[%s1 + $0x40] sm:$0xf]
  %v96 = vld [vmem:[%s1 + $0x44] sm:$0xf]
  %v97 = vld [vmem:[%s1 + $0x48] sm:$0xf]
  %v98 = vld [vmem:[%s1 + $0x4c] sm:$0xf]
  %v99 = vld [vmem:[%s1 + $0x50] sm:$0xf]
  %v100 = vld [vmem:[%s1 + $0x54] sm:$0xf]
  %v101 = vld [vmem:[%s1 + $0x58] sm:$0xf]
  %v102 = vld [vmem:[%s1 + $0x5c] sm:$0xf]
  %v103 = vld [vmem:[%s1 + $0x60] sm:$0xf]
  %v104 = vld [vmem:[%s1 + $0x64] sm:$0xf]
  %v105 = vld [vmem:[%s1 + $0x68] sm:$0xf]
  %v106 = vld [vmem:[%s1 + $0x6c] sm:$0xf]
  %v107 = vld [vmem:[%s1 + $0x70] sm:$0xf]
  %v108 = vld [vmem:[%s1 + $0x74] sm:$0xf]
  %v109 = vld [vmem:[%s1 + $0x78] sm:$0xf]
  %v110 = vld [vmem:[%s1 + $0x7c] sm:$0xf]
  %v111 = vld [vmem:[%s1 + $0x80] sm:$0xf]
  %v112 = vld [vmem:[%s1 + $0x84] sm:$0xf]
  %v113 = vld [vmem:[%s1 + $0x88] sm:$0xf]
  %v114 = vld [vmem:[%s1 + $0x8c] sm:$0xf]
  %v115 = vld [vmem:[%s1 + $0x90] sm:$0xf]
  %v116 = vld [vmem:[%s1 + $0x94] sm:$0xf]
  %v117 = vld [vmem:[%s1 + $0x98] sm:$0xf]
  %v118 = vld [vmem:[%s1 + $0x9c] sm:$0xf]
  %v119 = vld [vmem:[%s1 + $0xa0] sm:$0xf]
  %v120 = vld [vmem:[%s1 + $0xa4] sm:$0xf]
  %v121 = vld [vmem:[%s1 + $0xa8] sm:$0xf]
  %v122 = vld [vmem:[%s1 + $0xac] sm:$0xf]
  %v123 = vld [vmem:[%s1 + $0xb0] sm:$0xf]
  %v124 = vld [vmem:[%s1 + $0xb4] sm:$0xf]
  %v125 = vld [vmem:[%s1 + $0xb8] sm:$0xf]
  %v126 = vld [vmem:[%s1 + $0xbc] sm:$0xf]
  %v127 = vld [vmem:[%s1 + $0xc0] sm:$0xf]
  %v128 = vld [vmem:[%s1 + $0xc4] sm:$0xf]
  %v129 = vld [vmem:[%s1 + $0xc8] sm:$0xf]
  %v130 = vld [vmem:[%s1 + $0xcc] sm:$0xf]
  %v131 = vld [vmem:[%s1 + $0xd0] sm:$0xf]
  %v132 = vld [vmem:[%s1 + $0xd4] sm:$0xf]
  %v133 = vld [vmem:[%s1 + $0xd8] sm:$0xf]
  %v134 = vld [vmem:[%s1 + $0xdc] sm:$0xf]
  %v135 = vld [vmem:[%s1 + $0xe0] sm:$0xf]
  %v136 = vld [vmem:[%s1 + $0xe4] sm:$0xf]
  %v137 = vld [vmem:[%s1 + $0xe8] sm:$0xf]
  %v138 = vld [vmem:[%s1 + $0xec] sm:$0xf]
  %v139 = vld [vmem:[%s1 + $0xf0] sm:$0xf]
  %v140 = vld [vmem:[%s1 + $0xf4] sm:$0xf]
  %v141 = vld [vmem:[%s1 + $0xf8] sm:$0xf]
  %v142 = vld [vmem:[%s1 + $0xfc] sm:$0xf]
  %v143 = vld [vmem:[%s1 + $0x100] sm:$0xf]
  %v144 = vld [vmem:[%s1 + $0x104] sm:$0xf]
  %v145 = vld [vmem:[%s1 + $0x108] sm:$0xf]
  %v146 = vld [vmem:[%s1 + $0x10c] sm:$0xf]
  %v147 = vld [vmem:[%s1 + $0x110] sm:$0xf]
  %v148 = vld [vmem:[%s1 + $0x114] sm:$0xf]
  %v149 = vld [vmem:[%s1 + $0x118] sm:$0xf]
  %v150 = vld [vmem:[%s1 + $0x11c] sm:$0xf]
  %v151 = vld [vmem:[%s1 + $0x120] sm:$0xf]
  %v152 = vld [vmem:[%s1 + $0x124] sm:$0xf]
  %v153 = vld [vmem:[%s1 + $0x128] sm:$0xf]
  %v154 = vld [vmem:[%s1 + $0x12c] sm:$0xf]
  %v155 = vld [vmem:[%s1 + $0x130] sm:$0xf]
  %v156 = vld [vmem:[%s1 + $0x134] sm:$0xf]
  %v157 = vld [vmem:[%s1 + $0x138] sm:$0xf]
  %v158 = vld [vmem:[%s1 + $0x13c] sm:$0xf]
  %v159 = vld [vmem:[%s1 + $0x140] sm:$0xf]
  %v160 = vld [vmem:[%s1 + $0x144] sm:$0xf]
  %v161 = vld [vmem:[%s1 + $0x148] sm:$0xf]
  %v162 = vld [vmem:[%s1 + $0x14c] sm:$0xf]
  %v163 = vld [vmem:[%s1 + $0x150] sm:$0xf]
  %v164 = vld [vmem:[%s1 + $0x154] sm:$0xf]
  %v165 = vld [vmem:[%s1 + $0x158] sm:$0xf]
  %v166 = vld [vmem:[%s1 + $0x15c] sm:$0xf]
  %v167 = vld [vmem:[%s1 + $0x160] sm:$0xf]
  %v168 = vld [vmem:[%s1 + $0x164] sm:$0xf]
  %v169 = vld [vmem:[%s1 + $0x168] sm:$0xf]
  %v170 = vld [vmem:[%s1 + $0x16c] sm:$0xf]
  %v171 = vld [vmem:[%s1 + $0x170] sm:$0xf]
  %v172 = vld [vmem:[%s1 + $0x174] sm:$0xf]
  %v173 = vld [vmem:[%s1 + $0x178] sm:$0xf]
  %v174 = vld [vmem:[%s1 + $0x17c] sm:$0xf]
  %v175 = vld [vmem:[%s1 + $0x180] sm:$0xf]
  %v176 = vld [vmem:[%s1 + $0x184] sm:$0xf]
  %v177 = vld [vmem:[%s1 + $0x188] sm:$0xf]
  %v178 = vld [vmem:[%s1 + $0x18c] sm:$0xf]
  %v179 = vld [vmem:[%s1 + $0x190] sm:$0xf]
  %v180 = vld [vmem:[%s1 + $0x194] sm:$0xf]
  %v181 = vld [vmem:[%s1 + $0x198] sm:$0xf]
  %v182 = vld [vmem:[%s1 + $0x19c] sm:$0xf]
  %v183 = vld [vmem:[%s1 + $0x1a0] sm:$0xf]
  %v184 = vld [vmem:[%s1 + $0x1a4] sm:$0xf]
  %v185 = vld [vmem:[%s1 + $0x1a8] sm:$0xf]
  %v186 = vld [vmem:[%s1 + $0x1ac] sm:$0xf]
  %v187 = vld [vmem:[%s1 + $0x1b0] sm:$0xf]
  %v188 = vld [vmem:[%s1 + $0x1b4] sm:$0xf]
  %v189 = vld [vmem:[%s1 + $0x1b8] sm:$0xf]
  %v190 = vld [vmem:[%s1 + $0x1bc] sm:$0xf]
  %v191 = vld [vmem:[%s1 + $0x1c0] sm:$0xf]
  %v192 = vld [vmem:[%s1 + $0x1c4] sm:$0xf]
  %v193 = vld [vmem:[%s1 + $0x1c8] sm:$0xf]
  %v194 = vld [vmem:[%s1 + $0x1cc] sm:$0xf]
  %v195 = vld [vmem:[%s1 + $0x1d0] sm:$0xf]
  %v196 = vld [vmem:[%s1 + $0x1d4] sm:$0xf]
  %v197 = vld [vmem:[%s1 + $0x1d8] sm:$0xf]
  %v198 = vld [vmem:[%s1 + $0x1dc] sm:$0xf]
  %v199 = vld [vmem:[%s1 + $0x1e0] sm:$0xf]
  %v200 = vld [vmem:[%s1 + $0x1e4] sm:$0xf]
  %v201 = vld [vmem:[%s1 + $0x1e8] sm:$0xf]
  %v202 = vld [vmem:[%s1 + $0x1ec] sm:$0xf]
  %v203 = vld [vmem:[%s1 + $0x1f0] sm:$0xf]
  %v204 = vld [vmem:[%s1 + $0x1f4] sm:$0xf]
  %v205 = vld [vmem:[%s1 + $0x1f8] sm:$0xf]
  %v206 = vld [vmem:[%s1 + $0x1fc] sm:$0xf]
  %v271 = vunpack.c.l.b16 %v15
  %v272 = vunpack.c.h.b16 %v15
  %v273 = vunpack.c.l.b16 %v16
  %v274 = vunpack.c.h.b16 %v16
  %v275 = vunpack.c.l.b16 %v17
  %v276 = vunpack.c.h.b16 %v17
  %v277 = vunpack.c.l.b16 %v18
  %v278 = vunpack.c.h.b16 %v18
  %v279 = vunpack.c.l.b16 %v19
  %v280 = vunpack.c.h.b16 %v19
  %v281 = vunpack.c.l.b16 %v20
  %v282 = vunpack.c.h.b16 %v20
  %v283 = vunpack.c.l.b16 %v21
  %v284 = vunpack.c.h.b16 %v21
  %v285 = vunpack.c.l.b16 %v22
  %v286 = vunpack.c.h.b16 %v22
  %v287 = vunpack.c.l.b16 %v23
  %v288 = vunpack.c.h.b16 %v23
  %v289 = vunpack.c.l.b16 %v24
  %v290 = vunpack.c.h.b16 %v24
  %v291 = vunpack.c.l.b16 %v25
  %v292 = vunpack.c.h.b16 %v25
  %v293 = vunpack.c.l.b16 %v26
  %v294 = vunpack.c.h.b16 %v26
  %v295 = vunpack.c.l.b16 %v27
  %v296 = vunpack.c.h.b16 %v27
  %v297 = vunpack.c.l.b16 %v28
  %v298 = vunpack.c.h.b16 %v28
  %v299 = vunpack.c.l.b16 %v29
  %v300 = vunpack.c.h.b16 %v29
  %v301 = vunpack.c.l.b16 %v30
  %v302 = vunpack.c.h.b16 %v30
  %v303 = vunpack.c.l.b16 %v31
  %v304 = vunpack.c.h.b16 %v31
  %v305 = vunpack.c.l.b16 %v32
  %v306 = vunpack.c.h.b16 %v32
  %v307 = vunpack.c.l.b16 %v33
  %v308 = vunpack.c.h.b16 %v33
  %v309 = vunpack.c.l.b16 %v34
  %v310 = vunpack.c.h.b16 %v34
  %v311 = vunpack.c.l.b16 %v35
  %v312 = vunpack.c.h.b16 %v35
  %v313 = vunpack.c.l.b16 %v36
  %v314 = vunpack.c.h.b16 %v36
  %v315 = vunpack.c.l.b16 %v37
  %v316 = vunpack.c.h.b16 %v37
  %v317 = vunpack.c.l.b16 %v38
  %v318 = vunpack.c.h.b16 %v38
  %v319 = vunpack.c.l.b16 %v39
  %v320 = vunpack.c.h.b16 %v39
  %v321 = vunpack.c.l.b16 %v40
  %v322 = vunpack.c.h.b16 %v40
  %v323 = vunpack.c.l.b16 %v41
  %v324 = vunpack.c.h.b16 %v41
  %v325 = vunpack.c.l.b16 %v42
  %v326 = vunpack.c.h.b16 %v42
  %v327 = vunpack.c.l.b16 %v43
  %v328 = vunpack.c.h.b16 %v43
  %v329 = vunpack.c.l.b16 %v44
  %v330 = vunpack.c.h.b16 %v44
  %v331 = vunpack.c.l.b16 %v45
  %v332 = vunpack.c.h.b16 %v45
  %v333 = vunpack.c.l.b16 %v46
  %v334 = vunpack.c.h.b16 %v46
  %v335 = vunpack.c.l.b16 %v47
  %v336 = vunpack.c.h.b16 %v47
  %v337 = vunpack.c.l.b16 %v48
  %v338 = vunpack.c.h.b16 %v48
  %v339 = vunpack.c.l.b16 %v49
  %v340 = vunpack.c.h.b16 %v49
  %v341 = vunpack.c.l.b16 %v50
  %v342 = vunpack.c.h.b16 %v50
  %v343 = vunpack.c.l.b16 %v51
  %v344 = vunpack.c.h.b16 %v51
  %v345 = vunpack.c.l.b16 %v52
  %v346 = vunpack.c.h.b16 %v52
  %v347 = vunpack.c.l.b16 %v53
  %v348 = vunpack.c.h.b16 %v53
  %v349 = vunpack.c.l.b16 %v54
  %v350 = vunpack.c.h.b16 %v54
  %v351 = vunpack.c.l.b16 %v55
  %v352 = vunpack.c.h.b16 %v55
  %v353 = vunpack.c.l.b16 %v56
  %v354 = vunpack.c.h.b16 %v56
  %v355 = vunpack.c.l.b16 %v57
  %v356 = vunpack.c.h.b16 %v57
  %v357 = vunpack.c.l.b16 %v58
  %v358 = vunpack.c.h.b16 %v58
  %v359 = vunpack.c.l.b16 %v59
  %v360 = vunpack.c.h.b16 %v59
  %v361 = vunpack.c.l.b16 %v60
  %v362 = vunpack.c.h.b16 %v60
  %v363 = vunpack.c.l.b16 %v61
  %v364 = vunpack.c.h.b16 %v61
  %v365 = vunpack.c.l.b16 %v62
  %v366 = vunpack.c.h.b16 %v62
  %v367 = vunpack.c.l.b16 %v63
  %v368 = vunpack.c.h.b16 %v63
  %v369 = vunpack.c.l.b16 %v64
  %v370 = vunpack.c.h.b16 %v64
  %v371 = vunpack.c.l.b16 %v65
  %v372 = vunpack.c.h.b16 %v65
  %v373 = vunpack.c.l.b16 %v66
  %v374 = vunpack.c.h.b16 %v66
  %v375 = vunpack.c.l.b16 %v67
  %v376 = vunpack.c.h.b16 %v67
  %v377 = vunpack.c.l.b16 %v68
  %v378 = vunpack.c.h.b16 %v68
  %v379 = vunpack.c.l.b16 %v69
  %v380 = vunpack.c.h.b16 %v69
  %v381 = vunpack.c.l.b16 %v70
  %v382 = vunpack.c.h.b16 %v70
  %v383 = vunpack.c.l.b16 %v71
  %v384 = vunpack.c.h.b16 %v71
  %v385 = vunpack.c.l.b16 %v72
  %v386 = vunpack.c.h.b16 %v72
  %v387 = vunpack.c.l.b16 %v73
  %v388 = vunpack.c.h.b16 %v73
  %v389 = vunpack.c.l.b16 %v74
  %v390 = vunpack.c.h.b16 %v74
  %v391 = vunpack.c.l.b16 %v75
  %v392 = vunpack.c.h.b16 %v75
  %v393 = vunpack.c.l.b16 %v76
  %v394 = vunpack.c.h.b16 %v76
  %v395 = vunpack.c.l.b16 %v77
  %v396 = vunpack.c.h.b16 %v77
  %v397 = vunpack.c.l.b16 %v78
  %v398 = vunpack.c.h.b16 %v78
  %v399 = vpack.c.b16 %v279, %v271
  %v400 = vpack.c.b16 %v280, %v272
  %v401 = vpack.c.b16 %v281, %v273
  %v402 = vpack.c.b16 %v282, %v274
  %v403 = vpack.c.b16 %v283, %v275
  %v404 = vpack.c.b16 %v284, %v276
  %v405 = vpack.c.b16 %v285, %v277
  %v406 = vpack.c.b16 %v286, %v278
  %v407 = vpack.c.b16 %v295, %v287
  %v408 = vpack.c.b16 %v296, %v288
  %v409 = vpack.c.b16 %v297, %v289
  %v410 = vpack.c.b16 %v298, %v290
  %v411 = vpack.c.b16 %v299, %v291
  %v412 = vpack.c.b16 %v300, %v292
  %v413 = vpack.c.b16 %v301, %v293
  %v414 = vpack.c.b16 %v302, %v294
  %v415 = vpack.c.b16 %v311, %v303
  %v416 = vpack.c.b16 %v312, %v304
  %v417 = vpack.c.b16 %v313, %v305
  %v418 = vpack.c.b16 %v314, %v306
  %v419 = vpack.c.b16 %v315, %v307
  %v420 = vpack.c.b16 %v316, %v308
  %v421 = vpack.c.b16 %v317, %v309
  %v422 = vpack.c.b16 %v318, %v310
  %v423 = vpack.c.b16 %v327, %v319
  %v424 = vpack.c.b16 %v328, %v320
  %v425 = vpack.c.b16 %v329, %v321
  %v426 = vpack.c.b16 %v330, %v322
  %v427 = vpack.c.b16 %v331, %v323
  %v428 = vpack.c.b16 %v332, %v324
  %v429 = vpack.c.b16 %v333, %v325
  %v430 = vpack.c.b16 %v334, %v326
  %v431 = vpack.c.b16 %v343, %v335
  %v432 = vpack.c.b16 %v344, %v336
  %v433 = vpack.c.b16 %v345, %v337
  %v434 = vpack.c.b16 %v346, %v338
  %v435 = vpack.c.b16 %v347, %v339
  %v436 = vpack.c.b16 %v348, %v340
  %v437 = vpack.c.b16 %v349, %v341
  %v438 = vpack.c.b16 %v350, %v342
  %v439 = vpack.c.b16 %v359, %v351
  %v440 = vpack.c.b16 %v360, %v352
  %v441 = vpack.c.b16 %v361, %v353
  %v442 = vpack.c.b16 %v362, %v354
  %v443 = vpack.c.b16 %v363, %v355
  %v444 = vpack.c.b16 %v364, %v356
  %v445 = vpack.c.b16 %v365, %v357
  %v446 = vpack.c.b16 %v366, %v358
  %v447 = vpack.c.b16 %v375, %v367
  %v448 = vpack.c.b16 %v376, %v368
  %v449 = vpack.c.b16 %v377, %v369
  %v450 = vpack.c.b16 %v378, %v370
  %v451 = vpack.c.b16 %v379, %v371
  %v452 = vpack.c.b16 %v380, %v372
  %v453 = vpack.c.b16 %v381, %v373
  %v454 = vpack.c.b16 %v382, %v374
  %v455 = vpack.c.b16 %v391, %v383
  %v456 = vpack.c.b16 %v392, %v384
  %v457 = vpack.c.b16 %v393, %v385
  %v458 = vpack.c.b16 %v394, %v386
  %v459 = vpack.c.b16 %v395, %v387
  %v460 = vpack.c.b16 %v396, %v388
  %v461 = vpack.c.b16 %v397, %v389
  %v462 = vpack.c.b16 %v398, %v390
  %v655 = vunpack.c.l.b16 %v79
  %v656 = vunpack.c.l.b16 %v80
  %v657 = vunpack.c.l.b16 %v81
  %v658 = vunpack.c.l.b16 %v82
  %v659 = vunpack.c.l.b16 %v83
  %v660 = vunpack.c.l.b16 %v84
  %v661 = vunpack.c.l.b16 %v85
  %v662 = vunpack.c.l.b16 %v86
  %v663 = vunpack.c.l.b16 %v87
  %v664 = vunpack.c.l.b16 %v88
  %v665 = vunpack.c.l.b16 %v89
  %v666 = vunpack.c.l.b16 %v90
  %v667 = vunpack.c.l.b16 %v91
  %v668 = vunpack.c.l.b16 %v92
  %v669 = vunpack.c.l.b16 %v93
  %v670 = vunpack.c.l.b16 %v94
  %v671 = vunpack.c.l.b16 %v95
  %v672 = vunpack.c.l.b16 %v96
  %v673 = vunpack.c.l.b16 %v97
  %v674 = vunpack.c.l.b16 %v98
  %v675 = vunpack.c.l.b16 %v99
  %v676 = vunpack.c.l.b16 %v100
  %v677 = vunpack.c.l.b16 %v101
  %v678 = vunpack.c.l.b16 %v102
  %v679 = vunpack.c.l.b16 %v103
  %v680 = vunpack.c.l.b16 %v104
  %v681 = vunpack.c.l.b16 %v105
  %v682 = vunpack.c.l.b16 %v106
  %v683 = vunpack.c.l.b16 %v107
  %v684 = vunpack.c.l.b16 %v108
  %v685 = vunpack.c.l.b16 %v109
  %v686 = vunpack.c.l.b16 %v110
  %v687 = vunpack.c.l.b16 %v111
  %v688 = vunpack.c.l.b16 %v112
  %v689 = vunpack.c.l.b16 %v113
  %v690 = vunpack.c.l.b16 %v114
  %v691 = vunpack.c.l.b16 %v115
  %v692 = vunpack.c.l.b16 %v116
  %v693 = vunpack.c.l.b16 %v117
  %v694 = vunpack.c.l.b16 %v118
  %v695 = vunpack.c.l.b16 %v119
  %v696 = vunpack.c.l.b16 %v120
  %v697 = vunpack.c.l.b16 %v121
  %v698 = vunpack.c.l.b16 %v122
  %v699 = vunpack.c.l.b16 %v123
  %v700 = vunpack.c.l.b16 %v124
  %v701 = vunpack.c.l.b16 %v125
  %v702 = vunpack.c.l.b16 %v126
  %v703 = vunpack.c.l.b16 %v127
  %v704 = vunpack.c.l.b16 %v128
  %v705 = vunpack.c.l.b16 %v129
  %v706 = vunpack.c.l.b16 %v130
  %v707 = vunpack.c.l.b16 %v131
  %v708 = vunpack.c.l.b16 %v132
  %v709 = vunpack.c.l.b16 %v133
  %v710 = vunpack.c.l.b16 %v134
  %v711 = vunpack.c.l.b16 %v135
  %v712 = vunpack.c.l.b16 %v136
  %v713 = vunpack.c.l.b16 %v137
  %v714 = vunpack.c.l.b16 %v138
  %v715 = vunpack.c.l.b16 %v139
  %v716 = vunpack.c.l.b16 %v140
  %v717 = vunpack.c.l.b16 %v141
  %v718 = vunpack.c.l.b16 %v142
  %v719 = vunpack.c.l.b16 %v143
  %v720 = vunpack.c.l.b16 %v144
  %v721 = vunpack.c.l.b16 %v145
  %v722 = vunpack.c.l.b16 %v146
  %v723 = vunpack.c.l.b16 %v147
  %v724 = vunpack.c.l.b16 %v148
  %v725 = vunpack.c.l.b16 %v149
  %v726 = vunpack.c.l.b16 %v150
  %v727 = vunpack.c.l.b16 %v151
  %v728 = vunpack.c.l.b16 %v152
  %v729 = vunpack.c.l.b16 %v153
  %v730 = vunpack.c.l.b16 %v154
  %v731 = vunpack.c.l.b16 %v155
  %v732 = vunpack.c.l.b16 %v156
  %v733 = vunpack.c.l.b16 %v157
  %v734 = vunpack.c.l.b16 %v158
  %v735 = vunpack.c.l.b16 %v159
  %v736 = vunpack.c.l.b16 %v160
  %v737 = vunpack.c.l.b16 %v161
  %v738 = vunpack.c.l.b16 %v162
  %v739 = vunpack.c.l.b16 %v163
  %v740 = vunpack.c.l.b16 %v164
  %v741 = vunpack.c.l.b16 %v165
  %v742 = vunpack.c.l.b16 %v166
  %v743 = vunpack.c.l.b16 %v167
  %v744 = vunpack.c.l.b16 %v168
  %v745 = vunpack.c.l.b16 %v169
  %v746 = vunpack.c.l.b16 %v170
  %v747 = vunpack.c.l.b16 %v171
  %v748 = vunpack.c.l.b16 %v172
  %v749 = vunpack.c.l.b16 %v173
  %v750 = vunpack.c.l.b16 %v174
  %v751 = vunpack.c.l.b16 %v175
  %v752 = vunpack.c.l.b16 %v176
  %v753 = vunpack.c.l.b16 %v177
  %v754 = vunpack.c.l.b16 %v178
  %v755 = vunpack.c.l.b16 %v179
  %v756 = vunpack.c.l.b16 %v180
  %v757 = vunpack.c.l.b16 %v181
  %v758 = vunpack.c.l.b16 %v182
  %v759 = vunpack.c.l.b16 %v183
  %v760 = vunpack.c.l.b16 %v184
  %v761 = vunpack.c.l.b16 %v185
  %v762 = vunpack.c.l.b16 %v186
  %v763 = vunpack.c.l.b16 %v187
  %v764 = vunpack.c.l.b16 %v188
  %v765 = vunpack.c.l.b16 %v189
  %v766 = vunpack.c.l.b16 %v190
  %v767 = vunpack.c.l.b16 %v191
  %v768 = vunpack.c.l.b16 %v192
  %v769 = vunpack.c.l.b16 %v193
  %v770 = vunpack.c.l.b16 %v194
  %v771 = vunpack.c.l.b16 %v195
  %v772 = vunpack.c.l.b16 %v196
  %v773 = vunpack.c.l.b16 %v197
  %v774 = vunpack.c.l.b16 %v198
  %v775 = vunpack.c.l.b16 %v199
  %v776 = vunpack.c.l.b16 %v200
  %v777 = vunpack.c.l.b16 %v201
  %v778 = vunpack.c.l.b16 %v202
  %v779 = vunpack.c.l.b16 %v203
  %v780 = vunpack.c.l.b16 %v204
  %v781 = vunpack.c.l.b16 %v205
  %v782 = vunpack.c.l.b16 %v206
  %v783 = vpack.c.b16 %v656, %v655
  %v784 = vpack.c.b16 %v658, %v657
  %v785 = vpack.c.b16 %v660, %v659
  %v786 = vpack.c.b16 %v662, %v661
  %v787 = vpack.c.b16 %v664, %v663
  %v788 = vpack.c.b16 %v666, %v665
  %v789 = vpack.c.b16 %v668, %v667
  %v790 = vpack.c.b16 %v670, %v669
  %v791 = vpack.c.b16 %v672, %v671
  %v792 = vpack.c.b16 %v674, %v673
  %v793 = vpack.c.b16 %v676, %v675
  %v794 = vpack.c.b16 %v678, %v677
  %v795 = vpack.c.b16 %v680, %v679
  %v796 = vpack.c.b16 %v682, %v681
  %v797 = vpack.c.b16 %v684, %v683
  %v798 = vpack.c.b16 %v686, %v685
  %v799 = vpack.c.b16 %v688, %v687
  %v800 = vpack.c.b16 %v690, %v689
  %v801 = vpack.c.b16 %v692, %v691
  %v802 = vpack.c.b16 %v694, %v693
  %v803 = vpack.c.b16 %v696, %v695
  %v804 = vpack.c.b16 %v698, %v697
  %v805 = vpack.c.b16 %v700, %v699
  %v806 = vpack.c.b16 %v702, %v701
  %v807 = vpack.c.b16 %v704, %v703
  %v808 = vpack.c.b16 %v706, %v705
  %v809 = vpack.c.b16 %v708, %v707
  %v810 = vpack.c.b16 %v710, %v709
  %v811 = vpack.c.b16 %v712, %v711
  %v812 = vpack.c.b16 %v714, %v713
  %v813 = vpack.c.b16 %v716, %v715
  %v814 = vpack.c.b16 %v718, %v717
  %v815 = vpack.c.b16 %v720, %v719
  %v816 = vpack.c.b16 %v722, %v721
  %v817 = vpack.c.b16 %v724, %v723
  %v818 = vpack.c.b16 %v726, %v725
  %v819 = vpack.c.b16 %v728, %v727
  %v820 = vpack.c.b16 %v730, %v729
  %v821 = vpack.c.b16 %v732, %v731
  %v822 = vpack.c.b16 %v734, %v733
  %v823 = vpack.c.b16 %v736, %v735
  %v824 = vpack.c.b16 %v738, %v737
  %v825 = vpack.c.b16 %v740, %v739
  %v826 = vpack.c.b16 %v742, %v741
  %v827 = vpack.c.b16 %v744, %v743
  %v828 = vpack.c.b16 %v746, %v745
  %v829 = vpack.c.b16 %v748, %v747
  %v830 = vpack.c.b16 %v750, %v749
  %v831 = vpack.c.b16 %v752, %v751
  %v832 = vpack.c.b16 %v754, %v753
  %v833 = vpack.c.b16 %v756, %v755
  %v834 = vpack.c.b16 %v758, %v757
  %v835 = vpack.c.b16 %v760, %v759
  %v836 = vpack.c.b16 %v762, %v761
  %v837 = vpack.c.b16 %v764, %v763
  %v838 = vpack.c.b16 %v766, %v765
  %v839 = vpack.c.b16 %v768, %v767
  %v840 = vpack.c.b16 %v770, %v769
  %v841 = vpack.c.b16 %v772, %v771
  %v842 = vpack.c.b16 %v774, %v773
  %v843 = vpack.c.b16 %v776, %v775
  %v844 = vpack.c.b16 %v778, %v777
  %v845 = vpack.c.b16 %v780, %v779
  %v846 = vpack.c.b16 %v782, %v781
  %911 = vmatprep.subr.bf16.mxu0 0
  %912 = vmatpush1.bf16.msra.mxu0 %v790
  %913 = vmatprep.subr.bf16.mxu0 0
  %914 = vmatpush1.bf16.msra.mxu0 %v789
  %915 = vmatprep.subr.bf16.mxu0 0
  %916 = vmatpush1.bf16.msra.mxu0 %v788
  %917 = vmatprep.subr.bf16.mxu0 0
  %918 = vmatpush1.bf16.msra.mxu0 %v787
  %919 = vmatprep.subr.bf16.mxu0 0
  %920 = vmatpush1.bf16.msra.mxu0 %v786
  %921 = vmatprep.subr.bf16.mxu0 0
  %922 = vmatpush1.bf16.msra.mxu0 %v785
  %923 = vmatprep.subr.bf16.mxu0 0
  %924 = vmatpush1.bf16.msra.mxu0 %v784
  %925 = vmatprep.subr.bf16.mxu0 0
  %926 = vmatpush1.bf16.msra.mxu0 %v783
  %927 = vmatprep.subr.bf16.mxu0 0
  %928 = vmatpush2.bf16.msra.mxu0 %v798
  %929 = vmatprep.subr.bf16.mxu0 0
  %930 = vmatpush2.bf16.msra.mxu0 %v797
  %931 = vmatprep.subr.bf16.mxu0 0
  %932 = vmatpush2.bf16.msra.mxu0 %v796
  %933 = vmatprep.subr.bf16.mxu0 0
  %934 = vmatpush2.bf16.msra.mxu0 %v795
  %935 = vmatprep.subr.bf16.mxu0 0
  %936 = vmatpush2.bf16.msra.mxu0 %v794
  %937 = vmatprep.subr.bf16.mxu0 0
  %938 = vmatpush2.bf16.msra.mxu0 %v793
  %939 = vmatprep.subr.bf16.mxu0 0
  %940 = vmatpush2.bf16.msra.mxu0 %v792
  %941 = vmatprep.subr.bf16.mxu0 0
  %942 = vmatpush2.bf16.msra.mxu0 %v791
  %943 = vmatprep.mubr.bf16.mxu0 %v400
  %944 = vmatmul.mubr.bf16.gmra.mxu0 %v399
  %v945 = vpop.f32.mrf.mxu0
  %v946 = vadd.f32 0.0, %v945
  %v947 = vpop.f32.mrf.mxu0
  %v948 = vpop.f32.mrf.mxu0
  %v949 = vadd.f32 0.0, %v948
  %v950 = vpop.f32.mrf.mxu0
  %951 = vmatprep.mubr.bf16.mxu0 %v408
  %952 = vmatmul.mubr.bf16.gmra.mxu0 %v407
  %v953 = vpop.f32.mrf.mxu0
  %v954 = vadd.f32 0.0, %v953
  %v955 = vpop.f32.mrf.mxu0
  %v956 = vpop.f32.mrf.mxu0
  %v957 = vadd.f32 0.0, %v956
  %v958 = vpop.f32.mrf.mxu0
  %959 = vmatprep.mubr.bf16.mxu0 %v416
  %960 = vmatmul.mubr.bf16.gmra.mxu0 %v415
  %v961 = vpop.f32.mrf.mxu0
  %v962 = vadd.f32 0.0, %v961
  %v963 = vpop.f32.mrf.mxu0
  %v964 = vpop.f32.mrf.mxu0
  %v965 = vadd.f32 0.0, %v964
  %v966 = vpop.f32.mrf.mxu0
  %967 = vmatprep.mubr.bf16.mxu0 %v424
  %968 = vmatmul.mubr.bf16.gmra.mxu0 %v423
  %v969 = vpop.f32.mrf.mxu0
  %v970 = vadd.f32 0.0, %v969
  %v971 = vpop.f32.mrf.mxu0
  %v972 = vpop.f32.mrf.mxu0
  %v973 = vadd.f32 0.0, %v972
  %v974 = vpop.f32.mrf.mxu0
  %975 = vmatprep.mubr.bf16.mxu0 %v432
  %976 = vmatmul.mubr.bf16.gmra.mxu0 %v431
  %v977 = vpop.f32.mrf.mxu0
  %v978 = vadd.f32 0.0, %v977
  %v979 = vpop.f32.mrf.mxu0
  %v980 = vpop.f32.mrf.mxu0
  %v981 = vadd.f32 0.0, %v980
  %v982 = vpop.f32.mrf.mxu0
  %983 = vmatprep.mubr.bf16.mxu0 %v440
  %984 = vmatmul.mubr.bf16.gmra.mxu0 %v439
  %v985 = vpop.f32.mrf.mxu0
  %v986 = vadd.f32 0.0, %v985
  %v987 = vpop.f32.mrf.mxu0
  %v988 = vpop.f32.mrf.mxu0
  %v989 = vadd.f32 0.0, %v988
  %v990 = vpop.f32.mrf.mxu0
  %991 = vmatprep.mubr.bf16.mxu0 %v448
  %992 = vmatmul.mubr.bf16.gmra.mxu0 %v447
  %v993 = vpop.f32.mrf.mxu0
  %v994 = vadd.f32 0.0, %v993
  %v995 = vpop.f32.mrf.mxu0
  %v996 = vpop.f32.mrf.mxu0
  %v997 = vadd.f32 0.0, %v996
  %v998 = vpop.f32.mrf.mxu0
  %999 = vmatprep.mubr.bf16.mxu0 %v456
  %1000 = vmatmul.mubr.bf16.gmra.mxu0 %v455
  %v1001 = vpop.f32.mrf.mxu0
  %v1002 = vadd.f32 0.0, %v1001
  %v1003 = vpop.f32.mrf.mxu0
  %v1004 = vpop.f32.mrf.mxu0
  %v1005 = vadd.f32 0.0, %v1004
  %v1006 = vpop.f32.mrf.mxu0
  %1007 = vdwg.mxu0
  %1008 = vmatprep.subr.bf16.mxu0 0
  %1009 = vmatpush1.bf16.msra.mxu0 %v806
  %1010 = vmatprep.subr.bf16.mxu0 0
  %1011 = vmatpush1.bf16.msra.mxu0 %v805
  %1012 = vmatprep.subr.bf16.mxu0 0
  %1013 = vmatpush1.bf16.msra.mxu0 %v804
  %1014 = vmatprep.subr.bf16.mxu0 0
  %1015 = vmatpush1.bf16.msra.mxu0 %v803
  %1016 = vmatprep.subr.bf16.mxu0 0
  %1017 = vmatpush1.bf16.msra.mxu0 %v802
  %1018 = vmatprep.subr.bf16.mxu0 0
  %1019 = vmatpush1.bf16.msra.mxu0 %v801
  %1020 = vmatprep.subr.bf16.mxu0 0
  %1021 = vmatpush1.bf16.msra.mxu0 %v800
  %1022 = vmatprep.subr.bf16.mxu0 0
  %1023 = vmatpush1.bf16.msra.mxu0 %v799
  %1024 = vmatprep.subr.bf16.mxu0 0
  %1025 = vmatpush2.bf16.msra.mxu0 %v814
  %1026 = vmatprep.subr.bf16.mxu0 0
  %1027 = vmatpush2.bf16.msra.mxu0 %v813
  %1028 = vmatprep.subr.bf16.mxu0 0
  %1029 = vmatpush2.bf16.msra.mxu0 %v812
  %1030 = vmatprep.subr.bf16.mxu0 0
  %1031 = vmatpush2.bf16.msra.mxu0 %v811
  %1032 = vmatprep.subr.bf16.mxu0 0
  %1033 = vmatpush2.bf16.msra.mxu0 %v810
  %1034 = vmatprep.subr.bf16.mxu0 0
  %1035 = vmatpush2.bf16.msra.mxu0 %v809
  %1036 = vmatprep.subr.bf16.mxu0 0
  %1037 = vmatpush2.bf16.msra.mxu0 %v808
  %1038 = vmatprep.subr.bf16.mxu0 0
  %1039 = vmatpush2.bf16.msra.mxu0 %v807
  %1040 = vmatprep.mubr.bf16.mxu0 %v402
  %1041 = vmatmul.mubr.bf16.gmra.mxu0 %v401
  %v1042 = vpop.f32.mrf.mxu0
  %v1043 = vadd.f32 %v946, %v1042
  %v1044 = vpop.f32.mrf.mxu0
  %v1045 = vpop.f32.mrf.mxu0
  %v1046 = vadd.f32 %v949, %v1045
  %v1047 = vpop.f32.mrf.mxu0
  %1048 = vmatprep.mubr.bf16.mxu0 %v410
  %1049 = vmatmul.mubr.bf16.gmra.mxu0 %v409
  %v1050 = vpop.f32.mrf.mxu0
  %v1051 = vadd.f32 %v954, %v1050
  %v1052 = vpop.f32.mrf.mxu0
  %v1053 = vpop.f32.mrf.mxu0
  %v1054 = vadd.f32 %v957, %v1053
  %v1055 = vpop.f32.mrf.mxu0
  %1056 = vmatprep.mubr.bf16.mxu0 %v418
  %1057 = vmatmul.mubr.bf16.gmra.mxu0 %v417
  %v1058 = vpop.f32.mrf.mxu0
  %v1059 = vadd.f32 %v962, %v1058
  %v1060 = vpop.f32.mrf.mxu0
  %v1061 = vpop.f32.mrf.mxu0
  %v1062 = vadd.f32 %v965, %v1061
  %v1063 = vpop.f32.mrf.mxu0
  %1064 = vmatprep.mubr.bf16.mxu0 %v426
  %1065 = vmatmul.mubr.bf16.gmra.mxu0 %v425
  %v1066 = vpop.f32.mrf.mxu0
  %v1067 = vadd.f32 %v970, %v1066
  %v1068 = vpop.f32.mrf.mxu0
  %v1069 = vpop.f32.mrf.mxu0
  %v1070 = vadd.f32 %v973, %v1069
  %v1071 = vpop.f32.mrf.mxu0
  %1072 = vmatprep.mubr.bf16.mxu0 %v434
  %1073 = vmatmul.mubr.bf16.gmra.mxu0 %v433
  %v1074 = vpop.f32.mrf.mxu0
  %v1075 = vadd.f32 %v978, %v1074
  %v1076 = vpop.f32.mrf.mxu0
  %v1077 = vpop.f32.mrf.mxu0
  %v1078 = vadd.f32 %v981, %v1077
  %v1079 = vpop.f32.mrf.mxu0
  %1080 = vmatprep.mubr.bf16.mxu0 %v442
  %1081 = vmatmul.mubr.bf16.gmra.mxu0 %v441
  %v1082 = vpop.f32.mrf.mxu0
  %v1083 = vadd.f32 %v986, %v1082
  %v1084 = vpop.f32.mrf.mxu0
  %v1085 = vpop.f32.mrf.mxu0
  %v1086 = vadd.f32 %v989, %v1085
  %v1087 = vpop.f32.mrf.mxu0
  %1088 = vmatprep.mubr.bf16.mxu0 %v450
  %1089 = vmatmul.mubr.bf16.gmra.mxu0 %v449
  %v1090 = vpop.f32.mrf.mxu0
  %v1091 = vadd.f32 %v994, %v1090
  %v1092 = vpop.f32.mrf.mxu0
  %v1093 = vpop.f32.mrf.mxu0
  %v1094 = vadd.f32 %v997, %v1093
  %v1095 = vpop.f32.mrf.mxu0
  %1096 = vmatprep.mubr.bf16.mxu0 %v458
  %1097 = vmatmul.mubr.bf16.gmra.mxu0 %v457
  %v1098 = vpop.f32.mrf.mxu0
  %v1099 = vadd.f32 %v1002, %v1098
  %v1100 = vpop.f32.mrf.mxu0
  %v1101 = vpop.f32.mrf.mxu0
  %v1102 = vadd.f32 %v1005, %v1101
  %v1103 = vpop.f32.mrf.mxu0
  %1104 = vdwg.mxu0
  %1105 = vmatprep.subr.bf16.mxu0 0
  %1106 = vmatpush1.bf16.msra.mxu0 %v822
  %1107 = vmatprep.subr.bf16.mxu0 0
  %1108 = vmatpush1.bf16.msra.mxu0 %v821
  %1109 = vmatprep.subr.bf16.mxu0 0
  %1110 = vmatpush1.bf16.msra.mxu0 %v820
  %1111 = vmatprep.subr.bf16.mxu0 0
  %1112 = vmatpush1.bf16.msra.mxu0 %v819
  %1113 = vmatprep.subr.bf16.mxu0 0
  %1114 = vmatpush1.bf16.msra.mxu0 %v818
  %1115 = vmatprep.subr.bf16.mxu0 0
  %1116 = vmatpush1.bf16.msra.mxu0 %v817
  %1117 = vmatprep.subr.bf16.mxu0 0
  %1118 = vmatpush1.bf16.msra.mxu0 %v816
  %1119 = vmatprep.subr.bf16.mxu0 0
  %1120 = vmatpush1.bf16.msra.mxu0 %v815
  %1121 = vmatprep.subr.bf16.mxu0 0
  %1122 = vmatpush2.bf16.msra.mxu0 %v830
  %1123 = vmatprep.subr.bf16.mxu0 0
  %1124 = vmatpush2.bf16.msra.mxu0 %v829
  %1125 = vmatprep.subr.bf16.mxu0 0
  %1126 = vmatpush2.bf16.msra.mxu0 %v828
  %1127 = vmatprep.subr.bf16.mxu0 0
  %1128 = vmatpush2.bf16.msra.mxu0 %v827
  %1129 = vmatprep.subr.bf16.mxu0 0
  %1130 = vmatpush2.bf16.msra.mxu0 %v826
  %1131 = vmatprep.subr.bf16.mxu0 0
  %1132 = vmatpush2.bf16.msra.mxu0 %v825
  %1133 = vmatprep.subr.bf16.mxu0 0
  %1134 = vmatpush2.bf16.msra.mxu0 %v824
  %1135 = vmatprep.subr.bf16.mxu0 0
  %1136 = vmatpush2.bf16.msra.mxu0 %v823
  %1137 = vmatprep.mubr.bf16.mxu0 %v404
  %1138 = vmatmul.mubr.bf16.gmra.mxu0 %v403
  %v1139 = vpop.f32.mrf.mxu0
  %v1140 = vadd.f32 %v1043, %v1139
  %v1141 = vpop.f32.mrf.mxu0
  %v1142 = vpop.f32.mrf.mxu0
  %v1143 = vadd.f32 %v1046, %v1142
  %v1144 = vpop.f32.mrf.mxu0
  %1145 = vmatprep.mubr.bf16.mxu0 %v412
  %1146 = vmatmul.mubr.bf16.gmra.mxu0 %v411
  %v1147 = vpop.f32.mrf.mxu0
  %v1148 = vadd.f32 %v1051, %v1147
  %v1149 = vpop.f32.mrf.mxu0
  %v1150 = vpop.f32.mrf.mxu0
  %v1151 = vadd.f32 %v1054, %v1150
  %v1152 = vpop.f32.mrf.mxu0
  %1153 = vmatprep.mubr.bf16.mxu0 %v420
  %1154 = vmatmul.mubr.bf16.gmra.mxu0 %v419
  %v1155 = vpop.f32.mrf.mxu0
  %v1156 = vadd.f32 %v1059, %v1155
  %v1157 = vpop.f32.mrf.mxu0
  %v1158 = vpop.f32.mrf.mxu0
  %v1159 = vadd.f32 %v1062, %v1158
  %v1160 = vpop.f32.mrf.mxu0
  %1161 = vmatprep.mubr.bf16.mxu0 %v428
  %1162 = vmatmul.mubr.bf16.gmra.mxu0 %v427
  %v1163 = vpop.f32.mrf.mxu0
  %v1164 = vadd.f32 %v1067, %v1163
  %v1165 = vpop.f32.mrf.mxu0
  %v1166 = vpop.f32.mrf.mxu0
  %v1167 = vadd.f32 %v1070, %v1166
  %v1168 = vpop.f32.mrf.mxu0
  %1169 = vmatprep.mubr.bf16.mxu0 %v436
  %1170 = vmatmul.mubr.bf16.gmra.mxu0 %v435
  %v1171 = vpop.f32.mrf.mxu0
  %v1172 = vadd.f32 %v1075, %v1171
  %v1173 = vpop.f32.mrf.mxu0
  %v1174 = vpop.f32.mrf.mxu0
  %v1175 = vadd.f32 %v1078, %v1174
  %v1176 = vpop.f32.mrf.mxu0
  %1177 = vmatprep.mubr.bf16.mxu0 %v444
  %1178 = vmatmul.mubr.bf16.gmra.mxu0 %v443
  %v1179 = vpop.f32.mrf.mxu0
  %v1180 = vadd.f32 %v1083, %v1179
  %v1181 = vpop.f32.mrf.mxu0
  %v1182 = vpop.f32.mrf.mxu0
  %v1183 = vadd.f32 %v1086, %v1182
  %v1184 = vpop.f32.mrf.mxu0
  %1185 = vmatprep.mubr.bf16.mxu0 %v452
  %1186 = vmatmul.mubr.bf16.gmra.mxu0 %v451
  %v1187 = vpop.f32.mrf.mxu0
  %v1188 = vadd.f32 %v1091, %v1187
  %v1189 = vpop.f32.mrf.mxu0
  %v1190 = vpop.f32.mrf.mxu0
  %v1191 = vadd.f32 %v1094, %v1190
  %v1192 = vpop.f32.mrf.mxu0
  %1193 = vmatprep.mubr.bf16.mxu0 %v460
  %1194 = vmatmul.mubr.bf16.gmra.mxu0 %v459
  %v1195 = vpop.f32.mrf.mxu0
  %v1196 = vadd.f32 %v1099, %v1195
  %v1197 = vpop.f32.mrf.mxu0
  %v1198 = vpop.f32.mrf.mxu0
  %v1199 = vadd.f32 %v1102, %v1198
  %v1200 = vpop.f32.mrf.mxu0
  %1201 = vdwg.mxu0
  %1202 = vmatprep.subr.bf16.mxu0 0
  %1203 = vmatpush1.bf16.msra.mxu0 %v838
  %1204 = vmatprep.subr.bf16.mxu0 0
  %1205 = vmatpush1.bf16.msra.mxu0 %v837
  %1206 = vmatprep.subr.bf16.mxu0 0
  %1207 = vmatpush1.bf16.msra.mxu0 %v836
  %1208 = vmatprep.subr.bf16.mxu0 0
  %1209 = vmatpush1.bf16.msra.mxu0 %v835
  %1210 = vmatprep.subr.bf16.mxu0 0
  %1211 = vmatpush1.bf16.msra.mxu0 %v834
  %1212 = vmatprep.subr.bf16.mxu0 0
  %1213 = vmatpush1.bf16.msra.mxu0 %v833
  %1214 = vmatprep.subr.bf16.mxu0 0
  %1215 = vmatpush1.bf16.msra.mxu0 %v832
  %1216 = vmatprep.subr.bf16.mxu0 0
  %1217 = vmatpush1.bf16.msra.mxu0 %v831
  %1218 = vmatprep.subr.bf16.mxu0 0
  %1219 = vmatpush2.bf16.msra.mxu0 %v846
  %1220 = vmatprep.subr.bf16.mxu0 0
  %1221 = vmatpush2.bf16.msra.mxu0 %v845
  %1222 = vmatprep.subr.bf16.mxu0 0
  %1223 = vmatpush2.bf16.msra.mxu0 %v844
  %1224 = vmatprep.subr.bf16.mxu0 0
  %1225 = vmatpush2.bf16.msra.mxu0 %v843
  %1226 = vmatprep.subr.bf16.mxu0 0
  %1227 = vmatpush2.bf16.msra.mxu0 %v842
  %1228 = vmatprep.subr.bf16.mxu0 0
  %1229 = vmatpush2.bf16.msra.mxu0 %v841
  %1230 = vmatprep.subr.bf16.mxu0 0
  %1231 = vmatpush2.bf16.msra.mxu0 %v840
  %1232 = vmatprep.subr.bf16.mxu0 0
  %1233 = vmatpush2.bf16.msra.mxu0 %v839
  %1234 = vmatprep.mubr.bf16.mxu0 %v406
  %1235 = vmatmul.mubr.bf16.gmra.mxu0 %v405
  %v1236 = vpop.f32.mrf.mxu0
  %v1237 = vadd.f32 %v1140, %v1236
  %v1238 = vpop.f32.mrf.mxu0
  %v1239 = vpop.f32.mrf.mxu0
  %v1240 = vadd.f32 %v1143, %v1239
  %v1241 = vpop.f32.mrf.mxu0
  %1242 = vmatprep.mubr.bf16.mxu0 %v414
  %1243 = vmatmul.mubr.bf16.gmra.mxu0 %v413
  %v1244 = vpop.f32.mrf.mxu0
  %v1245 = vadd.f32 %v1148, %v1244
  %v1246 = vpop.f32.mrf.mxu0
  %v1247 = vpop.f32.mrf.mxu0
  %v1248 = vadd.f32 %v1151, %v1247
  %v1249 = vpop.f32.mrf.mxu0
  %1250 = vmatprep.mubr.bf16.mxu0 %v422
  %1251 = vmatmul.mubr.bf16.gmra.mxu0 %v421
  %v1252 = vpop.f32.mrf.mxu0
  %v1253 = vadd.f32 %v1156, %v1252
  %v1254 = vpop.f32.mrf.mxu0
  %v1255 = vpop.f32.mrf.mxu0
  %v1256 = vadd.f32 %v1159, %v1255
  %v1257 = vpop.f32.mrf.mxu0
  %1258 = vmatprep.mubr.bf16.mxu0 %v430
  %1259 = vmatmul.mubr.bf16.gmra.mxu0 %v429
  %v1260 = vpop.f32.mrf.mxu0
  %v1261 = vadd.f32 %v1164, %v1260
  %v1262 = vpop.f32.mrf.mxu0
  %v1263 = vpop.f32.mrf.mxu0
  %v1264 = vadd.f32 %v1167, %v1263
  %v1265 = vpop.f32.mrf.mxu0
  %1266 = vmatprep.mubr.bf16.mxu0 %v438
  %1267 = vmatmul.mubr.bf16.gmra.mxu0 %v437
  %v1268 = vpop.f32.mrf.mxu0
  %v1269 = vadd.f32 %v1172, %v1268
  %v1270 = vpop.f32.mrf.mxu0
  %v1271 = vpop.f32.mrf.mxu0
  %v1272 = vadd.f32 %v1175, %v1271
  %v1273 = vpop.f32.mrf.mxu0
  %1274 = vmatprep.mubr.bf16.mxu0 %v446
  %1275 = vmatmul.mubr.bf16.gmra.mxu0 %v445
  %v1276 = vpop.f32.mrf.mxu0
  %v1277 = vadd.f32 %v1180, %v1276
  %v1278 = vpop.f32.mrf.mxu0
  %v1279 = vpop.f32.mrf.mxu0
  %v1280 = vadd.f32 %v1183, %v1279
  %v1281 = vpop.f32.mrf.mxu0
  %1282 = vmatprep.mubr.bf16.mxu0 %v454
  %1283 = vmatmul.mubr.bf16.gmra.mxu0 %v453
  %v1284 = vpop.f32.mrf.mxu0
  %v1285 = vadd.f32 %v1188, %v1284
  %v1286 = vpop.f32.mrf.mxu0
  %v1287 = vpop.f32.mrf.mxu0
  %v1288 = vadd.f32 %v1191, %v1287
  %v1289 = vpop.f32.mrf.mxu0
  %1290 = vmatprep.mubr.bf16.mxu0 %v462
  %1291 = vmatmul.mubr.bf16.gmra.mxu0 %v461
  %v1292 = vpop.f32.mrf.mxu0
  %v1293 = vadd.f32 %v1196, %v1292
  %v1294 = vpop.f32.mrf.mxu0
  %v1295 = vpop.f32.mrf.mxu0
  %v1296 = vadd.f32 %v1199, %v1295
  %v1297 = vpop.f32.mrf.mxu0
  %1298 = vdwg.mxu0
  %1299 = vst [vmem:[%s2] sm:$0xff] %v1237
  %1300 = vst [vmem:[%s2 + $0x8] sm:$0xff] %v1240
  %1301 = vst [vmem:[%s2 + $0x10] sm:$0xff] %v1245
  %1302 = vst [vmem:[%s2 + $0x18] sm:$0xff] %v1248
  %1303 = vst [vmem:[%s2 + $0x20] sm:$0xff] %v1253
  %1304 = vst [vmem:[%s2 + $0x28] sm:$0xff] %v1256
  %1305 = vst [vmem:[%s2 + $0x30] sm:$0xff] %v1261
  %1306 = vst [vmem:[%s2 + $0x38] sm:$0xff] %v1264
  %1307 = vst [vmem:[%s2 + $0x40] sm:$0xff] %v1269
  %1308 = vst [vmem:[%s2 + $0x48] sm:$0xff] %v1272
  %1309 = vst [vmem:[%s2 + $0x50] sm:$0xff] %v1277
  %1310 = vst [vmem:[%s2 + $0x58] sm:$0xff] %v1280
  %1311 = vst [vmem:[%s2 + $0x60] sm:$0xff] %v1285
  %1312 = vst [vmem:[%s2 + $0x68] sm:$0xff] %v1288
  %1313 = vst [vmem:[%s2 + $0x70] sm:$0xff] %v1293
  %1314 = vst [vmem:[%s2 + $0x78] sm:$0xff] %v1296
  %v1315 = vadd.f32 %v1237, %v1240
  %v1316 = vadd.f32 %v1315, %v1245
  %v1317 = vadd.f32 %v1316, %v1248
  %v1318 = vadd.f32 %v1317, %v1253
  %v1319 = vadd.f32 %v1318, %v1256
  %v1320 = vadd.f32 %v1319, %v1261
  %v1321 = vadd.f32 %v1320, %v1264
  %v1322 = vadd.f32 %v1321, %v1269
  %v1323 = vadd.f32 %v1322, %v1272
  %v1324 = vadd.f32 %v1323, %v1277
  %v1325 = vadd.f32 %v1324, %v1280
  %v1326 = vadd.f32 %v1325, %v1285
  %v1327 = vadd.f32 %v1326, %v1288
  %v1328 = vadd.f32 %v1327, %v1293
  %v1329 = vadd.f32 %v1328, %v1296
  %v1330 = vrot.slane %v1329, 4
  %v1331 = vadd.f32 %v1329, %v1330
  %v1332 = vrot.slane %v1331, 2
  %v1333 = vadd.f32 %v1331, %v1332
  %v1334 = vrot.slane %v1333, 1
  %v1335 = vadd.f32 %v1333, %v1334
  %1336 = vst [vmem:[%s3] sm:$0x1] %v1335
  %v1337 = vmul.f32 %v1237, %v1237
  %v1338 = vmul.f32 %v1240, %v1240
  %v1339 = vmul.f32 %v1245, %v1245
  %v1340 = vmul.f32 %v1248, %v1248
  %v1341 = vmul.f32 %v1253, %v1253
  %v1342 = vmul.f32 %v1256, %v1256
  %v1343 = vmul.f32 %v1261, %v1261
  %v1344 = vmul.f32 %v1264, %v1264
  %v1345 = vmul.f32 %v1269, %v1269
  %v1346 = vmul.f32 %v1272, %v1272
  %v1347 = vmul.f32 %v1277, %v1277
  %v1348 = vmul.f32 %v1280, %v1280
  %v1349 = vmul.f32 %v1285, %v1285
  %v1350 = vmul.f32 %v1288, %v1288
  %v1351 = vmul.f32 %v1293, %v1293
  %v1352 = vmul.f32 %v1296, %v1296
  %v1353 = vadd.f32 %v1337, %v1338
  %v1354 = vadd.f32 %v1353, %v1339
  %v1355 = vadd.f32 %v1354, %v1340
  %v1356 = vadd.f32 %v1355, %v1341
  %v1357 = vadd.f32 %v1356, %v1342
  %v1358 = vadd.f32 %v1357, %v1343
  %v1359 = vadd.f32 %v1358, %v1344
  %v1360 = vadd.f32 %v1359, %v1345
  %v1361 = vadd.f32 %v1360, %v1346
  %v1362 = vadd.f32 %v1361, %v1347
  %v1363 = vadd.f32 %v1362, %v1348
  %v1364 = vadd.f32 %v1363, %v1349
  %v1365 = vadd.f32 %v1364, %v1350
  %v1366 = vadd.f32 %v1365, %v1351
  %v1367 = vadd.f32 %v1366, %v1352
  %v1368 = vrot.slane %v1367, 4
  %v1369 = vadd.f32 %v1367, %v1368
  %v1370 = vrot.slane %v1369, 2
  %v1371 = vadd.f32 %v1369, %v1370
  %v1372 = vrot.slane %v1371, 1
  %v1373 = vadd.f32 %v1371, %v1372
  %1374 = vst [vmem:[%s4] sm:$0x1] %v1373
  // Predicated region
  $region10: #{discriminator_forward.12} parent=0 // pred_check
    _
  $region11: #{discriminator_forward.12} parent=0 // pred_check_branch
    %1376 = sbr.rel (0) target = $region13
  $region12: #{discriminator_forward.12} parent=0 // pred_region
    _
  $region13: #{discriminator_forward.12} parent=0 // pred_fallthru
    _
  // Predicated region
  $region14: #{discriminator_forward.12} parent=0 // pred_check
    _
  $region15: #{discriminator_forward.12} parent=0 // pred_check_branch
    %1378 = sbr.rel (0) target = $region17
  $region16: #{discriminator_forward.12} parent=0 // pred_region
    _
  $region17: #{discriminator_forward.12} parent=0 // pred_fallthru
    _
  // Predicated region
  $region18: #{discriminator_forward.12} parent=0 // pred_check
    _
  $region19: #{discriminator_forward.12} parent=0 // pred_check_branch
    %1380 = sbr.rel (0) target = $region21
  $region20: #{discriminator_forward.12} parent=0 // pred_region
    _
  $region21: #{discriminator_forward.12} parent=0 // pred_fallthru
    _
  // Predicated region
  $region22: #{discriminator_forward.12} parent=0 // pred_check
    _
  $region23: #{discriminator_forward.12} parent=0 // pred_check_branch
    %1382 = sbr.rel (0) target = $region25
  $region24: #{discriminator_forward.12} parent=0 // pred_region
    _
  $region25: #{discriminator_forward.12} parent=0 // pred_fallthru
    _
  // Predicated region
  $region26: #{discriminator_forward.12} parent=0 // pred_check
    _
  $region27: #{discriminator_forward.12} parent=0 // pred_check_branch
    %1384 = sbr.rel (0) target = $region29
  $region28: #{discriminator_forward.12} parent=0 // pred_region
    _
  $region29: #{discriminator_forward.12} parent=0 // pred_fallthru
    _
  // Predicated region
  $region30: #{discriminator_forward.12} parent=0 // pred_check
    _
  $region31: #{discriminator_forward.12} parent=0 // pred_check_branch
    %1386 = sbr.rel (0) target = $region33
  $region32: #{discriminator_forward.12} parent=0 // pred_region
    _
  $region33: #{discriminator_forward.12} parent=0 // pred_fallthru
    _

// kernel: discriminator_forward.15
$region0: #{discriminator_forward.15}
  #allocation0 [shape = 'u32[]', space=smem, size = 0x4, offset = 0x4, fixed_abs, tag = 'smem constant byte address 0x4 - core index']
  #allocation1 [shape = 'u32[144,128]{1,0:T(1,128)}', space=vmem, size = 0x12000, scoped, tag = 'internal scratch']
  #allocation2 [shape = 'f32[1,1]{1,0:T(1,128)S(1)}', space=vmem, size = 0x200, scoped, tag = 'scoped memory for discriminator_forward.15']
  %s0 = inlined_call_operand.vmem [shape: f32[2,16,256], index: 0, kind: input, shape index: {}]
  %s1 = inlined_call_operand.vmem [shape: f32[1,1,256], index: 1, kind: input, shape index: {}]
  %s2 = inlined_call_operand.vmem [shape: f32[1,1,256], index: 2, kind: input, shape index: {}]
  %s3 = inlined_call_operand.vmem [shape: f32[16,256], index: 3, kind: input, shape index: {}]
  %s4 = inlined_call_operand.<no memory space> [shape: f32[1,1], index: 4, kind: input, shape index: {}]
  %s5 = inlined_call_operand.vmem [shape: f32[2,1], index: 5, kind: output, shape index: {}]
  %s6 = sld [smem:[#allocation0]]
  $region30: #{discriminator_forward.15} parent=0
    _
  %s8 = ssub.s32 1, %s6
  %s9 = scalar_select 0, %s8, %s6
  %v10 = vstv %s4
  %11 = vst [vmem:[#allocation2] sm:$0x1] %v10
  // Predicated region
  $region2: #{discriminator_forward.15} parent=0 // pred_check
    _
  $region3: #{discriminator_forward.15} parent=0 // pred_check_branch
    %13 = sbr.rel (0) target = $region5
  $region4: #{discriminator_forward.15} parent=0 // pred_region
    _
  $region5: #{discriminator_forward.15} parent=0 // pred_fallthru
    _
  // Predicated region
  $region6: #{discriminator_forward.15} parent=0 // pred_check
    _
  $region7: #{discriminator_forward.15} parent=0 // pred_check_branch
    %15 = sbr.rel (0) target = $region9
  $region8: #{discriminator_forward.15} parent=0 // pred_region
    _
  $region9: #{discriminator_forward.15} parent=0 // pred_fallthru
    _
  // Predicated region
  $region10: #{discriminator_forward.15} parent=0 // pred_check
    _
  $region11: #{discriminator_forward.15} parent=0 // pred_check_branch
    %17 = sbr.rel (0) target = $region13
  $region12: #{discriminator_forward.15} parent=0 // pred_region
    _
  $region13: #{discriminator_forward.15} parent=0 // pred_fallthru
    _
  // Predicated region
  $region14: #{discriminator_forward.15} parent=0 // pred_check
    _
  $region15: #{discriminator_forward.15} parent=0 // pred_check_branch
    %19 = sbr.rel (0) target = $region17
  $region16: #{discriminator_forward.15} parent=0 // pred_region
    _
  $region17: #{discriminator_forward.15} parent=0 // pred_fallthru
    _
  // Predicated region
  $region18: #{discriminator_forward.15} parent=0 // pred_check
    _
  $region19: #{discriminator_forward.15} parent=0 // pred_check_branch
    %21 = sbr.rel (0) target = $region21
  $region20: #{discriminator_forward.15} parent=0 // pred_region
    _
  $region21: #{discriminator_forward.15} parent=0 // pred_fallthru
    _
  %v22 = vld [vmem:[%s0] sm:$0xff]
  %v23 = vld [vmem:[%s0 + $0x8] sm:$0xff]
  %v24 = vld [vmem:[%s0 + $0x10] sm:$0xff]
  %v25 = vld [vmem:[%s0 + $0x18] sm:$0xff]
  %v26 = vld [vmem:[%s0 + $0x20] sm:$0xff]
  %v27 = vld [vmem:[%s0 + $0x28] sm:$0xff]
  %v28 = vld [vmem:[%s0 + $0x30] sm:$0xff]
  %v29 = vld [vmem:[%s0 + $0x38] sm:$0xff]
  %v30 = vld [vmem:[%s1] sm:$0x3]
  %v32 = vlaneseq
  %v33 = vshrl.u32 %v32, 7
  %v34 = vsub.s32 0, %v33
  %v35 = vrot.slane %v30, %v34
  %v36 = vlaneseq
  %v37 = vshrl.u32 %v36, 7
  %v38 = vsub.s32 1, %v37
  %v39 = vrot.slane %v30, %v38
  %v42 = vmul.f32 %v22, %v35
  %v43 = vmul.f32 %v23, %v39
  %v44 = vmul.f32 %v24, %v35
  %v45 = vmul.f32 %v25, %v39
  %v46 = vmul.f32 %v26, %v35
  %v47 = vmul.f32 %v27, %v39
  %v48 = vmul.f32 %v28, %v35
  %v49 = vmul.f32 %v29, %v39
  %v50 = vld [vmem:[%s2] sm:$0x3]
  %v52 = vlaneseq
  %v53 = vshrl.u32 %v52, 7
  %v54 = vsub.s32 0, %v53
  %v55 = vrot.slane %v50, %v54
  %v56 = vlaneseq
  %v57 = vshrl.u32 %v56, 7
  %v58 = vsub.s32 1, %v57
  %v59 = vrot.slane %v50, %v58
  %v62 = vadd.f32 %v42, %v55
  %v63 = vadd.f32 %v43, %v59
  %v64 = vadd.f32 %v44, %v55
  %v65 = vadd.f32 %v45, %v59
  %v66 = vadd.f32 %v46, %v55
  %v67 = vadd.f32 %v47, %v59
  %v68 = vadd.f32 %v48, %v55
  %v69 = vadd.f32 %v49, %v59
  %vm70 = vcmp.gt.f32.partialorder %v62, 0.0
  %vm71 = vcmp.gt.f32.partialorder %v63, 0.0
  %vm72 = vcmp.gt.f32.partialorder %v64, 0.0
  %vm73 = vcmp.gt.f32.partialorder %v65, 0.0
  %vm74 = vcmp.gt.f32.partialorder %v66, 0.0
  %vm75 = vcmp.gt.f32.partialorder %v67, 0.0
  %vm76 = vcmp.gt.f32.partialorder %v68, 0.0
  %vm77 = vcmp.gt.f32.partialorder %v69, 0.0
  %v78 = vmul.f32 %v62, 1.442695
  %v79 = vpow.pop %v78
  %v80 = vmul.f32 %v63, 1.442695
  %v81 = vpow.pop %v80
  %v82 = vmul.f32 %v64, 1.442695
  %v83 = vpow.pop %v82
  %v84 = vmul.f32 %v65, 1.442695
  %v85 = vpow.pop %v84
  %v86 = vmul.f32 %v66, 1.442695
  %v87 = vpow.pop %v86
  %v88 = vmul.f32 %v67, 1.442695
  %v89 = vpow.pop %v88
  %v90 = vmul.f32 %v68, 1.442695
  %v91 = vpow.pop %v90
  %v92 = vmul.f32 %v69, 1.442695
  %v93 = vpow.pop %v92
  %v94 = vsub.f32 %v79, 1.0
  %v95 = vsub.f32 %v81, 1.0
  %v96 = vsub.f32 %v83, 1.0
  %v97 = vsub.f32 %v85, 1.0
  %v98 = vsub.f32 %v87, 1.0
  %v99 = vsub.f32 %v89, 1.0
  %v100 = vsub.f32 %v91, 1.0
  %v101 = vsub.f32 %v93, 1.0
  %v102 = vmul.f32 %v94, 1.6732632
  %v103 = vmul.f32 %v95, 1.6732632
  %v104 = vmul.f32 %v96, 1.6732632
  %v105 = vmul.f32 %v97, 1.6732632
  %v106 = vmul.f32 %v98, 1.6732632
  %v107 = vmul.f32 %v99, 1.6732632
  %v108 = vmul.f32 %v100, 1.6732632
  %v109 = vmul.f32 %v101, 1.6732632
  %v110 = vsel %vm70, %v62, %v102
  %v111 = vsel %vm71, %v63, %v103
  %v112 = vsel %vm72, %v64, %v104
  %v113 = vsel %vm73, %v65, %v105
  %v114 = vsel %vm74, %v66, %v106
  %v115 = vsel %vm75, %v67, %v107
  %v116 = vsel %vm76, %v68, %v108
  %v117 = vsel %vm77, %v69, %v109
  %v118 = vmul.f32 %v110, 1.050701
  %v119 = vmul.f32 %v111, 1.050701
  %v120 = vmul.f32 %v112, 1.050701
  %v121 = vmul.f32 %v113, 1.050701
  %v122 = vmul.f32 %v114, 1.050701
  %v123 = vmul.f32 %v115, 1.050701
  %v124 = vmul.f32 %v116, 1.050701
  %v125 = vmul.f32 %v117, 1.050701
  %v126 = vld [vmem:[%s3] sm:$0xff]
  %v127 = vld [vmem:[%s3 + $0x8] sm:$0xff]
  %v128 = vld [vmem:[%s3 + $0x10] sm:$0xff]
  %v129 = vld [vmem:[%s3 + $0x18] sm:$0xff]
  %v130 = vmul.f32 %v118, %v126
  %v131 = vmul.f32 %v119, %v127
  %v132 = vmul.f32 %v120, %v128
  %v133 = vmul.f32 %v121, %v129
  %v134 = vmul.f32 %v122, %v126
  %v135 = vmul.f32 %v123, %v127
  %v136 = vmul.f32 %v124, %v128
  %v137 = vmul.f32 %v125, %v129
  %v138 = vadd.f32 %v130, %v131
  %139 = vadd.xlane.f32.xlu0 %v138
  %v140 = vpop.xlane.xlu0 %139
  %v141 = vadd.f32 %v132, %v133
  %142 = vadd.xlane.f32.xlu0 %v141
  %v143 = vpop.xlane.xlu0 %142
  %v144 = vadd.f32 %v134, %v135
  %145 = vadd.xlane.f32.xlu0 %v144
  %v146 = vpop.xlane.xlu0 %145
  %v147 = vadd.f32 %v136, %v137
  %148 = vadd.xlane.f32.xlu0 %v147
  %v149 = vpop.xlane.xlu0 %148
  %v154 = vlaneseq
  %v155 = vand.u32 %v154, 127
  %v156 = vlaneseq
  %v157 = vshrl.u32 %v156, 7
  %v158 = vsub.s32 %v155, %v157
  %v159 = vrot.slane %v140, %v158
  %v160 = vadd.s32 %v155, 4294967288
  %v161 = vlaneseq
  %v162 = vshrl.u32 %v161, 7
  %v163 = vsub.s32 %v160, %v162
  %v164 = vrot.slane %v143, %v163
  %vm165 = vcmask 130112
  %v166 = vsel %vm165, %v164, %v159
  %v167 = vlaneseq
  %v168 = vshrl.u32 %v167, 7
  %v169 = vsub.s32 %v155, %v168
  %v170 = vrot.slane %v146, %v169
  %v171 = vlaneseq
  %v172 = vshrl.u32 %v171, 7
  %v173 = vsub.s32 %v160, %v172
  %v174 = vrot.slane %v149, %v173
  %v175 = vsel %vm165, %v174, %v170
  %vm176 = vcmask 1041409
  %v177 = vsel %vm176, %v175, %v166
  %vm179 = vcmask 123904
  %v180 = vsel %vm179, %v177, 0.0
  %181 = vadd.xlane.f32.xlu0 %v180
  %v182 = vpop.xlane.xlu0 %181
  %v183 = vld [vmem:[#allocation2] sm:$0x1]
  %v185 = vlaneseq
  %v186 = vshrl.u32 %v185, 7
  %v187 = vsub.s32 0, %v186
  %v188 = vrot.slane %v183, %v187
  %v190 = vadd.f32 %v182, %v188
  %v191 = vxor.u32 %v190, 2147483648
  %v192 = vmul.f32 %v191, 1.442695
  %v193 = vpow.pop %v192
  %v194 = vadd.f32 %v193, 1.0
  %v195 = vrcp.pop %v194
  %v196 = vmul.f32 1.0, %v195
  %vm197 = vcmask 1024
  %198 = vst.msk [vmem:[%s5] sm:$0x3] %vm197, %v196
  // Predicated region
  $region22: #{discriminator_forward.15} parent=0 // pred_check
    _
  $region23: #{discriminator_forward.15} parent=0 // pred_check_branch
    %200 = sbr.rel (0) target = $region25
  $region24: #{discriminator_forward.15} parent=0 // pred_region
    _
  $region25: #{discriminator_forward.15} parent=0 // pred_fallthru
    _
  // Predicated region
  $region26: #{discriminator_forward.15} parent=0 // pred_check
    _
  $region27: #{discriminator_forward.15} parent=0 // pred_check_branch
    %202 = sbr.rel (0) target = $region29
  $region28: #{discriminator_forward.15} parent=0 // pred_region
    _
  $region29: #{discriminator_forward.15} parent=0 // pred_fallthru
    _

// kernel: discriminator_forward.14
$region0: #{discriminator_forward.14}
  #allocation0 [shape = 'u32[]', space=smem, size = 0x4, offset = 0x4, fixed_abs, tag = 'smem constant byte address 0x4 - core index']
  #allocation1 [shape = 'u32[144,128]{1,0:T(1,128)}', space=vmem, size = 0x12000, scoped, tag = 'internal scratch']
  %s0 = inlined_call_operand.vmem [shape: bf16[32,2048], index: 0, kind: input, shape index: {}]
  %s1 = inlined_call_operand.vmem [shape: bf16[2048,256], index: 1, kind: input, shape index: {}]
  %s2 = inlined_call_operand.vmem [shape: f32[32,256], index: 2, kind: output, shape index: {0}]
  %s3 = inlined_call_operand.vmem [shape: f32[1,1,256], index: 3, kind: output, shape index: {1}]
  %s4 = inlined_call_operand.vmem [shape: f32[1,1,256], index: 4, kind: output, shape index: {2}]
  %5 = xla_tuple %s2, %s3, %s4
  %s6 = sld [smem:[#allocation0]]
  $region34: #{discriminator_forward.14} parent=0
    _
  %s8 = ssub.s32 1, %s6
  %s9 = scalar_select 0, %s8, %s6
  // Predicated region
  $region2: #{discriminator_forward.14} parent=0 // pred_check
    _
  $region3: #{discriminator_forward.14} parent=0 // pred_check_branch
    %11 = sbr.rel (0) target = $region5
  $region4: #{discriminator_forward.14} parent=0 // pred_region
    _
  $region5: #{discriminator_forward.14} parent=0 // pred_fallthru
    _
  // Predicated region
  $region6: #{discriminator_forward.14} parent=0 // pred_check
    _
  $region7: #{discriminator_forward.14} parent=0 // pred_check_branch
    %13 = sbr.rel (0) target = $region9
  $region8: #{discriminator_forward.14} parent=0 // pred_region
    _
  $region9: #{discriminator_forward.14} parent=0 // pred_fallthru
    _
  %v14 = vld [vmem:[%s0] sm:$0xff]
  %v15 = vld [vmem:[%s0 + $0x8] sm:$0xff]
  %v16 = vld [vmem:[%s0 + $0x10] sm:$0xff]
  %v17 = vld [vmem:[%s0 + $0x18] sm:$0xff]
  %v18 = vld [vmem:[%s0 + $0x20] sm:$0xff]
  %v19 = vld [vmem:[%s0 + $0x28] sm:$0xff]
  %v20 = vld [vmem:[%s0 + $0x30] sm:$0xff]
  %v21 = vld [vmem:[%s0 + $0x38] sm:$0xff]
  %v22 = vld [vmem:[%s0 + $0x40] sm:$0xff]
  %v23 = vld [vmem:[%s0 + $0x48] sm:$0xff]
  %v24 = vld [vmem:[%s0 + $0x50] sm:$0xff]
  %v25 = vld [vmem:[%s0 + $0x58] sm:$0xff]
  %v26 = vld [vmem:[%s0 + $0x60] sm:$0xff]
  %v27 = vld [vmem:[%s0 + $0x68] sm:$0xff]
  %v28 = vld [vmem:[%s0 + $0x70] sm:$0xff]
  %v29 = vld [vmem:[%s0 + $0x78] sm:$0xff]
  %v30 = vld [vmem:[%s0 + $0x80] sm:$0xff]
  %v31 = vld [vmem:[%s0 + $0x88] sm:$0xff]
  %v32 = vld [vmem:[%s0 + $0x90] sm:$0xff]
  %v33 = vld [vmem:[%s0 + $0x98] sm:$0xff]
  %v34 = vld [vmem:[%s0 + $0xa0] sm:$0xff]
  %v35 = vld [vmem:[%s0 + $0xa8] sm:$0xff]
  %v36 = vld [vmem:[%s0 + $0xb0] sm:$0xff]
  %v37 = vld [vmem:[%s0 + $0xb8] sm:$0xff]
  %v38 = vld [vmem:[%s0 + $0xc0] sm:$0xff]
  %v39 = vld [vmem:[%s0 + $0xc8] sm:$0xff]
  %v40 = vld [vmem:[%s0 + $0xd0] sm:$0xff]
  %v41 = vld [vmem:[%s0 + $0xd8] sm:$0xff]
  %v42 = vld [vmem:[%s0 + $0xe0] sm:$0xff]
  %v43 = vld [vmem:[%s0 + $0xe8] sm:$0xff]
  %v44 = vld [vmem:[%s0 + $0xf0] sm:$0xff]
  %v45 = vld [vmem:[%s0 + $0xf8] sm:$0xff]
  %v46 = vld [vmem:[%s1] sm:$0xff]
  %v47 = vld [vmem:[%s1 + $0x8] sm:$0xff]
  %v48 = vld [vmem:[%s1 + $0x10] sm:$0xff]
  %v49 = vld [vmem:[%s1 + $0x18] sm:$0xff]
  %v50 = vld [vmem:[%s1 + $0x20] sm:$0xff]
  %v51 = vld [vmem:[%s1 + $0x28] sm:$0xff]
  %v52 = vld [vmem:[%s1 + $0x30] sm:$0xff]
  %v53 = vld [vmem:[%s1 + $0x38] sm:$0xff]
  %v54 = vld [vmem:[%s1 + $0x40] sm:$0xff]
  %v55 = vld [vmem:[%s1 + $0x48] sm:$0xff]
  %v56 = vld [vmem:[%s1 + $0x50] sm:$0xff]
  %v57 = vld [vmem:[%s1 + $0x58] sm:$0xff]
  %v58 = vld [vmem:[%s1 + $0x60] sm:$0xff]
  %v59 = vld [vmem:[%s1 + $0x68] sm:$0xff]
  %v60 = vld [vmem:[%s1 + $0x70] sm:$0xff]
  %v61 = vld [vmem:[%s1 + $0x78] sm:$0xff]
  %v62 = vld [vmem:[%s1 + $0x80] sm:$0xff]
  %v63 = vld [vmem:[%s1 + $0x88] sm:$0xff]
  %v64 = vld [vmem:[%s1 + $0x90] sm:$0xff]
  %v65 = vld [vmem:[%s1 + $0x98] sm:$0xff]
  %v66 = vld [vmem:[%s1 + $0xa0] sm:$0xff]
  %v67 = vld [vmem:[%s1 + $0xa8] sm:$0xff]
  %v68 = vld [vmem:[%s1 + $0xb0] sm:$0xff]
  %v69 = vld [vmem:[%s1 + $0xb8] sm:$0xff]
  %v70 = vld [vmem:[%s1 + $0xc0] sm:$0xff]
  %v71 = vld [vmem:[%s1 + $0xc8] sm:$0xff]
  %v72 = vld [vmem:[%s1 + $0xd0] sm:$0xff]
  %v73 = vld [vmem:[%s1 + $0xd8] sm:$0xff]
  %v74 = vld [vmem:[%s1 + $0xe0] sm:$0xff]
  %v75 = vld [vmem:[%s1 + $0xe8] sm:$0xff]
  %v76 = vld [vmem:[%s1 + $0xf0] sm:$0xff]
  %v77 = vld [vmem:[%s1 + $0xf8] sm:$0xff]
  %v78 = vld [vmem:[%s1 + $0x100] sm:$0xff]
  %v79 = vld [vmem:[%s1 + $0x108] sm:$0xff]
  %v80 = vld [vmem:[%s1 + $0x110] sm:$0xff]
  %v81 = vld [vmem:[%s1 + $0x118] sm:$0xff]
  %v82 = vld [vmem:[%s1 + $0x120] sm:$0xff]
  %v83 = vld [vmem:[%s1 + $0x128] sm:$0xff]
  %v84 = vld [vmem:[%s1 + $0x130] sm:$0xff]
  %v85 = vld [vmem:[%s1 + $0x138] sm:$0xff]
  %v86 = vld [vmem:[%s1 + $0x140] sm:$0xff]
  %v87 = vld [vmem:[%s1 + $0x148] sm:$0xff]
  %v88 = vld [vmem:[%s1 + $0x150] sm:$0xff]
  %v89 = vld [vmem:[%s1 + $0x158] sm:$0xff]
  %v90 = vld [vmem:[%s1 + $0x160] sm:$0xff]
  %v91 = vld [vmem:[%s1 + $0x168] sm:$0xff]
  %v92 = vld [vmem:[%s1 + $0x170] sm:$0xff]
  %v93 = vld [vmem:[%s1 + $0x178] sm:$0xff]
  %v94 = vld [vmem:[%s1 + $0x180] sm:$0xff]
  %v95 = vld [vmem:[%s1 + $0x188] sm:$0xff]
  %v96 = vld [vmem:[%s1 + $0x190] sm:$0xff]
  %v97 = vld [vmem:[%s1 + $0x198] sm:$0xff]
  %v98 = vld [vmem:[%s1 + $0x1a0] sm:$0xff]
  %v99 = vld [vmem:[%s1 + $0x1a8] sm:$0xff]
  %v100 = vld [vmem:[%s1 + $0x1b0] sm:$0xff]
  %v101 = vld [vmem:[%s1 + $0x1b8] sm:$0xff]
  %v102 = vld [vmem:[%s1 + $0x1c0] sm:$0xff]
  %v103 = vld [vmem:[%s1 + $0x1c8] sm:$0xff]
  %v104 = vld [vmem:[%s1 + $0x1d0] sm:$0xff]
  %v105 = vld [vmem:[%s1 + $0x1d8] sm:$0xff]
  %v106 = vld [vmem:[%s1 + $0x1e0] sm:$0xff]
  %v107 = vld [vmem:[%s1 + $0x1e8] sm:$0xff]
  %v108 = vld [vmem:[%s1 + $0x1f0] sm:$0xff]
  %v109 = vld [vmem:[%s1 + $0x1f8] sm:$0xff]
  %v110 = vld [vmem:[%s1 + $0x200] sm:$0xff]
  %v111 = vld [vmem:[%s1 + $0x208] sm:$0xff]
  %v112 = vld [vmem:[%s1 + $0x210] sm:$0xff]
  %v113 = vld [vmem:[%s1 + $0x218] sm:$0xff]
  %v114 = vld [vmem:[%s1 + $0x220] sm:$0xff]
  %v115 = vld [vmem:[%s1 + $0x228] sm:$0xff]
  %v116 = vld [vmem:[%s1 + $0x230] sm:$0xff]
  %v117 = vld [vmem:[%s1 + $0x238] sm:$0xff]
  %v118 = vld [vmem:[%s1 + $0x240] sm:$0xff]
  %v119 = vld [vmem:[%s1 + $0x248] sm:$0xff]
  %v120 = vld [vmem:[%s1 + $0x250] sm:$0xff]
  %v121 = vld [vmem:[%s1 + $0x258] sm:$0xff]
  %v122 = vld [vmem:[%s1 + $0x260] sm:$0xff]
  %v123 = vld [vmem:[%s1 + $0x268] sm:$0xff]
  %v124 = vld [vmem:[%s1 + $0x270] sm:$0xff]
  %v125 = vld [vmem:[%s1 + $0x278] sm:$0xff]
  %v126 = vld [vmem:[%s1 + $0x280] sm:$0xff]
  %v127 = vld [vmem:[%s1 + $0x288] sm:$0xff]
  %v128 = vld [vmem:[%s1 + $0x290] sm:$0xff]
  %v129 = vld [vmem:[%s1 + $0x298] sm:$0xff]
  %v130 = vld [vmem:[%s1 + $0x2a0] sm:$0xff]
  %v131 = vld [vmem:[%s1 + $0x2a8] sm:$0xff]
  %v132 = vld [vmem:[%s1 + $0x2b0] sm:$0xff]
  %v133 = vld [vmem:[%s1 + $0x2b8] sm:$0xff]
  %v134 = vld [vmem:[%s1 + $0x2c0] sm:$0xff]
  %v135 = vld [vmem:[%s1 + $0x2c8] sm:$0xff]
  %v136 = vld [vmem:[%s1 + $0x2d0] sm:$0xff]
  %v137 = vld [vmem:[%s1 + $0x2d8] sm:$0xff]
  %v138 = vld [vmem:[%s1 + $0x2e0] sm:$0xff]
  %v139 = vld [vmem:[%s1 + $0x2e8] sm:$0xff]
  %v140 = vld [vmem:[%s1 + $0x2f0] sm:$0xff]
  %v141 = vld [vmem:[%s1 + $0x2f8] sm:$0xff]
  %v142 = vld [vmem:[%s1 + $0x300] sm:$0xff]
  %v143 = vld [vmem:[%s1 + $0x308] sm:$0xff]
  %v144 = vld [vmem:[%s1 + $0x310] sm:$0xff]
  %v145 = vld [vmem:[%s1 + $0x318] sm:$0xff]
  %v146 = vld [vmem:[%s1 + $0x320] sm:$0xff]
  %v147 = vld [vmem:[%s1 + $0x328] sm:$0xff]
  %v148 = vld [vmem:[%s1 + $0x330] sm:$0xff]
  %v149 = vld [vmem:[%s1 + $0x338] sm:$0xff]
  %v150 = vld [vmem:[%s1 + $0x340] sm:$0xff]
  %v151 = vld [vmem:[%s1 + $0x348] sm:$0xff]
  %v152 = vld [vmem:[%s1 + $0x350] sm:$0xff]
  %v153 = vld [vmem:[%s1 + $0x358] sm:$0xff]
  %v154 = vld [vmem:[%s1 + $0x360] sm:$0xff]
  %v155 = vld [vmem:[%s1 + $0x368] sm:$0xff]
  %v156 = vld [vmem:[%s1 + $0x370] sm:$0xff]
  %v157 = vld [vmem:[%s1 + $0x378] sm:$0xff]
  %v158 = vld [vmem:[%s1 + $0x380] sm:$0xff]
  %v159 = vld [vmem:[%s1 + $0x388] sm:$0xff]
  %v160 = vld [vmem:[%s1 + $0x390] sm:$0xff]
  %v161 = vld [vmem:[%s1 + $0x398] sm:$0xff]
  %v162 = vld [vmem:[%s1 + $0x3a0] sm:$0xff]
  %v163 = vld [vmem:[%s1 + $0x3a8] sm:$0xff]
  %v164 = vld [vmem:[%s1 + $0x3b0] sm:$0xff]
  %v165 = vld [vmem:[%s1 + $0x3b8] sm:$0xff]
  %v166 = vld [vmem:[%s1 + $0x3c0] sm:$0xff]
  %v167 = vld [vmem:[%s1 + $0x3c8] sm:$0xff]
  %v168 = vld [vmem:[%s1 + $0x3d0] sm:$0xff]
  %v169 = vld [vmem:[%s1 + $0x3d8] sm:$0xff]
  %v170 = vld [vmem:[%s1 + $0x3e0] sm:$0xff]
  %v171 = vld [vmem:[%s1 + $0x3e8] sm:$0xff]
  %v172 = vld [vmem:[%s1 + $0x3f0] sm:$0xff]
  %v173 = vld [vmem:[%s1 + $0x3f8] sm:$0xff]
  %v174 = vld [vmem:[%s1 + $0x400] sm:$0xff]
  %v175 = vld [vmem:[%s1 + $0x408] sm:$0xff]
  %v176 = vld [vmem:[%s1 + $0x410] sm:$0xff]
  %v177 = vld [vmem:[%s1 + $0x418] sm:$0xff]
  %v178 = vld [vmem:[%s1 + $0x420] sm:$0xff]
  %v179 = vld [vmem:[%s1 + $0x428] sm:$0xff]
  %v180 = vld [vmem:[%s1 + $0x430] sm:$0xff]
  %v181 = vld [vmem:[%s1 + $0x438] sm:$0xff]
  %v182 = vld [vmem:[%s1 + $0x440] sm:$0xff]
  %v183 = vld [vmem:[%s1 + $0x448] sm:$0xff]
  %v184 = vld [vmem:[%s1 + $0x450] sm:$0xff]
  %v185 = vld [vmem:[%s1 + $0x458] sm:$0xff]
  %v186 = vld [vmem:[%s1 + $0x460] sm:$0xff]
  %v187 = vld [vmem:[%s1 + $0x468] sm:$0xff]
  %v188 = vld [vmem:[%s1 + $0x470] sm:$0xff]
  %v189 = vld [vmem:[%s1 + $0x478] sm:$0xff]
  %v190 = vld [vmem:[%s1 + $0x480] sm:$0xff]
  %v191 = vld [vmem:[%s1 + $0x488] sm:$0xff]
  %v192 = vld [vmem:[%s1 + $0x490] sm:$0xff]
  %v193 = vld [vmem:[%s1 + $0x498] sm:$0xff]
  %v194 = vld [vmem:[%s1 + $0x4a0] sm:$0xff]
  %v195 = vld [vmem:[%s1 + $0x4a8] sm:$0xff]
  %v196 = vld [vmem:[%s1 + $0x4b0] sm:$0xff]
  %v197 = vld [vmem:[%s1 + $0x4b8] sm:$0xff]
  %v198 = vld [vmem:[%s1 + $0x4c0] sm:$0xff]
  %v199 = vld [vmem:[%s1 + $0x4c8] sm:$0xff]
  %v200 = vld [vmem:[%s1 + $0x4d0] sm:$0xff]
  %v201 = vld [vmem:[%s1 + $0x4d8] sm:$0xff]
  %v202 = vld [vmem:[%s1 + $0x4e0] sm:$0xff]
  %v203 = vld [vmem:[%s1 + $0x4e8] sm:$0xff]
  %v204 = vld [vmem:[%s1 + $0x4f0] sm:$0xff]
  %v205 = vld [vmem:[%s1 + $0x4f8] sm:$0xff]
  %v206 = vld [vmem:[%s1 + $0x500] sm:$0xff]
  %v207 = vld [vmem:[%s1 + $0x508] sm:$0xff]
  %v208 = vld [vmem:[%s1 + $0x510] sm:$0xff]
  %v209 = vld [vmem:[%s1 + $0x518] sm:$0xff]
  %v210 = vld [vmem:[%s1 + $0x520] sm:$0xff]
  %v211 = vld [vmem:[%s1 + $0x528] sm:$0xff]
  %v212 = vld [vmem:[%s1 + $0x530] sm:$0xff]
  %v213 = vld [vmem:[%s1 + $0x538] sm:$0xff]
  %v214 = vld [vmem:[%s1 + $0x540] sm:$0xff]
  %v215 = vld [vmem:[%s1 + $0x548] sm:$0xff]
  %v216 = vld [vmem:[%s1 + $0x550] sm:$0xff]
  %v217 = vld [vmem:[%s1 + $0x558] sm:$0xff]
  %v218 = vld [vmem:[%s1 + $0x560] sm:$0xff]
  %v219 = vld [vmem:[%s1 + $0x568] sm:$0xff]
  %v220 = vld [vmem:[%s1 + $0x570] sm:$0xff]
  %v221 = vld [vmem:[%s1 + $0x578] sm:$0xff]
  %v222 = vld [vmem:[%s1 + $0x580] sm:$0xff]
  %v223 = vld [vmem:[%s1 + $0x588] sm:$0xff]
  %v224 = vld [vmem:[%s1 + $0x590] sm:$0xff]
  %v225 = vld [vmem:[%s1 + $0x598] sm:$0xff]
  %v226 = vld [vmem:[%s1 + $0x5a0] sm:$0xff]
  %v227 = vld [vmem:[%s1 + $0x5a8] sm:$0xff]
  %v228 = vld [vmem:[%s1 + $0x5b0] sm:$0xff]
  %v229 = vld [vmem:[%s1 + $0x5b8] sm:$0xff]
  %v230 = vld [vmem:[%s1 + $0x5c0] sm:$0xff]
  %v231 = vld [vmem:[%s1 + $0x5c8] sm:$0xff]
  %v232 = vld [vmem:[%s1 + $0x5d0] sm:$0xff]
  %v233 = vld [vmem:[%s1 + $0x5d8] sm:$0xff]
  %v234 = vld [vmem:[%s1 + $0x5e0] sm:$0xff]
  %v235 = vld [vmem:[%s1 + $0x5e8] sm:$0xff]
  %v236 = vld [vmem:[%s1 + $0x5f0] sm:$0xff]
  %v237 = vld [vmem:[%s1 + $0x5f8] sm:$0xff]
  %v238 = vld [vmem:[%s1 + $0x600] sm:$0xff]
  %v239 = vld [vmem:[%s1 + $0x608] sm:$0xff]
  %v240 = vld [vmem:[%s1 + $0x610] sm:$0xff]
  %v241 = vld [vmem:[%s1 + $0x618] sm:$0xff]
  %v242 = vld [vmem:[%s1 + $0x620] sm:$0xff]
  %v243 = vld [vmem:[%s1 + $0x628] sm:$0xff]
  %v244 = vld [vmem:[%s1 + $0x630] sm:$0xff]
  %v245 = vld [vmem:[%s1 + $0x638] sm:$0xff]
  %v246 = vld [vmem:[%s1 + $0x640] sm:$0xff]
  %v247 = vld [vmem:[%s1 + $0x648] sm:$0xff]
  %v248 = vld [vmem:[%s1 + $0x650] sm:$0xff]
  %v249 = vld [vmem:[%s1 + $0x658] sm:$0xff]
  %v250 = vld [vmem:[%s1 + $0x660] sm:$0xff]
  %v251 = vld [vmem:[%s1 + $0x668] sm:$0xff]
  %v252 = vld [vmem:[%s1 + $0x670] sm:$0xff]
  %v253 = vld [vmem:[%s1 + $0x678] sm:$0xff]
  %v254 = vld [vmem:[%s1 + $0x680] sm:$0xff]
  %v255 = vld [vmem:[%s1 + $0x688] sm:$0xff]
  %v256 = vld [vmem:[%s1 + $0x690] sm:$0xff]
  %v257 = vld [vmem:[%s1 + $0x698] sm:$0xff]
  %v258 = vld [vmem:[%s1 + $0x6a0] sm:$0xff]
  %v259 = vld [vmem:[%s1 + $0x6a8] sm:$0xff]
  %v260 = vld [vmem:[%s1 + $0x6b0] sm:$0xff]
  %v261 = vld [vmem:[%s1 + $0x6b8] sm:$0xff]
  %v262 = vld [vmem:[%s1 + $0x6c0] sm:$0xff]
  %v263 = vld [vmem:[%s1 + $0x6c8] sm:$0xff]
  %v264 = vld [vmem:[%s1 + $0x6d0] sm:$0xff]
  %v265 = vld [vmem:[%s1 + $0x6d8] sm:$0xff]
  %v266 = vld [vmem:[%s1 + $0x6e0] sm:$0xff]
  %v267 = vld [vmem:[%s1 + $0x6e8] sm:$0xff]
  %v268 = vld [vmem:[%s1 + $0x6f0] sm:$0xff]
  %v269 = vld [vmem:[%s1 + $0x6f8] sm:$0xff]
  %v270 = vld [vmem:[%s1 + $0x700] sm:$0xff]
  %v271 = vld [vmem:[%s1 + $0x708] sm:$0xff]
  %v272 = vld [vmem:[%s1 + $0x710] sm:$0xff]
  %v273 = vld [vmem:[%s1 + $0x718] sm:$0xff]
  %v274 = vld [vmem:[%s1 + $0x720] sm:$0xff]
  %v275 = vld [vmem:[%s1 + $0x728] sm:$0xff]
  %v276 = vld [vmem:[%s1 + $0x730] sm:$0xff]
  %v277 = vld [vmem:[%s1 + $0x738] sm:$0xff]
  %v278 = vld [vmem:[%s1 + $0x740] sm:$0xff]
  %v279 = vld [vmem:[%s1 + $0x748] sm:$0xff]
  %v280 = vld [vmem:[%s1 + $0x750] sm:$0xff]
  %v281 = vld [vmem:[%s1 + $0x758] sm:$0xff]
  %v282 = vld [vmem:[%s1 + $0x760] sm:$0xff]
  %v283 = vld [vmem:[%s1 + $0x768] sm:$0xff]
  %v284 = vld [vmem:[%s1 + $0x770] sm:$0xff]
  %v285 = vld [vmem:[%s1 + $0x778] sm:$0xff]
  %v286 = vld [vmem:[%s1 + $0x780] sm:$0xff]
  %v287 = vld [vmem:[%s1 + $0x788] sm:$0xff]
  %v288 = vld [vmem:[%s1 + $0x790] sm:$0xff]
  %v289 = vld [vmem:[%s1 + $0x798] sm:$0xff]
  %v290 = vld [vmem:[%s1 + $0x7a0] sm:$0xff]
  %v291 = vld [vmem:[%s1 + $0x7a8] sm:$0xff]
  %v292 = vld [vmem:[%s1 + $0x7b0] sm:$0xff]
  %v293 = vld [vmem:[%s1 + $0x7b8] sm:$0xff]
  %v294 = vld [vmem:[%s1 + $0x7c0] sm:$0xff]
  %v295 = vld [vmem:[%s1 + $0x7c8] sm:$0xff]
  %v296 = vld [vmem:[%s1 + $0x7d0] sm:$0xff]
  %v297 = vld [vmem:[%s1 + $0x7d8] sm:$0xff]
  %v298 = vld [vmem:[%s1 + $0x7e0] sm:$0xff]
  %v299 = vld [vmem:[%s1 + $0x7e8] sm:$0xff]
  %v300 = vld [vmem:[%s1 + $0x7f0] sm:$0xff]
  %v301 = vld [vmem:[%s1 + $0x7f8] sm:$0xff]
  %v334 = vunpack.c.l.b16 %v14
  %v335 = vunpack.c.h.b16 %v14
  %v336 = vunpack.c.l.b16 %v15
  %v337 = vunpack.c.h.b16 %v15
  %v338 = vunpack.c.l.b16 %v16
  %v339 = vunpack.c.h.b16 %v16
  %v340 = vunpack.c.l.b16 %v17
  %v341 = vunpack.c.h.b16 %v17
  %v342 = vunpack.c.l.b16 %v18
  %v343 = vunpack.c.h.b16 %v18
  %v344 = vunpack.c.l.b16 %v19
  %v345 = vunpack.c.h.b16 %v19
  %v346 = vunpack.c.l.b16 %v20
  %v347 = vunpack.c.h.b16 %v20
  %v348 = vunpack.c.l.b16 %v21
  %v349 = vunpack.c.h.b16 %v21
  %v350 = vunpack.c.l.b16 %v22
  %v351 = vunpack.c.h.b16 %v22
  %v352 = vunpack.c.l.b16 %v23
  %v353 = vunpack.c.h.b16 %v23
  %v354 = vunpack.c.l.b16 %v24
  %v355 = vunpack.c.h.b16 %v24
  %v356 = vunpack.c.l.b16 %v25
  %v357 = vunpack.c.h.b16 %v25
  %v358 = vunpack.c.l.b16 %v26
  %v359 = vunpack.c.h.b16 %v26
  %v360 = vunpack.c.l.b16 %v27
  %v361 = vunpack.c.h.b16 %v27
  %v362 = vunpack.c.l.b16 %v28
  %v363 = vunpack.c.h.b16 %v28
  %v364 = vunpack.c.l.b16 %v29
  %v365 = vunpack.c.h.b16 %v29
  %v366 = vunpack.c.l.b16 %v30
  %v367 = vunpack.c.h.b16 %v30
  %v368 = vunpack.c.l.b16 %v31
  %v369 = vunpack.c.h.b16 %v31
  %v370 = vunpack.c.l.b16 %v32
  %v371 = vunpack.c.h.b16 %v32
  %v372 = vunpack.c.l.b16 %v33
  %v373 = vunpack.c.h.b16 %v33
  %v374 = vunpack.c.l.b16 %v34
  %v375 = vunpack.c.h.b16 %v34
  %v376 = vunpack.c.l.b16 %v35
  %v377 = vunpack.c.h.b16 %v35
  %v378 = vunpack.c.l.b16 %v36
  %v379 = vunpack.c.h.b16 %v36
  %v380 = vunpack.c.l.b16 %v37
  %v381 = vunpack.c.h.b16 %v37
  %v382 = vunpack.c.l.b16 %v38
  %v383 = vunpack.c.h.b16 %v38
  %v384 = vunpack.c.l.b16 %v39
  %v385 = vunpack.c.h.b16 %v39
  %v386 = vunpack.c.l.b16 %v40
  %v387 = vunpack.c.h.b16 %v40
  %v388 = vunpack.c.l.b16 %v41
  %v389 = vunpack.c.h.b16 %v41
  %v390 = vunpack.c.l.b16 %v42
  %v391 = vunpack.c.h.b16 %v42
  %v392 = vunpack.c.l.b16 %v43
  %v393 = vunpack.c.h.b16 %v43
  %v394 = vunpack.c.l.b16 %v44
  %v395 = vunpack.c.h.b16 %v44
  %v396 = vunpack.c.l.b16 %v45
  %v397 = vunpack.c.h.b16 %v45
  %v398 = vpack.c.b16 %v350, %v334
  %v399 = vpack.c.b16 %v351, %v335
  %v400 = vpack.c.b16 %v352, %v336
  %v401 = vpack.c.b16 %v353, %v337
  %v402 = vpack.c.b16 %v354, %v338
  %v403 = vpack.c.b16 %v355, %v339
  %v404 = vpack.c.b16 %v356, %v340
  %v405 = vpack.c.b16 %v357, %v341
  %v406 = vpack.c.b16 %v358, %v342
  %v407 = vpack.c.b16 %v359, %v343
  %v408 = vpack.c.b16 %v360, %v344
  %v409 = vpack.c.b16 %v361, %v345
  %v410 = vpack.c.b16 %v362, %v346
  %v411 = vpack.c.b16 %v363, %v347
  %v412 = vpack.c.b16 %v364, %v348
  %v413 = vpack.c.b16 %v365, %v349
  %v414 = vpack.c.b16 %v382, %v366
  %v415 = vpack.c.b16 %v383, %v367
  %v416 = vpack.c.b16 %v384, %v368
  %v417 = vpack.c.b16 %v385, %v369
  %v418 = vpack.c.b16 %v386, %v370
  %v419 = vpack.c.b16 %v387, %v371
  %v420 = vpack.c.b16 %v388, %v372
  %v421 = vpack.c.b16 %v389, %v373
  %v422 = vpack.c.b16 %v390, %v374
  %v423 = vpack.c.b16 %v391, %v375
  %v424 = vpack.c.b16 %v392, %v376
  %v425 = vpack.c.b16 %v393, %v377
  %v426 = vpack.c.b16 %v394, %v378
  %v427 = vpack.c.b16 %v395, %v379
  %v428 = vpack.c.b16 %v396, %v380
  %v429 = vpack.c.b16 %v397, %v381
  %v718 = vunpack.c.l.b16 %v46
  %v719 = vunpack.c.h.b16 %v46
  %v720 = vunpack.c.l.b16 %v47
  %v721 = vunpack.c.h.b16 %v47
  %v722 = vunpack.c.l.b16 %v48
  %v723 = vunpack.c.h.b16 %v48
  %v724 = vunpack.c.l.b16 %v49
  %v725 = vunpack.c.h.b16 %v49
  %v726 = vunpack.c.l.b16 %v50
  %v727 = vunpack.c.h.b16 %v50
  %v728 = vunpack.c.l.b16 %v51
  %v729 = vunpack.c.h.b16 %v51
  %v730 = vunpack.c.l.b16 %v52
  %v731 = vunpack.c.h.b16 %v52
  %v732 = vunpack.c.l.b16 %v53
  %v733 = vunpack.c.h.b16 %v53
  %v734 = vunpack.c.l.b16 %v54
  %v735 = vunpack.c.h.b16 %v54
  %v736 = vunpack.c.l.b16 %v55
  %v737 = vunpack.c.h.b16 %v55
  %v738 = vunpack.c.l.b16 %v56
  %v739 = vunpack.c.h.b16 %v56
  %v740 = vunpack.c.l.b16 %v57
  %v741 = vunpack.c.h.b16 %v57
  %v742 = vunpack.c.l.b16 %v58
  %v743 = vunpack.c.h.b16 %v58
  %v744 = vunpack.c.l.b16 %v59
  %v745 = vunpack.c.h.b16 %v59
  %v746 = vunpack.c.l.b16 %v60
  %v747 = vunpack.c.h.b16 %v60
  %v748 = vunpack.c.l.b16 %v61
  %v749 = vunpack.c.h.b16 %v61
  %v750 = vunpack.c.l.b16 %v62
  %v751 = vunpack.c.h.b16 %v62
  %v752 = vunpack.c.l.b16 %v63
  %v753 = vunpack.c.h.b16 %v63
  %v754 = vunpack.c.l.b16 %v64
  %v755 = vunpack.c.h.b16 %v64
  %v756 = vunpack.c.l.b16 %v65
  %v757 = vunpack.c.h.b16 %v65
  %v758 = vunpack.c.l.b16 %v66
  %v759 = vunpack.c.h.b16 %v66
  %v760 = vunpack.c.l.b16 %v67
  %v761 = vunpack.c.h.b16 %v67
  %v762 = vunpack.c.l.b16 %v68
  %v763 = vunpack.c.h.b16 %v68
  %v764 = vunpack.c.l.b16 %v69
  %v765 = vunpack.c.h.b16 %v69
  %v766 = vunpack.c.l.b16 %v70
  %v767 = vunpack.c.h.b16 %v70
  %v768 = vunpack.c.l.b16 %v71
  %v769 = vunpack.c.h.b16 %v71
  %v770 = vunpack.c.l.b16 %v72
  %v771 = vunpack.c.h.b16 %v72
  %v772 = vunpack.c.l.b16 %v73
  %v773 = vunpack.c.h.b16 %v73
  %v774 = vunpack.c.l.b16 %v74
  %v775 = vunpack.c.h.b16 %v74
  %v776 = vunpack.c.l.b16 %v75
  %v777 = vunpack.c.h.b16 %v75
  %v778 = vunpack.c.l.b16 %v76
  %v779 = vunpack.c.h.b16 %v76
  %v780 = vunpack.c.l.b16 %v77
  %v781 = vunpack.c.h.b16 %v77
  %v782 = vunpack.c.l.b16 %v78
  %v783 = vunpack.c.h.b16 %v78
  %v784 = vunpack.c.l.b16 %v79
  %v785 = vunpack.c.h.b16 %v79
  %v786 = vunpack.c.l.b16 %v80
  %v787 = vunpack.c.h.b16 %v80
  %v788 = vunpack.c.l.b16 %v81
  %v789 = vunpack.c.h.b16 %v81
  %v790 = vunpack.c.l.b16 %v82
  %v791 = vunpack.c.h.b16 %v82
  %v792 = vunpack.c.l.b16 %v83
  %v793 = vunpack.c.h.b16 %v83
  %v794 = vunpack.c.l.b16 %v84
  %v795 = vunpack.c.h.b16 %v84
  %v796 = vunpack.c.l.b16 %v85
  %v797 = vunpack.c.h.b16 %v85
  %v798 = vunpack.c.l.b16 %v86
  %v799 = vunpack.c.h.b16 %v86
  %v800 = vunpack.c.l.b16 %v87
  %v801 = vunpack.c.h.b16 %v87
  %v802 = vunpack.c.l.b16 %v88
  %v803 = vunpack.c.h.b16 %v88
  %v804 = vunpack.c.l.b16 %v89
  %v805 = vunpack.c.h.b16 %v89
  %v806 = vunpack.c.l.b16 %v90
  %v807 = vunpack.c.h.b16 %v90
  %v808 = vunpack.c.l.b16 %v91
  %v809 = vunpack.c.h.b16 %v91
  %v810 = vunpack.c.l.b16 %v92
  %v811 = vunpack.c.h.b16 %v92
  %v812 = vunpack.c.l.b16 %v93
  %v813 = vunpack.c.h.b16 %v93
  %v814 = vunpack.c.l.b16 %v94
  %v815 = vunpack.c.h.b16 %v94
  %v816 = vunpack.c.l.b16 %v95
  %v817 = vunpack.c.h.b16 %v95
  %v818 = vunpack.c.l.b16 %v96
  %v819 = vunpack.c.h.b16 %v96
  %v820 = vunpack.c.l.b16 %v97
  %v821 = vunpack.c.h.b16 %v97
  %v822 = vunpack.c.l.b16 %v98
  %v823 = vunpack.c.h.b16 %v98
  %v824 = vunpack.c.l.b16 %v99
  %v825 = vunpack.c.h.b16 %v99
  %v826 = vunpack.c.l.b16 %v100
  %v827 = vunpack.c.h.b16 %v100
  %v828 = vunpack.c.l.b16 %v101
  %v829 = vunpack.c.h.b16 %v101
  %v830 = vunpack.c.l.b16 %v102
  %v831 = vunpack.c.h.b16 %v102
  %v832 = vunpack.c.l.b16 %v103
  %v833 = vunpack.c.h.b16 %v103
  %v834 = vunpack.c.l.b16 %v104
  %v835 = vunpack.c.h.b16 %v104
  %v836 = vunpack.c.l.b16 %v105
  %v837 = vunpack.c.h.b16 %v105
  %v838 = vunpack.c.l.b16 %v106
  %v839 = vunpack.c.h.b16 %v106
  %v840 = vunpack.c.l.b16 %v107
  %v841 = vunpack.c.h.b16 %v107
  %v842 = vunpack.c.l.b16 %v108
  %v843 = vunpack.c.h.b16 %v108
  %v844 = vunpack.c.l.b16 %v109
  %v845 = vunpack.c.h.b16 %v109
  %v846 = vunpack.c.l.b16 %v110
  %v847 = vunpack.c.h.b16 %v110
  %v848 = vunpack.c.l.b16 %v111
  %v849 = vunpack.c.h.b16 %v111
  %v850 = vunpack.c.l.b16 %v112
  %v851 = vunpack.c.h.b16 %v112
  %v852 = vunpack.c.l.b16 %v113
  %v853 = vunpack.c.h.b16 %v113
  %v854 = vunpack.c.l.b16 %v114
  %v855 = vunpack.c.h.b16 %v114
  %v856 = vunpack.c.l.b16 %v115
  %v857 = vunpack.c.h.b16 %v115
  %v858 = vunpack.c.l.b16 %v116
  %v859 = vunpack.c.h.b16 %v116
  %v860 = vunpack.c.l.b16 %v117
  %v861 = vunpack.c.h.b16 %v117
  %v862 = vunpack.c.l.b16 %v118
  %v863 = vunpack.c.h.b16 %v118
  %v864 = vunpack.c.l.b16 %v119
  %v865 = vunpack.c.h.b16 %v119
  %v866 = vunpack.c.l.b16 %v120
  %v867 = vunpack.c.h.b16 %v120
  %v868 = vunpack.c.l.b16 %v121
  %v869 = vunpack.c.h.b16 %v121
  %v870 = vunpack.c.l.b16 %v122
  %v871 = vunpack.c.h.b16 %v122
  %v872 = vunpack.c.l.b16 %v123
  %v873 = vunpack.c.h.b16 %v123
  %v874 = vunpack.c.l.b16 %v124
  %v875 = vunpack.c.h.b16 %v124
  %v876 = vunpack.c.l.b16 %v125
  %v877 = vunpack.c.h.b16 %v125
  %v878 = vunpack.c.l.b16 %v126
  %v879 = vunpack.c.h.b16 %v126
  %v880 = vunpack.c.l.b16 %v127
  %v881 = vunpack.c.h.b16 %v127
  %v882 = vunpack.c.l.b16 %v128
  %v883 = vunpack.c.h.b16 %v128
  %v884 = vunpack.c.l.b16 %v129
  %v885 = vunpack.c.h.b16 %v129
  %v886 = vunpack.c.l.b16 %v130
  %v887 = vunpack.c.h.b16 %v130
  %v888 = vunpack.c.l.b16 %v131
  %v889 = vunpack.c.h.b16 %v131
  %v890 = vunpack.c.l.b16 %v132
  %v891 = vunpack.c.h.b16 %v132
  %v892 = vunpack.c.l.b16 %v133
  %v893 = vunpack.c.h.b16 %v133
  %v894 = vunpack.c.l.b16 %v134
  %v895 = vunpack.c.h.b16 %v134
  %v896 = vunpack.c.l.b16 %v135
  %v897 = vunpack.c.h.b16 %v135
  %v898 = vunpack.c.l.b16 %v136
  %v899 = vunpack.c.h.b16 %v136
  %v900 = vunpack.c.l.b16 %v137
  %v901 = vunpack.c.h.b16 %v137
  %v902 = vunpack.c.l.b16 %v138
  %v903 = vunpack.c.h.b16 %v138
  %v904 = vunpack.c.l.b16 %v139
  %v905 = vunpack.c.h.b16 %v139
  %v906 = vunpack.c.l.b16 %v140
  %v907 = vunpack.c.h.b16 %v140
  %v908 = vunpack.c.l.b16 %v141
  %v909 = vunpack.c.h.b16 %v141
  %v910 = vunpack.c.l.b16 %v142
  %v911 = vunpack.c.h.b16 %v142
  %v912 = vunpack.c.l.b16 %v143
  %v913 = vunpack.c.h.b16 %v143
  %v914 = vunpack.c.l.b16 %v144
  %v915 = vunpack.c.h.b16 %v144
  %v916 = vunpack.c.l.b16 %v145
  %v917 = vunpack.c.h.b16 %v145
  %v918 = vunpack.c.l.b16 %v146
  %v919 = vunpack.c.h.b16 %v146
  %v920 = vunpack.c.l.b16 %v147
  %v921 = vunpack.c.h.b16 %v147
  %v922 = vunpack.c.l.b16 %v148
  %v923 = vunpack.c.h.b16 %v148
  %v924 = vunpack.c.l.b16 %v149
  %v925 = vunpack.c.h.b16 %v149
  %v926 = vunpack.c.l.b16 %v150
  %v927 = vunpack.c.h.b16 %v150
  %v928 = vunpack.c.l.b16 %v151
  %v929 = vunpack.c.h.b16 %v151
  %v930 = vunpack.c.l.b16 %v152
  %v931 = vunpack.c.h.b16 %v152
  %v932 = vunpack.c.l.b16 %v153
  %v933 = vunpack.c.h.b16 %v153
  %v934 = vunpack.c.l.b16 %v154
  %v935 = vunpack.c.h.b16 %v154
  %v936 = vunpack.c.l.b16 %v155
  %v937 = vunpack.c.h.b16 %v155
  %v938 = vunpack.c.l.b16 %v156
  %v939 = vunpack.c.h.b16 %v156
  %v940 = vunpack.c.l.b16 %v157
  %v941 = vunpack.c.h.b16 %v157
  %v942 = vunpack.c.l.b16 %v158
  %v943 = vunpack.c.h.b16 %v158
  %v944 = vunpack.c.l.b16 %v159
  %v945 = vunpack.c.h.b16 %v159
  %v946 = vunpack.c.l.b16 %v160
  %v947 = vunpack.c.h.b16 %v160
  %v948 = vunpack.c.l.b16 %v161
  %v949 = vunpack.c.h.b16 %v161
  %v950 = vunpack.c.l.b16 %v162
  %v951 = vunpack.c.h.b16 %v162
  %v952 = vunpack.c.l.b16 %v163
  %v953 = vunpack.c.h.b16 %v163
  %v954 = vunpack.c.l.b16 %v164
  %v955 = vunpack.c.h.b16 %v164
  %v956 = vunpack.c.l.b16 %v165
  %v957 = vunpack.c.h.b16 %v165
  %v958 = vunpack.c.l.b16 %v166
  %v959 = vunpack.c.h.b16 %v166
  %v960 = vunpack.c.l.b16 %v167
  %v961 = vunpack.c.h.b16 %v167
  %v962 = vunpack.c.l.b16 %v168
  %v963 = vunpack.c.h.b16 %v168
  %v964 = vunpack.c.l.b16 %v169
  %v965 = vunpack.c.h.b16 %v169
  %v966 = vunpack.c.l.b16 %v170
  %v967 = vunpack.c.h.b16 %v170
  %v968 = vunpack.c.l.b16 %v171
  %v969 = vunpack.c.h.b16 %v171
  %v970 = vunpack.c.l.b16 %v172
  %v971 = vunpack.c.h.b16 %v172
  %v972 = vunpack.c.l.b16 %v173
  %v973 = vunpack.c.h.b16 %v173
  %v974 = vunpack.c.l.b16 %v174
  %v975 = vunpack.c.h.b16 %v174
  %v976 = vunpack.c.l.b16 %v175
  %v977 = vunpack.c.h.b16 %v175
  %v978 = vunpack.c.l.b16 %v176
  %v979 = vunpack.c.h.b16 %v176
  %v980 = vunpack.c.l.b16 %v177
  %v981 = vunpack.c.h.b16 %v177
  %v982 = vunpack.c.l.b16 %v178
  %v983 = vunpack.c.h.b16 %v178
  %v984 = vunpack.c.l.b16 %v179
  %v985 = vunpack.c.h.b16 %v179
  %v986 = vunpack.c.l.b16 %v180
  %v987 = vunpack.c.h.b16 %v180
  %v988 = vunpack.c.l.b16 %v181
  %v989 = vunpack.c.h.b16 %v181
  %v990 = vunpack.c.l.b16 %v182
  %v991 = vunpack.c.h.b16 %v182
  %v992 = vunpack.c.l.b16 %v183
  %v993 = vunpack.c.h.b16 %v183
  %v994 = vunpack.c.l.b16 %v184
  %v995 = vunpack.c.h.b16 %v184
  %v996 = vunpack.c.l.b16 %v185
  %v997 = vunpack.c.h.b16 %v185
  %v998 = vunpack.c.l.b16 %v186
  %v999 = vunpack.c.h.b16 %v186
  %v1000 = vunpack.c.l.b16 %v187
  %v1001 = vunpack.c.h.b16 %v187
  %v1002 = vunpack.c.l.b16 %v188
  %v1003 = vunpack.c.h.b16 %v188
  %v1004 = vunpack.c.l.b16 %v189
  %v1005 = vunpack.c.h.b16 %v189
  %v1006 = vunpack.c.l.b16 %v190
  %v1007 = vunpack.c.h.b16 %v190
  %v1008 = vunpack.c.l.b16 %v191
  %v1009 = vunpack.c.h.b16 %v191
  %v1010 = vunpack.c.l.b16 %v192
  %v1011 = vunpack.c.h.b16 %v192
  %v1012 = vunpack.c.l.b16 %v193
  %v1013 = vunpack.c.h.b16 %v193
  %v1014 = vunpack.c.l.b16 %v194
  %v1015 = vunpack.c.h.b16 %v194
  %v1016 = vunpack.c.l.b16 %v195
  %v1017 = vunpack.c.h.b16 %v195
  %v1018 = vunpack.c.l.b16 %v196
  %v1019 = vunpack.c.h.b16 %v196
  %v1020 = vunpack.c.l.b16 %v197
  %v1021 = vunpack.c.h.b16 %v197
  %v1022 = vunpack.c.l.b16 %v198
  %v1023 = vunpack.c.h.b16 %v198
  %v1024 = vunpack.c.l.b16 %v199
  %v1025 = vunpack.c.h.b16 %v199
  %v1026 = vunpack.c.l.b16 %v200
  %v1027 = vunpack.c.h.b16 %v200
  %v1028 = vunpack.c.l.b16 %v201
  %v1029 = vunpack.c.h.b16 %v201
  %v1030 = vunpack.c.l.b16 %v202
  %v1031 = vunpack.c.h.b16 %v202
  %v1032 = vunpack.c.l.b16 %v203
  %v1033 = vunpack.c.h.b16 %v203
  %v1034 = vunpack.c.l.b16 %v204
  %v1035 = vunpack.c.h.b16 %v204
  %v1036 = vunpack.c.l.b16 %v205
  %v1037 = vunpack.c.h.b16 %v205
  %v1038 = vunpack.c.l.b16 %v206
  %v1039 = vunpack.c.h.b16 %v206
  %v1040 = vunpack.c.l.b16 %v207
  %v1041 = vunpack.c.h.b16 %v207
  %v1042 = vunpack.c.l.b16 %v208
  %v1043 = vunpack.c.h.b16 %v208
  %v1044 = vunpack.c.l.b16 %v209
  %v1045 = vunpack.c.h.b16 %v209
  %v1046 = vunpack.c.l.b16 %v210
  %v1047 = vunpack.c.h.b16 %v210
  %v1048 = vunpack.c.l.b16 %v211
  %v1049 = vunpack.c.h.b16 %v211
  %v1050 = vunpack.c.l.b16 %v212
  %v1051 = vunpack.c.h.b16 %v212
  %v1052 = vunpack.c.l.b16 %v213
  %v1053 = vunpack.c.h.b16 %v213
  %v1054 = vunpack.c.l.b16 %v214
  %v1055 = vunpack.c.h.b16 %v214
  %v1056 = vunpack.c.l.b16 %v215
  %v1057 = vunpack.c.h.b16 %v215
  %v1058 = vunpack.c.l.b16 %v216
  %v1059 = vunpack.c.h.b16 %v216
  %v1060 = vunpack.c.l.b16 %v217
  %v1061 = vunpack.c.h.b16 %v217
  %v1062 = vunpack.c.l.b16 %v218
  %v1063 = vunpack.c.h.b16 %v218
  %v1064 = vunpack.c.l.b16 %v219
  %v1065 = vunpack.c.h.b16 %v219
  %v1066 = vunpack.c.l.b16 %v220
  %v1067 = vunpack.c.h.b16 %v220
  %v1068 = vunpack.c.l.b16 %v221
  %v1069 = vunpack.c.h.b16 %v221
  %v1070 = vunpack.c.l.b16 %v222
  %v1071 = vunpack.c.h.b16 %v222
  %v1072 = vunpack.c.l.b16 %v223
  %v1073 = vunpack.c.h.b16 %v223
  %v1074 = vunpack.c.l.b16 %v224
  %v1075 = vunpack.c.h.b16 %v224
  %v1076 = vunpack.c.l.b16 %v225
  %v1077 = vunpack.c.h.b16 %v225
  %v1078 = vunpack.c.l.b16 %v226
  %v1079 = vunpack.c.h.b16 %v226
  %v1080 = vunpack.c.l.b16 %v227
  %v1081 = vunpack.c.h.b16 %v227
  %v1082 = vunpack.c.l.b16 %v228
  %v1083 = vunpack.c.h.b16 %v228
  %v1084 = vunpack.c.l.b16 %v229
  %v1085 = vunpack.c.h.b16 %v229
  %v1086 = vunpack.c.l.b16 %v230
  %v1087 = vunpack.c.h.b16 %v230
  %v1088 = vunpack.c.l.b16 %v231
  %v1089 = vunpack.c.h.b16 %v231
  %v1090 = vunpack.c.l.b16 %v232
  %v1091 = vunpack.c.h.b16 %v232
  %v1092 = vunpack.c.l.b16 %v233
  %v1093 = vunpack.c.h.b16 %v233
  %v1094 = vunpack.c.l.b16 %v234
  %v1095 = vunpack.c.h.b16 %v234
  %v1096 = vunpack.c.l.b16 %v235
  %v1097 = vunpack.c.h.b16 %v235
  %v1098 = vunpack.c.l.b16 %v236
  %v1099 = vunpack.c.h.b16 %v236
  %v1100 = vunpack.c.l.b16 %v237
  %v1101 = vunpack.c.h.b16 %v237
  %v1102 = vunpack.c.l.b16 %v238
  %v1103 = vunpack.c.h.b16 %v238
  %v1104 = vunpack.c.l.b16 %v239
  %v1105 = vunpack.c.h.b16 %v239
  %v1106 = vunpack.c.l.b16 %v240
  %v1107 = vunpack.c.h.b16 %v240
  %v1108 = vunpack.c.l.b16 %v241
  %v1109 = vunpack.c.h.b16 %v241
  %v1110 = vunpack.c.l.b16 %v242
  %v1111 = vunpack.c.h.b16 %v242
  %v1112 = vunpack.c.l.b16 %v243
  %v1113 = vunpack.c.h.b16 %v243
  %v1114 = vunpack.c.l.b16 %v244
  %v1115 = vunpack.c.h.b16 %v244
  %v1116 = vunpack.c.l.b16 %v245
  %v1117 = vunpack.c.h.b16 %v245
  %v1118 = vunpack.c.l.b16 %v246
  %v1119 = vunpack.c.h.b16 %v246
  %v1120 = vunpack.c.l.b16 %v247
  %v1121 = vunpack.c.h.b16 %v247
  %v1122 = vunpack.c.l.b16 %v248
  %v1123 = vunpack.c.h.b16 %v248
  %v1124 = vunpack.c.l.b16 %v249
  %v1125 = vunpack.c.h.b16 %v249
  %v1126 = vunpack.c.l.b16 %v250
  %v1127 = vunpack.c.h.b16 %v250
  %v1128 = vunpack.c.l.b16 %v251
  %v1129 = vunpack.c.h.b16 %v251
  %v1130 = vunpack.c.l.b16 %v252
  %v1131 = vunpack.c.h.b16 %v252
  %v1132 = vunpack.c.l.b16 %v253
  %v1133 = vunpack.c.h.b16 %v253
  %v1134 = vunpack.c.l.b16 %v254
  %v1135 = vunpack.c.h.b16 %v254
  %v1136 = vunpack.c.l.b16 %v255
  %v1137 = vunpack.c.h.b16 %v255
  %v1138 = vunpack.c.l.b16 %v256
  %v1139 = vunpack.c.h.b16 %v256
  %v1140 = vunpack.c.l.b16 %v257
  %v1141 = vunpack.c.h.b16 %v257
  %v1142 = vunpack.c.l.b16 %v258
  %v1143 = vunpack.c.h.b16 %v258
  %v1144 = vunpack.c.l.b16 %v259
  %v1145 = vunpack.c.h.b16 %v259
  %v1146 = vunpack.c.l.b16 %v260
  %v1147 = vunpack.c.h.b16 %v260
  %v1148 = vunpack.c.l.b16 %v261
  %v1149 = vunpack.c.h.b16 %v261
  %v1150 = vunpack.c.l.b16 %v262
  %v1151 = vunpack.c.h.b16 %v262
  %v1152 = vunpack.c.l.b16 %v263
  %v1153 = vunpack.c.h.b16 %v263
  %v1154 = vunpack.c.l.b16 %v264
  %v1155 = vunpack.c.h.b16 %v264
  %v1156 = vunpack.c.l.b16 %v265
  %v1157 = vunpack.c.h.b16 %v265
  %v1158 = vunpack.c.l.b16 %v266
  %v1159 = vunpack.c.h.b16 %v266
  %v1160 = vunpack.c.l.b16 %v267
  %v1161 = vunpack.c.h.b16 %v267
  %v1162 = vunpack.c.l.b16 %v268
  %v1163 = vunpack.c.h.b16 %v268
  %v1164 = vunpack.c.l.b16 %v269
  %v1165 = vunpack.c.h.b16 %v269
  %v1166 = vunpack.c.l.b16 %v270
  %v1167 = vunpack.c.h.b16 %v270
  %v1168 = vunpack.c.l.b16 %v271
  %v1169 = vunpack.c.h.b16 %v271
  %v1170 = vunpack.c.l.b16 %v272
  %v1171 = vunpack.c.h.b16 %v272
  %v1172 = vunpack.c.l.b16 %v273
  %v1173 = vunpack.c.h.b16 %v273
  %v1174 = vunpack.c.l.b16 %v274
  %v1175 = vunpack.c.h.b16 %v274
  %v1176 = vunpack.c.l.b16 %v275
  %v1177 = vunpack.c.h.b16 %v275
  %v1178 = vunpack.c.l.b16 %v276
  %v1179 = vunpack.c.h.b16 %v276
  %v1180 = vunpack.c.l.b16 %v277
  %v1181 = vunpack.c.h.b16 %v277
  %v1182 = vunpack.c.l.b16 %v278
  %v1183 = vunpack.c.h.b16 %v278
  %v1184 = vunpack.c.l.b16 %v279
  %v1185 = vunpack.c.h.b16 %v279
  %v1186 = vunpack.c.l.b16 %v280
  %v1187 = vunpack.c.h.b16 %v280
  %v1188 = vunpack.c.l.b16 %v281
  %v1189 = vunpack.c.h.b16 %v281
  %v1190 = vunpack.c.l.b16 %v282
  %v1191 = vunpack.c.h.b16 %v282
  %v1192 = vunpack.c.l.b16 %v283
  %v1193 = vunpack.c.h.b16 %v283
  %v1194 = vunpack.c.l.b16 %v284
  %v1195 = vunpack.c.h.b16 %v284
  %v1196 = vunpack.c.l.b16 %v285
  %v1197 = vunpack.c.h.b16 %v285
  %v1198 = vunpack.c.l.b16 %v286
  %v1199 = vunpack.c.h.b16 %v286
  %v1200 = vunpack.c.l.b16 %v287
  %v1201 = vunpack.c.h.b16 %v287
  %v1202 = vunpack.c.l.b16 %v288
  %v1203 = vunpack.c.h.b16 %v288
  %v1204 = vunpack.c.l.b16 %v289
  %v1205 = vunpack.c.h.b16 %v289
  %v1206 = vunpack.c.l.b16 %v290
  %v1207 = vunpack.c.h.b16 %v290
  %v1208 = vunpack.c.l.b16 %v291
  %v1209 = vunpack.c.h.b16 %v291
  %v1210 = vunpack.c.l.b16 %v292
  %v1211 = vunpack.c.h.b16 %v292
  %v1212 = vunpack.c.l.b16 %v293
  %v1213 = vunpack.c.h.b16 %v293
  %v1214 = vunpack.c.l.b16 %v294
  %v1215 = vunpack.c.h.b16 %v294
  %v1216 = vunpack.c.l.b16 %v295
  %v1217 = vunpack.c.h.b16 %v295
  %v1218 = vunpack.c.l.b16 %v296
  %v1219 = vunpack.c.h.b16 %v296
  %v1220 = vunpack.c.l.b16 %v297
  %v1221 = vunpack.c.h.b16 %v297
  %v1222 = vunpack.c.l.b16 %v298
  %v1223 = vunpack.c.h.b16 %v298
  %v1224 = vunpack.c.l.b16 %v299
  %v1225 = vunpack.c.h.b16 %v299
  %v1226 = vunpack.c.l.b16 %v300
  %v1227 = vunpack.c.h.b16 %v300
  %v1228 = vunpack.c.l.b16 %v301
  %v1229 = vunpack.c.h.b16 %v301
  %v1230 = vpack.c.b16 %v720, %v718
  %v1231 = vpack.c.b16 %v721, %v719
  %v1232 = vpack.c.b16 %v724, %v722
  %v1233 = vpack.c.b16 %v725, %v723
  %v1234 = vpack.c.b16 %v728, %v726
  %v1235 = vpack.c.b16 %v729, %v727
  %v1236 = vpack.c.b16 %v732, %v730
  %v1237 = vpack.c.b16 %v733, %v731
  %v1238 = vpack.c.b16 %v736, %v734
  %v1239 = vpack.c.b16 %v737, %v735
  %v1240 = vpack.c.b16 %v740, %v738
  %v1241 = vpack.c.b16 %v741, %v739
  %v1242 = vpack.c.b16 %v744, %v742
  %v1243 = vpack.c.b16 %v745, %v743
  %v1244 = vpack.c.b16 %v748, %v746
  %v1245 = vpack.c.b16 %v749, %v747
  %v1246 = vpack.c.b16 %v752, %v750
  %v1247 = vpack.c.b16 %v753, %v751
  %v1248 = vpack.c.b16 %v756, %v754
  %v1249 = vpack.c.b16 %v757, %v755
  %v1250 = vpack.c.b16 %v760, %v758
  %v1251 = vpack.c.b16 %v761, %v759
  %v1252 = vpack.c.b16 %v764, %v762
  %v1253 = vpack.c.b16 %v765, %v763
  %v1254 = vpack.c.b16 %v768, %v766
  %v1255 = vpack.c.b16 %v769, %v767
  %v1256 = vpack.c.b16 %v772, %v770
  %v1257 = vpack.c.b16 %v773, %v771
  %v1258 = vpack.c.b16 %v776, %v774
  %v1259 = vpack.c.b16 %v777, %v775
  %v1260 = vpack.c.b16 %v780, %v778
  %v1261 = vpack.c.b16 %v781, %v779
  %v1262 = vpack.c.b16 %v784, %v782
  %v1263 = vpack.c.b16 %v785, %v783
  %v1264 = vpack.c.b16 %v788, %v786
  %v1265 = vpack.c.b16 %v789, %v787
  %v1266 = vpack.c.b16 %v792, %v790
  %v1267 = vpack.c.b16 %v793, %v791
  %v1268 = vpack.c.b16 %v796, %v794
  %v1269 = vpack.c.b16 %v797, %v795
  %v1270 = vpack.c.b16 %v800, %v798
  %v1271 = vpack.c.b16 %v801, %v799
  %v1272 = vpack.c.b16 %v804, %v802
  %v1273 = vpack.c.b16 %v805, %v803
  %v1274 = vpack.c.b16 %v808, %v806
  %v1275 = vpack.c.b16 %v809, %v807
  %v1276 = vpack.c.b16 %v812, %v810
  %v1277 = vpack.c.b16 %v813, %v811
  %v1278 = vpack.c.b16 %v816, %v814
  %v1279 = vpack.c.b16 %v817, %v815
  %v1280 = vpack.c.b16 %v820, %v818
  %v1281 = vpack.c.b16 %v821, %v819
  %v1282 = vpack.c.b16 %v824, %v822
  %v1283 = vpack.c.b16 %v825, %v823
  %v1284 = vpack.c.b16 %v828, %v826
  %v1285 = vpack.c.b16 %v829, %v827
  %v1286 = vpack.c.b16 %v832, %v830
  %v1287 = vpack.c.b16 %v833, %v831
  %v1288 = vpack.c.b16 %v836, %v834
  %v1289 = vpack.c.b16 %v837, %v835
  %v1290 = vpack.c.b16 %v840, %v838
  %v1291 = vpack.c.b16 %v841, %v839
  %v1292 = vpack.c.b16 %v844, %v842
  %v1293 = vpack.c.b16 %v845, %v843
  %v1294 = vpack.c.b16 %v848, %v846
  %v1295 = vpack.c.b16 %v849, %v847
  %v1296 = vpack.c.b16 %v852, %v850
  %v1297 = vpack.c.b16 %v853, %v851
  %v1298 = vpack.c.b16 %v856, %v854
  %v1299 = vpack.c.b16 %v857, %v855
  %v1300 = vpack.c.b16 %v860, %v858
  %v1301 = vpack.c.b16 %v861, %v859
  %v1302 = vpack.c.b16 %v864, %v862
  %v1303 = vpack.c.b16 %v865, %v863
  %v1304 = vpack.c.b16 %v868, %v866
  %v1305 = vpack.c.b16 %v869, %v867
  %v1306 = vpack.c.b16 %v872, %v870
  %v1307 = vpack.c.b16 %v873, %v871
  %v1308 = vpack.c.b16 %v876, %v874
  %v1309 = vpack.c.b16 %v877, %v875
  %v1310 = vpack.c.b16 %v880, %v878
  %v1311 = vpack.c.b16 %v881, %v879
  %v1312 = vpack.c.b16 %v884, %v882
  %v1313 = vpack.c.b16 %v885, %v883
  %v1314 = vpack.c.b16 %v888, %v886
  %v1315 = vpack.c.b16 %v889, %v887
  %v1316 = vpack.c.b16 %v892, %v890
  %v1317 = vpack.c.b16 %v893, %v891
  %v1318 = vpack.c.b16 %v896, %v894
  %v1319 = vpack.c.b16 %v897, %v895
  %v1320 = vpack.c.b16 %v900, %v898
  %v1321 = vpack.c.b16 %v901, %v899
  %v1322 = vpack.c.b16 %v904, %v902
  %v1323 = vpack.c.b16 %v905, %v903
  %v1324 = vpack.c.b16 %v908, %v906
  %v1325 = vpack.c.b16 %v909, %v907
  %v1326 = vpack.c.b16 %v912, %v910
  %v1327 = vpack.c.b16 %v913, %v911
  %v1328 = vpack.c.b16 %v916, %v914
  %v1329 = vpack.c.b16 %v917, %v915
  %v1330 = vpack.c.b16 %v920, %v918
  %v1331 = vpack.c.b16 %v921, %v919
  %v1332 = vpack.c.b16 %v924, %v922
  %v1333 = vpack.c.b16 %v925, %v923
  %v1334 = vpack.c.b16 %v928, %v926
  %v1335 = vpack.c.b16 %v929, %v927
  %v1336 = vpack.c.b16 %v932, %v930
  %v1337 = vpack.c.b16 %v933, %v931
  %v1338 = vpack.c.b16 %v936, %v934
  %v1339 = vpack.c.b16 %v937, %v935
  %v1340 = vpack.c.b16 %v940, %v938
  %v1341 = vpack.c.b16 %v941, %v939
  %v1342 = vpack.c.b16 %v944, %v942
  %v1343 = vpack.c.b16 %v945, %v943
  %v1344 = vpack.c.b16 %v948, %v946
  %v1345 = vpack.c.b16 %v949, %v947
  %v1346 = vpack.c.b16 %v952, %v950
  %v1347 = vpack.c.b16 %v953, %v951
  %v1348 = vpack.c.b16 %v956, %v954
  %v1349 = vpack.c.b16 %v957, %v955
  %v1350 = vpack.c.b16 %v960, %v958
  %v1351 = vpack.c.b16 %v961, %v959
  %v1352 = vpack.c.b16 %v964, %v962
  %v1353 = vpack.c.b16 %v965, %v963
  %v1354 = vpack.c.b16 %v968, %v966
  %v1355 = vpack.c.b16 %v969, %v967
  %v1356 = vpack.c.b16 %v972, %v970
  %v1357 = vpack.c.b16 %v973, %v971
  %v1358 = vpack.c.b16 %v976, %v974
  %v1359 = vpack.c.b16 %v977, %v975
  %v1360 = vpack.c.b16 %v980, %v978
  %v1361 = vpack.c.b16 %v981, %v979
  %v1362 = vpack.c.b16 %v984, %v982
  %v1363 = vpack.c.b16 %v985, %v983
  %v1364 = vpack.c.b16 %v988, %v986
  %v1365 = vpack.c.b16 %v989, %v987
  %v1366 = vpack.c.b16 %v992, %v990
  %v1367 = vpack.c.b16 %v993, %v991
  %v1368 = vpack.c.b16 %v996, %v994
  %v1369 = vpack.c.b16 %v997, %v995
  %v1370 = vpack.c.b16 %v1000, %v998
  %v1371 = vpack.c.b16 %v1001, %v999
  %v1372 = vpack.c.b16 %v1004, %v1002
  %v1373 = vpack.c.b16 %v1005, %v1003
  %v1374 = vpack.c.b16 %v1008, %v1006
  %v1375 = vpack.c.b16 %v1009, %v1007
  %v1376 = vpack.c.b16 %v1012, %v1010
  %v1377 = vpack.c.b16 %v1013, %v1011
  %v1378 = vpack.c.b16 %v1016, %v1014
  %v1379 = vpack.c.b16 %v1017, %v1015
  %v1380 = vpack.c.b16 %v1020, %v1018
  %v1381 = vpack.c.b16 %v1021, %v1019
  %v1382 = vpack.c.b16 %v1024, %v1022
  %v1383 = vpack.c.b16 %v1025, %v1023
  %v1384 = vpack.c.b16 %v1028, %v1026
  %v1385 = vpack.c.b16 %v1029, %v1027
  %v1386 = vpack.c.b16 %v1032, %v1030
  %v1387 = vpack.c.b16 %v1033, %v1031
  %v1388 = vpack.c.b16 %v1036, %v1034
  %v1389 = vpack.c.b16 %v1037, %v1035
  %v1390 = vpack.c.b16 %v1040, %v1038
  %v1391 = vpack.c.b16 %v1041, %v1039
  %v1392 = vpack.c.b16 %v1044, %v1042
  %v1393 = vpack.c.b16 %v1045, %v1043
  %v1394 = vpack.c.b16 %v1048, %v1046
  %v1395 = vpack.c.b16 %v1049, %v1047
  %v1396 = vpack.c.b16 %v1052, %v1050
  %v1397 = vpack.c.b16 %v1053, %v1051
  %v1398 = vpack.c.b16 %v1056, %v1054
  %v1399 = vpack.c.b16 %v1057, %v1055
  %v1400 = vpack.c.b16 %v1060, %v1058
  %v1401 = vpack.c.b16 %v1061, %v1059
  %v1402 = vpack.c.b16 %v1064, %v1062
  %v1403 = vpack.c.b16 %v1065, %v1063
  %v1404 = vpack.c.b16 %v1068, %v1066
  %v1405 = vpack.c.b16 %v1069, %v1067
  %v1406 = vpack.c.b16 %v1072, %v1070
  %v1407 = vpack.c.b16 %v1073, %v1071
  %v1408 = vpack.c.b16 %v1076, %v1074
  %v1409 = vpack.c.b16 %v1077, %v1075
  %v1410 = vpack.c.b16 %v1080, %v1078
  %v1411 = vpack.c.b16 %v1081, %v1079
  %v1412 = vpack.c.b16 %v1084, %v1082
  %v1413 = vpack.c.b16 %v1085, %v1083
  %v1414 = vpack.c.b16 %v1088, %v1086
  %v1415 = vpack.c.b16 %v1089, %v1087
  %v1416 = vpack.c.b16 %v1092, %v1090
  %v1417 = vpack.c.b16 %v1093, %v1091
  %v1418 = vpack.c.b16 %v1096, %v1094
  %v1419 = vpack.c.b16 %v1097, %v1095
  %v1420 = vpack.c.b16 %v1100, %v1098
  %v1421 = vpack.c.b16 %v1101, %v1099
  %v1422 = vpack.c.b16 %v1104, %v1102
  %v1423 = vpack.c.b16 %v1105, %v1103
  %v1424 = vpack.c.b16 %v1108, %v1106
  %v1425 = vpack.c.b16 %v1109, %v1107
  %v1426 = vpack.c.b16 %v1112, %v1110
  %v1427 = vpack.c.b16 %v1113, %v1111
  %v1428 = vpack.c.b16 %v1116, %v1114
  %v1429 = vpack.c.b16 %v1117, %v1115
  %v1430 = vpack.c.b16 %v1120, %v1118
  %v1431 = vpack.c.b16 %v1121, %v1119
  %v1432 = vpack.c.b16 %v1124, %v1122
  %v1433 = vpack.c.b16 %v1125, %v1123
  %v1434 = vpack.c.b16 %v1128, %v1126
  %v1435 = vpack.c.b16 %v1129, %v1127
  %v1436 = vpack.c.b16 %v1132, %v1130
  %v1437 = vpack.c.b16 %v1133, %v1131
  %v1438 = vpack.c.b16 %v1136, %v1134
  %v1439 = vpack.c.b16 %v1137, %v1135
  %v1440 = vpack.c.b16 %v1140, %v1138
  %v1441 = vpack.c.b16 %v1141, %v1139
  %v1442 = vpack.c.b16 %v1144, %v1142
  %v1443 = vpack.c.b16 %v1145, %v1143
  %v1444 = vpack.c.b16 %v1148, %v1146
  %v1445 = vpack.c.b16 %v1149, %v1147
  %v1446 = vpack.c.b16 %v1152, %v1150
  %v1447 = vpack.c.b16 %v1153, %v1151
  %v1448 = vpack.c.b16 %v1156, %v1154
  %v1449 = vpack.c.b16 %v1157, %v1155
  %v1450 = vpack.c.b16 %v1160, %v1158
  %v1451 = vpack.c.b16 %v1161, %v1159
  %v1452 = vpack.c.b16 %v1164, %v1162
  %v1453 = vpack.c.b16 %v1165, %v1163
  %v1454 = vpack.c.b16 %v1168, %v1166
  %v1455 = vpack.c.b16 %v1169, %v1167
  %v1456 = vpack.c.b16 %v1172, %v1170
  %v1457 = vpack.c.b16 %v1173, %v1171
  %v1458 = vpack.c.b16 %v1176, %v1174
  %v1459 = vpack.c.b16 %v1177, %v1175
  %v1460 = vpack.c.b16 %v1180, %v1178
  %v1461 = vpack.c.b16 %v1181, %v1179
  %v1462 = vpack.c.b16 %v1184, %v1182
  %v1463 = vpack.c.b16 %v1185, %v1183
  %v1464 = vpack.c.b16 %v1188, %v1186
  %v1465 = vpack.c.b16 %v1189, %v1187
  %v1466 = vpack.c.b16 %v1192, %v1190
  %v1467 = vpack.c.b16 %v1193, %v1191
  %v1468 = vpack.c.b16 %v1196, %v1194
  %v1469 = vpack.c.b16 %v1197, %v1195
  %v1470 = vpack.c.b16 %v1200, %v1198
  %v1471 = vpack.c.b16 %v1201, %v1199
  %v1472 = vpack.c.b16 %v1204, %v1202
  %v1473 = vpack.c.b16 %v1205, %v1203
  %v1474 = vpack.c.b16 %v1208, %v1206
  %v1475 = vpack.c.b16 %v1209, %v1207
  %v1476 = vpack.c.b16 %v1212, %v1210
  %v1477 = vpack.c.b16 %v1213, %v1211
  %v1478 = vpack.c.b16 %v1216, %v1214
  %v1479 = vpack.c.b16 %v1217, %v1215
  %v1480 = vpack.c.b16 %v1220, %v1218
  %v1481 = vpack.c.b16 %v1221, %v1219
  %v1482 = vpack.c.b16 %v1224, %v1222
  %v1483 = vpack.c.b16 %v1225, %v1223
  %v1484 = vpack.c.b16 %v1228, %v1226
  %v1485 = vpack.c.b16 %v1229, %v1227
  %1742 = vmatprep.subr.bf16.mxu0 %v1245
  %1743 = vmatpush1.bf16.msra.mxu0 %v1244
  %1744 = vmatprep.subr.bf16.mxu0 %v1243
  %1745 = vmatpush1.bf16.msra.mxu0 %v1242
  %1746 = vmatprep.subr.bf16.mxu0 %v1241
  %1747 = vmatpush1.bf16.msra.mxu0 %v1240
  %1748 = vmatprep.subr.bf16.mxu0 %v1239
  %1749 = vmatpush1.bf16.msra.mxu0 %v1238
  %1750 = vmatprep.subr.bf16.mxu0 %v1237
  %1751 = vmatpush1.bf16.msra.mxu0 %v1236
  %1752 = vmatprep.subr.bf16.mxu0 %v1235
  %1753 = vmatpush1.bf16.msra.mxu0 %v1234
  %1754 = vmatprep.subr.bf16.mxu0 %v1233
  %1755 = vmatpush1.bf16.msra.mxu0 %v1232
  %1756 = vmatprep.subr.bf16.mxu0 %v1231
  %1757 = vmatpush1.bf16.msra.mxu0 %v1230
  %1758 = vmatprep.subr.bf16.mxu0 %v1261
  %1759 = vmatpush2.bf16.msra.mxu0 %v1260
  %1760 = vmatprep.subr.bf16.mxu0 %v1259
  %1761 = vmatpush2.bf16.msra.mxu0 %v1258
  %1762 = vmatprep.subr.bf16.mxu0 %v1257
  %1763 = vmatpush2.bf16.msra.mxu0 %v1256
  %1764 = vmatprep.subr.bf16.mxu0 %v1255
  %1765 = vmatpush2.bf16.msra.mxu0 %v1254
  %1766 = vmatprep.subr.bf16.mxu0 %v1253
  %1767 = vmatpush2.bf16.msra.mxu0 %v1252
  %1768 = vmatprep.subr.bf16.mxu0 %v1251
  %1769 = vmatpush2.bf16.msra.mxu0 %v1250
  %1770 = vmatprep.subr.bf16.mxu0 %v1249
  %1771 = vmatpush2.bf16.msra.mxu0 %v1248
  %1772 = vmatprep.subr.bf16.mxu0 %v1247
  %1773 = vmatpush2.bf16.msra.mxu0 %v1246
  %1774 = vmatprep.mubr.bf16.mxu0 %v399
  %1775 = vmatmul.mubr.bf16.gmra.mxu0 %v398
  %v1776 = vpop.f32.mrf.mxu0
  %v1777 = vadd.f32 0.0, %v1776
  %v1778 = vpop.f32.mrf.mxu0
  %v1779 = vadd.f32 0.0, %v1778
  %v1780 = vpop.f32.mrf.mxu0
  %v1781 = vadd.f32 0.0, %v1780
  %v1782 = vpop.f32.mrf.mxu0
  %v1783 = vadd.f32 0.0, %v1782
  %1784 = vmatprep.mubr.bf16.mxu0 %v415
  %1785 = vmatmul.mubr.bf16.gmra.mxu0 %v414
  %v1786 = vpop.f32.mrf.mxu0
  %v1787 = vadd.f32 0.0, %v1786
  %v1788 = vpop.f32.mrf.mxu0
  %v1789 = vadd.f32 0.0, %v1788
  %v1790 = vpop.f32.mrf.mxu0
  %v1791 = vadd.f32 0.0, %v1790
  %v1792 = vpop.f32.mrf.mxu0
  %v1793 = vadd.f32 0.0, %v1792
  %1794 = vdwg.mxu0
  %1795 = vmatprep.subr.bf16.mxu0 %v1277
  %1796 = vmatpush1.bf16.msra.mxu0 %v1276
  %1797 = vmatprep.subr.bf16.mxu0 %v1275
  %1798 = vmatpush1.bf16.msra.mxu0 %v1274
  %1799 = vmatprep.subr.bf16.mxu0 %v1273
  %1800 = vmatpush1.bf16.msra.mxu0 %v1272
  %1801 = vmatprep.subr.bf16.mxu0 %v1271
  %1802 = vmatpush1.bf16.msra.mxu0 %v1270
  %1803 = vmatprep.subr.bf16.mxu0 %v1269
  %1804 = vmatpush1.bf16.msra.mxu0 %v1268
  %1805 = vmatprep.subr.bf16.mxu0 %v1267
  %1806 = vmatpush1.bf16.msra.mxu0 %v1266
  %1807 = vmatprep.subr.bf16.mxu0 %v1265
  %1808 = vmatpush1.bf16.msra.mxu0 %v1264
  %1809 = vmatprep.subr.bf16.mxu0 %v1263
  %1810 = vmatpush1.bf16.msra.mxu0 %v1262
  %1811 = vmatprep.subr.bf16.mxu0 %v1293
  %1812 = vmatpush2.bf16.msra.mxu0 %v1292
  %1813 = vmatprep.subr.bf16.mxu0 %v1291
  %1814 = vmatpush2.bf16.msra.mxu0 %v1290
  %1815 = vmatprep.subr.bf16.mxu0 %v1289
  %1816 = vmatpush2.bf16.msra.mxu0 %v1288
  %1817 = vmatprep.subr.bf16.mxu0 %v1287
  %1818 = vmatpush2.bf16.msra.mxu0 %v1286
  %1819 = vmatprep.subr.bf16.mxu0 %v1285
  %1820 = vmatpush2.bf16.msra.mxu0 %v1284
  %1821 = vmatprep.subr.bf16.mxu0 %v1283
  %1822 = vmatpush2.bf16.msra.mxu0 %v1282
  %1823 = vmatprep.subr.bf16.mxu0 %v1281
  %1824 = vmatpush2.bf16.msra.mxu0 %v1280
  %1825 = vmatprep.subr.bf16.mxu0 %v1279
  %1826 = vmatpush2.bf16.msra.mxu0 %v1278
  %1827 = vmatprep.mubr.bf16.mxu0 %v401
  %1828 = vmatmul.mubr.bf16.gmra.mxu0 %v400
  %v1829 = vpop.f32.mrf.mxu0
  %v1830 = vadd.f32 %v1777, %v1829
  %v1831 = vpop.f32.mrf.mxu0
  %v1832 = vadd.f32 %v1779, %v1831
  %v1833 = vpop.f32.mrf.mxu0
  %v1834 = vadd.f32 %v1781, %v1833
  %v1835 = vpop.f32.mrf.mxu0
  %v1836 = vadd.f32 %v1783, %v1835
  %1837 = vmatprep.mubr.bf16.mxu0 %v417
  %1838 = vmatmul.mubr.bf16.gmra.mxu0 %v416
  %v1839 = vpop.f32.mrf.mxu0
  %v1840 = vadd.f32 %v1787, %v1839
  %v1841 = vpop.f32.mrf.mxu0
  %v1842 = vadd.f32 %v1789, %v1841
  %v1843 = vpop.f32.mrf.mxu0
  %v1844 = vadd.f32 %v1791, %v1843
  %v1845 = vpop.f32.mrf.mxu0
  %v1846 = vadd.f32 %v1793, %v1845
  %1847 = vdwg.mxu0
  %1848 = vmatprep.subr.bf16.mxu0 %v1309
  %1849 = vmatpush1.bf16.msra.mxu0 %v1308
  %1850 = vmatprep.subr.bf16.mxu0 %v1307
  %1851 = vmatpush1.bf16.msra.mxu0 %v1306
  %1852 = vmatprep.subr.bf16.mxu0 %v1305
  %1853 = vmatpush1.bf16.msra.mxu0 %v1304
  %1854 = vmatprep.subr.bf16.mxu0 %v1303
  %1855 = vmatpush1.bf16.msra.mxu0 %v1302
  %1856 = vmatprep.subr.bf16.mxu0 %v1301
  %1857 = vmatpush1.bf16.msra.mxu0 %v1300
  %1858 = vmatprep.subr.bf16.mxu0 %v1299
  %1859 = vmatpush1.bf16.msra.mxu0 %v1298
  %1860 = vmatprep.subr.bf16.mxu0 %v1297
  %1861 = vmatpush1.bf16.msra.mxu0 %v1296
  %1862 = vmatprep.subr.bf16.mxu0 %v1295
  %1863 = vmatpush1.bf16.msra.mxu0 %v1294
  %1864 = vmatprep.subr.bf16.mxu0 %v1325
  %1865 = vmatpush2.bf16.msra.mxu0 %v1324
  %1866 = vmatprep.subr.bf16.mxu0 %v1323
  %1867 = vmatpush2.bf16.msra.mxu0 %v1322
  %1868 = vmatprep.subr.bf16.mxu0 %v1321
  %1869 = vmatpush2.bf16.msra.mxu0 %v1320
  %1870 = vmatprep.subr.bf16.mxu0 %v1319
  %1871 = vmatpush2.bf16.msra.mxu0 %v1318
  %1872 = vmatprep.subr.bf16.mxu0 %v1317
  %1873 = vmatpush2.bf16.msra.mxu0 %v1316
  %1874 = vmatprep.subr.bf16.mxu0 %v1315
  %1875 = vmatpush2.bf16.msra.mxu0 %v1314
  %1876 = vmatprep.subr.bf16.mxu0 %v1313
  %1877 = vmatpush2.bf16.msra.mxu0 %v1312
  %1878 = vmatprep.subr.bf16.mxu0 %v1311
  %1879 = vmatpush2.bf16.msra.mxu0 %v1310
  %1880 = vmatprep.mubr.bf16.mxu0 %v403
  %1881 = vmatmul.mubr.bf16.gmra.mxu0 %v402
  %v1882 = vpop.f32.mrf.mxu0
  %v1883 = vadd.f32 %v1830, %v1882
  %v1884 = vpop.f32.mrf.mxu0
  %v1885 = vadd.f32 %v1832, %v1884
  %v1886 = vpop.f32.mrf.mxu0
  %v1887 = vadd.f32 %v1834, %v1886
  %v1888 = vpop.f32.mrf.mxu0
  %v1889 = vadd.f32 %v1836, %v1888
  %1890 = vmatprep.mubr.bf16.mxu0 %v419
  %1891 = vmatmul.mubr.bf16.gmra.mxu0 %v418
  %v1892 = vpop.f32.mrf.mxu0
  %v1893 = vadd.f32 %v1840, %v1892
  %v1894 = vpop.f32.mrf.mxu0
  %v1895 = vadd.f32 %v1842, %v1894
  %v1896 = vpop.f32.mrf.mxu0
  %v1897 = vadd.f32 %v1844, %v1896
  %v1898 = vpop.f32.mrf.mxu0
  %v1899 = vadd.f32 %v1846, %v1898
  %1900 = vdwg.mxu0
  %1901 = vmatprep.subr.bf16.mxu0 %v1341
  %1902 = vmatpush1.bf16.msra.mxu0 %v1340
  %1903 = vmatprep.subr.bf16.mxu0 %v1339
  %1904 = vmatpush1.bf16.msra.mxu0 %v1338
  %1905 = vmatprep.subr.bf16.mxu0 %v1337
  %1906 = vmatpush1.bf16.msra.mxu0 %v1336
  %1907 = vmatprep.subr.bf16.mxu0 %v1335
  %1908 = vmatpush1.bf16.msra.mxu0 %v1334
  %1909 = vmatprep.subr.bf16.mxu0 %v1333
  %1910 = vmatpush1.bf16.msra.mxu0 %v1332
  %1911 = vmatprep.subr.bf16.mxu0 %v1331
  %1912 = vmatpush1.bf16.msra.mxu0 %v1330
  %1913 = vmatprep.subr.bf16.mxu0 %v1329
  %1914 = vmatpush1.bf16.msra.mxu0 %v1328
  %1915 = vmatprep.subr.bf16.mxu0 %v1327
  %1916 = vmatpush1.bf16.msra.mxu0 %v1326
  %1917 = vmatprep.subr.bf16.mxu0 %v1357
  %1918 = vmatpush2.bf16.msra.mxu0 %v1356
  %1919 = vmatprep.subr.bf16.mxu0 %v1355
  %1920 = vmatpush2.bf16.msra.mxu0 %v1354
  %1921 = vmatprep.subr.bf16.mxu0 %v1353
  %1922 = vmatpush2.bf16.msra.mxu0 %v1352
  %1923 = vmatprep.subr.bf16.mxu0 %v1351
  %1924 = vmatpush2.bf16.msra.mxu0 %v1350
  %1925 = vmatprep.subr.bf16.mxu0 %v1349
  %1926 = vmatpush2.bf16.msra.mxu0 %v1348
  %1927 = vmatprep.subr.bf16.mxu0 %v1347
  %1928 = vmatpush2.bf16.msra.mxu0 %v1346
  %1929 = vmatprep.subr.bf16.mxu0 %v1345
  %1930 = vmatpush2.bf16.msra.mxu0 %v1344
  %1931 = vmatprep.subr.bf16.mxu0 %v1343
  %1932 = vmatpush2.bf16.msra.mxu0 %v1342
  %1933 = vmatprep.mubr.bf16.mxu0 %v405
  %1934 = vmatmul.mubr.bf16.gmra.mxu0 %v404
  %v1935 = vpop.f32.mrf.mxu0
  %v1936 = vadd.f32 %v1883, %v1935
  %v1937 = vpop.f32.mrf.mxu0
  %v1938 = vadd.f32 %v1885, %v1937
  %v1939 = vpop.f32.mrf.mxu0
  %v1940 = vadd.f32 %v1887, %v1939
  %v1941 = vpop.f32.mrf.mxu0
  %v1942 = vadd.f32 %v1889, %v1941
  %1943 = vmatprep.mubr.bf16.mxu0 %v421
  %1944 = vmatmul.mubr.bf16.gmra.mxu0 %v420
  %v1945 = vpop.f32.mrf.mxu0
  %v1946 = vadd.f32 %v1893, %v1945
  %v1947 = vpop.f32.mrf.mxu0
  %v1948 = vadd.f32 %v1895, %v1947
  %v1949 = vpop.f32.mrf.mxu0
  %v1950 = vadd.f32 %v1897, %v1949
  %v1951 = vpop.f32.mrf.mxu0
  %v1952 = vadd.f32 %v1899, %v1951
  %1953 = vdwg.mxu0
  %1954 = vmatprep.subr.bf16.mxu0 %v1373
  %1955 = vmatpush1.bf16.msra.mxu0 %v1372
  %1956 = vmatprep.subr.bf16.mxu0 %v1371
  %1957 = vmatpush1.bf16.msra.mxu0 %v1370
  %1958 = vmatprep.subr.bf16.mxu0 %v1369
  %1959 = vmatpush1.bf16.msra.mxu0 %v1368
  %1960 = vmatprep.subr.bf16.mxu0 %v1367
  %1961 = vmatpush1.bf16.msra.mxu0 %v1366
  %1962 = vmatprep.subr.bf16.mxu0 %v1365
  %1963 = vmatpush1.bf16.msra.mxu0 %v1364
  %1964 = vmatprep.subr.bf16.mxu0 %v1363
  %1965 = vmatpush1.bf16.msra.mxu0 %v1362
  %1966 = vmatprep.subr.bf16.mxu0 %v1361
  %1967 = vmatpush1.bf16.msra.mxu0 %v1360
  %1968 = vmatprep.subr.bf16.mxu0 %v1359
  %1969 = vmatpush1.bf16.msra.mxu0 %v1358
  %1970 = vmatprep.subr.bf16.mxu0 %v1389
  %1971 = vmatpush2.bf16.msra.mxu0 %v1388
  %1972 = vmatprep.subr.bf16.mxu0 %v1387
  %1973 = vmatpush2.bf16.msra.mxu0 %v1386
  %1974 = vmatprep.subr.bf16.mxu0 %v1385
  %1975 = vmatpush2.bf16.msra.mxu0 %v1384
  %1976 = vmatprep.subr.bf16.mxu0 %v1383
  %1977 = vmatpush2.bf16.msra.mxu0 %v1382
  %1978 = vmatprep.subr.bf16.mxu0 %v1381
  %1979 = vmatpush2.bf16.msra.mxu0 %v1380
  %1980 = vmatprep.subr.bf16.mxu0 %v1379
  %1981 = vmatpush2.bf16.msra.mxu0 %v1378
  %1982 = vmatprep.subr.bf16.mxu0 %v1377
  %1983 = vmatpush2.bf16.msra.mxu0 %v1376
  %1984 = vmatprep.subr.bf16.mxu0 %v1375
  %1985 = vmatpush2.bf16.msra.mxu0 %v1374
  %1986 = vmatprep.mubr.bf16.mxu0 %v407
  %1987 = vmatmul.mubr.bf16.gmra.mxu0 %v406
  %v1988 = vpop.f32.mrf.mxu0
  %v1989 = vadd.f32 %v1936, %v1988
  %v1990 = vpop.f32.mrf.mxu0
  %v1991 = vadd.f32 %v1938, %v1990
  %v1992 = vpop.f32.mrf.mxu0
  %v1993 = vadd.f32 %v1940, %v1992
  %v1994 = vpop.f32.mrf.mxu0
  %v1995 = vadd.f32 %v1942, %v1994
  %1996 = vmatprep.mubr.bf16.mxu0 %v423
  %1997 = vmatmul.mubr.bf16.gmra.mxu0 %v422
  %v1998 = vpop.f32.mrf.mxu0
  %v1999 = vadd.f32 %v1946, %v1998
  %v2000 = vpop.f32.mrf.mxu0
  %v2001 = vadd.f32 %v1948, %v2000
  %v2002 = vpop.f32.mrf.mxu0
  %v2003 = vadd.f32 %v1950, %v2002
  %v2004 = vpop.f32.mrf.mxu0
  %v2005 = vadd.f32 %v1952, %v2004
  %2006 = vdwg.mxu0
  %2007 = vmatprep.subr.bf16.mxu0 %v1405
  %2008 = vmatpush1.bf16.msra.mxu0 %v1404
  %2009 = vmatprep.subr.bf16.mxu0 %v1403
  %2010 = vmatpush1.bf16.msra.mxu0 %v1402
  %2011 = vmatprep.subr.bf16.mxu0 %v1401
  %2012 = vmatpush1.bf16.msra.mxu0 %v1400
  %2013 = vmatprep.subr.bf16.mxu0 %v1399
  %2014 = vmatpush1.bf16.msra.mxu0 %v1398
  %2015 = vmatprep.subr.bf16.mxu0 %v1397
  %2016 = vmatpush1.bf16.msra.mxu0 %v1396
  %2017 = vmatprep.subr.bf16.mxu0 %v1395
  %2018 = vmatpush1.bf16.msra.mxu0 %v1394
  %2019 = vmatprep.subr.bf16.mxu0 %v1393
  %2020 = vmatpush1.bf16.msra.mxu0 %v1392
  %2021 = vmatprep.subr.bf16.mxu0 %v1391
  %2022 = vmatpush1.bf16.msra.mxu0 %v1390
  %2023 = vmatprep.subr.bf16.mxu0 %v1421
  %2024 = vmatpush2.bf16.msra.mxu0 %v1420
  %2025 = vmatprep.subr.bf16.mxu0 %v1419
  %2026 = vmatpush2.bf16.msra.mxu0 %v1418
  %2027 = vmatprep.subr.bf16.mxu0 %v1417
  %2028 = vmatpush2.bf16.msra.mxu0 %v1416
  %2029 = vmatprep.subr.bf16.mxu0 %v1415
  %2030 = vmatpush2.bf16.msra.mxu0 %v1414
  %2031 = vmatprep.subr.bf16.mxu0 %v1413
  %2032 = vmatpush2.bf16.msra.mxu0 %v1412
  %2033 = vmatprep.subr.bf16.mxu0 %v1411
  %2034 = vmatpush2.bf16.msra.mxu0 %v1410
  %2035 = vmatprep.subr.bf16.mxu0 %v1409
  %2036 = vmatpush2.bf16.msra.mxu0 %v1408
  %2037 = vmatprep.subr.bf16.mxu0 %v1407
  %2038 = vmatpush2.bf16.msra.mxu0 %v1406
  %2039 = vmatprep.mubr.bf16.mxu0 %v409
  %2040 = vmatmul.mubr.bf16.gmra.mxu0 %v408
  %v2041 = vpop.f32.mrf.mxu0
  %v2042 = vadd.f32 %v1989, %v2041
  %v2043 = vpop.f32.mrf.mxu0
  %v2044 = vadd.f32 %v1991, %v2043
  %v2045 = vpop.f32.mrf.mxu0
  %v2046 = vadd.f32 %v1993, %v2045
  %v2047 = vpop.f32.mrf.mxu0
  %v2048 = vadd.f32 %v1995, %v2047
  %2049 = vmatprep.mubr.bf16.mxu0 %v425
  %2050 = vmatmul.mubr.bf16.gmra.mxu0 %v424
  %v2051 = vpop.f32.mrf.mxu0
  %v2052 = vadd.f32 %v1999, %v2051
  %v2053 = vpop.f32.mrf.mxu0
  %v2054 = vadd.f32 %v2001, %v2053
  %v2055 = vpop.f32.mrf.mxu0
  %v2056 = vadd.f32 %v2003, %v2055
  %v2057 = vpop.f32.mrf.mxu0
  %v2058 = vadd.f32 %v2005, %v2057
  %2059 = vdwg.mxu0
  %2060 = vmatprep.subr.bf16.mxu0 %v1437
  %2061 = vmatpush1.bf16.msra.mxu0 %v1436
  %2062 = vmatprep.subr.bf16.mxu0 %v1435
  %2063 = vmatpush1.bf16.msra.mxu0 %v1434
  %2064 = vmatprep.subr.bf16.mxu0 %v1433
  %2065 = vmatpush1.bf16.msra.mxu0 %v1432
  %2066 = vmatprep.subr.bf16.mxu0 %v1431
  %2067 = vmatpush1.bf16.msra.mxu0 %v1430
  %2068 = vmatprep.subr.bf16.mxu0 %v1429
  %2069 = vmatpush1.bf16.msra.mxu0 %v1428
  %2070 = vmatprep.subr.bf16.mxu0 %v1427
  %2071 = vmatpush1.bf16.msra.mxu0 %v1426
  %2072 = vmatprep.subr.bf16.mxu0 %v1425
  %2073 = vmatpush1.bf16.msra.mxu0 %v1424
  %2074 = vmatprep.subr.bf16.mxu0 %v1423
  %2075 = vmatpush1.bf16.msra.mxu0 %v1422
  %2076 = vmatprep.subr.bf16.mxu0 %v1453
  %2077 = vmatpush2.bf16.msra.mxu0 %v1452
  %2078 = vmatprep.subr.bf16.mxu0 %v1451
  %2079 = vmatpush2.bf16.msra.mxu0 %v1450
  %2080 = vmatprep.subr.bf16.mxu0 %v1449
  %2081 = vmatpush2.bf16.msra.mxu0 %v1448
  %2082 = vmatprep.subr.bf16.mxu0 %v1447
  %2083 = vmatpush2.bf16.msra.mxu0 %v1446
  %2084 = vmatprep.subr.bf16.mxu0 %v1445
  %2085 = vmatpush2.bf16.msra.mxu0 %v1444
  %2086 = vmatprep.subr.bf16.mxu0 %v1443
  %2087 = vmatpush2.bf16.msra.mxu0 %v1442
  %2088 = vmatprep.subr.bf16.mxu0 %v1441
  %2089 = vmatpush2.bf16.msra.mxu0 %v1440
  %2090 = vmatprep.subr.bf16.mxu0 %v1439
  %2091 = vmatpush2.bf16.msra.mxu0 %v1438
  %2092 = vmatprep.mubr.bf16.mxu0 %v411
  %2093 = vmatmul.mubr.bf16.gmra.mxu0 %v410
  %v2094 = vpop.f32.mrf.mxu0
  %v2095 = vadd.f32 %v2042, %v2094
  %v2096 = vpop.f32.mrf.mxu0
  %v2097 = vadd.f32 %v2044, %v2096
  %v2098 = vpop.f32.mrf.mxu0
  %v2099 = vadd.f32 %v2046, %v2098
  %v2100 = vpop.f32.mrf.mxu0
  %v2101 = vadd.f32 %v2048, %v2100
  %2102 = vmatprep.mubr.bf16.mxu0 %v427
  %2103 = vmatmul.mubr.bf16.gmra.mxu0 %v426
  %v2104 = vpop.f32.mrf.mxu0
  %v2105 = vadd.f32 %v2052, %v2104
  %v2106 = vpop.f32.mrf.mxu0
  %v2107 = vadd.f32 %v2054, %v2106
  %v2108 = vpop.f32.mrf.mxu0
  %v2109 = vadd.f32 %v2056, %v2108
  %v2110 = vpop.f32.mrf.mxu0
  %v2111 = vadd.f32 %v2058, %v2110
  %2112 = vdwg.mxu0
  %2113 = vmatprep.subr.bf16.mxu0 %v1469
  %2114 = vmatpush1.bf16.msra.mxu0 %v1468
  %2115 = vmatprep.subr.bf16.mxu0 %v1467
  %2116 = vmatpush1.bf16.msra.mxu0 %v1466
  %2117 = vmatprep.subr.bf16.mxu0 %v1465
  %2118 = vmatpush1.bf16.msra.mxu0 %v1464
  %2119 = vmatprep.subr.bf16.mxu0 %v1463
  %2120 = vmatpush1.bf16.msra.mxu0 %v1462
  %2121 = vmatprep.subr.bf16.mxu0 %v1461
  %2122 = vmatpush1.bf16.msra.mxu0 %v1460
  %2123 = vmatprep.subr.bf16.mxu0 %v1459
  %2124 = vmatpush1.bf16.msra.mxu0 %v1458
  %2125 = vmatprep.subr.bf16.mxu0 %v1457
  %2126 = vmatpush1.bf16.msra.mxu0 %v1456
  %2127 = vmatprep.subr.bf16.mxu0 %v1455
  %2128 = vmatpush1.bf16.msra.mxu0 %v1454
  %2129 = vmatprep.subr.bf16.mxu0 %v1485
  %2130 = vmatpush2.bf16.msra.mxu0 %v1484
  %2131 = vmatprep.subr.bf16.mxu0 %v1483
  %2132 = vmatpush2.bf16.msra.mxu0 %v1482
  %2133 = vmatprep.subr.bf16.mxu0 %v1481
  %2134 = vmatpush2.bf16.msra.mxu0 %v1480
  %2135 = vmatprep.subr.bf16.mxu0 %v1479
  %2136 = vmatpush2.bf16.msra.mxu0 %v1478
  %2137 = vmatprep.subr.bf16.mxu0 %v1477
  %2138 = vmatpush2.bf16.msra.mxu0 %v1476
  %2139 = vmatprep.subr.bf16.mxu0 %v1475
  %2140 = vmatpush2.bf16.msra.mxu0 %v1474
  %2141 = vmatprep.subr.bf16.mxu0 %v1473
  %2142 = vmatpush2.bf16.msra.mxu0 %v1472
  %2143 = vmatprep.subr.bf16.mxu0 %v1471
  %2144 = vmatpush2.bf16.msra.mxu0 %v1470
  %2145 = vmatprep.mubr.bf16.mxu0 %v413
  %2146 = vmatmul.mubr.bf16.gmra.mxu0 %v412
  %v2147 = vpop.f32.mrf.mxu0
  %v2148 = vadd.f32 %v2095, %v2147
  %v2149 = vpop.f32.mrf.mxu0
  %v2150 = vadd.f32 %v2097, %v2149
  %v2151 = vpop.f32.mrf.mxu0
  %v2152 = vadd.f32 %v2099, %v2151
  %v2153 = vpop.f32.mrf.mxu0
  %v2154 = vadd.f32 %v2101, %v2153
  %2155 = vmatprep.mubr.bf16.mxu0 %v429
  %2156 = vmatmul.mubr.bf16.gmra.mxu0 %v428
  %v2157 = vpop.f32.mrf.mxu0
  %v2158 = vadd.f32 %v2105, %v2157
  %v2159 = vpop.f32.mrf.mxu0
  %v2160 = vadd.f32 %v2107, %v2159
  %v2161 = vpop.f32.mrf.mxu0
  %v2162 = vadd.f32 %v2109, %v2161
  %v2163 = vpop.f32.mrf.mxu0
  %v2164 = vadd.f32 %v2111, %v2163
  %2165 = vdwg.mxu0
  %2166 = vst [vmem:[%s2] sm:$0xff] %v2148
  %2167 = vst [vmem:[%s2 + $0x8] sm:$0xff] %v2150
  %2168 = vst [vmem:[%s2 + $0x10] sm:$0xff] %v2152
  %2169 = vst [vmem:[%s2 + $0x18] sm:$0xff] %v2154
  %2170 = vst [vmem:[%s2 + $0x20] sm:$0xff] %v2158
  %2171 = vst [vmem:[%s2 + $0x28] sm:$0xff] %v2160
  %2172 = vst [vmem:[%s2 + $0x30] sm:$0xff] %v2162
  %2173 = vst [vmem:[%s2 + $0x38] sm:$0xff] %v2164
  %v2174 = vadd.f32 %v2148, %v2152
  %v2175 = vadd.f32 %v2174, %v2158
  %v2176 = vadd.f32 %v2175, %v2162
  %v2177 = vrot.slane %v2176, 4
  %v2178 = vadd.f32 %v2176, %v2177
  %v2179 = vrot.slane %v2178, 2
  %v2180 = vadd.f32 %v2178, %v2179
  %v2181 = vrot.slane %v2180, 1
  %v2182 = vadd.f32 %v2180, %v2181
  %v2183 = vadd.f32 %v2150, %v2154
  %v2184 = vadd.f32 %v2183, %v2160
  %v2185 = vadd.f32 %v2184, %v2164
  %v2186 = vrot.slane %v2185, 4
  %v2187 = vadd.f32 %v2185, %v2186
  %v2188 = vrot.slane %v2187, 2
  %v2189 = vadd.f32 %v2187, %v2188
  %v2190 = vrot.slane %v2189, 1
  %v2191 = vadd.f32 %v2189, %v2190
  %v2194 = vcombine.low %v2182, %v2191
  %v2196 = vunpack.c.l.s4 1966171168
  %v2197 = vunpack.c.0.s8 %v2196
  %v2198 = vlaneseq
  %v2199 = vshrl.u32 %v2198, 7
  %v2200 = vsub.s32 %v2197, %v2199
  %v2201 = vrot.slane %v2194, %v2200
  %v2203 = vunpack.c.l.s4 1966171168
  %v2204 = vunpack.c.0.s8 %v2203
  %v2205 = vlaneseq
  %v2206 = vshrl.u32 %v2205, 7
  %v2207 = vsub.s32 %v2204, %v2206
  %v2208 = vrot.slane %v2201, %v2207
  %v2210 = vlaneseq
  %vm2211 = vcmp.ge.s32.totalorder %v2210, 0
  %vm2212 = vcmp.lt.s32.totalorder %v2210, 256
  %vm2213 = vmand %vm2211, %vm2212
  %2214 = vst.msk [vmem:[%s3] sm:$0x3] %vm2213, %v2208
  %v2215 = vmul.f32 %v2148, %v2148
  %v2216 = vmul.f32 %v2150, %v2150
  %v2217 = vmul.f32 %v2152, %v2152
  %v2218 = vmul.f32 %v2154, %v2154
  %v2219 = vmul.f32 %v2158, %v2158
  %v2220 = vmul.f32 %v2160, %v2160
  %v2221 = vmul.f32 %v2162, %v2162
  %v2222 = vmul.f32 %v2164, %v2164
  %v2223 = vadd.f32 %v2215, %v2217
  %v2224 = vadd.f32 %v2223, %v2219
  %v2225 = vadd.f32 %v2224, %v2221
  %v2226 = vrot.slane %v2225, 4
  %v2227 = vadd.f32 %v2225, %v2226
  %v2228 = vrot.slane %v2227, 2
  %v2229 = vadd.f32 %v2227, %v2228
  %v2230 = vrot.slane %v2229, 1
  %v2231 = vadd.f32 %v2229, %v2230
  %v2232 = vadd.f32 %v2216, %v2218
  %v2233 = vadd.f32 %v2232, %v2220
  %v2234 = vadd.f32 %v2233, %v2222
  %v2235 = vrot.slane %v2234, 4
  %v2236 = vadd.f32 %v2234, %v2235
  %v2237 = vrot.slane %v2236, 2
  %v2238 = vadd.f32 %v2236, %v2237
  %v2239 = vrot.slane %v2238, 1
  %v2240 = vadd.f32 %v2238, %v2239
  %v2243 = vcombine.low %v2231, %v2240
  %v2245 = vunpack.c.l.s4 1966171168
  %v2246 = vunpack.c.0.s8 %v2245
  %v2247 = vlaneseq
  %v2248 = vshrl.u32 %v2247, 7
  %v2249 = vsub.s32 %v2246, %v2248
  %v2250 = vrot.slane %v2243, %v2249
  %v2252 = vunpack.c.l.s4 1966171168
  %v2253 = vunpack.c.0.s8 %v2252
  %v2254 = vlaneseq
  %v2255 = vshrl.u32 %v2254, 7
  %v2256 = vsub.s32 %v2253, %v2255
  %v2257 = vrot.slane %v2250, %v2256
  %2259 = vst.msk [vmem:[%s4] sm:$0x3] %vm2213, %v2257
  // Predicated region
  $region10: #{discriminator_forward.14} parent=0 // pred_check
    _
  $region11: #{discriminator_forward.14} parent=0 // pred_check_branch
    %2261 = sbr.rel (0) target = $region13
  $region12: #{discriminator_forward.14} parent=0 // pred_region
    _
  $region13: #{discriminator_forward.14} parent=0 // pred_fallthru
    _
  // Predicated region
  $region14: #{discriminator_forward.14} parent=0 // pred_check
    _
  $region15: #{discriminator_forward.14} parent=0 // pred_check_branch
    %2263 = sbr.rel (0) target = $region17
  $region16: #{discriminator_forward.14} parent=0 // pred_region
    _
  $region17: #{discriminator_forward.14} parent=0 // pred_fallthru
    _
  // Predicated region
  $region18: #{discriminator_forward.14} parent=0 // pred_check
    _
  $region19: #{discriminator_forward.14} parent=0 // pred_check_branch
    %2265 = sbr.rel (0) target = $region21
  $region20: #{discriminator_forward.14} parent=0 // pred_region
    _
  $region21: #{discriminator_forward.14} parent=0 // pred_fallthru
    _
  // Predicated region
  $region22: #{discriminator_forward.14} parent=0 // pred_check
    _
  $region23: #{discriminator_forward.14} parent=0 // pred_check_branch
    %2267 = sbr.rel (0) target = $region25
  $region24: #{discriminator_forward.14} parent=0 // pred_region
    _
  $region25: #{discriminator_forward.14} parent=0 // pred_fallthru
    _
  // Predicated region
  $region26: #{discriminator_forward.14} parent=0 // pred_check
    _
  $region27: #{discriminator_forward.14} parent=0 // pred_check_branch
    %2269 = sbr.rel (0) target = $region29
  $region28: #{discriminator_forward.14} parent=0 // pred_region
    _
  $region29: #{discriminator_forward.14} parent=0 // pred_fallthru
    _
  // Predicated region
  $region30: #{discriminator_forward.14} parent=0 // pred_check
    _
  $region31: #{discriminator_forward.14} parent=0 // pred_check_branch
    %2271 = sbr.rel (0) target = $region33
  $region32: #{discriminator_forward.14} parent=0 // pred_region
    _
  $region33: #{discriminator_forward.14} parent=0 // pred_fallthru
    _

</llo_original>
